<compile_context>
chip_gen: v7x
topology: tpu7x:2x2x1
jax: 0.10.0
libtpu: 0.0.40
codegen_flags: <defaults>
</compile_context>

<pallas_src>
import functools
import math

import jax
import jax.numpy as jnp
from jax.experimental import pallas as pl
from jax.experimental.pallas import tpu as pltpu

# ----------------------------- model hyper-params (small) -----------------------------
BATCH = 2
MAX_LEN = 16          # seq length == max_len (required by the output module's view)
FEAT_DIM = 6
D_MODEL = 32
N_HEADS = 4
HEAD_DIM = D_MODEL // N_HEADS
N_LAYERS = 2
D_FF = 64
N_CLASSES = 5
BN_EPS = 1e-5

# lane-dense padded output buffer (logits live in the top-left (B, N_CLASSES) corner)
OUT_PAD_ROWS = 8
OUT_PAD_COLS = 128

VMEM = pltpu.MemorySpace.VMEM


def _gelu(x):
    # tanh-approx GELU (see TODO(synk) above)
    return jax.nn.gelu(x, approximate=True)


# ----------------------------- the single fused kernel -----------------------------
def fused_forward_kernel(
    # activations / masks
    x_ref, maskcol_ref, keybias_ref, pe_ref,
    # input projection
    proj_w_ref, proj_b_ref,
    # stacked per-layer transformer weights (leading dim = layer)
    in_w_ref, in_b_ref, out_w_ref, out_b_ref,
    ff1_w_ref, ff1_b_ref, ff2_w_ref, ff2_b_ref,
    bn1_s_ref, bn1_t_ref, bn2_s_ref, bn2_t_ref,
    # output head (TemporalFeatureExtractor)
    conv1_w_ref, conv1_b_ref, cbn1_s_ref, cbn1_t_ref,
    conv2_w_ref, conv2_b_ref, cbn2_s_ref, cbn2_t_ref,
    cls1_w_ref, cls1_b_ref, clsbn_s_ref, clsbn_t_ref,
    cls2_w_ref, cls2_b_ref,
    # output
    o_ref,
    *, batch, seq_len, n_heads, head_dim, n_layers):
    f32 = jnp.float32
    B, S, H, dh = batch, seq_len, n_heads, head_dim
    D = H * dh
    BS = B * S
    inv_sqrt_dh = 1.0 / math.sqrt(dh)

    # ---------------- input projection * sqrt(d_model) + fixed positional encoding -----------
    x = jnp.dot(x_ref[...], proj_w_ref[...], preferred_element_type=f32) + proj_b_ref[...]
    pe_rows = jnp.concatenate([pe_ref[...]] * B, axis=0)        # (B*S, D), batch-major tiling
    x = x * math.sqrt(D) + pe_rows

    key_bias = keybias_ref[...]                                  # (B, S) additive key-pad bias

    # ---------------- transformer encoder layers (TransformerBatchNormEncoderLayer) ----------
    for l in range(n_layers):
        qkv = jnp.dot(x, in_w_ref[l], preferred_element_type=f32) + in_b_ref[l]  # (B*S, 3D)
        q = qkv[:, 0:D]
        k = qkv[:, D:2 * D]
        v = qkv[:, 2 * D:3 * D]

        ctx_rows = []
        for b in range(B):                                       # B, H small -> full unroll
            qb = q[b * S:(b + 1) * S]
            kb = k[b * S:(b + 1) * S]
            vb = v[b * S:(b + 1) * S]
            bias_b = key_bias[b:b + 1, :]                        # (1, S) broadcast over queries
            head_outs = []
            for h in range(H):
                lo = h * dh
                hi = lo + dh
                qh = qb[:, lo:hi] * inv_sqrt_dh                  # (S, dh)
                kh = kb[:, lo:hi]
                vh = vb[:, lo:hi]
                s = jax.lax.dot_general(qh, kh, (((1,), (1,)), ((), ())),
                                        preferred_element_type=f32)   # (S, S) = q @ k^T
                s = s + bias_b
                m = jnp.max(s, axis=-1, keepdims=True)
                e = jnp.exp(s - m)
                denom = jnp.sum(e, axis=-1, keepdims=True)
                p = e * pl.reciprocal(denom, approx=True)        # EUP-slot normalize
                head_outs.append(jnp.dot(p, vh, preferred_element_type=f32))   # (S, dh)
            ctx_rows.append(jnp.concatenate(head_outs, axis=1))  # (S, D)
        ctx = jnp.concatenate(ctx_rows, axis=0)                  # (B*S, D)

        # out_proj + residual + BatchNorm1d(eval), then FFN + residual + BatchNorm1d(eval)
        attn_out = jnp.dot(ctx, out_w_ref[l], preferred_element_type=f32) + out_b_ref[l]
        x = (x + attn_out) * bn1_s_ref[l] + bn1_t_ref[l]
        hdn = _gelu(jnp.dot(x, ff1_w_ref[l], preferred_element_type=f32) + ff1_b_ref[l])
        ff = jnp.dot(hdn, ff2_w_ref[l], preferred_element_type=f32) + ff2_b_ref[l]
        x = (x + ff) * bn2_s_ref[l] + bn2_t_ref[l]

    # ---------------- act(gelu) then zero padded positions ----------------
    out = _gelu(x) * maskcol_ref[...]                            # (B*S, D)

    # ---------------- conv head: 2x (Conv1d k=3 pad=1 -> BN -> GELU) via im2col matmul --------
    rib = jax.lax.broadcasted_iota(jnp.int32, (BS, D), 0) % S    # row index within its batch
    not_first = rib != 0
    not_last = rib != (S - 1)
    zero_row = jnp.zeros((1, D), f32)

    def conv3_bn_gelu(z, wflat_ref, b_ref, s_ref, t_ref):
        # previous / next time step per row, zeroed at per-batch sequence boundaries
        prev = jnp.where(not_first, jnp.concatenate([zero_row, z[:-1]], axis=0), 0.0)
        nxt = jnp.where(not_last, jnp.concatenate([z[1:], zero_row], axis=0), 0.0)
        zcat = jnp.concatenate([prev, z, nxt], axis=1)           # (B*S, 3D) im2col rows
        y = jnp.dot(zcat, wflat_ref[...], preferred_element_type=f32) + b_ref[...]
        return _gelu(y * s_ref[...] + t_ref[...])

    f1 = conv3_bn_gelu(out, conv1_w_ref, conv1_b_ref, cbn1_s_ref, cbn1_t_ref)
    f2 = conv3_bn_gelu(f1, conv2_w_ref, conv2_b_ref, cbn2_s_ref, cbn2_t_ref)

    # ---------------- [mean, max] pooling over time, per batch ----------------
    pooled_rows = []
    for b in range(B):
        fb = f2[b * S:(b + 1) * S]                               # (S, D)
        avg = jnp.mean(fb, axis=0, keepdims=True)                # (1, D)
        mx = jnp.max(fb, axis=0, keepdims=True)                  # (1, D)
        pooled_rows.append(jnp.concatenate([avg, mx], axis=1))   # (1, 2D)
    pooled = jnp.concatenate(pooled_rows, axis=0)                # (B, 2D)

    # ---------------- classifier: Linear -> BN -> GELU (-> Dropout=id) -> Linear ----------------
    hcls = jnp.dot(pooled, cls1_w_ref[...], preferred_element_type=f32) + cls1_b_ref[...]
    hcls = _gelu(hcls * clsbn_s_ref[...] + clsbn_t_ref[...])
    logits = jnp.dot(hcls, cls2_w_ref[...], preferred_element_type=f32) + cls2_b_ref[...]

    # lane-dense padded store; wrapper slices the (B, N_CLASSES) top-left corner
    o_ref[...] = jnp.zeros(o_ref.shape, f32)
    o_ref[0:logits.shape[0], 0:logits.shape[1]] = logits


# ----------------------------- parameter init -----------------------------
def _bn_fold(key, dim):
    k1, k2, k3, k4 = jax.random.split(key, 4)
    gamma = 1.0 + 0.1 * jax.random.normal(k1, (dim,), jnp.float32)
    beta = 0.1 * jax.random.normal(k2, (dim,), jnp.float32)
    mean = 0.1 * jax.random.normal(k3, (dim,), jnp.float32)
    var = 1.0 + 0.1 * jax.random.uniform(k4, (dim,), jnp.float32)
    scale = gamma / jnp.sqrt(var + BN_EPS)
    shift = beta - mean * scale
    return scale.reshape(1, dim), shift.reshape(1, dim)


def _linear_init(key, fan_in, fan_out):
    kw, kb = jax.random.split(key)
    w = 0.02 * jax.random.normal(kw, (fan_in, fan_out), jnp.float32)
    b = 0.02 * jax.random.normal(kb, (1, fan_out), jnp.float32)
    return w, b


def init_params(key):
    keys = jax.random.split(key, 4 + N_LAYERS)
    p = {}
    # input projection
    p['proj_w'], p['proj_b'] = _linear_init(keys[0], FEAT_DIM, D_MODEL)

    # fixed sinusoidal positional encoding (max_len, d_model)
    position = jnp.arange(MAX_LEN, dtype=jnp.float32)[:, None]
    div_term = jnp.exp(jnp.arange(0, D_MODEL, 2, dtype=jnp.float32)
                       * (-math.log(10000.0) / D_MODEL))
    pe = jnp.zeros((MAX_LEN, D_MODEL), jnp.float32)
    pe = pe.at[:, 0::2].set(jnp.sin(position * div_term))
    pe = pe.at[:, 1::2].set(jnp.cos(position * div_term))
    p['pe'] = pe

    # transformer encoder layers (stacked along a leading layer dim)
    acc = {name: [] for name in ('in_w', 'in_b', 'out_w', 'out_b', 'ff1_w', 'ff1_b',
                                 'ff2_w', 'ff2_b', 'bn1_s', 'bn1_t', 'bn2_s', 'bn2_t')}
    for l in range(N_LAYERS):
        lk = jax.random.split(keys[1 + l], 6)
        w, b = _linear_init(lk[0], D_MODEL, 3 * D_MODEL); acc['in_w'].append(w); acc['in_b'].append(b)
        w, b = _linear_init(lk[1], D_MODEL, D_MODEL);     acc['out_w'].append(w); acc['out_b'].append(b)
        w, b = _linear_init(lk[2], D_MODEL, D_FF);        acc['ff1_w'].append(w); acc['ff1_b'].append(b)
        w, b = _linear_init(lk[3], D_FF, D_MODEL);        acc['ff2_w'].append(w); acc['ff2_b'].append(b)
        s, t = _bn_fold(lk[4], D_MODEL);                  acc['bn1_s'].append(s); acc['bn1_t'].append(t)
        s, t = _bn_fold(lk[5], D_MODEL);                  acc['bn2_s'].append(s); acc['bn2_t'].append(t)
    for name, vals in acc.items():
        p[name] = jnp.stack(vals, axis=0)

    # output module: TemporalFeatureExtractor
    ck = jax.random.split(keys[1 + N_LAYERS], 8)
    # conv weights stored as (K=3, C_in, C_out), flattened to (3*C_in, C_out) for im2col matmul;
    # row-block order (t-1, t, t+1) matches the in-kernel [prev, center, next] concat.
    p['conv1_w'] = (0.02 * jax.random.normal(ck[0], (3, D_MODEL, D_MODEL), jnp.float32)
                    ).reshape(3 * D_MODEL, D_MODEL)
    p['conv1_b'] = 0.02 * jax.random.normal(ck[1], (1, D_MODEL), jnp.float32)
    p['cbn1_s'], p['cbn1_t'] = _bn_fold(ck[2], D_MODEL)
    p['conv2_w'] = (0.02 * jax.random.normal(ck[3], (3, D_MODEL, D_MODEL), jnp.float32)
                    ).reshape(3 * D_MODEL, D_MODEL)
    p['conv2_b'] = 0.02 * jax.random.normal(ck[4], (1, D_MODEL), jnp.float32)
    p['cbn2_s'], p['cbn2_t'] = _bn_fold(ck[5], D_MODEL)
    p['cls1_w'], p['cls1_b'] = _linear_init(ck[6], 2 * D_MODEL, D_MODEL)
    p['clsbn_s'], p['clsbn_t'] = _bn_fold(ck[7], D_MODEL)
    p['cls2_w'], p['cls2_b'] = _linear_init(keys[2 + N_LAYERS], D_MODEL, N_CLASSES)
    return p


# ----------------------------- forward pass (single pallas_call) -----------------------------
def forward(params, X, padding_masks):
    """X: (B, S, FEAT_DIM) float32; padding_masks: (B, S) bool. Returns (B, N_CLASSES)."""
    B, S, F = X.shape
    assert B <= OUT_PAD_ROWS and N_CLASSES <= OUT_PAD_COLS

    # batch-major row flatten (row = b*S + s); trivial prep ops fuse into the surrounding jit
    x_flat = X.reshape(B * S, F).astype(jnp.float32)
    maskcol = padding_masks.astype(jnp.float32).reshape(B * S, 1)            # multiplicative
    key_bias = jnp.where(padding_masks, 0.0, -1e30).astype(jnp.float32)      # (B, S) additive

    args = [
        x_flat, maskcol, key_bias, params['pe'],
        params['proj_w'], params['proj_b'],
        params['in_w'], params['in_b'], params['out_w'], params['out_b'],
        params['ff1_w'], params['ff1_b'], params['ff2_w'], params['ff2_b'],
        params['bn1_s'], params['bn1_t'], params['bn2_s'], params['bn2_t'],
        params['conv1_w'], params['conv1_b'], params['cbn1_s'], params['cbn1_t'],
        params['conv2_w'], params['conv2_b'], params['cbn2_s'], params['cbn2_t'],
        params['cls1_w'], params['cls1_b'], params['clsbn_s'], params['clsbn_t'],
        params['cls2_w'], params['cls2_b'],
    ]

    kernel = functools.partial(
        fused_forward_kernel,
        batch=B, seq_len=S, n_heads=N_HEADS, head_dim=HEAD_DIM, n_layers=N_LAYERS)

    padded = pl.pallas_call(
        kernel,
        out_shape=jax.ShapeDtypeStruct((OUT_PAD_ROWS, OUT_PAD_COLS), jnp.float32),
        in_specs=[pl.BlockSpec(memory_space=VMEM) for _ in args],
        out_specs=pl.BlockSpec(memory_space=VMEM),
    )(*args)

    return padded[:B, :N_CLASSES]


forward_jit = jax.jit(forward)


# ----------------------------- main -----------------------------
if __name__ == "__main__":
    key = jax.random.PRNGKey(0)
    pk, xk = jax.random.split(key)
    params = init_params(pk)

    X = jax.random.normal(xk, (BATCH, MAX_LEN, FEAT_DIM), jnp.float32)
    # deterministic padding mask: first sample full length, second sample last 4 steps padded
    lengths = jnp.array([MAX_LEN, MAX_LEN - 4])
    padding_masks = jnp.arange(MAX_LEN)[None, :] < lengths[:, None]           # (B, S) bool

    out = forward_jit(params, X, padding_masks)
    out = jax.block_until_ready(out)

    assert out.shape == (BATCH, N_CLASSES)
    assert bool(jnp.all(jnp.isfinite(out)))
    print("KERNEL_OK")
</pallas_src>

<mosaic_0001>
module attributes {stable_mosaic.version = 11 : i64} {
  func.func @fused_forward_kernel(%arg0: memref<32x6xf32, #tpu.memory_space<vmem>>, %arg1: memref<32x1xf32, #tpu.memory_space<vmem>>, %arg2: memref<2x16xf32, #tpu.memory_space<vmem>>, %arg3: memref<16x32xf32, #tpu.memory_space<vmem>>, %arg4: memref<6x32xf32, #tpu.memory_space<vmem>>, %arg5: memref<1x32xf32, #tpu.memory_space<vmem>>, %arg6: memref<2x32x96xf32, #tpu.memory_space<vmem>>, %arg7: memref<2x1x96xf32, #tpu.memory_space<vmem>>, %arg8: memref<2x32x32xf32, #tpu.memory_space<vmem>>, %arg9: memref<2x1x32xf32, #tpu.memory_space<vmem>>, %arg10: memref<2x32x64xf32, #tpu.memory_space<vmem>>, %arg11: memref<2x1x64xf32, #tpu.memory_space<vmem>>, %arg12: memref<2x64x32xf32, #tpu.memory_space<vmem>>, %arg13: memref<2x1x32xf32, #tpu.memory_space<vmem>>, %arg14: memref<2x1x32xf32, #tpu.memory_space<vmem>>, %arg15: memref<2x1x32xf32, #tpu.memory_space<vmem>>, %arg16: memref<2x1x32xf32, #tpu.memory_space<vmem>>, %arg17: memref<2x1x32xf32, #tpu.memory_space<vmem>>, %arg18: memref<96x32xf32, #tpu.memory_space<vmem>>, %arg19: memref<1x32xf32, #tpu.memory_space<vmem>>, %arg20: memref<1x32xf32, #tpu.memory_space<vmem>>, %arg21: memref<1x32xf32, #tpu.memory_space<vmem>>, %arg22: memref<96x32xf32, #tpu.memory_space<vmem>>, %arg23: memref<1x32xf32, #tpu.memory_space<vmem>>, %arg24: memref<1x32xf32, #tpu.memory_space<vmem>>, %arg25: memref<1x32xf32, #tpu.memory_space<vmem>>, %arg26: memref<64x32xf32, #tpu.memory_space<vmem>>, %arg27: memref<1x32xf32, #tpu.memory_space<vmem>>, %arg28: memref<1x32xf32, #tpu.memory_space<vmem>>, %arg29: memref<1x32xf32, #tpu.memory_space<vmem>>, %arg30: memref<32x5xf32, #tpu.memory_space<vmem>>, %arg31: memref<1x5xf32, #tpu.memory_space<vmem>>, %arg32: memref<8x128xf32, #tpu.memory_space<vmem>>) attributes {dimension_semantics = [], scalar_prefetch = 0 : i64, scratch_operands = 0 : i64, tpu.core_type = #tpu.core_type<tc>} {
    %c0 = arith.constant 0 : index
    %c0_0 = arith.constant 0 : index
    %0 = vector.load %arg0[%c0, %c0_0] : memref<32x6xf32, #tpu.memory_space<vmem>>, vector<32x6xf32>
    %c0_1 = arith.constant 0 : index
    %c0_2 = arith.constant 0 : index
    %1 = vector.load %arg4[%c0_1, %c0_2] : memref<6x32xf32, #tpu.memory_space<vmem>>, vector<6x32xf32>
    %cst = arith.constant dense<0.000000e+00> : vector<32x32xf32>
    %2 = tpu.matmul %0, %1, %cst {dimension_numbers = #tpu.dot_dimension_numbers<[1], [0], [0], [1], [0, 0, 1, 1], [], []>} : vector<32x6xf32>, vector<6x32xf32>, vector<32x32xf32> -> vector<32x32xf32>
    %c0_3 = arith.constant 0 : index
    %c0_4 = arith.constant 0 : index
    %3 = vector.load %arg5[%c0_3, %c0_4] : memref<1x32xf32, #tpu.memory_space<vmem>>, vector<1x32xf32>
    %4 = vector.broadcast %3 : vector<1x32xf32> to vector<32x32xf32>
    %5 = arith.addf %2, %4 : vector<32x32xf32>
    %c0_5 = arith.constant 0 : index
    %c0_6 = arith.constant 0 : index
    %6 = vector.load %arg3[%c0_5, %c0_6] : memref<16x32xf32, #tpu.memory_space<vmem>>, vector<16x32xf32>
    %7 = tpu.concatenate %6, %6 in 0 : vector<16x32xf32>, vector<16x32xf32> -> vector<32x32xf32>
    %cst_7 = arith.constant 5.65685415 : f32
    %8 = vector.broadcast %cst_7 : f32 to vector<32x32xf32>
    %9 = arith.mulf %5, %8 : vector<32x32xf32>
    %10 = arith.addf %9, %7 : vector<32x32xf32>
    %c0_8 = arith.constant 0 : index
    %c0_9 = arith.constant 0 : index
    %11 = vector.load %arg2[%c0_8, %c0_9] : memref<2x16xf32, #tpu.memory_space<vmem>>, vector<2x16xf32>
    %c0_10 = arith.constant 0 : index
    %c0_11 = arith.constant 0 : index
    %c0_12 = arith.constant 0 : index
    %12 = vector.load %arg6[%c0_10, %c0_11, %c0_12] : memref<2x32x96xf32, #tpu.memory_space<vmem>>, vector<1x32x96xf32>
    %13 = vector.shape_cast %12 : vector<1x32x96xf32> to vector<32x96xf32>
    %cst_13 = arith.constant dense<0.000000e+00> : vector<32x96xf32>
    %14 = tpu.matmul %10, %13, %cst_13 {dimension_numbers = #tpu.dot_dimension_numbers<[1], [0], [0], [1], [0, 0, 1, 1], [], []>} : vector<32x32xf32>, vector<32x96xf32>, vector<32x96xf32> -> vector<32x96xf32>
    %c0_14 = arith.constant 0 : index
    %c0_15 = arith.constant 0 : index
    %c0_16 = arith.constant 0 : index
    %15 = vector.load %arg7[%c0_14, %c0_15, %c0_16] : memref<2x1x96xf32, #tpu.memory_space<vmem>>, vector<1x1x96xf32>
    %16 = vector.shape_cast %15 : vector<1x1x96xf32> to vector<1x96xf32>
    %17 = vector.broadcast %16 : vector<1x96xf32> to vector<32x96xf32>
    %18 = arith.addf %14, %17 : vector<32x96xf32>
    %19 = vector.extract_strided_slice %18 {offsets = [0, 0], sizes = [32, 32], strides = [1, 1]} : vector<32x96xf32> to vector<32x32xf32>
    %20 = vector.extract_strided_slice %18 {offsets = [0, 32], sizes = [32, 32], strides = [1, 1]} : vector<32x96xf32> to vector<32x32xf32>
    %21 = vector.extract_strided_slice %18 {offsets = [0, 64], sizes = [32, 32], strides = [1, 1]} : vector<32x96xf32> to vector<32x32xf32>
    %22 = vector.extract_strided_slice %19 {offsets = [0, 0], sizes = [16, 32], strides = [1, 1]} : vector<32x32xf32> to vector<16x32xf32>
    %23 = vector.extract_strided_slice %20 {offsets = [0, 0], sizes = [16, 32], strides = [1, 1]} : vector<32x32xf32> to vector<16x32xf32>
    %24 = vector.extract_strided_slice %21 {offsets = [0, 0], sizes = [16, 32], strides = [1, 1]} : vector<32x32xf32> to vector<16x32xf32>
    %25 = vector.extract_strided_slice %11 {offsets = [0, 0], sizes = [1, 16], strides = [1, 1]} : vector<2x16xf32> to vector<1x16xf32>
    %26 = vector.extract_strided_slice %22 {offsets = [0, 0], sizes = [16, 8], strides = [1, 1]} : vector<16x32xf32> to vector<16x8xf32>
    %cst_17 = arith.constant 0.353553385 : f32
    %27 = vector.broadcast %cst_17 : f32 to vector<16x8xf32>
    %28 = arith.mulf %26, %27 : vector<16x8xf32>
    %29 = vector.extract_strided_slice %23 {offsets = [0, 0], sizes = [16, 8], strides = [1, 1]} : vector<16x32xf32> to vector<16x8xf32>
    %30 = vector.extract_strided_slice %24 {offsets = [0, 0], sizes = [16, 8], strides = [1, 1]} : vector<16x32xf32> to vector<16x8xf32>
    %cst_18 = arith.constant dense<0.000000e+00> : vector<16x16xf32>
    %31 = tpu.matmul %28, %29, %cst_18 {dimension_numbers = #tpu.dot_dimension_numbers<[1], [1], [0], [0], [0, 0, 1, 0], [], []>} : vector<16x8xf32>, vector<16x8xf32>, vector<16x16xf32> -> vector<16x16xf32>
    %32 = vector.broadcast %25 : vector<1x16xf32> to vector<16x16xf32>
    %33 = arith.addf %31, %32 : vector<16x16xf32>
    %cst_19 = arith.constant dense<0xFF800000> : vector<16xf32>
    %34 = vector.multi_reduction <maximumf>, %33, %cst_19 [1] : vector<16x16xf32> to vector<16xf32>
    %35 = vector.shape_cast %34 : vector<16xf32> to vector<16x1xf32>
    %36 = vector.broadcast %35 : vector<16x1xf32> to vector<16x16xf32>
    %37 = arith.subf %33, %36 : vector<16x16xf32>
    %38 = math.exp %37 : vector<16x16xf32>
    %cst_20 = arith.constant dense<0.000000e+00> : vector<16xf32>
    %39 = vector.multi_reduction <add>, %38, %cst_20 [1] : vector<16x16xf32> to vector<16xf32>
    %40 = vector.shape_cast %39 : vector<16xf32> to vector<16x1xf32>
    %41 = tpu.reciprocal %40 {approx = true} : vector<16x1xf32> -> vector<16x1xf32>
    %42 = vector.broadcast %41 : vector<16x1xf32> to vector<16x16xf32>
    %43 = arith.mulf %38, %42 : vector<16x16xf32>
    %cst_21 = arith.constant dense<0.000000e+00> : vector<16x8xf32>
    %44 = tpu.matmul %43, %30, %cst_21 {dimension_numbers = #tpu.dot_dimension_numbers<[1], [0], [0], [1], [0, 0, 1, 1], [], []>} : vector<16x16xf32>, vector<16x8xf32>, vector<16x8xf32> -> vector<16x8xf32>
    %45 = vector.extract_strided_slice %22 {offsets = [0, 8], sizes = [16, 8], strides = [1, 1]} : vector<16x32xf32> to vector<16x8xf32>
    %cst_22 = arith.constant 0.353553385 : f32
    %46 = vector.broadcast %cst_22 : f32 to vector<16x8xf32>
    %47 = arith.mulf %45, %46 : vector<16x8xf32>
    %48 = vector.extract_strided_slice %23 {offsets = [0, 8], sizes = [16, 8], strides = [1, 1]} : vector<16x32xf32> to vector<16x8xf32>
    %49 = vector.extract_strided_slice %24 {offsets = [0, 8], sizes = [16, 8], strides = [1, 1]} : vector<16x32xf32> to vector<16x8xf32>
    %cst_23 = arith.constant dense<0.000000e+00> : vector<16x16xf32>
    %50 = tpu.matmul %47, %48, %cst_23 {dimension_numbers = #tpu.dot_dimension_numbers<[1], [1], [0], [0], [0, 0, 1, 0], [], []>} : vector<16x8xf32>, vector<16x8xf32>, vector<16x16xf32> -> vector<16x16xf32>
    %51 = vector.broadcast %25 : vector<1x16xf32> to vector<16x16xf32>
    %52 = arith.addf %50, %51 : vector<16x16xf32>
    %cst_24 = arith.constant dense<0xFF800000> : vector<16xf32>
    %53 = vector.multi_reduction <maximumf>, %52, %cst_24 [1] : vector<16x16xf32> to vector<16xf32>
    %54 = vector.shape_cast %53 : vector<16xf32> to vector<16x1xf32>
    %55 = vector.broadcast %54 : vector<16x1xf32> to vector<16x16xf32>
    %56 = arith.subf %52, %55 : vector<16x16xf32>
    %57 = math.exp %56 : vector<16x16xf32>
    %cst_25 = arith.constant dense<0.000000e+00> : vector<16xf32>
    %58 = vector.multi_reduction <add>, %57, %cst_25 [1] : vector<16x16xf32> to vector<16xf32>
    %59 = vector.shape_cast %58 : vector<16xf32> to vector<16x1xf32>
    %60 = tpu.reciprocal %59 {approx = true} : vector<16x1xf32> -> vector<16x1xf32>
    %61 = vector.broadcast %60 : vector<16x1xf32> to vector<16x16xf32>
    %62 = arith.mulf %57, %61 : vector<16x16xf32>
    %cst_26 = arith.constant dense<0.000000e+00> : vector<16x8xf32>
    %63 = tpu.matmul %62, %49, %cst_26 {dimension_numbers = #tpu.dot_dimension_numbers<[1], [0], [0], [1], [0, 0, 1, 1], [], []>} : vector<16x16xf32>, vector<16x8xf32>, vector<16x8xf32> -> vector<16x8xf32>
    %64 = vector.extract_strided_slice %22 {offsets = [0, 16], sizes = [16, 8], strides = [1, 1]} : vector<16x32xf32> to vector<16x8xf32>
    %cst_27 = arith.constant 0.353553385 : f32
    %65 = vector.broadcast %cst_27 : f32 to vector<16x8xf32>
    %66 = arith.mulf %64, %65 : vector<16x8xf32>
    %67 = vector.extract_strided_slice %23 {offsets = [0, 16], sizes = [16, 8], strides = [1, 1]} : vector<16x32xf32> to vector<16x8xf32>
    %68 = vector.extract_strided_slice %24 {offsets = [0, 16], sizes = [16, 8], strides = [1, 1]} : vector<16x32xf32> to vector<16x8xf32>
    %cst_28 = arith.constant dense<0.000000e+00> : vector<16x16xf32>
    %69 = tpu.matmul %66, %67, %cst_28 {dimension_numbers = #tpu.dot_dimension_numbers<[1], [1], [0], [0], [0, 0, 1, 0], [], []>} : vector<16x8xf32>, vector<16x8xf32>, vector<16x16xf32> -> vector<16x16xf32>
    %70 = vector.broadcast %25 : vector<1x16xf32> to vector<16x16xf32>
    %71 = arith.addf %69, %70 : vector<16x16xf32>
    %cst_29 = arith.constant dense<0xFF800000> : vector<16xf32>
    %72 = vector.multi_reduction <maximumf>, %71, %cst_29 [1] : vector<16x16xf32> to vector<16xf32>
    %73 = vector.shape_cast %72 : vector<16xf32> to vector<16x1xf32>
    %74 = vector.broadcast %73 : vector<16x1xf32> to vector<16x16xf32>
    %75 = arith.subf %71, %74 : vector<16x16xf32>
    %76 = math.exp %75 : vector<16x16xf32>
    %cst_30 = arith.constant dense<0.000000e+00> : vector<16xf32>
    %77 = vector.multi_reduction <add>, %76, %cst_30 [1] : vector<16x16xf32> to vector<16xf32>
    %78 = vector.shape_cast %77 : vector<16xf32> to vector<16x1xf32>
    %79 = tpu.reciprocal %78 {approx = true} : vector<16x1xf32> -> vector<16x1xf32>
    %80 = vector.broadcast %79 : vector<16x1xf32> to vector<16x16xf32>
    %81 = arith.mulf %76, %80 : vector<16x16xf32>
    %cst_31 = arith.constant dense<0.000000e+00> : vector<16x8xf32>
    %82 = tpu.matmul %81, %68, %cst_31 {dimension_numbers = #tpu.dot_dimension_numbers<[1], [0], [0], [1], [0, 0, 1, 1], [], []>} : vector<16x16xf32>, vector<16x8xf32>, vector<16x8xf32> -> vector<16x8xf32>
    %83 = vector.extract_strided_slice %22 {offsets = [0, 24], sizes = [16, 8], strides = [1, 1]} : vector<16x32xf32> to vector<16x8xf32>
    %cst_32 = arith.constant 0.353553385 : f32
    %84 = vector.broadcast %cst_32 : f32 to vector<16x8xf32>
    %85 = arith.mulf %83, %84 : vector<16x8xf32>
    %86 = vector.extract_strided_slice %23 {offsets = [0, 24], sizes = [16, 8], strides = [1, 1]} : vector<16x32xf32> to vector<16x8xf32>
    %87 = vector.extract_strided_slice %24 {offsets = [0, 24], sizes = [16, 8], strides = [1, 1]} : vector<16x32xf32> to vector<16x8xf32>
    %cst_33 = arith.constant dense<0.000000e+00> : vector<16x16xf32>
    %88 = tpu.matmul %85, %86, %cst_33 {dimension_numbers = #tpu.dot_dimension_numbers<[1], [1], [0], [0], [0, 0, 1, 0], [], []>} : vector<16x8xf32>, vector<16x8xf32>, vector<16x16xf32> -> vector<16x16xf32>
    %89 = vector.broadcast %25 : vector<1x16xf32> to vector<16x16xf32>
    %90 = arith.addf %88, %89 : vector<16x16xf32>
    %cst_34 = arith.constant dense<0xFF800000> : vector<16xf32>
    %91 = vector.multi_reduction <maximumf>, %90, %cst_34 [1] : vector<16x16xf32> to vector<16xf32>
    %92 = vector.shape_cast %91 : vector<16xf32> to vector<16x1xf32>
    %93 = vector.broadcast %92 : vector<16x1xf32> to vector<16x16xf32>
    %94 = arith.subf %90, %93 : vector<16x16xf32>
    %95 = math.exp %94 : vector<16x16xf32>
    %cst_35 = arith.constant dense<0.000000e+00> : vector<16xf32>
    %96 = vector.multi_reduction <add>, %95, %cst_35 [1] : vector<16x16xf32> to vector<16xf32>
    %97 = vector.shape_cast %96 : vector<16xf32> to vector<16x1xf32>
    %98 = tpu.reciprocal %97 {approx = true} : vector<16x1xf32> -> vector<16x1xf32>
    %99 = vector.broadcast %98 : vector<16x1xf32> to vector<16x16xf32>
    %100 = arith.mulf %95, %99 : vector<16x16xf32>
    %cst_36 = arith.constant dense<0.000000e+00> : vector<16x8xf32>
    %101 = tpu.matmul %100, %87, %cst_36 {dimension_numbers = #tpu.dot_dimension_numbers<[1], [0], [0], [1], [0, 0, 1, 1], [], []>} : vector<16x16xf32>, vector<16x8xf32>, vector<16x8xf32> -> vector<16x8xf32>
    %102 = tpu.concatenate %44, %63, %82, %101 in 1 : vector<16x8xf32>, vector<16x8xf32>, vector<16x8xf32>, vector<16x8xf32> -> vector<16x32xf32>
    %103 = vector.extract_strided_slice %19 {offsets = [16, 0], sizes = [16, 32], strides = [1, 1]} : vector<32x32xf32> to vector<16x32xf32>
    %104 = vector.extract_strided_slice %20 {offsets = [16, 0], sizes = [16, 32], strides = [1, 1]} : vector<32x32xf32> to vector<16x32xf32>
    %105 = vector.extract_strided_slice %21 {offsets = [16, 0], sizes = [16, 32], strides = [1, 1]} : vector<32x32xf32> to vector<16x32xf32>
    %106 = vector.extract_strided_slice %11 {offsets = [1, 0], sizes = [1, 16], strides = [1, 1]} : vector<2x16xf32> to vector<1x16xf32>
    %107 = vector.extract_strided_slice %103 {offsets = [0, 0], sizes = [16, 8], strides = [1, 1]} : vector<16x32xf32> to vector<16x8xf32>
    %cst_37 = arith.constant 0.353553385 : f32
    %108 = vector.broadcast %cst_37 : f32 to vector<16x8xf32>
    %109 = arith.mulf %107, %108 : vector<16x8xf32>
    %110 = vector.extract_strided_slice %104 {offsets = [0, 0], sizes = [16, 8], strides = [1, 1]} : vector<16x32xf32> to vector<16x8xf32>
    %111 = vector.extract_strided_slice %105 {offsets = [0, 0], sizes = [16, 8], strides = [1, 1]} : vector<16x32xf32> to vector<16x8xf32>
    %cst_38 = arith.constant dense<0.000000e+00> : vector<16x16xf32>
    %112 = tpu.matmul %109, %110, %cst_38 {dimension_numbers = #tpu.dot_dimension_numbers<[1], [1], [0], [0], [0, 0, 1, 0], [], []>} : vector<16x8xf32>, vector<16x8xf32>, vector<16x16xf32> -> vector<16x16xf32>
    %113 = vector.broadcast %106 : vector<1x16xf32> to vector<16x16xf32>
    %114 = arith.addf %112, %113 : vector<16x16xf32>
    %cst_39 = arith.constant dense<0xFF800000> : vector<16xf32>
    %115 = vector.multi_reduction <maximumf>, %114, %cst_39 [1] : vector<16x16xf32> to vector<16xf32>
    %116 = vector.shape_cast %115 : vector<16xf32> to vector<16x1xf32>
    %117 = vector.broadcast %116 : vector<16x1xf32> to vector<16x16xf32>
    %118 = arith.subf %114, %117 : vector<16x16xf32>
    %119 = math.exp %118 : vector<16x16xf32>
    %cst_40 = arith.constant dense<0.000000e+00> : vector<16xf32>
    %120 = vector.multi_reduction <add>, %119, %cst_40 [1] : vector<16x16xf32> to vector<16xf32>
    %121 = vector.shape_cast %120 : vector<16xf32> to vector<16x1xf32>
    %122 = tpu.reciprocal %121 {approx = true} : vector<16x1xf32> -> vector<16x1xf32>
    %123 = vector.broadcast %122 : vector<16x1xf32> to vector<16x16xf32>
    %124 = arith.mulf %119, %123 : vector<16x16xf32>
    %cst_41 = arith.constant dense<0.000000e+00> : vector<16x8xf32>
    %125 = tpu.matmul %124, %111, %cst_41 {dimension_numbers = #tpu.dot_dimension_numbers<[1], [0], [0], [1], [0, 0, 1, 1], [], []>} : vector<16x16xf32>, vector<16x8xf32>, vector<16x8xf32> -> vector<16x8xf32>
    %126 = vector.extract_strided_slice %103 {offsets = [0, 8], sizes = [16, 8], strides = [1, 1]} : vector<16x32xf32> to vector<16x8xf32>
    %cst_42 = arith.constant 0.353553385 : f32
    %127 = vector.broadcast %cst_42 : f32 to vector<16x8xf32>
    %128 = arith.mulf %126, %127 : vector<16x8xf32>
    %129 = vector.extract_strided_slice %104 {offsets = [0, 8], sizes = [16, 8], strides = [1, 1]} : vector<16x32xf32> to vector<16x8xf32>
    %130 = vector.extract_strided_slice %105 {offsets = [0, 8], sizes = [16, 8], strides = [1, 1]} : vector<16x32xf32> to vector<16x8xf32>
    %cst_43 = arith.constant dense<0.000000e+00> : vector<16x16xf32>
    %131 = tpu.matmul %128, %129, %cst_43 {dimension_numbers = #tpu.dot_dimension_numbers<[1], [1], [0], [0], [0, 0, 1, 0], [], []>} : vector<16x8xf32>, vector<16x8xf32>, vector<16x16xf32> -> vector<16x16xf32>
    %132 = vector.broadcast %106 : vector<1x16xf32> to vector<16x16xf32>
    %133 = arith.addf %131, %132 : vector<16x16xf32>
    %cst_44 = arith.constant dense<0xFF800000> : vector<16xf32>
    %134 = vector.multi_reduction <maximumf>, %133, %cst_44 [1] : vector<16x16xf32> to vector<16xf32>
    %135 = vector.shape_cast %134 : vector<16xf32> to vector<16x1xf32>
    %136 = vector.broadcast %135 : vector<16x1xf32> to vector<16x16xf32>
    %137 = arith.subf %133, %136 : vector<16x16xf32>
    %138 = math.exp %137 : vector<16x16xf32>
    %cst_45 = arith.constant dense<0.000000e+00> : vector<16xf32>
    %139 = vector.multi_reduction <add>, %138, %cst_45 [1] : vector<16x16xf32> to vector<16xf32>
    %140 = vector.shape_cast %139 : vector<16xf32> to vector<16x1xf32>
    %141 = tpu.reciprocal %140 {approx = true} : vector<16x1xf32> -> vector<16x1xf32>
    %142 = vector.broadcast %141 : vector<16x1xf32> to vector<16x16xf32>
    %143 = arith.mulf %138, %142 : vector<16x16xf32>
    %cst_46 = arith.constant dense<0.000000e+00> : vector<16x8xf32>
    %144 = tpu.matmul %143, %130, %cst_46 {dimension_numbers = #tpu.dot_dimension_numbers<[1], [0], [0], [1], [0, 0, 1, 1], [], []>} : vector<16x16xf32>, vector<16x8xf32>, vector<16x8xf32> -> vector<16x8xf32>
    %145 = vector.extract_strided_slice %103 {offsets = [0, 16], sizes = [16, 8], strides = [1, 1]} : vector<16x32xf32> to vector<16x8xf32>
    %cst_47 = arith.constant 0.353553385 : f32
    %146 = vector.broadcast %cst_47 : f32 to vector<16x8xf32>
    %147 = arith.mulf %145, %146 : vector<16x8xf32>
    %148 = vector.extract_strided_slice %104 {offsets = [0, 16], sizes = [16, 8], strides = [1, 1]} : vector<16x32xf32> to vector<16x8xf32>
    %149 = vector.extract_strided_slice %105 {offsets = [0, 16], sizes = [16, 8], strides = [1, 1]} : vector<16x32xf32> to vector<16x8xf32>
    %cst_48 = arith.constant dense<0.000000e+00> : vector<16x16xf32>
    %150 = tpu.matmul %147, %148, %cst_48 {dimension_numbers = #tpu.dot_dimension_numbers<[1], [1], [0], [0], [0, 0, 1, 0], [], []>} : vector<16x8xf32>, vector<16x8xf32>, vector<16x16xf32> -> vector<16x16xf32>
    %151 = vector.broadcast %106 : vector<1x16xf32> to vector<16x16xf32>
    %152 = arith.addf %150, %151 : vector<16x16xf32>
    %cst_49 = arith.constant dense<0xFF800000> : vector<16xf32>
    %153 = vector.multi_reduction <maximumf>, %152, %cst_49 [1] : vector<16x16xf32> to vector<16xf32>
    %154 = vector.shape_cast %153 : vector<16xf32> to vector<16x1xf32>
    %155 = vector.broadcast %154 : vector<16x1xf32> to vector<16x16xf32>
    %156 = arith.subf %152, %155 : vector<16x16xf32>
    %157 = math.exp %156 : vector<16x16xf32>
    %cst_50 = arith.constant dense<0.000000e+00> : vector<16xf32>
    %158 = vector.multi_reduction <add>, %157, %cst_50 [1] : vector<16x16xf32> to vector<16xf32>
    %159 = vector.shape_cast %158 : vector<16xf32> to vector<16x1xf32>
    %160 = tpu.reciprocal %159 {approx = true} : vector<16x1xf32> -> vector<16x1xf32>
    %161 = vector.broadcast %160 : vector<16x1xf32> to vector<16x16xf32>
    %162 = arith.mulf %157, %161 : vector<16x16xf32>
    %cst_51 = arith.constant dense<0.000000e+00> : vector<16x8xf32>
    %163 = tpu.matmul %162, %149, %cst_51 {dimension_numbers = #tpu.dot_dimension_numbers<[1], [0], [0], [1], [0, 0, 1, 1], [], []>} : vector<16x16xf32>, vector<16x8xf32>, vector<16x8xf32> -> vector<16x8xf32>
    %164 = vector.extract_strided_slice %103 {offsets = [0, 24], sizes = [16, 8], strides = [1, 1]} : vector<16x32xf32> to vector<16x8xf32>
    %cst_52 = arith.constant 0.353553385 : f32
    %165 = vector.broadcast %cst_52 : f32 to vector<16x8xf32>
    %166 = arith.mulf %164, %165 : vector<16x8xf32>
    %167 = vector.extract_strided_slice %104 {offsets = [0, 24], sizes = [16, 8], strides = [1, 1]} : vector<16x32xf32> to vector<16x8xf32>
    %168 = vector.extract_strided_slice %105 {offsets = [0, 24], sizes = [16, 8], strides = [1, 1]} : vector<16x32xf32> to vector<16x8xf32>
    %cst_53 = arith.constant dense<0.000000e+00> : vector<16x16xf32>
    %169 = tpu.matmul %166, %167, %cst_53 {dimension_numbers = #tpu.dot_dimension_numbers<[1], [1], [0], [0], [0, 0, 1, 0], [], []>} : vector<16x8xf32>, vector<16x8xf32>, vector<16x16xf32> -> vector<16x16xf32>
    %170 = vector.broadcast %106 : vector<1x16xf32> to vector<16x16xf32>
    %171 = arith.addf %169, %170 : vector<16x16xf32>
    %cst_54 = arith.constant dense<0xFF800000> : vector<16xf32>
    %172 = vector.multi_reduction <maximumf>, %171, %cst_54 [1] : vector<16x16xf32> to vector<16xf32>
    %173 = vector.shape_cast %172 : vector<16xf32> to vector<16x1xf32>
    %174 = vector.broadcast %173 : vector<16x1xf32> to vector<16x16xf32>
    %175 = arith.subf %171, %174 : vector<16x16xf32>
    %176 = math.exp %175 : vector<16x16xf32>
    %cst_55 = arith.constant dense<0.000000e+00> : vector<16xf32>
    %177 = vector.multi_reduction <add>, %176, %cst_55 [1] : vector<16x16xf32> to vector<16xf32>
    %178 = vector.shape_cast %177 : vector<16xf32> to vector<16x1xf32>
    %179 = tpu.reciprocal %178 {approx = true} : vector<16x1xf32> -> vector<16x1xf32>
    %180 = vector.broadcast %179 : vector<16x1xf32> to vector<16x16xf32>
    %181 = arith.mulf %176, %180 : vector<16x16xf32>
    %cst_56 = arith.constant dense<0.000000e+00> : vector<16x8xf32>
    %182 = tpu.matmul %181, %168, %cst_56 {dimension_numbers = #tpu.dot_dimension_numbers<[1], [0], [0], [1], [0, 0, 1, 1], [], []>} : vector<16x16xf32>, vector<16x8xf32>, vector<16x8xf32> -> vector<16x8xf32>
    %183 = tpu.concatenate %125, %144, %163, %182 in 1 : vector<16x8xf32>, vector<16x8xf32>, vector<16x8xf32>, vector<16x8xf32> -> vector<16x32xf32>
    %184 = tpu.concatenate %102, %183 in 0 : vector<16x32xf32>, vector<16x32xf32> -> vector<32x32xf32>
    %c0_57 = arith.constant 0 : index
    %c0_58 = arith.constant 0 : index
    %c0_59 = arith.constant 0 : index
    %185 = vector.load %arg8[%c0_57, %c0_58, %c0_59] : memref<2x32x32xf32, #tpu.memory_space<vmem>>, vector<1x32x32xf32>
    %186 = vector.shape_cast %185 : vector<1x32x32xf32> to vector<32x32xf32>
    %cst_60 = arith.constant dense<0.000000e+00> : vector<32x32xf32>
    %187 = tpu.matmul %184, %186, %cst_60 {dimension_numbers = #tpu.dot_dimension_numbers<[1], [0], [0], [1], [0, 0, 1, 1], [], []>} : vector<32x32xf32>, vector<32x32xf32>, vector<32x32xf32> -> vector<32x32xf32>
    %c0_61 = arith.constant 0 : index
    %c0_62 = arith.constant 0 : index
    %c0_63 = arith.constant 0 : index
    %188 = vector.load %arg9[%c0_61, %c0_62, %c0_63] : memref<2x1x32xf32, #tpu.memory_space<vmem>>, vector<1x1x32xf32>
    %189 = vector.shape_cast %188 : vector<1x1x32xf32> to vector<1x32xf32>
    %190 = vector.broadcast %189 : vector<1x32xf32> to vector<32x32xf32>
    %191 = arith.addf %187, %190 : vector<32x32xf32>
    %192 = arith.addf %10, %191 : vector<32x32xf32>
    %c0_64 = arith.constant 0 : index
    %c0_65 = arith.constant 0 : index
    %c0_66 = arith.constant 0 : index
    %193 = vector.load %arg14[%c0_64, %c0_65, %c0_66] : memref<2x1x32xf32, #tpu.memory_space<vmem>>, vector<1x1x32xf32>
    %194 = vector.shape_cast %193 : vector<1x1x32xf32> to vector<1x32xf32>
    %195 = vector.broadcast %194 : vector<1x32xf32> to vector<32x32xf32>
    %196 = arith.mulf %192, %195 : vector<32x32xf32>
    %c0_67 = arith.constant 0 : index
    %c0_68 = arith.constant 0 : index
    %c0_69 = arith.constant 0 : index
    %197 = vector.load %arg15[%c0_67, %c0_68, %c0_69] : memref<2x1x32xf32, #tpu.memory_space<vmem>>, vector<1x1x32xf32>
    %198 = vector.shape_cast %197 : vector<1x1x32xf32> to vector<1x32xf32>
    %199 = vector.broadcast %198 : vector<1x32xf32> to vector<32x32xf32>
    %200 = arith.addf %196, %199 : vector<32x32xf32>
    %c0_70 = arith.constant 0 : index
    %c0_71 = arith.constant 0 : index
    %c0_72 = arith.constant 0 : index
    %201 = vector.load %arg10[%c0_70, %c0_71, %c0_72] : memref<2x32x64xf32, #tpu.memory_space<vmem>>, vector<1x32x64xf32>
    %202 = vector.shape_cast %201 : vector<1x32x64xf32> to vector<32x64xf32>
    %cst_73 = arith.constant dense<0.000000e+00> : vector<32x64xf32>
    %203 = tpu.matmul %200, %202, %cst_73 {dimension_numbers = #tpu.dot_dimension_numbers<[1], [0], [0], [1], [0, 0, 1, 1], [], []>} : vector<32x32xf32>, vector<32x64xf32>, vector<32x64xf32> -> vector<32x64xf32>
    %c0_74 = arith.constant 0 : index
    %c0_75 = arith.constant 0 : index
    %c0_76 = arith.constant 0 : index
    %204 = vector.load %arg11[%c0_74, %c0_75, %c0_76] : memref<2x1x64xf32, #tpu.memory_space<vmem>>, vector<1x1x64xf32>
    %205 = vector.shape_cast %204 : vector<1x1x64xf32> to vector<1x64xf32>
    %206 = vector.broadcast %205 : vector<1x64xf32> to vector<32x64xf32>
    %207 = arith.addf %203, %206 : vector<32x64xf32>
    %208 = arith.mulf %207, %207 : vector<32x64xf32>
    %209 = arith.mulf %207, %208 : vector<32x64xf32>
    %cst_77 = arith.constant 4.471500e-02 : f32
    %210 = vector.broadcast %cst_77 : f32 to vector<32x64xf32>
    %211 = arith.mulf %210, %209 : vector<32x64xf32>
    %212 = arith.addf %207, %211 : vector<32x64xf32>
    %cst_78 = arith.constant 0.797884583 : f32
    %213 = vector.broadcast %cst_78 : f32 to vector<32x64xf32>
    %214 = arith.mulf %213, %212 : vector<32x64xf32>
    %215 = math.tanh %214 : vector<32x64xf32>
    %cst_79 = arith.constant 1.000000e+00 : f32
    %216 = vector.broadcast %cst_79 : f32 to vector<32x64xf32>
    %217 = arith.addf %216, %215 : vector<32x64xf32>
    %cst_80 = arith.constant 5.000000e-01 : f32
    %218 = vector.broadcast %cst_80 : f32 to vector<32x64xf32>
    %219 = arith.mulf %218, %217 : vector<32x64xf32>
    %220 = arith.mulf %207, %219 : vector<32x64xf32>
    %c0_81 = arith.constant 0 : index
    %c0_82 = arith.constant 0 : index
    %c0_83 = arith.constant 0 : index
    %221 = vector.load %arg12[%c0_81, %c0_82, %c0_83] : memref<2x64x32xf32, #tpu.memory_space<vmem>>, vector<1x64x32xf32>
    %222 = vector.shape_cast %221 : vector<1x64x32xf32> to vector<64x32xf32>
    %cst_84 = arith.constant dense<0.000000e+00> : vector<32x32xf32>
    %223 = tpu.matmul %220, %222, %cst_84 {dimension_numbers = #tpu.dot_dimension_numbers<[1], [0], [0], [1], [0, 0, 1, 1], [], []>} : vector<32x64xf32>, vector<64x32xf32>, vector<32x32xf32> -> vector<32x32xf32>
    %c0_85 = arith.constant 0 : index
    %c0_86 = arith.constant 0 : index
    %c0_87 = arith.constant 0 : index
    %224 = vector.load %arg13[%c0_85, %c0_86, %c0_87] : memref<2x1x32xf32, #tpu.memory_space<vmem>>, vector<1x1x32xf32>
    %225 = vector.shape_cast %224 : vector<1x1x32xf32> to vector<1x32xf32>
    %226 = vector.broadcast %225 : vector<1x32xf32> to vector<32x32xf32>
    %227 = arith.addf %223, %226 : vector<32x32xf32>
    %228 = arith.addf %200, %227 : vector<32x32xf32>
    %c0_88 = arith.constant 0 : index
    %c0_89 = arith.constant 0 : index
    %c0_90 = arith.constant 0 : index
    %229 = vector.load %arg16[%c0_88, %c0_89, %c0_90] : memref<2x1x32xf32, #tpu.memory_space<vmem>>, vector<1x1x32xf32>
    %230 = vector.shape_cast %229 : vector<1x1x32xf32> to vector<1x32xf32>
    %231 = vector.broadcast %230 : vector<1x32xf32> to vector<32x32xf32>
    %232 = arith.mulf %228, %231 : vector<32x32xf32>
    %c0_91 = arith.constant 0 : index
    %c0_92 = arith.constant 0 : index
    %c0_93 = arith.constant 0 : index
    %233 = vector.load %arg17[%c0_91, %c0_92, %c0_93] : memref<2x1x32xf32, #tpu.memory_space<vmem>>, vector<1x1x32xf32>
    %234 = vector.shape_cast %233 : vector<1x1x32xf32> to vector<1x32xf32>
    %235 = vector.broadcast %234 : vector<1x32xf32> to vector<32x32xf32>
    %236 = arith.addf %232, %235 : vector<32x32xf32>
    %c1 = arith.constant 1 : index
    %c0_94 = arith.constant 0 : index
    %c0_95 = arith.constant 0 : index
    %237 = vector.load %arg6[%c1, %c0_94, %c0_95] : memref<2x32x96xf32, #tpu.memory_space<vmem>>, vector<1x32x96xf32>
    %238 = vector.shape_cast %237 : vector<1x32x96xf32> to vector<32x96xf32>
    %cst_96 = arith.constant dense<0.000000e+00> : vector<32x96xf32>
    %239 = tpu.matmul %236, %238, %cst_96 {dimension_numbers = #tpu.dot_dimension_numbers<[1], [0], [0], [1], [0, 0, 1, 1], [], []>} : vector<32x32xf32>, vector<32x96xf32>, vector<32x96xf32> -> vector<32x96xf32>
    %c1_97 = arith.constant 1 : index
    %c0_98 = arith.constant 0 : index
    %c0_99 = arith.constant 0 : index
    %240 = vector.load %arg7[%c1_97, %c0_98, %c0_99] : memref<2x1x96xf32, #tpu.memory_space<vmem>>, vector<1x1x96xf32>
    %241 = vector.shape_cast %240 : vector<1x1x96xf32> to vector<1x96xf32>
    %242 = vector.broadcast %241 : vector<1x96xf32> to vector<32x96xf32>
    %243 = arith.addf %239, %242 : vector<32x96xf32>
    %244 = vector.extract_strided_slice %243 {offsets = [0, 0], sizes = [32, 32], strides = [1, 1]} : vector<32x96xf32> to vector<32x32xf32>
    %245 = vector.extract_strided_slice %243 {offsets = [0, 32], sizes = [32, 32], strides = [1, 1]} : vector<32x96xf32> to vector<32x32xf32>
    %246 = vector.extract_strided_slice %243 {offsets = [0, 64], sizes = [32, 32], strides = [1, 1]} : vector<32x96xf32> to vector<32x32xf32>
    %247 = vector.extract_strided_slice %244 {offsets = [0, 0], sizes = [16, 32], strides = [1, 1]} : vector<32x32xf32> to vector<16x32xf32>
    %248 = vector.extract_strided_slice %245 {offsets = [0, 0], sizes = [16, 32], strides = [1, 1]} : vector<32x32xf32> to vector<16x32xf32>
    %249 = vector.extract_strided_slice %246 {offsets = [0, 0], sizes = [16, 32], strides = [1, 1]} : vector<32x32xf32> to vector<16x32xf32>
    %250 = vector.extract_strided_slice %11 {offsets = [0, 0], sizes = [1, 16], strides = [1, 1]} : vector<2x16xf32> to vector<1x16xf32>
    %251 = vector.extract_strided_slice %247 {offsets = [0, 0], sizes = [16, 8], strides = [1, 1]} : vector<16x32xf32> to vector<16x8xf32>
    %cst_100 = arith.constant 0.353553385 : f32
    %252 = vector.broadcast %cst_100 : f32 to vector<16x8xf32>
    %253 = arith.mulf %251, %252 : vector<16x8xf32>
    %254 = vector.extract_strided_slice %248 {offsets = [0, 0], sizes = [16, 8], strides = [1, 1]} : vector<16x32xf32> to vector<16x8xf32>
    %255 = vector.extract_strided_slice %249 {offsets = [0, 0], sizes = [16, 8], strides = [1, 1]} : vector<16x32xf32> to vector<16x8xf32>
    %cst_101 = arith.constant dense<0.000000e+00> : vector<16x16xf32>
    %256 = tpu.matmul %253, %254, %cst_101 {dimension_numbers = #tpu.dot_dimension_numbers<[1], [1], [0], [0], [0, 0, 1, 0], [], []>} : vector<16x8xf32>, vector<16x8xf32>, vector<16x16xf32> -> vector<16x16xf32>
    %257 = vector.broadcast %250 : vector<1x16xf32> to vector<16x16xf32>
    %258 = arith.addf %256, %257 : vector<16x16xf32>
    %cst_102 = arith.constant dense<0xFF800000> : vector<16xf32>
    %259 = vector.multi_reduction <maximumf>, %258, %cst_102 [1] : vector<16x16xf32> to vector<16xf32>
    %260 = vector.shape_cast %259 : vector<16xf32> to vector<16x1xf32>
    %261 = vector.broadcast %260 : vector<16x1xf32> to vector<16x16xf32>
    %262 = arith.subf %258, %261 : vector<16x16xf32>
    %263 = math.exp %262 : vector<16x16xf32>
    %cst_103 = arith.constant dense<0.000000e+00> : vector<16xf32>
    %264 = vector.multi_reduction <add>, %263, %cst_103 [1] : vector<16x16xf32> to vector<16xf32>
    %265 = vector.shape_cast %264 : vector<16xf32> to vector<16x1xf32>
    %266 = tpu.reciprocal %265 {approx = true} : vector<16x1xf32> -> vector<16x1xf32>
    %267 = vector.broadcast %266 : vector<16x1xf32> to vector<16x16xf32>
    %268 = arith.mulf %263, %267 : vector<16x16xf32>
    %cst_104 = arith.constant dense<0.000000e+00> : vector<16x8xf32>
    %269 = tpu.matmul %268, %255, %cst_104 {dimension_numbers = #tpu.dot_dimension_numbers<[1], [0], [0], [1], [0, 0, 1, 1], [], []>} : vector<16x16xf32>, vector<16x8xf32>, vector<16x8xf32> -> vector<16x8xf32>
    %270 = vector.extract_strided_slice %247 {offsets = [0, 8], sizes = [16, 8], strides = [1, 1]} : vector<16x32xf32> to vector<16x8xf32>
    %cst_105 = arith.constant 0.353553385 : f32
    %271 = vector.broadcast %cst_105 : f32 to vector<16x8xf32>
    %272 = arith.mulf %270, %271 : vector<16x8xf32>
    %273 = vector.extract_strided_slice %248 {offsets = [0, 8], sizes = [16, 8], strides = [1, 1]} : vector<16x32xf32> to vector<16x8xf32>
    %274 = vector.extract_strided_slice %249 {offsets = [0, 8], sizes = [16, 8], strides = [1, 1]} : vector<16x32xf32> to vector<16x8xf32>
    %cst_106 = arith.constant dense<0.000000e+00> : vector<16x16xf32>
    %275 = tpu.matmul %272, %273, %cst_106 {dimension_numbers = #tpu.dot_dimension_numbers<[1], [1], [0], [0], [0, 0, 1, 0], [], []>} : vector<16x8xf32>, vector<16x8xf32>, vector<16x16xf32> -> vector<16x16xf32>
    %276 = vector.broadcast %250 : vector<1x16xf32> to vector<16x16xf32>
    %277 = arith.addf %275, %276 : vector<16x16xf32>
    %cst_107 = arith.constant dense<0xFF800000> : vector<16xf32>
    %278 = vector.multi_reduction <maximumf>, %277, %cst_107 [1] : vector<16x16xf32> to vector<16xf32>
    %279 = vector.shape_cast %278 : vector<16xf32> to vector<16x1xf32>
    %280 = vector.broadcast %279 : vector<16x1xf32> to vector<16x16xf32>
    %281 = arith.subf %277, %280 : vector<16x16xf32>
    %282 = math.exp %281 : vector<16x16xf32>
    %cst_108 = arith.constant dense<0.000000e+00> : vector<16xf32>
    %283 = vector.multi_reduction <add>, %282, %cst_108 [1] : vector<16x16xf32> to vector<16xf32>
    %284 = vector.shape_cast %283 : vector<16xf32> to vector<16x1xf32>
    %285 = tpu.reciprocal %284 {approx = true} : vector<16x1xf32> -> vector<16x1xf32>
    %286 = vector.broadcast %285 : vector<16x1xf32> to vector<16x16xf32>
    %287 = arith.mulf %282, %286 : vector<16x16xf32>
    %cst_109 = arith.constant dense<0.000000e+00> : vector<16x8xf32>
    %288 = tpu.matmul %287, %274, %cst_109 {dimension_numbers = #tpu.dot_dimension_numbers<[1], [0], [0], [1], [0, 0, 1, 1], [], []>} : vector<16x16xf32>, vector<16x8xf32>, vector<16x8xf32> -> vector<16x8xf32>
    %289 = vector.extract_strided_slice %247 {offsets = [0, 16], sizes = [16, 8], strides = [1, 1]} : vector<16x32xf32> to vector<16x8xf32>
    %cst_110 = arith.constant 0.353553385 : f32
    %290 = vector.broadcast %cst_110 : f32 to vector<16x8xf32>
    %291 = arith.mulf %289, %290 : vector<16x8xf32>
    %292 = vector.extract_strided_slice %248 {offsets = [0, 16], sizes = [16, 8], strides = [1, 1]} : vector<16x32xf32> to vector<16x8xf32>
    %293 = vector.extract_strided_slice %249 {offsets = [0, 16], sizes = [16, 8], strides = [1, 1]} : vector<16x32xf32> to vector<16x8xf32>
    %cst_111 = arith.constant dense<0.000000e+00> : vector<16x16xf32>
    %294 = tpu.matmul %291, %292, %cst_111 {dimension_numbers = #tpu.dot_dimension_numbers<[1], [1], [0], [0], [0, 0, 1, 0], [], []>} : vector<16x8xf32>, vector<16x8xf32>, vector<16x16xf32> -> vector<16x16xf32>
    %295 = vector.broadcast %250 : vector<1x16xf32> to vector<16x16xf32>
    %296 = arith.addf %294, %295 : vector<16x16xf32>
    %cst_112 = arith.constant dense<0xFF800000> : vector<16xf32>
    %297 = vector.multi_reduction <maximumf>, %296, %cst_112 [1] : vector<16x16xf32> to vector<16xf32>
    %298 = vector.shape_cast %297 : vector<16xf32> to vector<16x1xf32>
    %299 = vector.broadcast %298 : vector<16x1xf32> to vector<16x16xf32>
    %300 = arith.subf %296, %299 : vector<16x16xf32>
    %301 = math.exp %300 : vector<16x16xf32>
    %cst_113 = arith.constant dense<0.000000e+00> : vector<16xf32>
    %302 = vector.multi_reduction <add>, %301, %cst_113 [1] : vector<16x16xf32> to vector<16xf32>
    %303 = vector.shape_cast %302 : vector<16xf32> to vector<16x1xf32>
    %304 = tpu.reciprocal %303 {approx = true} : vector<16x1xf32> -> vector<16x1xf32>
    %305 = vector.broadcast %304 : vector<16x1xf32> to vector<16x16xf32>
    %306 = arith.mulf %301, %305 : vector<16x16xf32>
    %cst_114 = arith.constant dense<0.000000e+00> : vector<16x8xf32>
    %307 = tpu.matmul %306, %293, %cst_114 {dimension_numbers = #tpu.dot_dimension_numbers<[1], [0], [0], [1], [0, 0, 1, 1], [], []>} : vector<16x16xf32>, vector<16x8xf32>, vector<16x8xf32> -> vector<16x8xf32>
    %308 = vector.extract_strided_slice %247 {offsets = [0, 24], sizes = [16, 8], strides = [1, 1]} : vector<16x32xf32> to vector<16x8xf32>
    %cst_115 = arith.constant 0.353553385 : f32
    %309 = vector.broadcast %cst_115 : f32 to vector<16x8xf32>
    %310 = arith.mulf %308, %309 : vector<16x8xf32>
    %311 = vector.extract_strided_slice %248 {offsets = [0, 24], sizes = [16, 8], strides = [1, 1]} : vector<16x32xf32> to vector<16x8xf32>
    %312 = vector.extract_strided_slice %249 {offsets = [0, 24], sizes = [16, 8], strides = [1, 1]} : vector<16x32xf32> to vector<16x8xf32>
    %cst_116 = arith.constant dense<0.000000e+00> : vector<16x16xf32>
    %313 = tpu.matmul %310, %311, %cst_116 {dimension_numbers = #tpu.dot_dimension_numbers<[1], [1], [0], [0], [0, 0, 1, 0], [], []>} : vector<16x8xf32>, vector<16x8xf32>, vector<16x16xf32> -> vector<16x16xf32>
    %314 = vector.broadcast %250 : vector<1x16xf32> to vector<16x16xf32>
    %315 = arith.addf %313, %314 : vector<16x16xf32>
    %cst_117 = arith.constant dense<0xFF800000> : vector<16xf32>
    %316 = vector.multi_reduction <maximumf>, %315, %cst_117 [1] : vector<16x16xf32> to vector<16xf32>
    %317 = vector.shape_cast %316 : vector<16xf32> to vector<16x1xf32>
    %318 = vector.broadcast %317 : vector<16x1xf32> to vector<16x16xf32>
    %319 = arith.subf %315, %318 : vector<16x16xf32>
    %320 = math.exp %319 : vector<16x16xf32>
    %cst_118 = arith.constant dense<0.000000e+00> : vector<16xf32>
    %321 = vector.multi_reduction <add>, %320, %cst_118 [1] : vector<16x16xf32> to vector<16xf32>
    %322 = vector.shape_cast %321 : vector<16xf32> to vector<16x1xf32>
    %323 = tpu.reciprocal %322 {approx = true} : vector<16x1xf32> -> vector<16x1xf32>
    %324 = vector.broadcast %323 : vector<16x1xf32> to vector<16x16xf32>
    %325 = arith.mulf %320, %324 : vector<16x16xf32>
    %cst_119 = arith.constant dense<0.000000e+00> : vector<16x8xf32>
    %326 = tpu.matmul %325, %312, %cst_119 {dimension_numbers = #tpu.dot_dimension_numbers<[1], [0], [0], [1], [0, 0, 1, 1], [], []>} : vector<16x16xf32>, vector<16x8xf32>, vector<16x8xf32> -> vector<16x8xf32>
    %327 = tpu.concatenate %269, %288, %307, %326 in 1 : vector<16x8xf32>, vector<16x8xf32>, vector<16x8xf32>, vector<16x8xf32> -> vector<16x32xf32>
    %328 = vector.extract_strided_slice %244 {offsets = [16, 0], sizes = [16, 32], strides = [1, 1]} : vector<32x32xf32> to vector<16x32xf32>
    %329 = vector.extract_strided_slice %245 {offsets = [16, 0], sizes = [16, 32], strides = [1, 1]} : vector<32x32xf32> to vector<16x32xf32>
    %330 = vector.extract_strided_slice %246 {offsets = [16, 0], sizes = [16, 32], strides = [1, 1]} : vector<32x32xf32> to vector<16x32xf32>
    %331 = vector.extract_strided_slice %11 {offsets = [1, 0], sizes = [1, 16], strides = [1, 1]} : vector<2x16xf32> to vector<1x16xf32>
    %332 = vector.extract_strided_slice %328 {offsets = [0, 0], sizes = [16, 8], strides = [1, 1]} : vector<16x32xf32> to vector<16x8xf32>
    %cst_120 = arith.constant 0.353553385 : f32
    %333 = vector.broadcast %cst_120 : f32 to vector<16x8xf32>
    %334 = arith.mulf %332, %333 : vector<16x8xf32>
    %335 = vector.extract_strided_slice %329 {offsets = [0, 0], sizes = [16, 8], strides = [1, 1]} : vector<16x32xf32> to vector<16x8xf32>
    %336 = vector.extract_strided_slice %330 {offsets = [0, 0], sizes = [16, 8], strides = [1, 1]} : vector<16x32xf32> to vector<16x8xf32>
    %cst_121 = arith.constant dense<0.000000e+00> : vector<16x16xf32>
    %337 = tpu.matmul %334, %335, %cst_121 {dimension_numbers = #tpu.dot_dimension_numbers<[1], [1], [0], [0], [0, 0, 1, 0], [], []>} : vector<16x8xf32>, vector<16x8xf32>, vector<16x16xf32> -> vector<16x16xf32>
    %338 = vector.broadcast %331 : vector<1x16xf32> to vector<16x16xf32>
    %339 = arith.addf %337, %338 : vector<16x16xf32>
    %cst_122 = arith.constant dense<0xFF800000> : vector<16xf32>
    %340 = vector.multi_reduction <maximumf>, %339, %cst_122 [1] : vector<16x16xf32> to vector<16xf32>
    %341 = vector.shape_cast %340 : vector<16xf32> to vector<16x1xf32>
    %342 = vector.broadcast %341 : vector<16x1xf32> to vector<16x16xf32>
    %343 = arith.subf %339, %342 : vector<16x16xf32>
    %344 = math.exp %343 : vector<16x16xf32>
    %cst_123 = arith.constant dense<0.000000e+00> : vector<16xf32>
    %345 = vector.multi_reduction <add>, %344, %cst_123 [1] : vector<16x16xf32> to vector<16xf32>
    %346 = vector.shape_cast %345 : vector<16xf32> to vector<16x1xf32>
    %347 = tpu.reciprocal %346 {approx = true} : vector<16x1xf32> -> vector<16x1xf32>
    %348 = vector.broadcast %347 : vector<16x1xf32> to vector<16x16xf32>
    %349 = arith.mulf %344, %348 : vector<16x16xf32>
    %cst_124 = arith.constant dense<0.000000e+00> : vector<16x8xf32>
    %350 = tpu.matmul %349, %336, %cst_124 {dimension_numbers = #tpu.dot_dimension_numbers<[1], [0], [0], [1], [0, 0, 1, 1], [], []>} : vector<16x16xf32>, vector<16x8xf32>, vector<16x8xf32> -> vector<16x8xf32>
    %351 = vector.extract_strided_slice %328 {offsets = [0, 8], sizes = [16, 8], strides = [1, 1]} : vector<16x32xf32> to vector<16x8xf32>
    %cst_125 = arith.constant 0.353553385 : f32
    %352 = vector.broadcast %cst_125 : f32 to vector<16x8xf32>
    %353 = arith.mulf %351, %352 : vector<16x8xf32>
    %354 = vector.extract_strided_slice %329 {offsets = [0, 8], sizes = [16, 8], strides = [1, 1]} : vector<16x32xf32> to vector<16x8xf32>
    %355 = vector.extract_strided_slice %330 {offsets = [0, 8], sizes = [16, 8], strides = [1, 1]} : vector<16x32xf32> to vector<16x8xf32>
    %cst_126 = arith.constant dense<0.000000e+00> : vector<16x16xf32>
    %356 = tpu.matmul %353, %354, %cst_126 {dimension_numbers = #tpu.dot_dimension_numbers<[1], [1], [0], [0], [0, 0, 1, 0], [], []>} : vector<16x8xf32>, vector<16x8xf32>, vector<16x16xf32> -> vector<16x16xf32>
    %357 = vector.broadcast %331 : vector<1x16xf32> to vector<16x16xf32>
    %358 = arith.addf %356, %357 : vector<16x16xf32>
    %cst_127 = arith.constant dense<0xFF800000> : vector<16xf32>
    %359 = vector.multi_reduction <maximumf>, %358, %cst_127 [1] : vector<16x16xf32> to vector<16xf32>
    %360 = vector.shape_cast %359 : vector<16xf32> to vector<16x1xf32>
    %361 = vector.broadcast %360 : vector<16x1xf32> to vector<16x16xf32>
    %362 = arith.subf %358, %361 : vector<16x16xf32>
    %363 = math.exp %362 : vector<16x16xf32>
    %cst_128 = arith.constant dense<0.000000e+00> : vector<16xf32>
    %364 = vector.multi_reduction <add>, %363, %cst_128 [1] : vector<16x16xf32> to vector<16xf32>
    %365 = vector.shape_cast %364 : vector<16xf32> to vector<16x1xf32>
    %366 = tpu.reciprocal %365 {approx = true} : vector<16x1xf32> -> vector<16x1xf32>
    %367 = vector.broadcast %366 : vector<16x1xf32> to vector<16x16xf32>
    %368 = arith.mulf %363, %367 : vector<16x16xf32>
    %cst_129 = arith.constant dense<0.000000e+00> : vector<16x8xf32>
    %369 = tpu.matmul %368, %355, %cst_129 {dimension_numbers = #tpu.dot_dimension_numbers<[1], [0], [0], [1], [0, 0, 1, 1], [], []>} : vector<16x16xf32>, vector<16x8xf32>, vector<16x8xf32> -> vector<16x8xf32>
    %370 = vector.extract_strided_slice %328 {offsets = [0, 16], sizes = [16, 8], strides = [1, 1]} : vector<16x32xf32> to vector<16x8xf32>
    %cst_130 = arith.constant 0.353553385 : f32
    %371 = vector.broadcast %cst_130 : f32 to vector<16x8xf32>
    %372 = arith.mulf %370, %371 : vector<16x8xf32>
    %373 = vector.extract_strided_slice %329 {offsets = [0, 16], sizes = [16, 8], strides = [1, 1]} : vector<16x32xf32> to vector<16x8xf32>
    %374 = vector.extract_strided_slice %330 {offsets = [0, 16], sizes = [16, 8], strides = [1, 1]} : vector<16x32xf32> to vector<16x8xf32>
    %cst_131 = arith.constant dense<0.000000e+00> : vector<16x16xf32>
    %375 = tpu.matmul %372, %373, %cst_131 {dimension_numbers = #tpu.dot_dimension_numbers<[1], [1], [0], [0], [0, 0, 1, 0], [], []>} : vector<16x8xf32>, vector<16x8xf32>, vector<16x16xf32> -> vector<16x16xf32>
    %376 = vector.broadcast %331 : vector<1x16xf32> to vector<16x16xf32>
    %377 = arith.addf %375, %376 : vector<16x16xf32>
    %cst_132 = arith.constant dense<0xFF800000> : vector<16xf32>
    %378 = vector.multi_reduction <maximumf>, %377, %cst_132 [1] : vector<16x16xf32> to vector<16xf32>
    %379 = vector.shape_cast %378 : vector<16xf32> to vector<16x1xf32>
    %380 = vector.broadcast %379 : vector<16x1xf32> to vector<16x16xf32>
    %381 = arith.subf %377, %380 : vector<16x16xf32>
    %382 = math.exp %381 : vector<16x16xf32>
    %cst_133 = arith.constant dense<0.000000e+00> : vector<16xf32>
    %383 = vector.multi_reduction <add>, %382, %cst_133 [1] : vector<16x16xf32> to vector<16xf32>
    %384 = vector.shape_cast %383 : vector<16xf32> to vector<16x1xf32>
    %385 = tpu.reciprocal %384 {approx = true} : vector<16x1xf32> -> vector<16x1xf32>
    %386 = vector.broadcast %385 : vector<16x1xf32> to vector<16x16xf32>
    %387 = arith.mulf %382, %386 : vector<16x16xf32>
    %cst_134 = arith.constant dense<0.000000e+00> : vector<16x8xf32>
    %388 = tpu.matmul %387, %374, %cst_134 {dimension_numbers = #tpu.dot_dimension_numbers<[1], [0], [0], [1], [0, 0, 1, 1], [], []>} : vector<16x16xf32>, vector<16x8xf32>, vector<16x8xf32> -> vector<16x8xf32>
    %389 = vector.extract_strided_slice %328 {offsets = [0, 24], sizes = [16, 8], strides = [1, 1]} : vector<16x32xf32> to vector<16x8xf32>
    %cst_135 = arith.constant 0.353553385 : f32
    %390 = vector.broadcast %cst_135 : f32 to vector<16x8xf32>
    %391 = arith.mulf %389, %390 : vector<16x8xf32>
    %392 = vector.extract_strided_slice %329 {offsets = [0, 24], sizes = [16, 8], strides = [1, 1]} : vector<16x32xf32> to vector<16x8xf32>
    %393 = vector.extract_strided_slice %330 {offsets = [0, 24], sizes = [16, 8], strides = [1, 1]} : vector<16x32xf32> to vector<16x8xf32>
    %cst_136 = arith.constant dense<0.000000e+00> : vector<16x16xf32>
    %394 = tpu.matmul %391, %392, %cst_136 {dimension_numbers = #tpu.dot_dimension_numbers<[1], [1], [0], [0], [0, 0, 1, 0], [], []>} : vector<16x8xf32>, vector<16x8xf32>, vector<16x16xf32> -> vector<16x16xf32>
    %395 = vector.broadcast %331 : vector<1x16xf32> to vector<16x16xf32>
    %396 = arith.addf %394, %395 : vector<16x16xf32>
    %cst_137 = arith.constant dense<0xFF800000> : vector<16xf32>
    %397 = vector.multi_reduction <maximumf>, %396, %cst_137 [1] : vector<16x16xf32> to vector<16xf32>
    %398 = vector.shape_cast %397 : vector<16xf32> to vector<16x1xf32>
    %399 = vector.broadcast %398 : vector<16x1xf32> to vector<16x16xf32>
    %400 = arith.subf %396, %399 : vector<16x16xf32>
    %401 = math.exp %400 : vector<16x16xf32>
    %cst_138 = arith.constant dense<0.000000e+00> : vector<16xf32>
    %402 = vector.multi_reduction <add>, %401, %cst_138 [1] : vector<16x16xf32> to vector<16xf32>
    %403 = vector.shape_cast %402 : vector<16xf32> to vector<16x1xf32>
    %404 = tpu.reciprocal %403 {approx = true} : vector<16x1xf32> -> vector<16x1xf32>
    %405 = vector.broadcast %404 : vector<16x1xf32> to vector<16x16xf32>
    %406 = arith.mulf %401, %405 : vector<16x16xf32>
    %cst_139 = arith.constant dense<0.000000e+00> : vector<16x8xf32>
    %407 = tpu.matmul %406, %393, %cst_139 {dimension_numbers = #tpu.dot_dimension_numbers<[1], [0], [0], [1], [0, 0, 1, 1], [], []>} : vector<16x16xf32>, vector<16x8xf32>, vector<16x8xf32> -> vector<16x8xf32>
    %408 = tpu.concatenate %350, %369, %388, %407 in 1 : vector<16x8xf32>, vector<16x8xf32>, vector<16x8xf32>, vector<16x8xf32> -> vector<16x32xf32>
    %409 = tpu.concatenate %327, %408 in 0 : vector<16x32xf32>, vector<16x32xf32> -> vector<32x32xf32>
    %c1_140 = arith.constant 1 : index
    %c0_141 = arith.constant 0 : index
    %c0_142 = arith.constant 0 : index
    %410 = vector.load %arg8[%c1_140, %c0_141, %c0_142] : memref<2x32x32xf32, #tpu.memory_space<vmem>>, vector<1x32x32xf32>
    %411 = vector.shape_cast %410 : vector<1x32x32xf32> to vector<32x32xf32>
    %cst_143 = arith.constant dense<0.000000e+00> : vector<32x32xf32>
    %412 = tpu.matmul %409, %411, %cst_143 {dimension_numbers = #tpu.dot_dimension_numbers<[1], [0], [0], [1], [0, 0, 1, 1], [], []>} : vector<32x32xf32>, vector<32x32xf32>, vector<32x32xf32> -> vector<32x32xf32>
    %c1_144 = arith.constant 1 : index
    %c0_145 = arith.constant 0 : index
    %c0_146 = arith.constant 0 : index
    %413 = vector.load %arg9[%c1_144, %c0_145, %c0_146] : memref<2x1x32xf32, #tpu.memory_space<vmem>>, vector<1x1x32xf32>
    %414 = vector.shape_cast %413 : vector<1x1x32xf32> to vector<1x32xf32>
    %415 = vector.broadcast %414 : vector<1x32xf32> to vector<32x32xf32>
    %416 = arith.addf %412, %415 : vector<32x32xf32>
    %417 = arith.addf %236, %416 : vector<32x32xf32>
    %c1_147 = arith.constant 1 : index
    %c0_148 = arith.constant 0 : index
    %c0_149 = arith.constant 0 : index
    %418 = vector.load %arg14[%c1_147, %c0_148, %c0_149] : memref<2x1x32xf32, #tpu.memory_space<vmem>>, vector<1x1x32xf32>
    %419 = vector.shape_cast %418 : vector<1x1x32xf32> to vector<1x32xf32>
    %420 = vector.broadcast %419 : vector<1x32xf32> to vector<32x32xf32>
    %421 = arith.mulf %417, %420 : vector<32x32xf32>
    %c1_150 = arith.constant 1 : index
    %c0_151 = arith.constant 0 : index
    %c0_152 = arith.constant 0 : index
    %422 = vector.load %arg15[%c1_150, %c0_151, %c0_152] : memref<2x1x32xf32, #tpu.memory_space<vmem>>, vector<1x1x32xf32>
    %423 = vector.shape_cast %422 : vector<1x1x32xf32> to vector<1x32xf32>
    %424 = vector.broadcast %423 : vector<1x32xf32> to vector<32x32xf32>
    %425 = arith.addf %421, %424 : vector<32x32xf32>
    %c1_153 = arith.constant 1 : index
    %c0_154 = arith.constant 0 : index
    %c0_155 = arith.constant 0 : index
    %426 = vector.load %arg10[%c1_153, %c0_154, %c0_155] : memref<2x32x64xf32, #tpu.memory_space<vmem>>, vector<1x32x64xf32>
    %427 = vector.shape_cast %426 : vector<1x32x64xf32> to vector<32x64xf32>
    %cst_156 = arith.constant dense<0.000000e+00> : vector<32x64xf32>
    %428 = tpu.matmul %425, %427, %cst_156 {dimension_numbers = #tpu.dot_dimension_numbers<[1], [0], [0], [1], [0, 0, 1, 1], [], []>} : vector<32x32xf32>, vector<32x64xf32>, vector<32x64xf32> -> vector<32x64xf32>
    %c1_157 = arith.constant 1 : index
    %c0_158 = arith.constant 0 : index
    %c0_159 = arith.constant 0 : index
    %429 = vector.load %arg11[%c1_157, %c0_158, %c0_159] : memref<2x1x64xf32, #tpu.memory_space<vmem>>, vector<1x1x64xf32>
    %430 = vector.shape_cast %429 : vector<1x1x64xf32> to vector<1x64xf32>
    %431 = vector.broadcast %430 : vector<1x64xf32> to vector<32x64xf32>
    %432 = arith.addf %428, %431 : vector<32x64xf32>
    %433 = arith.mulf %432, %432 : vector<32x64xf32>
    %434 = arith.mulf %432, %433 : vector<32x64xf32>
    %cst_160 = arith.constant 4.471500e-02 : f32
    %435 = vector.broadcast %cst_160 : f32 to vector<32x64xf32>
    %436 = arith.mulf %435, %434 : vector<32x64xf32>
    %437 = arith.addf %432, %436 : vector<32x64xf32>
    %cst_161 = arith.constant 0.797884583 : f32
    %438 = vector.broadcast %cst_161 : f32 to vector<32x64xf32>
    %439 = arith.mulf %438, %437 : vector<32x64xf32>
    %440 = math.tanh %439 : vector<32x64xf32>
    %cst_162 = arith.constant 1.000000e+00 : f32
    %441 = vector.broadcast %cst_162 : f32 to vector<32x64xf32>
    %442 = arith.addf %441, %440 : vector<32x64xf32>
    %cst_163 = arith.constant 5.000000e-01 : f32
    %443 = vector.broadcast %cst_163 : f32 to vector<32x64xf32>
    %444 = arith.mulf %443, %442 : vector<32x64xf32>
    %445 = arith.mulf %432, %444 : vector<32x64xf32>
    %c1_164 = arith.constant 1 : index
    %c0_165 = arith.constant 0 : index
    %c0_166 = arith.constant 0 : index
    %446 = vector.load %arg12[%c1_164, %c0_165, %c0_166] : memref<2x64x32xf32, #tpu.memory_space<vmem>>, vector<1x64x32xf32>
    %447 = vector.shape_cast %446 : vector<1x64x32xf32> to vector<64x32xf32>
    %cst_167 = arith.constant dense<0.000000e+00> : vector<32x32xf32>
    %448 = tpu.matmul %445, %447, %cst_167 {dimension_numbers = #tpu.dot_dimension_numbers<[1], [0], [0], [1], [0, 0, 1, 1], [], []>} : vector<32x64xf32>, vector<64x32xf32>, vector<32x32xf32> -> vector<32x32xf32>
    %c1_168 = arith.constant 1 : index
    %c0_169 = arith.constant 0 : index
    %c0_170 = arith.constant 0 : index
    %449 = vector.load %arg13[%c1_168, %c0_169, %c0_170] : memref<2x1x32xf32, #tpu.memory_space<vmem>>, vector<1x1x32xf32>
    %450 = vector.shape_cast %449 : vector<1x1x32xf32> to vector<1x32xf32>
    %451 = vector.broadcast %450 : vector<1x32xf32> to vector<32x32xf32>
    %452 = arith.addf %448, %451 : vector<32x32xf32>
    %453 = arith.addf %425, %452 : vector<32x32xf32>
    %c1_171 = arith.constant 1 : index
    %c0_172 = arith.constant 0 : index
    %c0_173 = arith.constant 0 : index
    %454 = vector.load %arg16[%c1_171, %c0_172, %c0_173] : memref<2x1x32xf32, #tpu.memory_space<vmem>>, vector<1x1x32xf32>
    %455 = vector.shape_cast %454 : vector<1x1x32xf32> to vector<1x32xf32>
    %456 = vector.broadcast %455 : vector<1x32xf32> to vector<32x32xf32>
    %457 = arith.mulf %453, %456 : vector<32x32xf32>
    %c1_174 = arith.constant 1 : index
    %c0_175 = arith.constant 0 : index
    %c0_176 = arith.constant 0 : index
    %458 = vector.load %arg17[%c1_174, %c0_175, %c0_176] : memref<2x1x32xf32, #tpu.memory_space<vmem>>, vector<1x1x32xf32>
    %459 = vector.shape_cast %458 : vector<1x1x32xf32> to vector<1x32xf32>
    %460 = vector.broadcast %459 : vector<1x32xf32> to vector<32x32xf32>
    %461 = arith.addf %457, %460 : vector<32x32xf32>
    %462 = arith.mulf %461, %461 : vector<32x32xf32>
    %463 = arith.mulf %461, %462 : vector<32x32xf32>
    %cst_177 = arith.constant 4.471500e-02 : f32
    %464 = vector.broadcast %cst_177 : f32 to vector<32x32xf32>
    %465 = arith.mulf %464, %463 : vector<32x32xf32>
    %466 = arith.addf %461, %465 : vector<32x32xf32>
    %cst_178 = arith.constant 0.797884583 : f32
    %467 = vector.broadcast %cst_178 : f32 to vector<32x32xf32>
    %468 = arith.mulf %467, %466 : vector<32x32xf32>
    %469 = math.tanh %468 : vector<32x32xf32>
    %cst_179 = arith.constant 1.000000e+00 : f32
    %470 = vector.broadcast %cst_179 : f32 to vector<32x32xf32>
    %471 = arith.addf %470, %469 : vector<32x32xf32>
    %cst_180 = arith.constant 5.000000e-01 : f32
    %472 = vector.broadcast %cst_180 : f32 to vector<32x32xf32>
    %473 = arith.mulf %472, %471 : vector<32x32xf32>
    %474 = arith.mulf %461, %473 : vector<32x32xf32>
    %c0_181 = arith.constant 0 : index
    %c0_182 = arith.constant 0 : index
    %475 = vector.load %arg1[%c0_181, %c0_182] : memref<32x1xf32, #tpu.memory_space<vmem>>, vector<32x1xf32>
    %476 = vector.broadcast %475 : vector<32x1xf32> to vector<32x32xf32>
    %477 = arith.mulf %474, %476 : vector<32x32xf32>
    %478 = tpu.iota {dimensions = array<i32: 0>} : vector<32x32xi32>
    %c16_i32 = arith.constant 16 : i32
    %c0_i32 = arith.constant 0 : i32
    %479 = arith.cmpi eq, %c16_i32, %c0_i32 : i32
    %c1_i32 = arith.constant 1 : i32
    %480 = arith.select %479, %c1_i32, %c16_i32 : i32
    %481 = vector.broadcast %480 : i32 to vector<32x32xi32>
    %482 = arith.remsi %478, %481 : vector<32x32xi32>
    %c0_i32_183 = arith.constant 0 : i32
    %483 = vector.broadcast %c0_i32_183 : i32 to vector<32x32xi32>
    %484 = arith.cmpi ne, %482, %483 : vector<32x32xi32>
    %c0_i32_184 = arith.constant 0 : i32
    %485 = vector.broadcast %c0_i32_184 : i32 to vector<32x32xi32>
    %486 = arith.cmpi slt, %482, %485 : vector<32x32xi32>
    %c0_i32_185 = arith.constant 0 : i32
    %487 = arith.cmpi slt, %480, %c0_i32_185 : i32
    %488 = vector.broadcast %487 : i1 to vector<32x32xi1>
    %489 = vector.broadcast %488 : vector<32x32xi1> to vector<32x32xi1>
    %490 = arith.xori %486, %489 : vector<32x32xi1>
    %491 = arith.andi %490, %484 : vector<32x32xi1>
    %492 = vector.broadcast %480 : i32 to vector<32x32xi32>
    %493 = arith.addi %482, %492 : vector<32x32xi32>
    %494 = arith.select %491, %493, %482 : vector<32x32xi1>, vector<32x32xi32>
    %c0_i32_186 = arith.constant 0 : i32
    %495 = vector.broadcast %c0_i32_186 : i32 to vector<32x32xi32>
    %496 = arith.cmpi ne, %494, %495 : vector<32x32xi32>
    %c15_i32 = arith.constant 15 : i32
    %497 = vector.broadcast %c15_i32 : i32 to vector<32x32xi32>
    %498 = arith.cmpi ne, %494, %497 : vector<32x32xi32>
    %cst_187 = arith.constant 0.000000e+00 : f32
    %499 = vector.broadcast %cst_187 : f32 to vector<1x32xf32>
    %500 = vector.extract_strided_slice %477 {offsets = [0, 0], sizes = [31, 32], strides = [1, 1]} : vector<32x32xf32> to vector<31x32xf32>
    %501 = tpu.concatenate %499, %500 in 0 : vector<1x32xf32>, vector<31x32xf32> -> vector<32x32xf32>
    %cst_188 = arith.constant 0.000000e+00 : f32
    %502 = vector.broadcast %cst_188 : f32 to vector<32x32xf32>
    %503 = arith.select %496, %501, %502 : vector<32x32xi1>, vector<32x32xf32>
    %504 = vector.extract_strided_slice %477 {offsets = [1, 0], sizes = [31, 32], strides = [1, 1]} : vector<32x32xf32> to vector<31x32xf32>
    %505 = tpu.concatenate %504, %499 in 0 : vector<31x32xf32>, vector<1x32xf32> -> vector<32x32xf32>
    %cst_189 = arith.constant 0.000000e+00 : f32
    %506 = vector.broadcast %cst_189 : f32 to vector<32x32xf32>
    %507 = arith.select %498, %505, %506 : vector<32x32xi1>, vector<32x32xf32>
    %508 = tpu.concatenate %503, %477, %507 in 1 : vector<32x32xf32>, vector<32x32xf32>, vector<32x32xf32> -> vector<32x96xf32>
    %c0_190 = arith.constant 0 : index
    %c0_191 = arith.constant 0 : index
    %509 = vector.load %arg18[%c0_190, %c0_191] : memref<96x32xf32, #tpu.memory_space<vmem>>, vector<96x32xf32>
    %cst_192 = arith.constant dense<0.000000e+00> : vector<32x32xf32>
    %510 = tpu.matmul %508, %509, %cst_192 {dimension_numbers = #tpu.dot_dimension_numbers<[1], [0], [0], [1], [0, 0, 1, 1], [], []>} : vector<32x96xf32>, vector<96x32xf32>, vector<32x32xf32> -> vector<32x32xf32>
    %c0_193 = arith.constant 0 : index
    %c0_194 = arith.constant 0 : index
    %511 = vector.load %arg19[%c0_193, %c0_194] : memref<1x32xf32, #tpu.memory_space<vmem>>, vector<1x32xf32>
    %512 = vector.broadcast %511 : vector<1x32xf32> to vector<32x32xf32>
    %513 = arith.addf %510, %512 : vector<32x32xf32>
    %c0_195 = arith.constant 0 : index
    %c0_196 = arith.constant 0 : index
    %514 = vector.load %arg20[%c0_195, %c0_196] : memref<1x32xf32, #tpu.memory_space<vmem>>, vector<1x32xf32>
    %515 = vector.broadcast %514 : vector<1x32xf32> to vector<32x32xf32>
    %516 = arith.mulf %513, %515 : vector<32x32xf32>
    %c0_197 = arith.constant 0 : index
    %c0_198 = arith.constant 0 : index
    %517 = vector.load %arg21[%c0_197, %c0_198] : memref<1x32xf32, #tpu.memory_space<vmem>>, vector<1x32xf32>
    %518 = vector.broadcast %517 : vector<1x32xf32> to vector<32x32xf32>
    %519 = arith.addf %516, %518 : vector<32x32xf32>
    %520 = arith.mulf %519, %519 : vector<32x32xf32>
    %521 = arith.mulf %519, %520 : vector<32x32xf32>
    %cst_199 = arith.constant 4.471500e-02 : f32
    %522 = vector.broadcast %cst_199 : f32 to vector<32x32xf32>
    %523 = arith.mulf %522, %521 : vector<32x32xf32>
    %524 = arith.addf %519, %523 : vector<32x32xf32>
    %cst_200 = arith.constant 0.797884583 : f32
    %525 = vector.broadcast %cst_200 : f32 to vector<32x32xf32>
    %526 = arith.mulf %525, %524 : vector<32x32xf32>
    %527 = math.tanh %526 : vector<32x32xf32>
    %cst_201 = arith.constant 1.000000e+00 : f32
    %528 = vector.broadcast %cst_201 : f32 to vector<32x32xf32>
    %529 = arith.addf %528, %527 : vector<32x32xf32>
    %cst_202 = arith.constant 5.000000e-01 : f32
    %530 = vector.broadcast %cst_202 : f32 to vector<32x32xf32>
    %531 = arith.mulf %530, %529 : vector<32x32xf32>
    %532 = arith.mulf %519, %531 : vector<32x32xf32>
    %533 = vector.extract_strided_slice %532 {offsets = [0, 0], sizes = [31, 32], strides = [1, 1]} : vector<32x32xf32> to vector<31x32xf32>
    %534 = tpu.concatenate %499, %533 in 0 : vector<1x32xf32>, vector<31x32xf32> -> vector<32x32xf32>
    %cst_203 = arith.constant 0.000000e+00 : f32
    %535 = vector.broadcast %cst_203 : f32 to vector<32x32xf32>
    %536 = arith.select %496, %534, %535 : vector<32x32xi1>, vector<32x32xf32>
    %537 = vector.extract_strided_slice %532 {offsets = [1, 0], sizes = [31, 32], strides = [1, 1]} : vector<32x32xf32> to vector<31x32xf32>
    %538 = tpu.concatenate %537, %499 in 0 : vector<31x32xf32>, vector<1x32xf32> -> vector<32x32xf32>
    %cst_204 = arith.constant 0.000000e+00 : f32
    %539 = vector.broadcast %cst_204 : f32 to vector<32x32xf32>
    %540 = arith.select %498, %538, %539 : vector<32x32xi1>, vector<32x32xf32>
    %541 = tpu.concatenate %536, %532, %540 in 1 : vector<32x32xf32>, vector<32x32xf32>, vector<32x32xf32> -> vector<32x96xf32>
    %c0_205 = arith.constant 0 : index
    %c0_206 = arith.constant 0 : index
    %542 = vector.load %arg22[%c0_205, %c0_206] : memref<96x32xf32, #tpu.memory_space<vmem>>, vector<96x32xf32>
    %cst_207 = arith.constant dense<0.000000e+00> : vector<32x32xf32>
    %543 = tpu.matmul %541, %542, %cst_207 {dimension_numbers = #tpu.dot_dimension_numbers<[1], [0], [0], [1], [0, 0, 1, 1], [], []>} : vector<32x96xf32>, vector<96x32xf32>, vector<32x32xf32> -> vector<32x32xf32>
    %c0_208 = arith.constant 0 : index
    %c0_209 = arith.constant 0 : index
    %544 = vector.load %arg23[%c0_208, %c0_209] : memref<1x32xf32, #tpu.memory_space<vmem>>, vector<1x32xf32>
    %545 = vector.broadcast %544 : vector<1x32xf32> to vector<32x32xf32>
    %546 = arith.addf %543, %545 : vector<32x32xf32>
    %c0_210 = arith.constant 0 : index
    %c0_211 = arith.constant 0 : index
    %547 = vector.load %arg24[%c0_210, %c0_211] : memref<1x32xf32, #tpu.memory_space<vmem>>, vector<1x32xf32>
    %548 = vector.broadcast %547 : vector<1x32xf32> to vector<32x32xf32>
    %549 = arith.mulf %546, %548 : vector<32x32xf32>
    %c0_212 = arith.constant 0 : index
    %c0_213 = arith.constant 0 : index
    %550 = vector.load %arg25[%c0_212, %c0_213] : memref<1x32xf32, #tpu.memory_space<vmem>>, vector<1x32xf32>
    %551 = vector.broadcast %550 : vector<1x32xf32> to vector<32x32xf32>
    %552 = arith.addf %549, %551 : vector<32x32xf32>
    %553 = arith.mulf %552, %552 : vector<32x32xf32>
    %554 = arith.mulf %552, %553 : vector<32x32xf32>
    %cst_214 = arith.constant 4.471500e-02 : f32
    %555 = vector.broadcast %cst_214 : f32 to vector<32x32xf32>
    %556 = arith.mulf %555, %554 : vector<32x32xf32>
    %557 = arith.addf %552, %556 : vector<32x32xf32>
    %cst_215 = arith.constant 0.797884583 : f32
    %558 = vector.broadcast %cst_215 : f32 to vector<32x32xf32>
    %559 = arith.mulf %558, %557 : vector<32x32xf32>
    %560 = math.tanh %559 : vector<32x32xf32>
    %cst_216 = arith.constant 1.000000e+00 : f32
    %561 = vector.broadcast %cst_216 : f32 to vector<32x32xf32>
    %562 = arith.addf %561, %560 : vector<32x32xf32>
    %cst_217 = arith.constant 5.000000e-01 : f32
    %563 = vector.broadcast %cst_217 : f32 to vector<32x32xf32>
    %564 = arith.mulf %563, %562 : vector<32x32xf32>
    %565 = arith.mulf %552, %564 : vector<32x32xf32>
    %566 = vector.extract_strided_slice %565 {offsets = [0, 0], sizes = [16, 32], strides = [1, 1]} : vector<32x32xf32> to vector<16x32xf32>
    %cst_218 = arith.constant dense<0.000000e+00> : vector<32xf32>
    %567 = vector.multi_reduction <add>, %566, %cst_218 [0] : vector<16x32xf32> to vector<32xf32>
    %568 = vector.shape_cast %567 : vector<32xf32> to vector<1x32xf32>
    %cst_219 = arith.constant 1.600000e+01 : f32
    %569 = vector.broadcast %cst_219 : f32 to vector<1x32xf32>
    %570 = arith.divf %568, %569 : vector<1x32xf32>
    %cst_220 = arith.constant dense<0xFF800000> : vector<32xf32>
    %571 = vector.multi_reduction <maximumf>, %566, %cst_220 [0] : vector<16x32xf32> to vector<32xf32>
    %572 = vector.shape_cast %571 : vector<32xf32> to vector<1x32xf32>
    %573 = tpu.concatenate %570, %572 in 1 : vector<1x32xf32>, vector<1x32xf32> -> vector<1x64xf32>
    %574 = vector.extract_strided_slice %565 {offsets = [16, 0], sizes = [16, 32], strides = [1, 1]} : vector<32x32xf32> to vector<16x32xf32>
    %cst_221 = arith.constant dense<0.000000e+00> : vector<32xf32>
    %575 = vector.multi_reduction <add>, %574, %cst_221 [0] : vector<16x32xf32> to vector<32xf32>
    %576 = vector.shape_cast %575 : vector<32xf32> to vector<1x32xf32>
    %cst_222 = arith.constant 1.600000e+01 : f32
    %577 = vector.broadcast %cst_222 : f32 to vector<1x32xf32>
    %578 = arith.divf %576, %577 : vector<1x32xf32>
    %cst_223 = arith.constant dense<0xFF800000> : vector<32xf32>
    %579 = vector.multi_reduction <maximumf>, %574, %cst_223 [0] : vector<16x32xf32> to vector<32xf32>
    %580 = vector.shape_cast %579 : vector<32xf32> to vector<1x32xf32>
    %581 = tpu.concatenate %578, %580 in 1 : vector<1x32xf32>, vector<1x32xf32> -> vector<1x64xf32>
    %582 = tpu.concatenate %573, %581 in 0 : vector<1x64xf32>, vector<1x64xf32> -> vector<2x64xf32>
    %c0_224 = arith.constant 0 : index
    %c0_225 = arith.constant 0 : index
    %583 = vector.load %arg26[%c0_224, %c0_225] : memref<64x32xf32, #tpu.memory_space<vmem>>, vector<64x32xf32>
    %cst_226 = arith.constant dense<0.000000e+00> : vector<2x32xf32>
    %584 = tpu.matmul %582, %583, %cst_226 {dimension_numbers = #tpu.dot_dimension_numbers<[1], [0], [0], [1], [0, 0, 1, 1], [], []>} : vector<2x64xf32>, vector<64x32xf32>, vector<2x32xf32> -> vector<2x32xf32>
    %c0_227 = arith.constant 0 : index
    %c0_228 = arith.constant 0 : index
    %585 = vector.load %arg27[%c0_227, %c0_228] : memref<1x32xf32, #tpu.memory_space<vmem>>, vector<1x32xf32>
    %586 = vector.broadcast %585 : vector<1x32xf32> to vector<2x32xf32>
    %587 = arith.addf %584, %586 : vector<2x32xf32>
    %c0_229 = arith.constant 0 : index
    %c0_230 = arith.constant 0 : index
    %588 = vector.load %arg28[%c0_229, %c0_230] : memref<1x32xf32, #tpu.memory_space<vmem>>, vector<1x32xf32>
    %589 = vector.broadcast %588 : vector<1x32xf32> to vector<2x32xf32>
    %590 = arith.mulf %587, %589 : vector<2x32xf32>
    %c0_231 = arith.constant 0 : index
    %c0_232 = arith.constant 0 : index
    %591 = vector.load %arg29[%c0_231, %c0_232] : memref<1x32xf32, #tpu.memory_space<vmem>>, vector<1x32xf32>
    %592 = vector.broadcast %591 : vector<1x32xf32> to vector<2x32xf32>
    %593 = arith.addf %590, %592 : vector<2x32xf32>
    %594 = arith.mulf %593, %593 : vector<2x32xf32>
    %595 = arith.mulf %593, %594 : vector<2x32xf32>
    %cst_233 = arith.constant 4.471500e-02 : f32
    %596 = vector.broadcast %cst_233 : f32 to vector<2x32xf32>
    %597 = arith.mulf %596, %595 : vector<2x32xf32>
    %598 = arith.addf %593, %597 : vector<2x32xf32>
    %cst_234 = arith.constant 0.797884583 : f32
    %599 = vector.broadcast %cst_234 : f32 to vector<2x32xf32>
    %600 = arith.mulf %599, %598 : vector<2x32xf32>
    %601 = math.tanh %600 : vector<2x32xf32>
    %cst_235 = arith.constant 1.000000e+00 : f32
    %602 = vector.broadcast %cst_235 : f32 to vector<2x32xf32>
    %603 = arith.addf %602, %601 : vector<2x32xf32>
    %cst_236 = arith.constant 5.000000e-01 : f32
    %604 = vector.broadcast %cst_236 : f32 to vector<2x32xf32>
    %605 = arith.mulf %604, %603 : vector<2x32xf32>
    %606 = arith.mulf %593, %605 : vector<2x32xf32>
    %c0_237 = arith.constant 0 : index
    %c0_238 = arith.constant 0 : index
    %607 = vector.load %arg30[%c0_237, %c0_238] : memref<32x5xf32, #tpu.memory_space<vmem>>, vector<32x5xf32>
    %cst_239 = arith.constant dense<0.000000e+00> : vector<2x5xf32>
    %608 = tpu.matmul %606, %607, %cst_239 {dimension_numbers = #tpu.dot_dimension_numbers<[1], [0], [0], [1], [0, 0, 1, 1], [], []>} : vector<2x32xf32>, vector<32x5xf32>, vector<2x5xf32> -> vector<2x5xf32>
    %c0_240 = arith.constant 0 : index
    %c0_241 = arith.constant 0 : index
    %609 = vector.load %arg31[%c0_240, %c0_241] : memref<1x5xf32, #tpu.memory_space<vmem>>, vector<1x5xf32>
    %610 = vector.broadcast %609 : vector<1x5xf32> to vector<2x5xf32>
    %611 = arith.addf %608, %610 : vector<2x5xf32>
    %cst_242 = arith.constant 0.000000e+00 : f32
    %612 = vector.broadcast %cst_242 : f32 to vector<8x128xf32>
    %c0_243 = arith.constant 0 : index
    %c0_244 = arith.constant 0 : index
    %613 = vector.load %arg32[%c0_243, %c0_244] : memref<8x128xf32, #tpu.memory_space<vmem>>, vector<8x128xf32>
    tpu.vector_store %arg32[%c0_243, %c0_244], %612 {strides = array<i32>} : memref<8x128xf32, #tpu.memory_space<vmem>>, vector<8x128xf32>,
    %c0_245 = arith.constant 0 : index
    %c0_246 = arith.constant 0 : index
    %614 = vector.load %arg32[%c0_245, %c0_246] : memref<8x128xf32, #tpu.memory_space<vmem>>, vector<2x5xf32>
    tpu.vector_store %arg32[%c0_245, %c0_246], %611 {strides = array<i32>} : memref<8x128xf32, #tpu.memory_space<vmem>>, vector<2x5xf32>,
    return
  }
}

</mosaic_0001>

<llo_original>
// kernel: forward.1
$region0: #{forward.1}
  #allocation0 [shape = 'u32[]', space=smem, size = 0x4, offset = 0x4, fixed_abs, tag = 'smem constant byte address 0x4 - core index']
  #allocation1 [shape = 'u32[144,128]{1,0:T(1,128)}', space=vmem, size = 0x12000, scoped, tag = 'internal scratch']
  %s0 = inlined_call_operand.smem [shape: u32[33], index: -1, kind: input, shape index: {}]
  %s1 = sld [smem:[%s0]]
  %s2 = scalar_lea.smem %s0, 1
  %s3 = sld [smem:[%s2]]
  %s4 = scalar_lea.smem %s0, 2
  %s5 = sld [smem:[%s4]]
  %s6 = scalar_lea.smem %s0, 3
  %s7 = sld [smem:[%s6]]
  %s8 = scalar_lea.smem %s0, 4
  %s9 = sld [smem:[%s8]]
  %s10 = scalar_lea.smem %s0, 5
  %s11 = sld [smem:[%s10]]
  %s12 = scalar_lea.smem %s0, 6
  %s13 = sld [smem:[%s12]]
  %s14 = scalar_lea.smem %s0, 7
  %s15 = sld [smem:[%s14]]
  %s16 = scalar_lea.smem %s0, 8
  %s17 = sld [smem:[%s16]]
  %s18 = scalar_lea.smem %s0, 9
  %s19 = sld [smem:[%s18]]
  %s20 = scalar_lea.smem %s0, 10
  %s21 = sld [smem:[%s20]]
  %s22 = scalar_lea.smem %s0, 11
  %s23 = sld [smem:[%s22]]
  %s24 = scalar_lea.smem %s0, 12
  %s25 = sld [smem:[%s24]]
  %s26 = scalar_lea.smem %s0, 13
  %s27 = sld [smem:[%s26]]
  %s28 = scalar_lea.smem %s0, 14
  %s29 = sld [smem:[%s28]]
  %s30 = scalar_lea.smem %s0, 15
  %s31 = sld [smem:[%s30]]
  %s32 = scalar_lea.smem %s0, 16
  %s33 = sld [smem:[%s32]]
  %s34 = scalar_lea.smem %s0, 17
  %s35 = sld [smem:[%s34]]
  %s36 = scalar_lea.smem %s0, 18
  %s37 = sld [smem:[%s36]]
  %s38 = scalar_lea.smem %s0, 19
  %s39 = sld [smem:[%s38]]
  %s40 = scalar_lea.smem %s0, 20
  %s41 = sld [smem:[%s40]]
  %s42 = scalar_lea.smem %s0, 21
  %s43 = sld [smem:[%s42]]
  %s44 = scalar_lea.smem %s0, 22
  %s45 = sld [smem:[%s44]]
  %s46 = scalar_lea.smem %s0, 23
  %s47 = sld [smem:[%s46]]
  %s48 = scalar_lea.smem %s0, 24
  %s49 = sld [smem:[%s48]]
  %s50 = scalar_lea.smem %s0, 25
  %s51 = sld [smem:[%s50]]
  %s52 = scalar_lea.smem %s0, 26
  %s53 = sld [smem:[%s52]]
  %s54 = scalar_lea.smem %s0, 27
  %s55 = sld [smem:[%s54]]
  %s56 = scalar_lea.smem %s0, 28
  %s57 = sld [smem:[%s56]]
  %s58 = scalar_lea.smem %s0, 29
  %s59 = sld [smem:[%s58]]
  %s60 = scalar_lea.smem %s0, 30
  %s61 = sld [smem:[%s60]]
  %s62 = scalar_lea.smem %s0, 31
  %s63 = sld [smem:[%s62]]
  %s64 = scalar_lea.smem %s0, 32
  %s65 = sld [smem:[%s64]]
  %s66 = sld [smem:[#allocation0]]
  $region138: #{forward.1} parent=0
    _
  %s68 = ssub.s32 1, %s66
  %s69 = scalar_select 0, %s68, %s66
  // Predicated region
  $region2: #{forward.1} parent=0 // pred_check
    _
  $region3: #{forward.1} parent=0 // pred_check_branch
    %71 = sbr.rel (0) target = $region5
  $region4: #{forward.1} parent=0 // pred_region
    _
  $region5: #{forward.1} parent=0 // pred_fallthru
    _
  // Predicated region
  $region6: #{forward.1} parent=0 // pred_check
    _
  $region7: #{forward.1} parent=0 // pred_check_branch
    %73 = sbr.rel (0) target = $region9
  $region8: #{forward.1} parent=0 // pred_region
    _
  $region9: #{forward.1} parent=0 // pred_fallthru
    _
  // Predicated region
  $region10: #{forward.1} parent=0 // pred_check
    _
  $region11: #{forward.1} parent=0 // pred_check_branch
    %75 = sbr.rel (0) target = $region13
  $region12: #{forward.1} parent=0 // pred_region
    _
  $region13: #{forward.1} parent=0 // pred_fallthru
    _
  // Predicated region
  $region14: #{forward.1} parent=0 // pred_check
    _
  $region15: #{forward.1} parent=0 // pred_check_branch
    %77 = sbr.rel (0) target = $region17
  $region16: #{forward.1} parent=0 // pred_region
    _
  $region17: #{forward.1} parent=0 // pred_fallthru
    _
  // Predicated region
  $region18: #{forward.1} parent=0 // pred_check
    _
  $region19: #{forward.1} parent=0 // pred_check_branch
    %79 = sbr.rel (0) target = $region21
  $region20: #{forward.1} parent=0 // pred_region
    _
  $region21: #{forward.1} parent=0 // pred_fallthru
    _
  // Predicated region
  $region22: #{forward.1} parent=0 // pred_check
    _
  $region23: #{forward.1} parent=0 // pred_check_branch
    %81 = sbr.rel (0) target = $region25
  $region24: #{forward.1} parent=0 // pred_region
    _
  $region25: #{forward.1} parent=0 // pred_fallthru
    _
  // Predicated region
  $region26: #{forward.1} parent=0 // pred_check
    _
  $region27: #{forward.1} parent=0 // pred_check_branch
    %83 = sbr.rel (0) target = $region29
  $region28: #{forward.1} parent=0 // pred_region
    _
  $region29: #{forward.1} parent=0 // pred_fallthru
    _
  // Predicated region
  $region30: #{forward.1} parent=0 // pred_check
    _
  $region31: #{forward.1} parent=0 // pred_check_branch
    %85 = sbr.rel (0) target = $region33
  $region32: #{forward.1} parent=0 // pred_region
    _
  $region33: #{forward.1} parent=0 // pred_fallthru
    _
  // Predicated region
  $region34: #{forward.1} parent=0 // pred_check
    _
  $region35: #{forward.1} parent=0 // pred_check_branch
    %87 = sbr.rel (0) target = $region37
  $region36: #{forward.1} parent=0 // pred_region
    _
  $region37: #{forward.1} parent=0 // pred_fallthru
    _
  // Predicated region
  $region38: #{forward.1} parent=0 // pred_check
    _
  $region39: #{forward.1} parent=0 // pred_check_branch
    %89 = sbr.rel (0) target = $region41
  $region40: #{forward.1} parent=0 // pred_region
    _
  $region41: #{forward.1} parent=0 // pred_fallthru
    _
  // Predicated region
  $region42: #{forward.1} parent=0 // pred_check
    _
  $region43: #{forward.1} parent=0 // pred_check_branch
    %91 = sbr.rel (0) target = $region45
  $region44: #{forward.1} parent=0 // pred_region
    _
  $region45: #{forward.1} parent=0 // pred_fallthru
    _
  // Predicated region
  $region46: #{forward.1} parent=0 // pred_check
    _
  $region47: #{forward.1} parent=0 // pred_check_branch
    %93 = sbr.rel (0) target = $region49
  $region48: #{forward.1} parent=0 // pred_region
    _
  $region49: #{forward.1} parent=0 // pred_fallthru
    _
  // Predicated region
  $region50: #{forward.1} parent=0 // pred_check
    _
  $region51: #{forward.1} parent=0 // pred_check_branch
    %95 = sbr.rel (0) target = $region53
  $region52: #{forward.1} parent=0 // pred_region
    _
  $region53: #{forward.1} parent=0 // pred_fallthru
    _
  // Predicated region
  $region54: #{forward.1} parent=0 // pred_check
    _
  $region55: #{forward.1} parent=0 // pred_check_branch
    %97 = sbr.rel (0) target = $region57
  $region56: #{forward.1} parent=0 // pred_region
    _
  $region57: #{forward.1} parent=0 // pred_fallthru
    _
  // Predicated region
  $region58: #{forward.1} parent=0 // pred_check
    _
  $region59: #{forward.1} parent=0 // pred_check_branch
    %99 = sbr.rel (0) target = $region61
  $region60: #{forward.1} parent=0 // pred_region
    _
  $region61: #{forward.1} parent=0 // pred_fallthru
    _
  // Predicated region
  $region62: #{forward.1} parent=0 // pred_check
    _
  $region63: #{forward.1} parent=0 // pred_check_branch
    %101 = sbr.rel (0) target = $region65
  $region64: #{forward.1} parent=0 // pred_region
    _
  $region65: #{forward.1} parent=0 // pred_fallthru
    _
  // Predicated region
  $region66: #{forward.1} parent=0 // pred_check
    _
  $region67: #{forward.1} parent=0 // pred_check_branch
    %103 = sbr.rel (0) target = $region69
  $region68: #{forward.1} parent=0 // pred_region
    _
  $region69: #{forward.1} parent=0 // pred_fallthru
    _
  // Predicated region
  $region70: #{forward.1} parent=0 // pred_check
    _
  $region71: #{forward.1} parent=0 // pred_check_branch
    %105 = sbr.rel (0) target = $region73
  $region72: #{forward.1} parent=0 // pred_region
    _
  $region73: #{forward.1} parent=0 // pred_fallthru
    _
  // Predicated region
  $region74: #{forward.1} parent=0 // pred_check
    _
  $region75: #{forward.1} parent=0 // pred_check_branch
    %107 = sbr.rel (0) target = $region77
  $region76: #{forward.1} parent=0 // pred_region
    _
  $region77: #{forward.1} parent=0 // pred_fallthru
    _
  // Predicated region
  $region78: #{forward.1} parent=0 // pred_check
    _
  $region79: #{forward.1} parent=0 // pred_check_branch
    %109 = sbr.rel (0) target = $region81
  $region80: #{forward.1} parent=0 // pred_region
    _
  $region81: #{forward.1} parent=0 // pred_fallthru
    _
  // Predicated region
  $region82: #{forward.1} parent=0 // pred_check
    _
  $region83: #{forward.1} parent=0 // pred_check_branch
    %111 = sbr.rel (0) target = $region85
  $region84: #{forward.1} parent=0 // pred_region
    _
  $region85: #{forward.1} parent=0 // pred_fallthru
    _
  // Predicated region
  $region86: #{forward.1} parent=0 // pred_check
    _
  $region87: #{forward.1} parent=0 // pred_check_branch
    %113 = sbr.rel (0) target = $region89
  $region88: #{forward.1} parent=0 // pred_region
    _
  $region89: #{forward.1} parent=0 // pred_fallthru
    _
  // Predicated region
  $region90: #{forward.1} parent=0 // pred_check
    _
  $region91: #{forward.1} parent=0 // pred_check_branch
    %115 = sbr.rel (0) target = $region93
  $region92: #{forward.1} parent=0 // pred_region
    _
  $region93: #{forward.1} parent=0 // pred_fallthru
    _
  // Predicated region
  $region94: #{forward.1} parent=0 // pred_check
    _
  $region95: #{forward.1} parent=0 // pred_check_branch
    %117 = sbr.rel (0) target = $region97
  $region96: #{forward.1} parent=0 // pred_region
    _
  $region97: #{forward.1} parent=0 // pred_fallthru
    _
  // Predicated region
  $region98: #{forward.1} parent=0 // pred_check
    _
  $region99: #{forward.1} parent=0 // pred_check_branch
    %119 = sbr.rel (0) target = $region101
  $region100: #{forward.1} parent=0 // pred_region
    _
  $region101: #{forward.1} parent=0 // pred_fallthru
    _
  // Predicated region
  $region102: #{forward.1} parent=0 // pred_check
    _
  $region103: #{forward.1} parent=0 // pred_check_branch
    %121 = sbr.rel (0) target = $region105
  $region104: #{forward.1} parent=0 // pred_region
    _
  $region105: #{forward.1} parent=0 // pred_fallthru
    _
  // Predicated region
  $region106: #{forward.1} parent=0 // pred_check
    _
  $region107: #{forward.1} parent=0 // pred_check_branch
    %123 = sbr.rel (0) target = $region109
  $region108: #{forward.1} parent=0 // pred_region
    _
  $region109: #{forward.1} parent=0 // pred_fallthru
    _
  // Predicated region
  $region110: #{forward.1} parent=0 // pred_check
    _
  $region111: #{forward.1} parent=0 // pred_check_branch
    %125 = sbr.rel (0) target = $region113
  $region112: #{forward.1} parent=0 // pred_region
    _
  $region113: #{forward.1} parent=0 // pred_fallthru
    _
  // Predicated region
  $region114: #{forward.1} parent=0 // pred_check
    _
  $region115: #{forward.1} parent=0 // pred_check_branch
    %127 = sbr.rel (0) target = $region117
  $region116: #{forward.1} parent=0 // pred_region
    _
  $region117: #{forward.1} parent=0 // pred_fallthru
    _
  // Predicated region
  $region118: #{forward.1} parent=0 // pred_check
    _
  $region119: #{forward.1} parent=0 // pred_check_branch
    %129 = sbr.rel (0) target = $region121
  $region120: #{forward.1} parent=0 // pred_region
    _
  $region121: #{forward.1} parent=0 // pred_fallthru
    _
  // Predicated region
  $region122: #{forward.1} parent=0 // pred_check
    _
  $region123: #{forward.1} parent=0 // pred_check_branch
    %131 = sbr.rel (0) target = $region125
  $region124: #{forward.1} parent=0 // pred_region
    _
  $region125: #{forward.1} parent=0 // pred_fallthru
    _
  // Predicated region
  $region126: #{forward.1} parent=0 // pred_check
    _
  $region127: #{forward.1} parent=0 // pred_check_branch
    %133 = sbr.rel (0) target = $region129
  $region128: #{forward.1} parent=0 // pred_region
    _
  $region129: #{forward.1} parent=0 // pred_fallthru
    _
  %v134 = vld [vmem:[%s1] sm:$0xff]
  %v135 = vld [vmem:[%s1 + $0x8] sm:$0xff]
  %v136 = vld [vmem:[%s1 + $0x10] sm:$0xff]
  %v137 = vld [vmem:[%s1 + $0x18] sm:$0xff]
  %v138 = vld [vmem:[%s9] sm:$0x3f]
  %v139 = vld [vmem:[%s11] sm:$0x1]
  %v141 = vlaneseq
  %v142 = vshrl.u32 %v141, 7
  %v143 = vsub.s32 0, %v142
  %v144 = vrot.slane %v139, %v143
  %vm146 = vcmask 48128
  %v148 = vsel %vm146, %v134, 0
  %v151 = vsel %vm146, %v135, 0
  %v154 = vsel %vm146, %v136, 0
  %v157 = vsel %vm146, %v137, 0
  %vm159 = vcmask 1045504
  %v161 = vsel %vm159, %v138, 0
  %163 = vmatprep.subr.mxu0 0.0
  %164 = vmatpush1.msra.mxu0 %v161
  %165 = vmatprep.subr.mxu0 0.0
  %166 = vmatpush1.msra.mxu0 0.0
  %167 = vmatprep.subr.mxu0 0.0
  %168 = vmatpush1.msra.mxu0 0.0
  %169 = vmatprep.subr.mxu0 0.0
  %170 = vmatpush1.msra.mxu0 0.0
  %171 = vmatprep.subr.mxu0 0.0
  %172 = vmatpush1.msra.mxu0 0.0
  %173 = vmatprep.subr.mxu0 0.0
  %174 = vmatpush1.msra.mxu0 0.0
  %175 = vmatprep.subr.mxu0 0.0
  %176 = vmatpush1.msra.mxu0 0.0
  %177 = vmatprep.subr.mxu0 0.0
  %178 = vmatpush1.msra.mxu0 0.0
  %179 = vmatprep.subr.mxu0 0.0
  %180 = vmatpush1.msra.mxu0 0.0
  %181 = vmatprep.subr.mxu0 0.0
  %182 = vmatpush1.msra.mxu0 0.0
  %183 = vmatprep.subr.mxu0 0.0
  %184 = vmatpush1.msra.mxu0 0.0
  %185 = vmatprep.subr.mxu0 0.0
  %186 = vmatpush1.msra.mxu0 0.0
  %187 = vmatprep.subr.mxu0 0.0
  %188 = vmatpush1.msra.mxu0 0.0
  %189 = vmatprep.subr.mxu0 0.0
  %190 = vmatpush1.msra.mxu0 0.0
  %191 = vmatprep.subr.mxu0 0.0
  %192 = vmatpush1.msra.mxu0 0.0
  %193 = vmatprep.subr.mxu0 0.0
  %194 = vmatpush1.msra.mxu0 0.0
  %195 = vmatprep.subr.mxu0 0.0
  %196 = vmatpush1.msra.mxu0 0.0
  %197 = vmatprep.subr.mxu0 0.0
  %198 = vmatpush1.msra.mxu0 0.0
  %199 = vmatprep.subr.mxu0 0.0
  %200 = vmatpush1.msra.mxu0 0.0
  %201 = vmatprep.subr.mxu0 0.0
  %202 = vmatpush1.msra.mxu0 0.0
  %203 = vmatprep.subr.mxu0 0.0
  %204 = vmatpush1.msra.mxu0 0.0
  %205 = vmatprep.subr.mxu0 0.0
  %206 = vmatpush1.msra.mxu0 0.0
  %207 = vmatprep.subr.mxu0 0.0
  %208 = vmatpush1.msra.mxu0 0.0
  %209 = vmatprep.subr.mxu0 0.0
  %210 = vmatpush1.msra.mxu0 0.0
  %211 = vmatprep.subr.mxu0 0.0
  %212 = vmatpush1.msra.mxu0 0.0
  %213 = vmatprep.subr.mxu0 0.0
  %214 = vmatpush1.msra.mxu0 0.0
  %215 = vmatprep.subr.mxu0 0.0
  %216 = vmatpush1.msra.mxu0 0.0
  %217 = vmatprep.subr.mxu0 0.0
  %218 = vmatpush1.msra.mxu0 0.0
  %219 = vmatprep.subr.mxu0 0.0
  %220 = vmatpush1.msra.mxu0 0.0
  %221 = vmatprep.subr.mxu0 0.0
  %222 = vmatpush1.msra.mxu0 0.0
  %223 = vmatprep.subr.mxu0 0.0
  %224 = vmatpush1.msra.mxu0 0.0
  %225 = vmatprep.subr.mxu0 0.0
  %226 = vmatpush1.msra.mxu0 0.0
  %227 = vmatprep.mubr.f32.mxu0 0.0
  %228 = vmatmul.mubr.f32.gmra.mrb[0].mxu0 %v148
  %v229 = vpop.f32.mrb[0].mxu0
  %v230 = vadd.f32 %v144, %v229
  %v231 = vpop.f32.mrb[0].mxu0
  %232 = vmatprep.mubr.f32.mxu0 0.0
  %233 = vmatmul.mubr.f32.gmra.mrb[0].mxu0 %v151
  %v234 = vpop.f32.mrb[0].mxu0
  %v235 = vadd.f32 %v144, %v234
  %v236 = vpop.f32.mrb[0].mxu0
  %237 = vmatprep.mubr.f32.mxu0 0.0
  %238 = vmatmul.mubr.f32.gmra.mrb[0].mxu0 %v154
  %v239 = vpop.f32.mrb[0].mxu0
  %v240 = vadd.f32 %v144, %v239
  %v241 = vpop.f32.mrb[0].mxu0
  %242 = vmatprep.mubr.f32.mxu0 0.0
  %243 = vmatmul.mubr.f32.gmra.mrb[0].mxu0 %v157
  %v244 = vpop.f32.mrb[0].mxu0
  %v245 = vadd.f32 %v144, %v244
  %v246 = vpop.f32.mrb[0].mxu0
  %247 = vdwg.mxu0
  %v248 = vld [vmem:[%s7] sm:$0xff]
  %v249 = vld [vmem:[%s7 + $0x8] sm:$0xff]
  %v250 = vmul.f32 %v230, 5.656854
  %v251 = vmul.f32 %v235, 5.656854
  %v252 = vmul.f32 %v240, 5.656854
  %v253 = vmul.f32 %v245, 5.656854
  %v254 = vadd.f32 %v250, %v248
  %v255 = vadd.f32 %v251, %v249
  %v256 = vadd.f32 %v252, %v248
  %v257 = vadd.f32 %v253, %v249
  %v258 = vld [vmem:[%s5] sm:$0x3]
  %v259 = vld [vmem:[%s13] sm:$0xff]
  %v260 = vld [vmem:[%s13 + $0x8] sm:$0xff]
  %v261 = vld [vmem:[%s13 + $0x10] sm:$0xff]
  %v262 = vld [vmem:[%s13 + $0x18] sm:$0xff]
  %v263 = vld [vmem:[%s15] sm:$0x1]
  %v265 = vlaneseq
  %v266 = vshrl.u32 %v265, 7
  %v267 = vsub.s32 0, %v266
  %v268 = vrot.slane %v263, %v267
  %vm270 = vcmask 261120
  %v272 = vsel %vm270, %v254, 0
  %v275 = vsel %vm270, %v255, 0
  %v278 = vsel %vm270, %v256, 0
  %v281 = vsel %vm270, %v257, 0
  %283 = vmatprep.subr.mxu0 0.0
  %284 = vmatpush1.msra.mxu0 %v259
  %285 = vmatprep.subr.mxu0 0.0
  %286 = vmatpush1.msra.mxu0 %v260
  %287 = vmatprep.subr.mxu0 0.0
  %288 = vmatpush1.msra.mxu0 %v261
  %289 = vmatprep.subr.mxu0 0.0
  %290 = vmatpush1.msra.mxu0 %v262
  %291 = vmatprep.subr.mxu0 0.0
  %292 = vmatpush1.msra.mxu0 0.0
  %293 = vmatprep.subr.mxu0 0.0
  %294 = vmatpush1.msra.mxu0 0.0
  %295 = vmatprep.subr.mxu0 0.0
  %296 = vmatpush1.msra.mxu0 0.0
  %297 = vmatprep.subr.mxu0 0.0
  %298 = vmatpush1.msra.mxu0 0.0
  %299 = vmatprep.subr.mxu0 0.0
  %300 = vmatpush1.msra.mxu0 0.0
  %301 = vmatprep.subr.mxu0 0.0
  %302 = vmatpush1.msra.mxu0 0.0
  %303 = vmatprep.subr.mxu0 0.0
  %304 = vmatpush1.msra.mxu0 0.0
  %305 = vmatprep.subr.mxu0 0.0
  %306 = vmatpush1.msra.mxu0 0.0
  %307 = vmatprep.subr.mxu0 0.0
  %308 = vmatpush1.msra.mxu0 0.0
  %309 = vmatprep.subr.mxu0 0.0
  %310 = vmatpush1.msra.mxu0 0.0
  %311 = vmatprep.subr.mxu0 0.0
  %312 = vmatpush1.msra.mxu0 0.0
  %313 = vmatprep.subr.mxu0 0.0
  %314 = vmatpush1.msra.mxu0 0.0
  %315 = vmatprep.subr.mxu0 0.0
  %316 = vmatpush1.msra.mxu0 0.0
  %317 = vmatprep.subr.mxu0 0.0
  %318 = vmatpush1.msra.mxu0 0.0
  %319 = vmatprep.subr.mxu0 0.0
  %320 = vmatpush1.msra.mxu0 0.0
  %321 = vmatprep.subr.mxu0 0.0
  %322 = vmatpush1.msra.mxu0 0.0
  %323 = vmatprep.subr.mxu0 0.0
  %324 = vmatpush1.msra.mxu0 0.0
  %325 = vmatprep.subr.mxu0 0.0
  %326 = vmatpush1.msra.mxu0 0.0
  %327 = vmatprep.subr.mxu0 0.0
  %328 = vmatpush1.msra.mxu0 0.0
  %329 = vmatprep.subr.mxu0 0.0
  %330 = vmatpush1.msra.mxu0 0.0
  %331 = vmatprep.subr.mxu0 0.0
  %332 = vmatpush1.msra.mxu0 0.0
  %333 = vmatprep.subr.mxu0 0.0
  %334 = vmatpush1.msra.mxu0 0.0
  %335 = vmatprep.subr.mxu0 0.0
  %336 = vmatpush1.msra.mxu0 0.0
  %337 = vmatprep.subr.mxu0 0.0
  %338 = vmatpush1.msra.mxu0 0.0
  %339 = vmatprep.subr.mxu0 0.0
  %340 = vmatpush1.msra.mxu0 0.0
  %341 = vmatprep.subr.mxu0 0.0
  %342 = vmatpush1.msra.mxu0 0.0
  %343 = vmatprep.subr.mxu0 0.0
  %344 = vmatpush1.msra.mxu0 0.0
  %345 = vmatprep.subr.mxu0 0.0
  %346 = vmatpush1.msra.mxu0 0.0
  %347 = vmatprep.mubr.f32.mxu0 0.0
  %348 = vmatmul.mubr.f32.gmra.mrb[0].mxu0 %v272
  %v349 = vpop.f32.mrb[0].mxu0
  %v350 = vadd.f32 %v268, %v349
  %v351 = vpop.f32.mrb[0].mxu0
  %352 = vmatprep.mubr.f32.mxu0 0.0
  %353 = vmatmul.mubr.f32.gmra.mrb[0].mxu0 %v275
  %v354 = vpop.f32.mrb[0].mxu0
  %v355 = vadd.f32 %v268, %v354
  %v356 = vpop.f32.mrb[0].mxu0
  %357 = vmatprep.mubr.f32.mxu0 0.0
  %358 = vmatmul.mubr.f32.gmra.mrb[0].mxu0 %v278
  %v359 = vpop.f32.mrb[0].mxu0
  %v360 = vadd.f32 %v268, %v359
  %v361 = vpop.f32.mrb[0].mxu0
  %362 = vmatprep.mubr.f32.mxu0 0.0
  %363 = vmatmul.mubr.f32.gmra.mrb[0].mxu0 %v281
  %v364 = vpop.f32.mrb[0].mxu0
  %v365 = vadd.f32 %v268, %v364
  %v366 = vpop.f32.mrb[0].mxu0
  %367 = vdwg.mxu0
  %v368 = vmul.f32 %v350, 0.35355338
  %v369 = vmul.f32 %v355, 0.35355338
  %v370 = vlaneseq
  %v371 = vshrl.u32 %v370, 7
  %v372 = vsub.s32 0, %v371
  %v373 = vrot.slane %v258, %v372
  %376 = vrot.lane.b32.xlu0 %v350, 96
  %v377 = vpop.permute.xlu0 %376
  %378 = vrot.lane.b32.xlu0 %v355, 96
  %v379 = vpop.permute.xlu0 %378
  %vm380 = vcmask 64512
  %v382 = vsel %vm380, %v368, 0
  %v385 = vsel %vm380, %v369, 0
  %v387 = vsel %vm380, %v377, 0
  %v389 = vsel %vm380, %v379, 0
  %391 = vmatprep.subr.mxu0 0.0
  %392 = vmatpush1.xpose.msra.mxu0 %v387
  %393 = vmatprep.subr.mxu0 0.0
  %394 = vmatpush1.xpose.msra.mxu0 %v389
  %395 = vmatprep.subr.mxu0 0.0
  %396 = vmatpush1.xpose.msra.mxu0 0.0
  %397 = vmatprep.subr.mxu0 0.0
  %398 = vmatpush1.xpose.msra.mxu0 0.0
  %399 = vmatprep.subr.mxu0 0.0
  %400 = vmatpush1.xpose.msra.mxu0 0.0
  %401 = vmatprep.subr.mxu0 0.0
  %402 = vmatpush1.xpose.msra.mxu0 0.0
  %403 = vmatprep.subr.mxu0 0.0
  %404 = vmatpush1.xpose.msra.mxu0 0.0
  %405 = vmatprep.subr.mxu0 0.0
  %406 = vmatpush1.xpose.msra.mxu0 0.0
  %407 = vmatprep.subr.mxu0 0.0
  %408 = vmatpush1.xpose.msra.mxu0 0.0
  %409 = vmatprep.subr.mxu0 0.0
  %410 = vmatpush1.xpose.msra.mxu0 0.0
  %411 = vmatprep.subr.mxu0 0.0
  %412 = vmatpush1.xpose.msra.mxu0 0.0
  %413 = vmatprep.subr.mxu0 0.0
  %414 = vmatpush1.xpose.msra.mxu0 0.0
  %415 = vmatprep.subr.mxu0 0.0
  %416 = vmatpush1.xpose.msra.mxu0 0.0
  %417 = vmatprep.subr.mxu0 0.0
  %418 = vmatpush1.xpose.msra.mxu0 0.0
  %419 = vmatprep.subr.mxu0 0.0
  %420 = vmatpush1.xpose.msra.mxu0 0.0
  %421 = vmatprep.subr.mxu0 0.0
  %422 = vmatpush1.xpose.msra.mxu0 0.0
  %423 = vmatprep.subr.mxu0 0.0
  %424 = vmatpush1.xpose.msra.mxu0 0.0
  %425 = vmatprep.subr.mxu0 0.0
  %426 = vmatpush1.xpose.msra.mxu0 0.0
  %427 = vmatprep.subr.mxu0 0.0
  %428 = vmatpush1.xpose.msra.mxu0 0.0
  %429 = vmatprep.subr.mxu0 0.0
  %430 = vmatpush1.xpose.msra.mxu0 0.0
  %431 = vmatprep.subr.mxu0 0.0
  %432 = vmatpush1.xpose.msra.mxu0 0.0
  %433 = vmatprep.subr.mxu0 0.0
  %434 = vmatpush1.xpose.msra.mxu0 0.0
  %435 = vmatprep.subr.mxu0 0.0
  %436 = vmatpush1.xpose.msra.mxu0 0.0
  %437 = vmatprep.subr.mxu0 0.0
  %438 = vmatpush1.xpose.msra.mxu0 0.0
  %439 = vmatprep.subr.mxu0 0.0
  %440 = vmatpush1.xpose.msra.mxu0 0.0
  %441 = vmatprep.subr.mxu0 0.0
  %442 = vmatpush1.xpose.msra.mxu0 0.0
  %443 = vmatprep.subr.mxu0 0.0
  %444 = vmatpush1.xpose.msra.mxu0 0.0
  %445 = vmatprep.subr.mxu0 0.0
  %446 = vmatpush1.xpose.msra.mxu0 0.0
  %447 = vmatprep.subr.mxu0 0.0
  %448 = vmatpush1.xpose.msra.mxu0 0.0
  %449 = vmatprep.subr.mxu0 0.0
  %450 = vmatpush1.xpose.msra.mxu0 0.0
  %451 = vmatprep.subr.mxu0 0.0
  %452 = vmatpush1.xpose.msra.mxu0 0.0
  %453 = vmatprep.subr.mxu0 0.0
  %454 = vmatpush1.xpose.msra.mxu0 0.0
  %455 = vmatprep.mubr.f32.mxu0 0.0
  %456 = vmatmul.mubr.f32.gmra.mrb[0].mxu0 %v382
  %v457 = vpop.f32.mrb[0].mxu0
  %v458 = vadd.f32 %v373, %v457
  %v459 = vpop.f32.mrb[0].mxu0
  %460 = vmatprep.mubr.f32.mxu0 0.0
  %461 = vmatmul.mubr.f32.gmra.mrb[0].mxu0 %v385
  %v462 = vpop.f32.mrb[0].mxu0
  %v463 = vadd.f32 %v373, %v462
  %v464 = vpop.f32.mrb[0].mxu0
  %465 = vdwg.mxu0
  %vm466 = vcmask 130048
  %v467 = vsel %vm466, %v458, -inf
  %468 = vmax.xlane.f32.xlu0 %v467
  %v469 = vpop.xlane.xlu0 %468
  %v470 = vsel %vm466, %v463, -inf
  %471 = vmax.xlane.f32.xlu0 %v470
  %v472 = vpop.xlane.xlu0 %471
  %v473 = vsub.f32 %v458, %v469
  %v474 = vsub.f32 %v463, %v472
  %v475 = vmul.f32 %v473, 1.442695
  %v476 = vpow.pop %v475
  %v477 = vmul.f32 %v474, 1.442695
  %v478 = vpow.pop %v477
  %v479 = vsel %vm466, %v476, 0.0
  %480 = vadd.xlane.f32.xlu0 %v479
  %v481 = vpop.xlane.xlu0 %480
  %v482 = vsel %vm466, %v478, 0.0
  %483 = vadd.xlane.f32.xlu0 %v482
  %v484 = vpop.xlane.xlu0 %483
  %v485 = vrcp.pop %v481
  %v486 = vrcp.pop %v484
  %v487 = vmul.f32 %v476, %v485
  %v488 = vmul.f32 %v478, %v486
  %489 = vrot.lane.b32.xlu0 %v350, 64
  %v490 = vpop.permute.xlu0 %489
  %491 = vrot.lane.b32.xlu0 %v355, 64
  %v492 = vpop.permute.xlu0 %491
  %v496 = vsel %vm466, %v487, 0
  %v499 = vsel %vm466, %v488, 0
  %501 = vmatprep.subr.mxu0 0.0
  %502 = vmatpush1.msra.mxu0 %v490
  %503 = vmatprep.subr.mxu0 0.0
  %504 = vmatpush1.msra.mxu0 %v492
  %505 = vmatprep.subr.mxu0 0.0
  %506 = vmatpush1.msra.mxu0 0.0
  %507 = vmatprep.subr.mxu0 0.0
  %508 = vmatpush1.msra.mxu0 0.0
  %509 = vmatprep.subr.mxu0 0.0
  %510 = vmatpush1.msra.mxu0 0.0
  %511 = vmatprep.subr.mxu0 0.0
  %512 = vmatpush1.msra.mxu0 0.0
  %513 = vmatprep.subr.mxu0 0.0
  %514 = vmatpush1.msra.mxu0 0.0
  %515 = vmatprep.subr.mxu0 0.0
  %516 = vmatpush1.msra.mxu0 0.0
  %517 = vmatprep.subr.mxu0 0.0
  %518 = vmatpush1.msra.mxu0 0.0
  %519 = vmatprep.subr.mxu0 0.0
  %520 = vmatpush1.msra.mxu0 0.0
  %521 = vmatprep.subr.mxu0 0.0
  %522 = vmatpush1.msra.mxu0 0.0
  %523 = vmatprep.subr.mxu0 0.0
  %524 = vmatpush1.msra.mxu0 0.0
  %525 = vmatprep.subr.mxu0 0.0
  %526 = vmatpush1.msra.mxu0 0.0
  %527 = vmatprep.subr.mxu0 0.0
  %528 = vmatpush1.msra.mxu0 0.0
  %529 = vmatprep.subr.mxu0 0.0
  %530 = vmatpush1.msra.mxu0 0.0
  %531 = vmatprep.subr.mxu0 0.0
  %532 = vmatpush1.msra.mxu0 0.0
  %533 = vmatprep.subr.mxu0 0.0
  %534 = vmatpush1.msra.mxu0 0.0
  %535 = vmatprep.subr.mxu0 0.0
  %536 = vmatpush1.msra.mxu0 0.0
  %537 = vmatprep.subr.mxu0 0.0
  %538 = vmatpush1.msra.mxu0 0.0
  %539 = vmatprep.subr.mxu0 0.0
  %540 = vmatpush1.msra.mxu0 0.0
  %541 = vmatprep.subr.mxu0 0.0
  %542 = vmatpush1.msra.mxu0 0.0
  %543 = vmatprep.subr.mxu0 0.0
  %544 = vmatpush1.msra.mxu0 0.0
  %545 = vmatprep.subr.mxu0 0.0
  %546 = vmatpush1.msra.mxu0 0.0
  %547 = vmatprep.subr.mxu0 0.0
  %548 = vmatpush1.msra.mxu0 0.0
  %549 = vmatprep.subr.mxu0 0.0
  %550 = vmatpush1.msra.mxu0 0.0
  %551 = vmatprep.subr.mxu0 0.0
  %552 = vmatpush1.msra.mxu0 0.0
  %553 = vmatprep.subr.mxu0 0.0
  %554 = vmatpush1.msra.mxu0 0.0
  %555 = vmatprep.subr.mxu0 0.0
  %556 = vmatpush1.msra.mxu0 0.0
  %557 = vmatprep.subr.mxu0 0.0
  %558 = vmatpush1.msra.mxu0 0.0
  %559 = vmatprep.subr.mxu0 0.0
  %560 = vmatpush1.msra.mxu0 0.0
  %561 = vmatprep.subr.mxu0 0.0
  %562 = vmatpush1.msra.mxu0 0.0
  %563 = vmatprep.subr.mxu0 0.0
  %564 = vmatpush1.msra.mxu0 0.0
  %565 = vmatprep.mubr.f32.mxu0 0.0
  %566 = vmatmul.mubr.f32.gmra.mrb[0].mxu0 %v496
  %v567 = vpop.f32.mrb[0].mxu0
  %v568 = vadd.f32 0.0, %v567
  %v569 = vpop.f32.mrb[0].mxu0
  %570 = vmatprep.mubr.f32.mxu0 0.0
  %571 = vmatmul.mubr.f32.gmra.mrb[0].mxu0 %v499
  %v572 = vpop.f32.mrb[0].mxu0
  %v573 = vadd.f32 0.0, %v572
  %v574 = vpop.f32.mrb[0].mxu0
  %575 = vdwg.mxu0
  %576 = vrot.lane.b32.xlu0 %v368, 120
  %v577 = vpop.permute.xlu0 %576
  %578 = vrot.lane.b32.xlu0 %v369, 120
  %v579 = vpop.permute.xlu0 %578
  %580 = vrot.lane.b32.xlu0 %v350, 88
  %v581 = vpop.permute.xlu0 %580
  %582 = vrot.lane.b32.xlu0 %v355, 88
  %v583 = vpop.permute.xlu0 %582
  %v584 = vsel %vm380, %v577, 0
  %v586 = vsel %vm380, %v579, 0
  %v588 = vsel %vm380, %v581, 0
  %v590 = vsel %vm380, %v583, 0
  %592 = vmatprep.subr.mxu0 0.0
  %593 = vmatpush1.xpose.msra.mxu0 %v588
  %594 = vmatprep.subr.mxu0 0.0
  %595 = vmatpush1.xpose.msra.mxu0 %v590
  %596 = vmatprep.subr.mxu0 0.0
  %597 = vmatpush1.xpose.msra.mxu0 0.0
  %598 = vmatprep.subr.mxu0 0.0
  %599 = vmatpush1.xpose.msra.mxu0 0.0
  %600 = vmatprep.subr.mxu0 0.0
  %601 = vmatpush1.xpose.msra.mxu0 0.0
  %602 = vmatprep.subr.mxu0 0.0
  %603 = vmatpush1.xpose.msra.mxu0 0.0
  %604 = vmatprep.subr.mxu0 0.0
  %605 = vmatpush1.xpose.msra.mxu0 0.0
  %606 = vmatprep.subr.mxu0 0.0
  %607 = vmatpush1.xpose.msra.mxu0 0.0
  %608 = vmatprep.subr.mxu0 0.0
  %609 = vmatpush1.xpose.msra.mxu0 0.0
  %610 = vmatprep.subr.mxu0 0.0
  %611 = vmatpush1.xpose.msra.mxu0 0.0
  %612 = vmatprep.subr.mxu0 0.0
  %613 = vmatpush1.xpose.msra.mxu0 0.0
  %614 = vmatprep.subr.mxu0 0.0
  %615 = vmatpush1.xpose.msra.mxu0 0.0
  %616 = vmatprep.subr.mxu0 0.0
  %617 = vmatpush1.xpose.msra.mxu0 0.0
  %618 = vmatprep.subr.mxu0 0.0
  %619 = vmatpush1.xpose.msra.mxu0 0.0
  %620 = vmatprep.subr.mxu0 0.0
  %621 = vmatpush1.xpose.msra.mxu0 0.0
  %622 = vmatprep.subr.mxu0 0.0
  %623 = vmatpush1.xpose.msra.mxu0 0.0
  %624 = vmatprep.subr.mxu0 0.0
  %625 = vmatpush1.xpose.msra.mxu0 0.0
  %626 = vmatprep.subr.mxu0 0.0
  %627 = vmatpush1.xpose.msra.mxu0 0.0
  %628 = vmatprep.subr.mxu0 0.0
  %629 = vmatpush1.xpose.msra.mxu0 0.0
  %630 = vmatprep.subr.mxu0 0.0
  %631 = vmatpush1.xpose.msra.mxu0 0.0
  %632 = vmatprep.subr.mxu0 0.0
  %633 = vmatpush1.xpose.msra.mxu0 0.0
  %634 = vmatprep.subr.mxu0 0.0
  %635 = vmatpush1.xpose.msra.mxu0 0.0
  %636 = vmatprep.subr.mxu0 0.0
  %637 = vmatpush1.xpose.msra.mxu0 0.0
  %638 = vmatprep.subr.mxu0 0.0
  %639 = vmatpush1.xpose.msra.mxu0 0.0
  %640 = vmatprep.subr.mxu0 0.0
  %641 = vmatpush1.xpose.msra.mxu0 0.0
  %642 = vmatprep.subr.mxu0 0.0
  %643 = vmatpush1.xpose.msra.mxu0 0.0
  %644 = vmatprep.subr.mxu0 0.0
  %645 = vmatpush1.xpose.msra.mxu0 0.0
  %646 = vmatprep.subr.mxu0 0.0
  %647 = vmatpush1.xpose.msra.mxu0 0.0
  %648 = vmatprep.subr.mxu0 0.0
  %649 = vmatpush1.xpose.msra.mxu0 0.0
  %650 = vmatprep.subr.mxu0 0.0
  %651 = vmatpush1.xpose.msra.mxu0 0.0
  %652 = vmatprep.subr.mxu0 0.0
  %653 = vmatpush1.xpose.msra.mxu0 0.0
  %654 = vmatprep.subr.mxu0 0.0
  %655 = vmatpush1.xpose.msra.mxu0 0.0
  %656 = vmatprep.mubr.f32.mxu0 0.0
  %657 = vmatmul.mubr.f32.gmra.mrb[0].mxu0 %v584
  %v658 = vpop.f32.mrb[0].mxu0
  %v659 = vadd.f32 %v373, %v658
  %v660 = vpop.f32.mrb[0].mxu0
  %661 = vmatprep.mubr.f32.mxu0 0.0
  %662 = vmatmul.mubr.f32.gmra.mrb[0].mxu0 %v586
  %v663 = vpop.f32.mrb[0].mxu0
  %v664 = vadd.f32 %v373, %v663
  %v665 = vpop.f32.mrb[0].mxu0
  %666 = vdwg.mxu0
  %v667 = vsel %vm466, %v659, -inf
  %668 = vmax.xlane.f32.xlu0 %v667
  %v669 = vpop.xlane.xlu0 %668
  %v670 = vsel %vm466, %v664, -inf
  %671 = vmax.xlane.f32.xlu0 %v670
  %v672 = vpop.xlane.xlu0 %671
  %v673 = vsub.f32 %v659, %v669
  %v674 = vsub.f32 %v664, %v672
  %v675 = vmul.f32 %v673, 1.442695
  %v676 = vpow.pop %v675
  %v677 = vmul.f32 %v674, 1.442695
  %v678 = vpow.pop %v677
  %v679 = vsel %vm466, %v676, 0.0
  %680 = vadd.xlane.f32.xlu0 %v679
  %v681 = vpop.xlane.xlu0 %680
  %v682 = vsel %vm466, %v678, 0.0
  %683 = vadd.xlane.f32.xlu0 %v682
  %v684 = vpop.xlane.xlu0 %683
  %v685 = vrcp.pop %v681
  %v686 = vrcp.pop %v684
  %v687 = vmul.f32 %v676, %v685
  %v688 = vmul.f32 %v678, %v686
  %689 = vrot.lane.b32.xlu0 %v350, 56
  %v690 = vpop.permute.xlu0 %689
  %691 = vrot.lane.b32.xlu0 %v355, 56
  %v692 = vpop.permute.xlu0 %691
  %v696 = vsel %vm466, %v687, 0
  %v699 = vsel %vm466, %v688, 0
  %701 = vmatprep.subr.mxu0 0.0
  %702 = vmatpush1.msra.mxu0 %v690
  %703 = vmatprep.subr.mxu0 0.0
  %704 = vmatpush1.msra.mxu0 %v692
  %705 = vmatprep.subr.mxu0 0.0
  %706 = vmatpush1.msra.mxu0 0.0
  %707 = vmatprep.subr.mxu0 0.0
  %708 = vmatpush1.msra.mxu0 0.0
  %709 = vmatprep.subr.mxu0 0.0
  %710 = vmatpush1.msra.mxu0 0.0
  %711 = vmatprep.subr.mxu0 0.0
  %712 = vmatpush1.msra.mxu0 0.0
  %713 = vmatprep.subr.mxu0 0.0
  %714 = vmatpush1.msra.mxu0 0.0
  %715 = vmatprep.subr.mxu0 0.0
  %716 = vmatpush1.msra.mxu0 0.0
  %717 = vmatprep.subr.mxu0 0.0
  %718 = vmatpush1.msra.mxu0 0.0
  %719 = vmatprep.subr.mxu0 0.0
  %720 = vmatpush1.msra.mxu0 0.0
  %721 = vmatprep.subr.mxu0 0.0
  %722 = vmatpush1.msra.mxu0 0.0
  %723 = vmatprep.subr.mxu0 0.0
  %724 = vmatpush1.msra.mxu0 0.0
  %725 = vmatprep.subr.mxu0 0.0
  %726 = vmatpush1.msra.mxu0 0.0
  %727 = vmatprep.subr.mxu0 0.0
  %728 = vmatpush1.msra.mxu0 0.0
  %729 = vmatprep.subr.mxu0 0.0
  %730 = vmatpush1.msra.mxu0 0.0
  %731 = vmatprep.subr.mxu0 0.0
  %732 = vmatpush1.msra.mxu0 0.0
  %733 = vmatprep.subr.mxu0 0.0
  %734 = vmatpush1.msra.mxu0 0.0
  %735 = vmatprep.subr.mxu0 0.0
  %736 = vmatpush1.msra.mxu0 0.0
  %737 = vmatprep.subr.mxu0 0.0
  %738 = vmatpush1.msra.mxu0 0.0
  %739 = vmatprep.subr.mxu0 0.0
  %740 = vmatpush1.msra.mxu0 0.0
  %741 = vmatprep.subr.mxu0 0.0
  %742 = vmatpush1.msra.mxu0 0.0
  %743 = vmatprep.subr.mxu0 0.0
  %744 = vmatpush1.msra.mxu0 0.0
  %745 = vmatprep.subr.mxu0 0.0
  %746 = vmatpush1.msra.mxu0 0.0
  %747 = vmatprep.subr.mxu0 0.0
  %748 = vmatpush1.msra.mxu0 0.0
  %749 = vmatprep.subr.mxu0 0.0
  %750 = vmatpush1.msra.mxu0 0.0
  %751 = vmatprep.subr.mxu0 0.0
  %752 = vmatpush1.msra.mxu0 0.0
  %753 = vmatprep.subr.mxu0 0.0
  %754 = vmatpush1.msra.mxu0 0.0
  %755 = vmatprep.subr.mxu0 0.0
  %756 = vmatpush1.msra.mxu0 0.0
  %757 = vmatprep.subr.mxu0 0.0
  %758 = vmatpush1.msra.mxu0 0.0
  %759 = vmatprep.subr.mxu0 0.0
  %760 = vmatpush1.msra.mxu0 0.0
  %761 = vmatprep.subr.mxu0 0.0
  %762 = vmatpush1.msra.mxu0 0.0
  %763 = vmatprep.subr.mxu0 0.0
  %764 = vmatpush1.msra.mxu0 0.0
  %765 = vmatprep.mubr.f32.mxu0 0.0
  %766 = vmatmul.mubr.f32.gmra.mrb[0].mxu0 %v696
  %v767 = vpop.f32.mrb[0].mxu0
  %v768 = vadd.f32 0.0, %v767
  %v769 = vpop.f32.mrb[0].mxu0
  %770 = vmatprep.mubr.f32.mxu0 0.0
  %771 = vmatmul.mubr.f32.gmra.mrb[0].mxu0 %v699
  %v772 = vpop.f32.mrb[0].mxu0
  %v773 = vadd.f32 0.0, %v772
  %v774 = vpop.f32.mrb[0].mxu0
  %775 = vdwg.mxu0
  %776 = vrot.lane.b32.xlu0 %v368, 112
  %v777 = vpop.permute.xlu0 %776
  %778 = vrot.lane.b32.xlu0 %v369, 112
  %v779 = vpop.permute.xlu0 %778
  %780 = vrot.lane.b32.xlu0 %v350, 80
  %v781 = vpop.permute.xlu0 %780
  %782 = vrot.lane.b32.xlu0 %v355, 80
  %v783 = vpop.permute.xlu0 %782
  %v784 = vsel %vm380, %v777, 0
  %v786 = vsel %vm380, %v779, 0
  %v788 = vsel %vm380, %v781, 0
  %v790 = vsel %vm380, %v783, 0
  %792 = vmatprep.subr.mxu0 0.0
  %793 = vmatpush1.xpose.msra.mxu0 %v788
  %794 = vmatprep.subr.mxu0 0.0
  %795 = vmatpush1.xpose.msra.mxu0 %v790
  %796 = vmatprep.subr.mxu0 0.0
  %797 = vmatpush1.xpose.msra.mxu0 0.0
  %798 = vmatprep.subr.mxu0 0.0
  %799 = vmatpush1.xpose.msra.mxu0 0.0
  %800 = vmatprep.subr.mxu0 0.0
  %801 = vmatpush1.xpose.msra.mxu0 0.0
  %802 = vmatprep.subr.mxu0 0.0
  %803 = vmatpush1.xpose.msra.mxu0 0.0
  %804 = vmatprep.subr.mxu0 0.0
  %805 = vmatpush1.xpose.msra.mxu0 0.0
  %806 = vmatprep.subr.mxu0 0.0
  %807 = vmatpush1.xpose.msra.mxu0 0.0
  %808 = vmatprep.subr.mxu0 0.0
  %809 = vmatpush1.xpose.msra.mxu0 0.0
  %810 = vmatprep.subr.mxu0 0.0
  %811 = vmatpush1.xpose.msra.mxu0 0.0
  %812 = vmatprep.subr.mxu0 0.0
  %813 = vmatpush1.xpose.msra.mxu0 0.0
  %814 = vmatprep.subr.mxu0 0.0
  %815 = vmatpush1.xpose.msra.mxu0 0.0
  %816 = vmatprep.subr.mxu0 0.0
  %817 = vmatpush1.xpose.msra.mxu0 0.0
  %818 = vmatprep.subr.mxu0 0.0
  %819 = vmatpush1.xpose.msra.mxu0 0.0
  %820 = vmatprep.subr.mxu0 0.0
  %821 = vmatpush1.xpose.msra.mxu0 0.0
  %822 = vmatprep.subr.mxu0 0.0
  %823 = vmatpush1.xpose.msra.mxu0 0.0
  %824 = vmatprep.subr.mxu0 0.0
  %825 = vmatpush1.xpose.msra.mxu0 0.0
  %826 = vmatprep.subr.mxu0 0.0
  %827 = vmatpush1.xpose.msra.mxu0 0.0
  %828 = vmatprep.subr.mxu0 0.0
  %829 = vmatpush1.xpose.msra.mxu0 0.0
  %830 = vmatprep.subr.mxu0 0.0
  %831 = vmatpush1.xpose.msra.mxu0 0.0
  %832 = vmatprep.subr.mxu0 0.0
  %833 = vmatpush1.xpose.msra.mxu0 0.0
  %834 = vmatprep.subr.mxu0 0.0
  %835 = vmatpush1.xpose.msra.mxu0 0.0
  %836 = vmatprep.subr.mxu0 0.0
  %837 = vmatpush1.xpose.msra.mxu0 0.0
  %838 = vmatprep.subr.mxu0 0.0
  %839 = vmatpush1.xpose.msra.mxu0 0.0
  %840 = vmatprep.subr.mxu0 0.0
  %841 = vmatpush1.xpose.msra.mxu0 0.0
  %842 = vmatprep.subr.mxu0 0.0
  %843 = vmatpush1.xpose.msra.mxu0 0.0
  %844 = vmatprep.subr.mxu0 0.0
  %845 = vmatpush1.xpose.msra.mxu0 0.0
  %846 = vmatprep.subr.mxu0 0.0
  %847 = vmatpush1.xpose.msra.mxu0 0.0
  %848 = vmatprep.subr.mxu0 0.0
  %849 = vmatpush1.xpose.msra.mxu0 0.0
  %850 = vmatprep.subr.mxu0 0.0
  %851 = vmatpush1.xpose.msra.mxu0 0.0
  %852 = vmatprep.subr.mxu0 0.0
  %853 = vmatpush1.xpose.msra.mxu0 0.0
  %854 = vmatprep.subr.mxu0 0.0
  %855 = vmatpush1.xpose.msra.mxu0 0.0
  %856 = vmatprep.mubr.f32.mxu0 0.0
  %857 = vmatmul.mubr.f32.gmra.mrb[0].mxu0 %v784
  %v858 = vpop.f32.mrb[0].mxu0
  %v859 = vadd.f32 %v373, %v858
  %v860 = vpop.f32.mrb[0].mxu0
  %861 = vmatprep.mubr.f32.mxu0 0.0
  %862 = vmatmul.mubr.f32.gmra.mrb[0].mxu0 %v786
  %v863 = vpop.f32.mrb[0].mxu0
  %v864 = vadd.f32 %v373, %v863
  %v865 = vpop.f32.mrb[0].mxu0
  %866 = vdwg.mxu0
  %v867 = vsel %vm466, %v859, -inf
  %868 = vmax.xlane.f32.xlu0 %v867
  %v869 = vpop.xlane.xlu0 %868
  %v870 = vsel %vm466, %v864, -inf
  %871 = vmax.xlane.f32.xlu0 %v870
  %v872 = vpop.xlane.xlu0 %871
  %v873 = vsub.f32 %v859, %v869
  %v874 = vsub.f32 %v864, %v872
  %v875 = vmul.f32 %v873, 1.442695
  %v876 = vpow.pop %v875
  %v877 = vmul.f32 %v874, 1.442695
  %v878 = vpow.pop %v877
  %v879 = vsel %vm466, %v876, 0.0
  %880 = vadd.xlane.f32.xlu0 %v879
  %v881 = vpop.xlane.xlu0 %880
  %v882 = vsel %vm466, %v878, 0.0
  %883 = vadd.xlane.f32.xlu0 %v882
  %v884 = vpop.xlane.xlu0 %883
  %v885 = vrcp.pop %v881
  %v886 = vrcp.pop %v884
  %v887 = vmul.f32 %v876, %v885
  %v888 = vmul.f32 %v878, %v886
  %889 = vrot.lane.b32.xlu0 %v350, 48
  %v890 = vpop.permute.xlu0 %889
  %891 = vrot.lane.b32.xlu0 %v355, 48
  %v892 = vpop.permute.xlu0 %891
  %v896 = vsel %vm466, %v887, 0
  %v899 = vsel %vm466, %v888, 0
  %901 = vmatprep.subr.mxu0 0.0
  %902 = vmatpush1.msra.mxu0 %v890
  %903 = vmatprep.subr.mxu0 0.0
  %904 = vmatpush1.msra.mxu0 %v892
  %905 = vmatprep.subr.mxu0 0.0
  %906 = vmatpush1.msra.mxu0 0.0
  %907 = vmatprep.subr.mxu0 0.0
  %908 = vmatpush1.msra.mxu0 0.0
  %909 = vmatprep.subr.mxu0 0.0
  %910 = vmatpush1.msra.mxu0 0.0
  %911 = vmatprep.subr.mxu0 0.0
  %912 = vmatpush1.msra.mxu0 0.0
  %913 = vmatprep.subr.mxu0 0.0
  %914 = vmatpush1.msra.mxu0 0.0
  %915 = vmatprep.subr.mxu0 0.0
  %916 = vmatpush1.msra.mxu0 0.0
  %917 = vmatprep.subr.mxu0 0.0
  %918 = vmatpush1.msra.mxu0 0.0
  %919 = vmatprep.subr.mxu0 0.0
  %920 = vmatpush1.msra.mxu0 0.0
  %921 = vmatprep.subr.mxu0 0.0
  %922 = vmatpush1.msra.mxu0 0.0
  %923 = vmatprep.subr.mxu0 0.0
  %924 = vmatpush1.msra.mxu0 0.0
  %925 = vmatprep.subr.mxu0 0.0
  %926 = vmatpush1.msra.mxu0 0.0
  %927 = vmatprep.subr.mxu0 0.0
  %928 = vmatpush1.msra.mxu0 0.0
  %929 = vmatprep.subr.mxu0 0.0
  %930 = vmatpush1.msra.mxu0 0.0
  %931 = vmatprep.subr.mxu0 0.0
  %932 = vmatpush1.msra.mxu0 0.0
  %933 = vmatprep.subr.mxu0 0.0
  %934 = vmatpush1.msra.mxu0 0.0
  %935 = vmatprep.subr.mxu0 0.0
  %936 = vmatpush1.msra.mxu0 0.0
  %937 = vmatprep.subr.mxu0 0.0
  %938 = vmatpush1.msra.mxu0 0.0
  %939 = vmatprep.subr.mxu0 0.0
  %940 = vmatpush1.msra.mxu0 0.0
  %941 = vmatprep.subr.mxu0 0.0
  %942 = vmatpush1.msra.mxu0 0.0
  %943 = vmatprep.subr.mxu0 0.0
  %944 = vmatpush1.msra.mxu0 0.0
  %945 = vmatprep.subr.mxu0 0.0
  %946 = vmatpush1.msra.mxu0 0.0
  %947 = vmatprep.subr.mxu0 0.0
  %948 = vmatpush1.msra.mxu0 0.0
  %949 = vmatprep.subr.mxu0 0.0
  %950 = vmatpush1.msra.mxu0 0.0
  %951 = vmatprep.subr.mxu0 0.0
  %952 = vmatpush1.msra.mxu0 0.0
  %953 = vmatprep.subr.mxu0 0.0
  %954 = vmatpush1.msra.mxu0 0.0
  %955 = vmatprep.subr.mxu0 0.0
  %956 = vmatpush1.msra.mxu0 0.0
  %957 = vmatprep.subr.mxu0 0.0
  %958 = vmatpush1.msra.mxu0 0.0
  %959 = vmatprep.subr.mxu0 0.0
  %960 = vmatpush1.msra.mxu0 0.0
  %961 = vmatprep.subr.mxu0 0.0
  %962 = vmatpush1.msra.mxu0 0.0
  %963 = vmatprep.subr.mxu0 0.0
  %964 = vmatpush1.msra.mxu0 0.0
  %965 = vmatprep.mubr.f32.mxu0 0.0
  %966 = vmatmul.mubr.f32.gmra.mrb[0].mxu0 %v896
  %v967 = vpop.f32.mrb[0].mxu0
  %v968 = vadd.f32 0.0, %v967
  %v969 = vpop.f32.mrb[0].mxu0
  %970 = vmatprep.mubr.f32.mxu0 0.0
  %971 = vmatmul.mubr.f32.gmra.mrb[0].mxu0 %v899
  %v972 = vpop.f32.mrb[0].mxu0
  %v973 = vadd.f32 0.0, %v972
  %v974 = vpop.f32.mrb[0].mxu0
  %975 = vdwg.mxu0
  %976 = vrot.lane.b32.xlu0 %v368, 104
  %v977 = vpop.permute.xlu0 %976
  %978 = vrot.lane.b32.xlu0 %v369, 104
  %v979 = vpop.permute.xlu0 %978
  %980 = vrot.lane.b32.xlu0 %v350, 72
  %v981 = vpop.permute.xlu0 %980
  %982 = vrot.lane.b32.xlu0 %v355, 72
  %v983 = vpop.permute.xlu0 %982
  %v984 = vsel %vm380, %v977, 0
  %v986 = vsel %vm380, %v979, 0
  %v988 = vsel %vm380, %v981, 0
  %v990 = vsel %vm380, %v983, 0
  %992 = vmatprep.subr.mxu0 0.0
  %993 = vmatpush1.xpose.msra.mxu0 %v988
  %994 = vmatprep.subr.mxu0 0.0
  %995 = vmatpush1.xpose.msra.mxu0 %v990
  %996 = vmatprep.subr.mxu0 0.0
  %997 = vmatpush1.xpose.msra.mxu0 0.0
  %998 = vmatprep.subr.mxu0 0.0
  %999 = vmatpush1.xpose.msra.mxu0 0.0
  %1000 = vmatprep.subr.mxu0 0.0
  %1001 = vmatpush1.xpose.msra.mxu0 0.0
  %1002 = vmatprep.subr.mxu0 0.0
  %1003 = vmatpush1.xpose.msra.mxu0 0.0
  %1004 = vmatprep.subr.mxu0 0.0
  %1005 = vmatpush1.xpose.msra.mxu0 0.0
  %1006 = vmatprep.subr.mxu0 0.0
  %1007 = vmatpush1.xpose.msra.mxu0 0.0
  %1008 = vmatprep.subr.mxu0 0.0
  %1009 = vmatpush1.xpose.msra.mxu0 0.0
  %1010 = vmatprep.subr.mxu0 0.0
  %1011 = vmatpush1.xpose.msra.mxu0 0.0
  %1012 = vmatprep.subr.mxu0 0.0
  %1013 = vmatpush1.xpose.msra.mxu0 0.0
  %1014 = vmatprep.subr.mxu0 0.0
  %1015 = vmatpush1.xpose.msra.mxu0 0.0
  %1016 = vmatprep.subr.mxu0 0.0
  %1017 = vmatpush1.xpose.msra.mxu0 0.0
  %1018 = vmatprep.subr.mxu0 0.0
  %1019 = vmatpush1.xpose.msra.mxu0 0.0
  %1020 = vmatprep.subr.mxu0 0.0
  %1021 = vmatpush1.xpose.msra.mxu0 0.0
  %1022 = vmatprep.subr.mxu0 0.0
  %1023 = vmatpush1.xpose.msra.mxu0 0.0
  %1024 = vmatprep.subr.mxu0 0.0
  %1025 = vmatpush1.xpose.msra.mxu0 0.0
  %1026 = vmatprep.subr.mxu0 0.0
  %1027 = vmatpush1.xpose.msra.mxu0 0.0
  %1028 = vmatprep.subr.mxu0 0.0
  %1029 = vmatpush1.xpose.msra.mxu0 0.0
  %1030 = vmatprep.subr.mxu0 0.0
  %1031 = vmatpush1.xpose.msra.mxu0 0.0
  %1032 = vmatprep.subr.mxu0 0.0
  %1033 = vmatpush1.xpose.msra.mxu0 0.0
  %1034 = vmatprep.subr.mxu0 0.0
  %1035 = vmatpush1.xpose.msra.mxu0 0.0
  %1036 = vmatprep.subr.mxu0 0.0
  %1037 = vmatpush1.xpose.msra.mxu0 0.0
  %1038 = vmatprep.subr.mxu0 0.0
  %1039 = vmatpush1.xpose.msra.mxu0 0.0
  %1040 = vmatprep.subr.mxu0 0.0
  %1041 = vmatpush1.xpose.msra.mxu0 0.0
  %1042 = vmatprep.subr.mxu0 0.0
  %1043 = vmatpush1.xpose.msra.mxu0 0.0
  %1044 = vmatprep.subr.mxu0 0.0
  %1045 = vmatpush1.xpose.msra.mxu0 0.0
  %1046 = vmatprep.subr.mxu0 0.0
  %1047 = vmatpush1.xpose.msra.mxu0 0.0
  %1048 = vmatprep.subr.mxu0 0.0
  %1049 = vmatpush1.xpose.msra.mxu0 0.0
  %1050 = vmatprep.subr.mxu0 0.0
  %1051 = vmatpush1.xpose.msra.mxu0 0.0
  %1052 = vmatprep.subr.mxu0 0.0
  %1053 = vmatpush1.xpose.msra.mxu0 0.0
  %1054 = vmatprep.subr.mxu0 0.0
  %1055 = vmatpush1.xpose.msra.mxu0 0.0
  %1056 = vmatprep.mubr.f32.mxu0 0.0
  %1057 = vmatmul.mubr.f32.gmra.mrb[0].mxu0 %v984
  %v1058 = vpop.f32.mrb[0].mxu0
  %v1059 = vadd.f32 %v373, %v1058
  %v1060 = vpop.f32.mrb[0].mxu0
  %1061 = vmatprep.mubr.f32.mxu0 0.0
  %1062 = vmatmul.mubr.f32.gmra.mrb[0].mxu0 %v986
  %v1063 = vpop.f32.mrb[0].mxu0
  %v1064 = vadd.f32 %v373, %v1063
  %v1065 = vpop.f32.mrb[0].mxu0
  %1066 = vdwg.mxu0
  %v1067 = vsel %vm466, %v1059, -inf
  %1068 = vmax.xlane.f32.xlu0 %v1067
  %v1069 = vpop.xlane.xlu0 %1068
  %v1070 = vsel %vm466, %v1064, -inf
  %1071 = vmax.xlane.f32.xlu0 %v1070
  %v1072 = vpop.xlane.xlu0 %1071
  %v1073 = vsub.f32 %v1059, %v1069
  %v1074 = vsub.f32 %v1064, %v1072
  %v1075 = vmul.f32 %v1073, 1.442695
  %v1076 = vpow.pop %v1075
  %v1077 = vmul.f32 %v1074, 1.442695
  %v1078 = vpow.pop %v1077
  %v1079 = vsel %vm466, %v1076, 0.0
  %1080 = vadd.xlane.f32.xlu0 %v1079
  %v1081 = vpop.xlane.xlu0 %1080
  %v1082 = vsel %vm466, %v1078, 0.0
  %1083 = vadd.xlane.f32.xlu0 %v1082
  %v1084 = vpop.xlane.xlu0 %1083
  %v1085 = vrcp.pop %v1081
  %v1086 = vrcp.pop %v1084
  %v1087 = vmul.f32 %v1076, %v1085
  %v1088 = vmul.f32 %v1078, %v1086
  %1089 = vrot.lane.b32.xlu0 %v350, 40
  %v1090 = vpop.permute.xlu0 %1089
  %1091 = vrot.lane.b32.xlu0 %v355, 40
  %v1092 = vpop.permute.xlu0 %1091
  %v1096 = vsel %vm466, %v1087, 0
  %v1099 = vsel %vm466, %v1088, 0
  %1101 = vmatprep.subr.mxu0 0.0
  %1102 = vmatpush1.msra.mxu0 %v1090
  %1103 = vmatprep.subr.mxu0 0.0
  %1104 = vmatpush1.msra.mxu0 %v1092
  %1105 = vmatprep.subr.mxu0 0.0
  %1106 = vmatpush1.msra.mxu0 0.0
  %1107 = vmatprep.subr.mxu0 0.0
  %1108 = vmatpush1.msra.mxu0 0.0
  %1109 = vmatprep.subr.mxu0 0.0
  %1110 = vmatpush1.msra.mxu0 0.0
  %1111 = vmatprep.subr.mxu0 0.0
  %1112 = vmatpush1.msra.mxu0 0.0
  %1113 = vmatprep.subr.mxu0 0.0
  %1114 = vmatpush1.msra.mxu0 0.0
  %1115 = vmatprep.subr.mxu0 0.0
  %1116 = vmatpush1.msra.mxu0 0.0
  %1117 = vmatprep.subr.mxu0 0.0
  %1118 = vmatpush1.msra.mxu0 0.0
  %1119 = vmatprep.subr.mxu0 0.0
  %1120 = vmatpush1.msra.mxu0 0.0
  %1121 = vmatprep.subr.mxu0 0.0
  %1122 = vmatpush1.msra.mxu0 0.0
  %1123 = vmatprep.subr.mxu0 0.0
  %1124 = vmatpush1.msra.mxu0 0.0
  %1125 = vmatprep.subr.mxu0 0.0
  %1126 = vmatpush1.msra.mxu0 0.0
  %1127 = vmatprep.subr.mxu0 0.0
  %1128 = vmatpush1.msra.mxu0 0.0
  %1129 = vmatprep.subr.mxu0 0.0
  %1130 = vmatpush1.msra.mxu0 0.0
  %1131 = vmatprep.subr.mxu0 0.0
  %1132 = vmatpush1.msra.mxu0 0.0
  %1133 = vmatprep.subr.mxu0 0.0
  %1134 = vmatpush1.msra.mxu0 0.0
  %1135 = vmatprep.subr.mxu0 0.0
  %1136 = vmatpush1.msra.mxu0 0.0
  %1137 = vmatprep.subr.mxu0 0.0
  %1138 = vmatpush1.msra.mxu0 0.0
  %1139 = vmatprep.subr.mxu0 0.0
  %1140 = vmatpush1.msra.mxu0 0.0
  %1141 = vmatprep.subr.mxu0 0.0
  %1142 = vmatpush1.msra.mxu0 0.0
  %1143 = vmatprep.subr.mxu0 0.0
  %1144 = vmatpush1.msra.mxu0 0.0
  %1145 = vmatprep.subr.mxu0 0.0
  %1146 = vmatpush1.msra.mxu0 0.0
  %1147 = vmatprep.subr.mxu0 0.0
  %1148 = vmatpush1.msra.mxu0 0.0
  %1149 = vmatprep.subr.mxu0 0.0
  %1150 = vmatpush1.msra.mxu0 0.0
  %1151 = vmatprep.subr.mxu0 0.0
  %1152 = vmatpush1.msra.mxu0 0.0
  %1153 = vmatprep.subr.mxu0 0.0
  %1154 = vmatpush1.msra.mxu0 0.0
  %1155 = vmatprep.subr.mxu0 0.0
  %1156 = vmatpush1.msra.mxu0 0.0
  %1157 = vmatprep.subr.mxu0 0.0
  %1158 = vmatpush1.msra.mxu0 0.0
  %1159 = vmatprep.subr.mxu0 0.0
  %1160 = vmatpush1.msra.mxu0 0.0
  %1161 = vmatprep.subr.mxu0 0.0
  %1162 = vmatpush1.msra.mxu0 0.0
  %1163 = vmatprep.subr.mxu0 0.0
  %1164 = vmatpush1.msra.mxu0 0.0
  %1165 = vmatprep.mubr.f32.mxu0 0.0
  %1166 = vmatmul.mubr.f32.gmra.mrb[0].mxu0 %v1096
  %v1167 = vpop.f32.mrb[0].mxu0
  %v1168 = vadd.f32 0.0, %v1167
  %v1169 = vpop.f32.mrb[0].mxu0
  %1170 = vmatprep.mubr.f32.mxu0 0.0
  %1171 = vmatmul.mubr.f32.gmra.mrb[0].mxu0 %v1099
  %v1172 = vpop.f32.mrb[0].mxu0
  %v1173 = vadd.f32 0.0, %v1172
  %v1174 = vpop.f32.mrb[0].mxu0
  %1175 = vdwg.mxu0
  %1178 = vrot.lane.b32.xlu0 %v768, 8
  %v1179 = vpop.permute.xlu0 %1178
  %1180 = vrot.lane.b32.xlu0 %v773, 8
  %v1181 = vpop.permute.xlu0 %1180
  %1186 = vrot.lane.b32.xlu0 %v968, 16
  %v1187 = vpop.permute.xlu0 %1186
  %1188 = vrot.lane.b32.xlu0 %v973, 16
  %v1189 = vpop.permute.xlu0 %1188
  %1194 = vrot.lane.b32.xlu0 %v1168, 24
  %v1195 = vpop.permute.xlu0 %1194
  %1196 = vrot.lane.b32.xlu0 %v1173, 24
  %v1197 = vpop.permute.xlu0 %1196
  %v1200 = vsel %vm380, %v568, %v1179
  %v1201 = vsel %vm380, %v573, %v1181
  %v1202 = vsel %vm466, %v1200, %v1187
  %v1203 = vsel %vm466, %v1201, %v1189
  %vm1204 = vcmask 195584
  %v1205 = vsel %vm1204, %v1202, %v1195
  %v1206 = vsel %vm1204, %v1203, %v1197
  %v1207 = vmul.f32 %v360, 0.35355338
  %v1208 = vmul.f32 %v365, 0.35355338
  %v1209 = vlaneseq
  %v1210 = vshrl.u32 %v1209, 7
  %v1211 = vsub.s32 1, %v1210
  %v1212 = vrot.slane %v258, %v1211
  %1215 = vrot.lane.b32.xlu0 %v360, 96
  %v1216 = vpop.permute.xlu0 %1215
  %1217 = vrot.lane.b32.xlu0 %v365, 96
  %v1218 = vpop.permute.xlu0 %1217
  %v1220 = vsel %vm380, %v1207, 0
  %v1223 = vsel %vm380, %v1208, 0
  %v1225 = vsel %vm380, %v1216, 0
  %v1227 = vsel %vm380, %v1218, 0
  %1229 = vmatprep.subr.mxu0 0.0
  %1230 = vmatpush1.xpose.msra.mxu0 %v1225
  %1231 = vmatprep.subr.mxu0 0.0
  %1232 = vmatpush1.xpose.msra.mxu0 %v1227
  %1233 = vmatprep.subr.mxu0 0.0
  %1234 = vmatpush1.xpose.msra.mxu0 0.0
  %1235 = vmatprep.subr.mxu0 0.0
  %1236 = vmatpush1.xpose.msra.mxu0 0.0
  %1237 = vmatprep.subr.mxu0 0.0
  %1238 = vmatpush1.xpose.msra.mxu0 0.0
  %1239 = vmatprep.subr.mxu0 0.0
  %1240 = vmatpush1.xpose.msra.mxu0 0.0
  %1241 = vmatprep.subr.mxu0 0.0
  %1242 = vmatpush1.xpose.msra.mxu0 0.0
  %1243 = vmatprep.subr.mxu0 0.0
  %1244 = vmatpush1.xpose.msra.mxu0 0.0
  %1245 = vmatprep.subr.mxu0 0.0
  %1246 = vmatpush1.xpose.msra.mxu0 0.0
  %1247 = vmatprep.subr.mxu0 0.0
  %1248 = vmatpush1.xpose.msra.mxu0 0.0
  %1249 = vmatprep.subr.mxu0 0.0
  %1250 = vmatpush1.xpose.msra.mxu0 0.0
  %1251 = vmatprep.subr.mxu0 0.0
  %1252 = vmatpush1.xpose.msra.mxu0 0.0
  %1253 = vmatprep.subr.mxu0 0.0
  %1254 = vmatpush1.xpose.msra.mxu0 0.0
  %1255 = vmatprep.subr.mxu0 0.0
  %1256 = vmatpush1.xpose.msra.mxu0 0.0
  %1257 = vmatprep.subr.mxu0 0.0
  %1258 = vmatpush1.xpose.msra.mxu0 0.0
  %1259 = vmatprep.subr.mxu0 0.0
  %1260 = vmatpush1.xpose.msra.mxu0 0.0
  %1261 = vmatprep.subr.mxu0 0.0
  %1262 = vmatpush1.xpose.msra.mxu0 0.0
  %1263 = vmatprep.subr.mxu0 0.0
  %1264 = vmatpush1.xpose.msra.mxu0 0.0
  %1265 = vmatprep.subr.mxu0 0.0
  %1266 = vmatpush1.xpose.msra.mxu0 0.0
  %1267 = vmatprep.subr.mxu0 0.0
  %1268 = vmatpush1.xpose.msra.mxu0 0.0
  %1269 = vmatprep.subr.mxu0 0.0
  %1270 = vmatpush1.xpose.msra.mxu0 0.0
  %1271 = vmatprep.subr.mxu0 0.0
  %1272 = vmatpush1.xpose.msra.mxu0 0.0
  %1273 = vmatprep.subr.mxu0 0.0
  %1274 = vmatpush1.xpose.msra.mxu0 0.0
  %1275 = vmatprep.subr.mxu0 0.0
  %1276 = vmatpush1.xpose.msra.mxu0 0.0
  %1277 = vmatprep.subr.mxu0 0.0
  %1278 = vmatpush1.xpose.msra.mxu0 0.0
  %1279 = vmatprep.subr.mxu0 0.0
  %1280 = vmatpush1.xpose.msra.mxu0 0.0
  %1281 = vmatprep.subr.mxu0 0.0
  %1282 = vmatpush1.xpose.msra.mxu0 0.0
  %1283 = vmatprep.subr.mxu0 0.0
  %1284 = vmatpush1.xpose.msra.mxu0 0.0
  %1285 = vmatprep.subr.mxu0 0.0
  %1286 = vmatpush1.xpose.msra.mxu0 0.0
  %1287 = vmatprep.subr.mxu0 0.0
  %1288 = vmatpush1.xpose.msra.mxu0 0.0
  %1289 = vmatprep.subr.mxu0 0.0
  %1290 = vmatpush1.xpose.msra.mxu0 0.0
  %1291 = vmatprep.subr.mxu0 0.0
  %1292 = vmatpush1.xpose.msra.mxu0 0.0
  %1293 = vmatprep.mubr.f32.mxu0 0.0
  %1294 = vmatmul.mubr.f32.gmra.mrb[0].mxu0 %v1220
  %v1295 = vpop.f32.mrb[0].mxu0
  %v1296 = vadd.f32 %v1212, %v1295
  %v1297 = vpop.f32.mrb[0].mxu0
  %1298 = vmatprep.mubr.f32.mxu0 0.0
  %1299 = vmatmul.mubr.f32.gmra.mrb[0].mxu0 %v1223
  %v1300 = vpop.f32.mrb[0].mxu0
  %v1301 = vadd.f32 %v1212, %v1300
  %v1302 = vpop.f32.mrb[0].mxu0
  %1303 = vdwg.mxu0
  %v1304 = vsel %vm466, %v1296, -inf
  %1305 = vmax.xlane.f32.xlu0 %v1304
  %v1306 = vpop.xlane.xlu0 %1305
  %v1307 = vsel %vm466, %v1301, -inf
  %1308 = vmax.xlane.f32.xlu0 %v1307
  %v1309 = vpop.xlane.xlu0 %1308
  %v1310 = vsub.f32 %v1296, %v1306
  %v1311 = vsub.f32 %v1301, %v1309
  %v1312 = vmul.f32 %v1310, 1.442695
  %v1313 = vpow.pop %v1312
  %v1314 = vmul.f32 %v1311, 1.442695
  %v1315 = vpow.pop %v1314
  %v1316 = vsel %vm466, %v1313, 0.0
  %1317 = vadd.xlane.f32.xlu0 %v1316
  %v1318 = vpop.xlane.xlu0 %1317
  %v1319 = vsel %vm466, %v1315, 0.0
  %1320 = vadd.xlane.f32.xlu0 %v1319
  %v1321 = vpop.xlane.xlu0 %1320
  %v1322 = vrcp.pop %v1318
  %v1323 = vrcp.pop %v1321
  %v1324 = vmul.f32 %v1313, %v1322
  %v1325 = vmul.f32 %v1315, %v1323
  %1326 = vrot.lane.b32.xlu0 %v360, 64
  %v1327 = vpop.permute.xlu0 %1326
  %1328 = vrot.lane.b32.xlu0 %v365, 64
  %v1329 = vpop.permute.xlu0 %1328
  %v1333 = vsel %vm466, %v1324, 0
  %v1336 = vsel %vm466, %v1325, 0
  %1338 = vmatprep.subr.mxu0 0.0
  %1339 = vmatpush1.msra.mxu0 %v1327
  %1340 = vmatprep.subr.mxu0 0.0
  %1341 = vmatpush1.msra.mxu0 %v1329
  %1342 = vmatprep.subr.mxu0 0.0
  %1343 = vmatpush1.msra.mxu0 0.0
  %1344 = vmatprep.subr.mxu0 0.0
  %1345 = vmatpush1.msra.mxu0 0.0
  %1346 = vmatprep.subr.mxu0 0.0
  %1347 = vmatpush1.msra.mxu0 0.0
  %1348 = vmatprep.subr.mxu0 0.0
  %1349 = vmatpush1.msra.mxu0 0.0
  %1350 = vmatprep.subr.mxu0 0.0
  %1351 = vmatpush1.msra.mxu0 0.0
  %1352 = vmatprep.subr.mxu0 0.0
  %1353 = vmatpush1.msra.mxu0 0.0
  %1354 = vmatprep.subr.mxu0 0.0
  %1355 = vmatpush1.msra.mxu0 0.0
  %1356 = vmatprep.subr.mxu0 0.0
  %1357 = vmatpush1.msra.mxu0 0.0
  %1358 = vmatprep.subr.mxu0 0.0
  %1359 = vmatpush1.msra.mxu0 0.0
  %1360 = vmatprep.subr.mxu0 0.0
  %1361 = vmatpush1.msra.mxu0 0.0
  %1362 = vmatprep.subr.mxu0 0.0
  %1363 = vmatpush1.msra.mxu0 0.0
  %1364 = vmatprep.subr.mxu0 0.0
  %1365 = vmatpush1.msra.mxu0 0.0
  %1366 = vmatprep.subr.mxu0 0.0
  %1367 = vmatpush1.msra.mxu0 0.0
  %1368 = vmatprep.subr.mxu0 0.0
  %1369 = vmatpush1.msra.mxu0 0.0
  %1370 = vmatprep.subr.mxu0 0.0
  %1371 = vmatpush1.msra.mxu0 0.0
  %1372 = vmatprep.subr.mxu0 0.0
  %1373 = vmatpush1.msra.mxu0 0.0
  %1374 = vmatprep.subr.mxu0 0.0
  %1375 = vmatpush1.msra.mxu0 0.0
  %1376 = vmatprep.subr.mxu0 0.0
  %1377 = vmatpush1.msra.mxu0 0.0
  %1378 = vmatprep.subr.mxu0 0.0
  %1379 = vmatpush1.msra.mxu0 0.0
  %1380 = vmatprep.subr.mxu0 0.0
  %1381 = vmatpush1.msra.mxu0 0.0
  %1382 = vmatprep.subr.mxu0 0.0
  %1383 = vmatpush1.msra.mxu0 0.0
  %1384 = vmatprep.subr.mxu0 0.0
  %1385 = vmatpush1.msra.mxu0 0.0
  %1386 = vmatprep.subr.mxu0 0.0
  %1387 = vmatpush1.msra.mxu0 0.0
  %1388 = vmatprep.subr.mxu0 0.0
  %1389 = vmatpush1.msra.mxu0 0.0
  %1390 = vmatprep.subr.mxu0 0.0
  %1391 = vmatpush1.msra.mxu0 0.0
  %1392 = vmatprep.subr.mxu0 0.0
  %1393 = vmatpush1.msra.mxu0 0.0
  %1394 = vmatprep.subr.mxu0 0.0
  %1395 = vmatpush1.msra.mxu0 0.0
  %1396 = vmatprep.subr.mxu0 0.0
  %1397 = vmatpush1.msra.mxu0 0.0
  %1398 = vmatprep.subr.mxu0 0.0
  %1399 = vmatpush1.msra.mxu0 0.0
  %1400 = vmatprep.subr.mxu0 0.0
  %1401 = vmatpush1.msra.mxu0 0.0
  %1402 = vmatprep.mubr.f32.mxu0 0.0
  %1403 = vmatmul.mubr.f32.gmra.mrb[0].mxu0 %v1333
  %v1404 = vpop.f32.mrb[0].mxu0
  %v1405 = vadd.f32 0.0, %v1404
  %v1406 = vpop.f32.mrb[0].mxu0
  %1407 = vmatprep.mubr.f32.mxu0 0.0
  %1408 = vmatmul.mubr.f32.gmra.mrb[0].mxu0 %v1336
  %v1409 = vpop.f32.mrb[0].mxu0
  %v1410 = vadd.f32 0.0, %v1409
  %v1411 = vpop.f32.mrb[0].mxu0
  %1412 = vdwg.mxu0
  %1413 = vrot.lane.b32.xlu0 %v1207, 120
  %v1414 = vpop.permute.xlu0 %1413
  %1415 = vrot.lane.b32.xlu0 %v1208, 120
  %v1416 = vpop.permute.xlu0 %1415
  %1417 = vrot.lane.b32.xlu0 %v360, 88
  %v1418 = vpop.permute.xlu0 %1417
  %1419 = vrot.lane.b32.xlu0 %v365, 88
  %v1420 = vpop.permute.xlu0 %1419
  %v1421 = vsel %vm380, %v1414, 0
  %v1423 = vsel %vm380, %v1416, 0
  %v1425 = vsel %vm380, %v1418, 0
  %v1427 = vsel %vm380, %v1420, 0
  %1429 = vmatprep.subr.mxu0 0.0
  %1430 = vmatpush1.xpose.msra.mxu0 %v1425
  %1431 = vmatprep.subr.mxu0 0.0
  %1432 = vmatpush1.xpose.msra.mxu0 %v1427
  %1433 = vmatprep.subr.mxu0 0.0
  %1434 = vmatpush1.xpose.msra.mxu0 0.0
  %1435 = vmatprep.subr.mxu0 0.0
  %1436 = vmatpush1.xpose.msra.mxu0 0.0
  %1437 = vmatprep.subr.mxu0 0.0
  %1438 = vmatpush1.xpose.msra.mxu0 0.0
  %1439 = vmatprep.subr.mxu0 0.0
  %1440 = vmatpush1.xpose.msra.mxu0 0.0
  %1441 = vmatprep.subr.mxu0 0.0
  %1442 = vmatpush1.xpose.msra.mxu0 0.0
  %1443 = vmatprep.subr.mxu0 0.0
  %1444 = vmatpush1.xpose.msra.mxu0 0.0
  %1445 = vmatprep.subr.mxu0 0.0
  %1446 = vmatpush1.xpose.msra.mxu0 0.0
  %1447 = vmatprep.subr.mxu0 0.0
  %1448 = vmatpush1.xpose.msra.mxu0 0.0
  %1449 = vmatprep.subr.mxu0 0.0
  %1450 = vmatpush1.xpose.msra.mxu0 0.0
  %1451 = vmatprep.subr.mxu0 0.0
  %1452 = vmatpush1.xpose.msra.mxu0 0.0
  %1453 = vmatprep.subr.mxu0 0.0
  %1454 = vmatpush1.xpose.msra.mxu0 0.0
  %1455 = vmatprep.subr.mxu0 0.0
  %1456 = vmatpush1.xpose.msra.mxu0 0.0
  %1457 = vmatprep.subr.mxu0 0.0
  %1458 = vmatpush1.xpose.msra.mxu0 0.0
  %1459 = vmatprep.subr.mxu0 0.0
  %1460 = vmatpush1.xpose.msra.mxu0 0.0
  %1461 = vmatprep.subr.mxu0 0.0
  %1462 = vmatpush1.xpose.msra.mxu0 0.0
  %1463 = vmatprep.subr.mxu0 0.0
  %1464 = vmatpush1.xpose.msra.mxu0 0.0
  %1465 = vmatprep.subr.mxu0 0.0
  %1466 = vmatpush1.xpose.msra.mxu0 0.0
  %1467 = vmatprep.subr.mxu0 0.0
  %1468 = vmatpush1.xpose.msra.mxu0 0.0
  %1469 = vmatprep.subr.mxu0 0.0
  %1470 = vmatpush1.xpose.msra.mxu0 0.0
  %1471 = vmatprep.subr.mxu0 0.0
  %1472 = vmatpush1.xpose.msra.mxu0 0.0
  %1473 = vmatprep.subr.mxu0 0.0
  %1474 = vmatpush1.xpose.msra.mxu0 0.0
  %1475 = vmatprep.subr.mxu0 0.0
  %1476 = vmatpush1.xpose.msra.mxu0 0.0
  %1477 = vmatprep.subr.mxu0 0.0
  %1478 = vmatpush1.xpose.msra.mxu0 0.0
  %1479 = vmatprep.subr.mxu0 0.0
  %1480 = vmatpush1.xpose.msra.mxu0 0.0
  %1481 = vmatprep.subr.mxu0 0.0
  %1482 = vmatpush1.xpose.msra.mxu0 0.0
  %1483 = vmatprep.subr.mxu0 0.0
  %1484 = vmatpush1.xpose.msra.mxu0 0.0
  %1485 = vmatprep.subr.mxu0 0.0
  %1486 = vmatpush1.xpose.msra.mxu0 0.0
  %1487 = vmatprep.subr.mxu0 0.0
  %1488 = vmatpush1.xpose.msra.mxu0 0.0
  %1489 = vmatprep.subr.mxu0 0.0
  %1490 = vmatpush1.xpose.msra.mxu0 0.0
  %1491 = vmatprep.subr.mxu0 0.0
  %1492 = vmatpush1.xpose.msra.mxu0 0.0
  %1493 = vmatprep.mubr.f32.mxu0 0.0
  %1494 = vmatmul.mubr.f32.gmra.mrb[0].mxu0 %v1421
  %v1495 = vpop.f32.mrb[0].mxu0
  %v1496 = vadd.f32 %v1212, %v1495
  %v1497 = vpop.f32.mrb[0].mxu0
  %1498 = vmatprep.mubr.f32.mxu0 0.0
  %1499 = vmatmul.mubr.f32.gmra.mrb[0].mxu0 %v1423
  %v1500 = vpop.f32.mrb[0].mxu0
  %v1501 = vadd.f32 %v1212, %v1500
  %v1502 = vpop.f32.mrb[0].mxu0
  %1503 = vdwg.mxu0
  %v1504 = vsel %vm466, %v1496, -inf
  %1505 = vmax.xlane.f32.xlu0 %v1504
  %v1506 = vpop.xlane.xlu0 %1505
  %v1507 = vsel %vm466, %v1501, -inf
  %1508 = vmax.xlane.f32.xlu0 %v1507
  %v1509 = vpop.xlane.xlu0 %1508
  %v1510 = vsub.f32 %v1496, %v1506
  %v1511 = vsub.f32 %v1501, %v1509
  %v1512 = vmul.f32 %v1510, 1.442695
  %v1513 = vpow.pop %v1512
  %v1514 = vmul.f32 %v1511, 1.442695
  %v1515 = vpow.pop %v1514
  %v1516 = vsel %vm466, %v1513, 0.0
  %1517 = vadd.xlane.f32.xlu0 %v1516
  %v1518 = vpop.xlane.xlu0 %1517
  %v1519 = vsel %vm466, %v1515, 0.0
  %1520 = vadd.xlane.f32.xlu0 %v1519
  %v1521 = vpop.xlane.xlu0 %1520
  %v1522 = vrcp.pop %v1518
  %v1523 = vrcp.pop %v1521
  %v1524 = vmul.f32 %v1513, %v1522
  %v1525 = vmul.f32 %v1515, %v1523
  %1526 = vrot.lane.b32.xlu0 %v360, 56
  %v1527 = vpop.permute.xlu0 %1526
  %1528 = vrot.lane.b32.xlu0 %v365, 56
  %v1529 = vpop.permute.xlu0 %1528
  %v1533 = vsel %vm466, %v1524, 0
  %v1536 = vsel %vm466, %v1525, 0
  %1538 = vmatprep.subr.mxu0 0.0
  %1539 = vmatpush1.msra.mxu0 %v1527
  %1540 = vmatprep.subr.mxu0 0.0
  %1541 = vmatpush1.msra.mxu0 %v1529
  %1542 = vmatprep.subr.mxu0 0.0
  %1543 = vmatpush1.msra.mxu0 0.0
  %1544 = vmatprep.subr.mxu0 0.0
  %1545 = vmatpush1.msra.mxu0 0.0
  %1546 = vmatprep.subr.mxu0 0.0
  %1547 = vmatpush1.msra.mxu0 0.0
  %1548 = vmatprep.subr.mxu0 0.0
  %1549 = vmatpush1.msra.mxu0 0.0
  %1550 = vmatprep.subr.mxu0 0.0
  %1551 = vmatpush1.msra.mxu0 0.0
  %1552 = vmatprep.subr.mxu0 0.0
  %1553 = vmatpush1.msra.mxu0 0.0
  %1554 = vmatprep.subr.mxu0 0.0
  %1555 = vmatpush1.msra.mxu0 0.0
  %1556 = vmatprep.subr.mxu0 0.0
  %1557 = vmatpush1.msra.mxu0 0.0
  %1558 = vmatprep.subr.mxu0 0.0
  %1559 = vmatpush1.msra.mxu0 0.0
  %1560 = vmatprep.subr.mxu0 0.0
  %1561 = vmatpush1.msra.mxu0 0.0
  %1562 = vmatprep.subr.mxu0 0.0
  %1563 = vmatpush1.msra.mxu0 0.0
  %1564 = vmatprep.subr.mxu0 0.0
  %1565 = vmatpush1.msra.mxu0 0.0
  %1566 = vmatprep.subr.mxu0 0.0
  %1567 = vmatpush1.msra.mxu0 0.0
  %1568 = vmatprep.subr.mxu0 0.0
  %1569 = vmatpush1.msra.mxu0 0.0
  %1570 = vmatprep.subr.mxu0 0.0
  %1571 = vmatpush1.msra.mxu0 0.0
  %1572 = vmatprep.subr.mxu0 0.0
  %1573 = vmatpush1.msra.mxu0 0.0
  %1574 = vmatprep.subr.mxu0 0.0
  %1575 = vmatpush1.msra.mxu0 0.0
  %1576 = vmatprep.subr.mxu0 0.0
  %1577 = vmatpush1.msra.mxu0 0.0
  %1578 = vmatprep.subr.mxu0 0.0
  %1579 = vmatpush1.msra.mxu0 0.0
  %1580 = vmatprep.subr.mxu0 0.0
  %1581 = vmatpush1.msra.mxu0 0.0
  %1582 = vmatprep.subr.mxu0 0.0
  %1583 = vmatpush1.msra.mxu0 0.0
  %1584 = vmatprep.subr.mxu0 0.0
  %1585 = vmatpush1.msra.mxu0 0.0
  %1586 = vmatprep.subr.mxu0 0.0
  %1587 = vmatpush1.msra.mxu0 0.0
  %1588 = vmatprep.subr.mxu0 0.0
  %1589 = vmatpush1.msra.mxu0 0.0
  %1590 = vmatprep.subr.mxu0 0.0
  %1591 = vmatpush1.msra.mxu0 0.0
  %1592 = vmatprep.subr.mxu0 0.0
  %1593 = vmatpush1.msra.mxu0 0.0
  %1594 = vmatprep.subr.mxu0 0.0
  %1595 = vmatpush1.msra.mxu0 0.0
  %1596 = vmatprep.subr.mxu0 0.0
  %1597 = vmatpush1.msra.mxu0 0.0
  %1598 = vmatprep.subr.mxu0 0.0
  %1599 = vmatpush1.msra.mxu0 0.0
  %1600 = vmatprep.subr.mxu0 0.0
  %1601 = vmatpush1.msra.mxu0 0.0
  %1602 = vmatprep.mubr.f32.mxu0 0.0
  %1603 = vmatmul.mubr.f32.gmra.mrb[0].mxu0 %v1533
  %v1604 = vpop.f32.mrb[0].mxu0
  %v1605 = vadd.f32 0.0, %v1604
  %v1606 = vpop.f32.mrb[0].mxu0
  %1607 = vmatprep.mubr.f32.mxu0 0.0
  %1608 = vmatmul.mubr.f32.gmra.mrb[0].mxu0 %v1536
  %v1609 = vpop.f32.mrb[0].mxu0
  %v1610 = vadd.f32 0.0, %v1609
  %v1611 = vpop.f32.mrb[0].mxu0
  %1612 = vdwg.mxu0
  %1613 = vrot.lane.b32.xlu0 %v1207, 112
  %v1614 = vpop.permute.xlu0 %1613
  %1615 = vrot.lane.b32.xlu0 %v1208, 112
  %v1616 = vpop.permute.xlu0 %1615
  %1617 = vrot.lane.b32.xlu0 %v360, 80
  %v1618 = vpop.permute.xlu0 %1617
  %1619 = vrot.lane.b32.xlu0 %v365, 80
  %v1620 = vpop.permute.xlu0 %1619
  %v1621 = vsel %vm380, %v1614, 0
  %v1623 = vsel %vm380, %v1616, 0
  %v1625 = vsel %vm380, %v1618, 0
  %v1627 = vsel %vm380, %v1620, 0
  %1629 = vmatprep.subr.mxu0 0.0
  %1630 = vmatpush1.xpose.msra.mxu0 %v1625
  %1631 = vmatprep.subr.mxu0 0.0
  %1632 = vmatpush1.xpose.msra.mxu0 %v1627
  %1633 = vmatprep.subr.mxu0 0.0
  %1634 = vmatpush1.xpose.msra.mxu0 0.0
  %1635 = vmatprep.subr.mxu0 0.0
  %1636 = vmatpush1.xpose.msra.mxu0 0.0
  %1637 = vmatprep.subr.mxu0 0.0
  %1638 = vmatpush1.xpose.msra.mxu0 0.0
  %1639 = vmatprep.subr.mxu0 0.0
  %1640 = vmatpush1.xpose.msra.mxu0 0.0
  %1641 = vmatprep.subr.mxu0 0.0
  %1642 = vmatpush1.xpose.msra.mxu0 0.0
  %1643 = vmatprep.subr.mxu0 0.0
  %1644 = vmatpush1.xpose.msra.mxu0 0.0
  %1645 = vmatprep.subr.mxu0 0.0
  %1646 = vmatpush1.xpose.msra.mxu0 0.0
  %1647 = vmatprep.subr.mxu0 0.0
  %1648 = vmatpush1.xpose.msra.mxu0 0.0
  %1649 = vmatprep.subr.mxu0 0.0
  %1650 = vmatpush1.xpose.msra.mxu0 0.0
  %1651 = vmatprep.subr.mxu0 0.0
  %1652 = vmatpush1.xpose.msra.mxu0 0.0
  %1653 = vmatprep.subr.mxu0 0.0
  %1654 = vmatpush1.xpose.msra.mxu0 0.0
  %1655 = vmatprep.subr.mxu0 0.0
  %1656 = vmatpush1.xpose.msra.mxu0 0.0
  %1657 = vmatprep.subr.mxu0 0.0
  %1658 = vmatpush1.xpose.msra.mxu0 0.0
  %1659 = vmatprep.subr.mxu0 0.0
  %1660 = vmatpush1.xpose.msra.mxu0 0.0
  %1661 = vmatprep.subr.mxu0 0.0
  %1662 = vmatpush1.xpose.msra.mxu0 0.0
  %1663 = vmatprep.subr.mxu0 0.0
  %1664 = vmatpush1.xpose.msra.mxu0 0.0
  %1665 = vmatprep.subr.mxu0 0.0
  %1666 = vmatpush1.xpose.msra.mxu0 0.0
  %1667 = vmatprep.subr.mxu0 0.0
  %1668 = vmatpush1.xpose.msra.mxu0 0.0
  %1669 = vmatprep.subr.mxu0 0.0
  %1670 = vmatpush1.xpose.msra.mxu0 0.0
  %1671 = vmatprep.subr.mxu0 0.0
  %1672 = vmatpush1.xpose.msra.mxu0 0.0
  %1673 = vmatprep.subr.mxu0 0.0
  %1674 = vmatpush1.xpose.msra.mxu0 0.0
  %1675 = vmatprep.subr.mxu0 0.0
  %1676 = vmatpush1.xpose.msra.mxu0 0.0
  %1677 = vmatprep.subr.mxu0 0.0
  %1678 = vmatpush1.xpose.msra.mxu0 0.0
  %1679 = vmatprep.subr.mxu0 0.0
  %1680 = vmatpush1.xpose.msra.mxu0 0.0
  %1681 = vmatprep.subr.mxu0 0.0
  %1682 = vmatpush1.xpose.msra.mxu0 0.0
  %1683 = vmatprep.subr.mxu0 0.0
  %1684 = vmatpush1.xpose.msra.mxu0 0.0
  %1685 = vmatprep.subr.mxu0 0.0
  %1686 = vmatpush1.xpose.msra.mxu0 0.0
  %1687 = vmatprep.subr.mxu0 0.0
  %1688 = vmatpush1.xpose.msra.mxu0 0.0
  %1689 = vmatprep.subr.mxu0 0.0
  %1690 = vmatpush1.xpose.msra.mxu0 0.0
  %1691 = vmatprep.subr.mxu0 0.0
  %1692 = vmatpush1.xpose.msra.mxu0 0.0
  %1693 = vmatprep.mubr.f32.mxu0 0.0
  %1694 = vmatmul.mubr.f32.gmra.mrb[0].mxu0 %v1621
  %v1695 = vpop.f32.mrb[0].mxu0
  %v1696 = vadd.f32 %v1212, %v1695
  %v1697 = vpop.f32.mrb[0].mxu0
  %1698 = vmatprep.mubr.f32.mxu0 0.0
  %1699 = vmatmul.mubr.f32.gmra.mrb[0].mxu0 %v1623
  %v1700 = vpop.f32.mrb[0].mxu0
  %v1701 = vadd.f32 %v1212, %v1700
  %v1702 = vpop.f32.mrb[0].mxu0
  %1703 = vdwg.mxu0
  %v1704 = vsel %vm466, %v1696, -inf
  %1705 = vmax.xlane.f32.xlu0 %v1704
  %v1706 = vpop.xlane.xlu0 %1705
  %v1707 = vsel %vm466, %v1701, -inf
  %1708 = vmax.xlane.f32.xlu0 %v1707
  %v1709 = vpop.xlane.xlu0 %1708
  %v1710 = vsub.f32 %v1696, %v1706
  %v1711 = vsub.f32 %v1701, %v1709
  %v1712 = vmul.f32 %v1710, 1.442695
  %v1713 = vpow.pop %v1712
  %v1714 = vmul.f32 %v1711, 1.442695
  %v1715 = vpow.pop %v1714
  %v1716 = vsel %vm466, %v1713, 0.0
  %1717 = vadd.xlane.f32.xlu0 %v1716
  %v1718 = vpop.xlane.xlu0 %1717
  %v1719 = vsel %vm466, %v1715, 0.0
  %1720 = vadd.xlane.f32.xlu0 %v1719
  %v1721 = vpop.xlane.xlu0 %1720
  %v1722 = vrcp.pop %v1718
  %v1723 = vrcp.pop %v1721
  %v1724 = vmul.f32 %v1713, %v1722
  %v1725 = vmul.f32 %v1715, %v1723
  %1726 = vrot.lane.b32.xlu0 %v360, 48
  %v1727 = vpop.permute.xlu0 %1726
  %1728 = vrot.lane.b32.xlu0 %v365, 48
  %v1729 = vpop.permute.xlu0 %1728
  %v1733 = vsel %vm466, %v1724, 0
  %v1736 = vsel %vm466, %v1725, 0
  %1738 = vmatprep.subr.mxu0 0.0
  %1739 = vmatpush1.msra.mxu0 %v1727
  %1740 = vmatprep.subr.mxu0 0.0
  %1741 = vmatpush1.msra.mxu0 %v1729
  %1742 = vmatprep.subr.mxu0 0.0
  %1743 = vmatpush1.msra.mxu0 0.0
  %1744 = vmatprep.subr.mxu0 0.0
  %1745 = vmatpush1.msra.mxu0 0.0
  %1746 = vmatprep.subr.mxu0 0.0
  %1747 = vmatpush1.msra.mxu0 0.0
  %1748 = vmatprep.subr.mxu0 0.0
  %1749 = vmatpush1.msra.mxu0 0.0
  %1750 = vmatprep.subr.mxu0 0.0
  %1751 = vmatpush1.msra.mxu0 0.0
  %1752 = vmatprep.subr.mxu0 0.0
  %1753 = vmatpush1.msra.mxu0 0.0
  %1754 = vmatprep.subr.mxu0 0.0
  %1755 = vmatpush1.msra.mxu0 0.0
  %1756 = vmatprep.subr.mxu0 0.0
  %1757 = vmatpush1.msra.mxu0 0.0
  %1758 = vmatprep.subr.mxu0 0.0
  %1759 = vmatpush1.msra.mxu0 0.0
  %1760 = vmatprep.subr.mxu0 0.0
  %1761 = vmatpush1.msra.mxu0 0.0
  %1762 = vmatprep.subr.mxu0 0.0
  %1763 = vmatpush1.msra.mxu0 0.0
  %1764 = vmatprep.subr.mxu0 0.0
  %1765 = vmatpush1.msra.mxu0 0.0
  %1766 = vmatprep.subr.mxu0 0.0
  %1767 = vmatpush1.msra.mxu0 0.0
  %1768 = vmatprep.subr.mxu0 0.0
  %1769 = vmatpush1.msra.mxu0 0.0
  %1770 = vmatprep.subr.mxu0 0.0
  %1771 = vmatpush1.msra.mxu0 0.0
  %1772 = vmatprep.subr.mxu0 0.0
  %1773 = vmatpush1.msra.mxu0 0.0
  %1774 = vmatprep.subr.mxu0 0.0
  %1775 = vmatpush1.msra.mxu0 0.0
  %1776 = vmatprep.subr.mxu0 0.0
  %1777 = vmatpush1.msra.mxu0 0.0
  %1778 = vmatprep.subr.mxu0 0.0
  %1779 = vmatpush1.msra.mxu0 0.0
  %1780 = vmatprep.subr.mxu0 0.0
  %1781 = vmatpush1.msra.mxu0 0.0
  %1782 = vmatprep.subr.mxu0 0.0
  %1783 = vmatpush1.msra.mxu0 0.0
  %1784 = vmatprep.subr.mxu0 0.0
  %1785 = vmatpush1.msra.mxu0 0.0
  %1786 = vmatprep.subr.mxu0 0.0
  %1787 = vmatpush1.msra.mxu0 0.0
  %1788 = vmatprep.subr.mxu0 0.0
  %1789 = vmatpush1.msra.mxu0 0.0
  %1790 = vmatprep.subr.mxu0 0.0
  %1791 = vmatpush1.msra.mxu0 0.0
  %1792 = vmatprep.subr.mxu0 0.0
  %1793 = vmatpush1.msra.mxu0 0.0
  %1794 = vmatprep.subr.mxu0 0.0
  %1795 = vmatpush1.msra.mxu0 0.0
  %1796 = vmatprep.subr.mxu0 0.0
  %1797 = vmatpush1.msra.mxu0 0.0
  %1798 = vmatprep.subr.mxu0 0.0
  %1799 = vmatpush1.msra.mxu0 0.0
  %1800 = vmatprep.subr.mxu0 0.0
  %1801 = vmatpush1.msra.mxu0 0.0
  %1802 = vmatprep.mubr.f32.mxu0 0.0
  %1803 = vmatmul.mubr.f32.gmra.mrb[0].mxu0 %v1733
  %v1804 = vpop.f32.mrb[0].mxu0
  %v1805 = vadd.f32 0.0, %v1804
  %v1806 = vpop.f32.mrb[0].mxu0
  %1807 = vmatprep.mubr.f32.mxu0 0.0
  %1808 = vmatmul.mubr.f32.gmra.mrb[0].mxu0 %v1736
  %v1809 = vpop.f32.mrb[0].mxu0
  %v1810 = vadd.f32 0.0, %v1809
  %v1811 = vpop.f32.mrb[0].mxu0
  %1812 = vdwg.mxu0
  %1813 = vrot.lane.b32.xlu0 %v1207, 104
  %v1814 = vpop.permute.xlu0 %1813
  %1815 = vrot.lane.b32.xlu0 %v1208, 104
  %v1816 = vpop.permute.xlu0 %1815
  %1817 = vrot.lane.b32.xlu0 %v360, 72
  %v1818 = vpop.permute.xlu0 %1817
  %1819 = vrot.lane.b32.xlu0 %v365, 72
  %v1820 = vpop.permute.xlu0 %1819
  %v1821 = vsel %vm380, %v1814, 0
  %v1823 = vsel %vm380, %v1816, 0
  %v1825 = vsel %vm380, %v1818, 0
  %v1827 = vsel %vm380, %v1820, 0
  %1829 = vmatprep.subr.mxu0 0.0
  %1830 = vmatpush1.xpose.msra.mxu0 %v1825
  %1831 = vmatprep.subr.mxu0 0.0
  %1832 = vmatpush1.xpose.msra.mxu0 %v1827
  %1833 = vmatprep.subr.mxu0 0.0
  %1834 = vmatpush1.xpose.msra.mxu0 0.0
  %1835 = vmatprep.subr.mxu0 0.0
  %1836 = vmatpush1.xpose.msra.mxu0 0.0
  %1837 = vmatprep.subr.mxu0 0.0
  %1838 = vmatpush1.xpose.msra.mxu0 0.0
  %1839 = vmatprep.subr.mxu0 0.0
  %1840 = vmatpush1.xpose.msra.mxu0 0.0
  %1841 = vmatprep.subr.mxu0 0.0
  %1842 = vmatpush1.xpose.msra.mxu0 0.0
  %1843 = vmatprep.subr.mxu0 0.0
  %1844 = vmatpush1.xpose.msra.mxu0 0.0
  %1845 = vmatprep.subr.mxu0 0.0
  %1846 = vmatpush1.xpose.msra.mxu0 0.0
  %1847 = vmatprep.subr.mxu0 0.0
  %1848 = vmatpush1.xpose.msra.mxu0 0.0
  %1849 = vmatprep.subr.mxu0 0.0
  %1850 = vmatpush1.xpose.msra.mxu0 0.0
  %1851 = vmatprep.subr.mxu0 0.0
  %1852 = vmatpush1.xpose.msra.mxu0 0.0
  %1853 = vmatprep.subr.mxu0 0.0
  %1854 = vmatpush1.xpose.msra.mxu0 0.0
  %1855 = vmatprep.subr.mxu0 0.0
  %1856 = vmatpush1.xpose.msra.mxu0 0.0
  %1857 = vmatprep.subr.mxu0 0.0
  %1858 = vmatpush1.xpose.msra.mxu0 0.0
  %1859 = vmatprep.subr.mxu0 0.0
  %1860 = vmatpush1.xpose.msra.mxu0 0.0
  %1861 = vmatprep.subr.mxu0 0.0
  %1862 = vmatpush1.xpose.msra.mxu0 0.0
  %1863 = vmatprep.subr.mxu0 0.0
  %1864 = vmatpush1.xpose.msra.mxu0 0.0
  %1865 = vmatprep.subr.mxu0 0.0
  %1866 = vmatpush1.xpose.msra.mxu0 0.0
  %1867 = vmatprep.subr.mxu0 0.0
  %1868 = vmatpush1.xpose.msra.mxu0 0.0
  %1869 = vmatprep.subr.mxu0 0.0
  %1870 = vmatpush1.xpose.msra.mxu0 0.0
  %1871 = vmatprep.subr.mxu0 0.0
  %1872 = vmatpush1.xpose.msra.mxu0 0.0
  %1873 = vmatprep.subr.mxu0 0.0
  %1874 = vmatpush1.xpose.msra.mxu0 0.0
  %1875 = vmatprep.subr.mxu0 0.0
  %1876 = vmatpush1.xpose.msra.mxu0 0.0
  %1877 = vmatprep.subr.mxu0 0.0
  %1878 = vmatpush1.xpose.msra.mxu0 0.0
  %1879 = vmatprep.subr.mxu0 0.0
  %1880 = vmatpush1.xpose.msra.mxu0 0.0
  %1881 = vmatprep.subr.mxu0 0.0
  %1882 = vmatpush1.xpose.msra.mxu0 0.0
  %1883 = vmatprep.subr.mxu0 0.0
  %1884 = vmatpush1.xpose.msra.mxu0 0.0
  %1885 = vmatprep.subr.mxu0 0.0
  %1886 = vmatpush1.xpose.msra.mxu0 0.0
  %1887 = vmatprep.subr.mxu0 0.0
  %1888 = vmatpush1.xpose.msra.mxu0 0.0
  %1889 = vmatprep.subr.mxu0 0.0
  %1890 = vmatpush1.xpose.msra.mxu0 0.0
  %1891 = vmatprep.subr.mxu0 0.0
  %1892 = vmatpush1.xpose.msra.mxu0 0.0
  %1893 = vmatprep.mubr.f32.mxu0 0.0
  %1894 = vmatmul.mubr.f32.gmra.mrb[0].mxu0 %v1821
  %v1895 = vpop.f32.mrb[0].mxu0
  %v1896 = vadd.f32 %v1212, %v1895
  %v1897 = vpop.f32.mrb[0].mxu0
  %1898 = vmatprep.mubr.f32.mxu0 0.0
  %1899 = vmatmul.mubr.f32.gmra.mrb[0].mxu0 %v1823
  %v1900 = vpop.f32.mrb[0].mxu0
  %v1901 = vadd.f32 %v1212, %v1900
  %v1902 = vpop.f32.mrb[0].mxu0
  %1903 = vdwg.mxu0
  %v1904 = vsel %vm466, %v1896, -inf
  %1905 = vmax.xlane.f32.xlu0 %v1904
  %v1906 = vpop.xlane.xlu0 %1905
  %v1907 = vsel %vm466, %v1901, -inf
  %1908 = vmax.xlane.f32.xlu0 %v1907
  %v1909 = vpop.xlane.xlu0 %1908
  %v1910 = vsub.f32 %v1896, %v1906
  %v1911 = vsub.f32 %v1901, %v1909
  %v1912 = vmul.f32 %v1910, 1.442695
  %v1913 = vpow.pop %v1912
  %v1914 = vmul.f32 %v1911, 1.442695
  %v1915 = vpow.pop %v1914
  %v1916 = vsel %vm466, %v1913, 0.0
  %1917 = vadd.xlane.f32.xlu0 %v1916
  %v1918 = vpop.xlane.xlu0 %1917
  %v1919 = vsel %vm466, %v1915, 0.0
  %1920 = vadd.xlane.f32.xlu0 %v1919
  %v1921 = vpop.xlane.xlu0 %1920
  %v1922 = vrcp.pop %v1918
  %v1923 = vrcp.pop %v1921
  %v1924 = vmul.f32 %v1913, %v1922
  %v1925 = vmul.f32 %v1915, %v1923
  %1926 = vrot.lane.b32.xlu0 %v360, 40
  %v1927 = vpop.permute.xlu0 %1926
  %1928 = vrot.lane.b32.xlu0 %v365, 40
  %v1929 = vpop.permute.xlu0 %1928
  %v1933 = vsel %vm466, %v1924, 0
  %v1936 = vsel %vm466, %v1925, 0
  %1938 = vmatprep.subr.mxu0 0.0
  %1939 = vmatpush1.msra.mxu0 %v1927
  %1940 = vmatprep.subr.mxu0 0.0
  %1941 = vmatpush1.msra.mxu0 %v1929
  %1942 = vmatprep.subr.mxu0 0.0
  %1943 = vmatpush1.msra.mxu0 0.0
  %1944 = vmatprep.subr.mxu0 0.0
  %1945 = vmatpush1.msra.mxu0 0.0
  %1946 = vmatprep.subr.mxu0 0.0
  %1947 = vmatpush1.msra.mxu0 0.0
  %1948 = vmatprep.subr.mxu0 0.0
  %1949 = vmatpush1.msra.mxu0 0.0
  %1950 = vmatprep.subr.mxu0 0.0
  %1951 = vmatpush1.msra.mxu0 0.0
  %1952 = vmatprep.subr.mxu0 0.0
  %1953 = vmatpush1.msra.mxu0 0.0
  %1954 = vmatprep.subr.mxu0 0.0
  %1955 = vmatpush1.msra.mxu0 0.0
  %1956 = vmatprep.subr.mxu0 0.0
  %1957 = vmatpush1.msra.mxu0 0.0
  %1958 = vmatprep.subr.mxu0 0.0
  %1959 = vmatpush1.msra.mxu0 0.0
  %1960 = vmatprep.subr.mxu0 0.0
  %1961 = vmatpush1.msra.mxu0 0.0
  %1962 = vmatprep.subr.mxu0 0.0
  %1963 = vmatpush1.msra.mxu0 0.0
  %1964 = vmatprep.subr.mxu0 0.0
  %1965 = vmatpush1.msra.mxu0 0.0
  %1966 = vmatprep.subr.mxu0 0.0
  %1967 = vmatpush1.msra.mxu0 0.0
  %1968 = vmatprep.subr.mxu0 0.0
  %1969 = vmatpush1.msra.mxu0 0.0
  %1970 = vmatprep.subr.mxu0 0.0
  %1971 = vmatpush1.msra.mxu0 0.0
  %1972 = vmatprep.subr.mxu0 0.0
  %1973 = vmatpush1.msra.mxu0 0.0
  %1974 = vmatprep.subr.mxu0 0.0
  %1975 = vmatpush1.msra.mxu0 0.0
  %1976 = vmatprep.subr.mxu0 0.0
  %1977 = vmatpush1.msra.mxu0 0.0
  %1978 = vmatprep.subr.mxu0 0.0
  %1979 = vmatpush1.msra.mxu0 0.0
  %1980 = vmatprep.subr.mxu0 0.0
  %1981 = vmatpush1.msra.mxu0 0.0
  %1982 = vmatprep.subr.mxu0 0.0
  %1983 = vmatpush1.msra.mxu0 0.0
  %1984 = vmatprep.subr.mxu0 0.0
  %1985 = vmatpush1.msra.mxu0 0.0
  %1986 = vmatprep.subr.mxu0 0.0
  %1987 = vmatpush1.msra.mxu0 0.0
  %1988 = vmatprep.subr.mxu0 0.0
  %1989 = vmatpush1.msra.mxu0 0.0
  %1990 = vmatprep.subr.mxu0 0.0
  %1991 = vmatpush1.msra.mxu0 0.0
  %1992 = vmatprep.subr.mxu0 0.0
  %1993 = vmatpush1.msra.mxu0 0.0
  %1994 = vmatprep.subr.mxu0 0.0
  %1995 = vmatpush1.msra.mxu0 0.0
  %1996 = vmatprep.subr.mxu0 0.0
  %1997 = vmatpush1.msra.mxu0 0.0
  %1998 = vmatprep.subr.mxu0 0.0
  %1999 = vmatpush1.msra.mxu0 0.0
  %2000 = vmatprep.subr.mxu0 0.0
  %2001 = vmatpush1.msra.mxu0 0.0
  %2002 = vmatprep.mubr.f32.mxu0 0.0
  %2003 = vmatmul.mubr.f32.gmra.mrb[0].mxu0 %v1933
  %v2004 = vpop.f32.mrb[0].mxu0
  %v2005 = vadd.f32 0.0, %v2004
  %v2006 = vpop.f32.mrb[0].mxu0
  %2007 = vmatprep.mubr.f32.mxu0 0.0
  %2008 = vmatmul.mubr.f32.gmra.mrb[0].mxu0 %v1936
  %v2009 = vpop.f32.mrb[0].mxu0
  %v2010 = vadd.f32 0.0, %v2009
  %v2011 = vpop.f32.mrb[0].mxu0
  %2012 = vdwg.mxu0
  %2015 = vrot.lane.b32.xlu0 %v1605, 8
  %v2016 = vpop.permute.xlu0 %2015
  %2017 = vrot.lane.b32.xlu0 %v1610, 8
  %v2018 = vpop.permute.xlu0 %2017
  %2023 = vrot.lane.b32.xlu0 %v1805, 16
  %v2024 = vpop.permute.xlu0 %2023
  %2025 = vrot.lane.b32.xlu0 %v1810, 16
  %v2026 = vpop.permute.xlu0 %2025
  %2031 = vrot.lane.b32.xlu0 %v2005, 24
  %v2032 = vpop.permute.xlu0 %2031
  %2033 = vrot.lane.b32.xlu0 %v2010, 24
  %v2034 = vpop.permute.xlu0 %2033
  %v2037 = vsel %vm380, %v1405, %v2016
  %v2038 = vsel %vm380, %v1410, %v2018
  %v2039 = vsel %vm466, %v2037, %v2024
  %v2040 = vsel %vm466, %v2038, %v2026
  %v2041 = vsel %vm1204, %v2039, %v2032
  %v2042 = vsel %vm1204, %v2040, %v2034
  %v2043 = vld [vmem:[%s17] sm:$0xff]
  %v2044 = vld [vmem:[%s17 + $0x8] sm:$0xff]
  %v2045 = vld [vmem:[%s17 + $0x10] sm:$0xff]
  %v2046 = vld [vmem:[%s17 + $0x18] sm:$0xff]
  %v2047 = vld [vmem:[%s19] sm:$0x1]
  %v2049 = vlaneseq
  %v2050 = vshrl.u32 %v2049, 7
  %v2051 = vsub.s32 0, %v2050
  %v2052 = vrot.slane %v2047, %v2051
  %v2055 = vsel %vm270, %v1205, 0
  %v2058 = vsel %vm270, %v1206, 0
  %v2061 = vsel %vm270, %v2041, 0
  %v2064 = vsel %vm270, %v2042, 0
  %2066 = vmatprep.subr.mxu0 0.0
  %2067 = vmatpush1.msra.mxu0 %v2043
  %2068 = vmatprep.subr.mxu0 0.0
  %2069 = vmatpush1.msra.mxu0 %v2044
  %2070 = vmatprep.subr.mxu0 0.0
  %2071 = vmatpush1.msra.mxu0 %v2045
  %2072 = vmatprep.subr.mxu0 0.0
  %2073 = vmatpush1.msra.mxu0 %v2046
  %2074 = vmatprep.subr.mxu0 0.0
  %2075 = vmatpush1.msra.mxu0 0.0
  %2076 = vmatprep.subr.mxu0 0.0
  %2077 = vmatpush1.msra.mxu0 0.0
  %2078 = vmatprep.subr.mxu0 0.0
  %2079 = vmatpush1.msra.mxu0 0.0
  %2080 = vmatprep.subr.mxu0 0.0
  %2081 = vmatpush1.msra.mxu0 0.0
  %2082 = vmatprep.subr.mxu0 0.0
  %2083 = vmatpush1.msra.mxu0 0.0
  %2084 = vmatprep.subr.mxu0 0.0
  %2085 = vmatpush1.msra.mxu0 0.0
  %2086 = vmatprep.subr.mxu0 0.0
  %2087 = vmatpush1.msra.mxu0 0.0
  %2088 = vmatprep.subr.mxu0 0.0
  %2089 = vmatpush1.msra.mxu0 0.0
  %2090 = vmatprep.subr.mxu0 0.0
  %2091 = vmatpush1.msra.mxu0 0.0
  %2092 = vmatprep.subr.mxu0 0.0
  %2093 = vmatpush1.msra.mxu0 0.0
  %2094 = vmatprep.subr.mxu0 0.0
  %2095 = vmatpush1.msra.mxu0 0.0
  %2096 = vmatprep.subr.mxu0 0.0
  %2097 = vmatpush1.msra.mxu0 0.0
  %2098 = vmatprep.subr.mxu0 0.0
  %2099 = vmatpush1.msra.mxu0 0.0
  %2100 = vmatprep.subr.mxu0 0.0
  %2101 = vmatpush1.msra.mxu0 0.0
  %2102 = vmatprep.subr.mxu0 0.0
  %2103 = vmatpush1.msra.mxu0 0.0
  %2104 = vmatprep.subr.mxu0 0.0
  %2105 = vmatpush1.msra.mxu0 0.0
  %2106 = vmatprep.subr.mxu0 0.0
  %2107 = vmatpush1.msra.mxu0 0.0
  %2108 = vmatprep.subr.mxu0 0.0
  %2109 = vmatpush1.msra.mxu0 0.0
  %2110 = vmatprep.subr.mxu0 0.0
  %2111 = vmatpush1.msra.mxu0 0.0
  %2112 = vmatprep.subr.mxu0 0.0
  %2113 = vmatpush1.msra.mxu0 0.0
  %2114 = vmatprep.subr.mxu0 0.0
  %2115 = vmatpush1.msra.mxu0 0.0
  %2116 = vmatprep.subr.mxu0 0.0
  %2117 = vmatpush1.msra.mxu0 0.0
  %2118 = vmatprep.subr.mxu0 0.0
  %2119 = vmatpush1.msra.mxu0 0.0
  %2120 = vmatprep.subr.mxu0 0.0
  %2121 = vmatpush1.msra.mxu0 0.0
  %2122 = vmatprep.subr.mxu0 0.0
  %2123 = vmatpush1.msra.mxu0 0.0
  %2124 = vmatprep.subr.mxu0 0.0
  %2125 = vmatpush1.msra.mxu0 0.0
  %2126 = vmatprep.subr.mxu0 0.0
  %2127 = vmatpush1.msra.mxu0 0.0
  %2128 = vmatprep.subr.mxu0 0.0
  %2129 = vmatpush1.msra.mxu0 0.0
  %2130 = vmatprep.mubr.f32.mxu0 0.0
  %2131 = vmatmul.mubr.f32.gmra.mrb[0].mxu0 %v2055
  %v2132 = vpop.f32.mrb[0].mxu0
  %v2133 = vadd.f32 %v2052, %v2132
  %v2134 = vpop.f32.mrb[0].mxu0
  %2135 = vmatprep.mubr.f32.mxu0 0.0
  %2136 = vmatmul.mubr.f32.gmra.mrb[0].mxu0 %v2058
  %v2137 = vpop.f32.mrb[0].mxu0
  %v2138 = vadd.f32 %v2052, %v2137
  %v2139 = vpop.f32.mrb[0].mxu0
  %2140 = vmatprep.mubr.f32.mxu0 0.0
  %2141 = vmatmul.mubr.f32.gmra.mrb[0].mxu0 %v2061
  %v2142 = vpop.f32.mrb[0].mxu0
  %v2143 = vadd.f32 %v2052, %v2142
  %v2144 = vpop.f32.mrb[0].mxu0
  %2145 = vmatprep.mubr.f32.mxu0 0.0
  %2146 = vmatmul.mubr.f32.gmra.mrb[0].mxu0 %v2064
  %v2147 = vpop.f32.mrb[0].mxu0
  %v2148 = vadd.f32 %v2052, %v2147
  %v2149 = vpop.f32.mrb[0].mxu0
  %2150 = vdwg.mxu0
  %v2151 = vadd.f32 %v254, %v2133
  %v2152 = vadd.f32 %v255, %v2138
  %v2153 = vadd.f32 %v256, %v2143
  %v2154 = vadd.f32 %v257, %v2148
  %v2155 = vld [vmem:[%s29] sm:$0x1]
  %v2157 = vlaneseq
  %v2158 = vshrl.u32 %v2157, 7
  %v2159 = vsub.s32 0, %v2158
  %v2160 = vrot.slane %v2155, %v2159
  %v2162 = vmul.f32 %v2151, %v2160
  %v2163 = vmul.f32 %v2152, %v2160
  %v2164 = vmul.f32 %v2153, %v2160
  %v2165 = vmul.f32 %v2154, %v2160
  %v2166 = vld [vmem:[%s31] sm:$0x1]
  %v2168 = vlaneseq
  %v2169 = vshrl.u32 %v2168, 7
  %v2170 = vsub.s32 0, %v2169
  %v2171 = vrot.slane %v2166, %v2170
  %v2173 = vadd.f32 %v2162, %v2171
  %v2174 = vadd.f32 %v2163, %v2171
  %v2175 = vadd.f32 %v2164, %v2171
  %v2176 = vadd.f32 %v2165, %v2171
  %v2177 = vld [vmem:[%s21] sm:$0xff]
  %v2178 = vld [vmem:[%s21 + $0x8] sm:$0xff]
  %v2179 = vld [vmem:[%s21 + $0x10] sm:$0xff]
  %v2180 = vld [vmem:[%s21 + $0x18] sm:$0xff]
  %v2181 = vld [vmem:[%s23] sm:$0x1]
  %v2183 = vlaneseq
  %v2184 = vshrl.u32 %v2183, 7
  %v2185 = vsub.s32 0, %v2184
  %v2186 = vrot.slane %v2181, %v2185
  %v2189 = vsel %vm270, %v2173, 0
  %v2192 = vsel %vm270, %v2174, 0
  %v2195 = vsel %vm270, %v2175, 0
  %v2198 = vsel %vm270, %v2176, 0
  %2200 = vmatprep.subr.mxu0 0.0
  %2201 = vmatpush1.msra.mxu0 %v2177
  %2202 = vmatprep.subr.mxu0 0.0
  %2203 = vmatpush1.msra.mxu0 %v2178
  %2204 = vmatprep.subr.mxu0 0.0
  %2205 = vmatpush1.msra.mxu0 %v2179
  %2206 = vmatprep.subr.mxu0 0.0
  %2207 = vmatpush1.msra.mxu0 %v2180
  %2208 = vmatprep.subr.mxu0 0.0
  %2209 = vmatpush1.msra.mxu0 0.0
  %2210 = vmatprep.subr.mxu0 0.0
  %2211 = vmatpush1.msra.mxu0 0.0
  %2212 = vmatprep.subr.mxu0 0.0
  %2213 = vmatpush1.msra.mxu0 0.0
  %2214 = vmatprep.subr.mxu0 0.0
  %2215 = vmatpush1.msra.mxu0 0.0
  %2216 = vmatprep.subr.mxu0 0.0
  %2217 = vmatpush1.msra.mxu0 0.0
  %2218 = vmatprep.subr.mxu0 0.0
  %2219 = vmatpush1.msra.mxu0 0.0
  %2220 = vmatprep.subr.mxu0 0.0
  %2221 = vmatpush1.msra.mxu0 0.0
  %2222 = vmatprep.subr.mxu0 0.0
  %2223 = vmatpush1.msra.mxu0 0.0
  %2224 = vmatprep.subr.mxu0 0.0
  %2225 = vmatpush1.msra.mxu0 0.0
  %2226 = vmatprep.subr.mxu0 0.0
  %2227 = vmatpush1.msra.mxu0 0.0
  %2228 = vmatprep.subr.mxu0 0.0
  %2229 = vmatpush1.msra.mxu0 0.0
  %2230 = vmatprep.subr.mxu0 0.0
  %2231 = vmatpush1.msra.mxu0 0.0
  %2232 = vmatprep.subr.mxu0 0.0
  %2233 = vmatpush1.msra.mxu0 0.0
  %2234 = vmatprep.subr.mxu0 0.0
  %2235 = vmatpush1.msra.mxu0 0.0
  %2236 = vmatprep.subr.mxu0 0.0
  %2237 = vmatpush1.msra.mxu0 0.0
  %2238 = vmatprep.subr.mxu0 0.0
  %2239 = vmatpush1.msra.mxu0 0.0
  %2240 = vmatprep.subr.mxu0 0.0
  %2241 = vmatpush1.msra.mxu0 0.0
  %2242 = vmatprep.subr.mxu0 0.0
  %2243 = vmatpush1.msra.mxu0 0.0
  %2244 = vmatprep.subr.mxu0 0.0
  %2245 = vmatpush1.msra.mxu0 0.0
  %2246 = vmatprep.subr.mxu0 0.0
  %2247 = vmatpush1.msra.mxu0 0.0
  %2248 = vmatprep.subr.mxu0 0.0
  %2249 = vmatpush1.msra.mxu0 0.0
  %2250 = vmatprep.subr.mxu0 0.0
  %2251 = vmatpush1.msra.mxu0 0.0
  %2252 = vmatprep.subr.mxu0 0.0
  %2253 = vmatpush1.msra.mxu0 0.0
  %2254 = vmatprep.subr.mxu0 0.0
  %2255 = vmatpush1.msra.mxu0 0.0
  %2256 = vmatprep.subr.mxu0 0.0
  %2257 = vmatpush1.msra.mxu0 0.0
  %2258 = vmatprep.subr.mxu0 0.0
  %2259 = vmatpush1.msra.mxu0 0.0
  %2260 = vmatprep.subr.mxu0 0.0
  %2261 = vmatpush1.msra.mxu0 0.0
  %2262 = vmatprep.subr.mxu0 0.0
  %2263 = vmatpush1.msra.mxu0 0.0
  %2264 = vmatprep.mubr.f32.mxu0 0.0
  %2265 = vmatmul.mubr.f32.gmra.mrb[0].mxu0 %v2189
  %v2266 = vpop.f32.mrb[0].mxu0
  %v2267 = vadd.f32 %v2186, %v2266
  %v2268 = vpop.f32.mrb[0].mxu0
  %2269 = vmatprep.mubr.f32.mxu0 0.0
  %2270 = vmatmul.mubr.f32.gmra.mrb[0].mxu0 %v2192
  %v2271 = vpop.f32.mrb[0].mxu0
  %v2272 = vadd.f32 %v2186, %v2271
  %v2273 = vpop.f32.mrb[0].mxu0
  %2274 = vmatprep.mubr.f32.mxu0 0.0
  %2275 = vmatmul.mubr.f32.gmra.mrb[0].mxu0 %v2195
  %v2276 = vpop.f32.mrb[0].mxu0
  %v2277 = vadd.f32 %v2186, %v2276
  %v2278 = vpop.f32.mrb[0].mxu0
  %2279 = vmatprep.mubr.f32.mxu0 0.0
  %2280 = vmatmul.mubr.f32.gmra.mrb[0].mxu0 %v2198
  %v2281 = vpop.f32.mrb[0].mxu0
  %v2282 = vadd.f32 %v2186, %v2281
  %v2283 = vpop.f32.mrb[0].mxu0
  %2284 = vdwg.mxu0
  %v2285 = vmul.f32 %v2267, %v2267
  %v2286 = vmul.f32 %v2272, %v2272
  %v2287 = vmul.f32 %v2277, %v2277
  %v2288 = vmul.f32 %v2282, %v2282
  %v2289 = vmul.f32 %v2267, %v2285
  %v2290 = vmul.f32 %v2272, %v2286
  %v2291 = vmul.f32 %v2277, %v2287
  %v2292 = vmul.f32 %v2282, %v2288
  %v2293 = vmul.f32 %v2289, 0.044715
  %v2294 = vmul.f32 %v2290, 0.044715
  %v2295 = vmul.f32 %v2291, 0.044715
  %v2296 = vmul.f32 %v2292, 0.044715
  %v2297 = vadd.f32 %v2267, %v2293
  %v2298 = vadd.f32 %v2272, %v2294
  %v2299 = vadd.f32 %v2277, %v2295
  %v2300 = vadd.f32 %v2282, %v2296
  %v2301 = vmul.f32 %v2297, 0.7978846
  %v2302 = vmul.f32 %v2298, 0.7978846
  %v2303 = vmul.f32 %v2299, 0.7978846
  %v2304 = vmul.f32 %v2300, 0.7978846
  %v2305 = vtanh.pop %v2301
  %v2306 = vtanh.pop %v2302
  %v2307 = vtanh.pop %v2303
  %v2308 = vtanh.pop %v2304
  %v2309 = vadd.f32 %v2305, 1.0
  %v2310 = vadd.f32 %v2306, 1.0
  %v2311 = vadd.f32 %v2307, 1.0
  %v2312 = vadd.f32 %v2308, 1.0
  %v2313 = vmul.f32 %v2309, 0.5
  %v2314 = vmul.f32 %v2310, 0.5
  %v2315 = vmul.f32 %v2311, 0.5
  %v2316 = vmul.f32 %v2312, 0.5
  %v2317 = vmul.f32 %v2267, %v2313
  %v2318 = vmul.f32 %v2272, %v2314
  %v2319 = vmul.f32 %v2277, %v2315
  %v2320 = vmul.f32 %v2282, %v2316
  %v2321 = vld [vmem:[%s25] sm:$0xff]
  %v2322 = vld [vmem:[%s25 + $0x8] sm:$0xff]
  %v2323 = vld [vmem:[%s25 + $0x10] sm:$0xff]
  %v2324 = vld [vmem:[%s25 + $0x18] sm:$0xff]
  %v2325 = vld [vmem:[%s25 + $0x20] sm:$0xff]
  %v2326 = vld [vmem:[%s25 + $0x28] sm:$0xff]
  %v2327 = vld [vmem:[%s25 + $0x30] sm:$0xff]
  %v2328 = vld [vmem:[%s25 + $0x38] sm:$0xff]
  %v2329 = vld [vmem:[%s27] sm:$0x1]
  %v2331 = vlaneseq
  %v2332 = vshrl.u32 %v2331, 7
  %v2333 = vsub.s32 0, %v2332
  %v2334 = vrot.slane %v2329, %v2333
  %vm2336 = vcmask 523264
  %v2338 = vsel %vm2336, %v2317, 0
  %v2341 = vsel %vm2336, %v2318, 0
  %v2344 = vsel %vm2336, %v2319, 0
  %v2347 = vsel %vm2336, %v2320, 0
  %2349 = vmatprep.subr.mxu0 0.0
  %2350 = vmatpush1.msra.mxu0 %v2321
  %2351 = vmatprep.subr.mxu0 0.0
  %2352 = vmatpush1.msra.mxu0 %v2322
  %2353 = vmatprep.subr.mxu0 0.0
  %2354 = vmatpush1.msra.mxu0 %v2323
  %2355 = vmatprep.subr.mxu0 0.0
  %2356 = vmatpush1.msra.mxu0 %v2324
  %2357 = vmatprep.subr.mxu0 0.0
  %2358 = vmatpush1.msra.mxu0 %v2325
  %2359 = vmatprep.subr.mxu0 0.0
  %2360 = vmatpush1.msra.mxu0 %v2326
  %2361 = vmatprep.subr.mxu0 0.0
  %2362 = vmatpush1.msra.mxu0 %v2327
  %2363 = vmatprep.subr.mxu0 0.0
  %2364 = vmatpush1.msra.mxu0 %v2328
  %2365 = vmatprep.subr.mxu0 0.0
  %2366 = vmatpush1.msra.mxu0 0.0
  %2367 = vmatprep.subr.mxu0 0.0
  %2368 = vmatpush1.msra.mxu0 0.0
  %2369 = vmatprep.subr.mxu0 0.0
  %2370 = vmatpush1.msra.mxu0 0.0
  %2371 = vmatprep.subr.mxu0 0.0
  %2372 = vmatpush1.msra.mxu0 0.0
  %2373 = vmatprep.subr.mxu0 0.0
  %2374 = vmatpush1.msra.mxu0 0.0
  %2375 = vmatprep.subr.mxu0 0.0
  %2376 = vmatpush1.msra.mxu0 0.0
  %2377 = vmatprep.subr.mxu0 0.0
  %2378 = vmatpush1.msra.mxu0 0.0
  %2379 = vmatprep.subr.mxu0 0.0
  %2380 = vmatpush1.msra.mxu0 0.0
  %2381 = vmatprep.subr.mxu0 0.0
  %2382 = vmatpush1.msra.mxu0 0.0
  %2383 = vmatprep.subr.mxu0 0.0
  %2384 = vmatpush1.msra.mxu0 0.0
  %2385 = vmatprep.subr.mxu0 0.0
  %2386 = vmatpush1.msra.mxu0 0.0
  %2387 = vmatprep.subr.mxu0 0.0
  %2388 = vmatpush1.msra.mxu0 0.0
  %2389 = vmatprep.subr.mxu0 0.0
  %2390 = vmatpush1.msra.mxu0 0.0
  %2391 = vmatprep.subr.mxu0 0.0
  %2392 = vmatpush1.msra.mxu0 0.0
  %2393 = vmatprep.subr.mxu0 0.0
  %2394 = vmatpush1.msra.mxu0 0.0
  %2395 = vmatprep.subr.mxu0 0.0
  %2396 = vmatpush1.msra.mxu0 0.0
  %2397 = vmatprep.subr.mxu0 0.0
  %2398 = vmatpush1.msra.mxu0 0.0
  %2399 = vmatprep.subr.mxu0 0.0
  %2400 = vmatpush1.msra.mxu0 0.0
  %2401 = vmatprep.subr.mxu0 0.0
  %2402 = vmatpush1.msra.mxu0 0.0
  %2403 = vmatprep.subr.mxu0 0.0
  %2404 = vmatpush1.msra.mxu0 0.0
  %2405 = vmatprep.subr.mxu0 0.0
  %2406 = vmatpush1.msra.mxu0 0.0
  %2407 = vmatprep.subr.mxu0 0.0
  %2408 = vmatpush1.msra.mxu0 0.0
  %2409 = vmatprep.subr.mxu0 0.0
  %2410 = vmatpush1.msra.mxu0 0.0
  %2411 = vmatprep.subr.mxu0 0.0
  %2412 = vmatpush1.msra.mxu0 0.0
  %2413 = vmatprep.mubr.f32.mxu0 0.0
  %2414 = vmatmul.mubr.f32.gmra.mrb[0].mxu0 %v2338
  %v2415 = vpop.f32.mrb[0].mxu0
  %v2416 = vadd.f32 %v2334, %v2415
  %v2417 = vpop.f32.mrb[0].mxu0
  %2418 = vmatprep.mubr.f32.mxu0 0.0
  %2419 = vmatmul.mubr.f32.gmra.mrb[0].mxu0 %v2341
  %v2420 = vpop.f32.mrb[0].mxu0
  %v2421 = vadd.f32 %v2334, %v2420
  %v2422 = vpop.f32.mrb[0].mxu0
  %2423 = vmatprep.mubr.f32.mxu0 0.0
  %2424 = vmatmul.mubr.f32.gmra.mrb[0].mxu0 %v2344
  %v2425 = vpop.f32.mrb[0].mxu0
  %v2426 = vadd.f32 %v2334, %v2425
  %v2427 = vpop.f32.mrb[0].mxu0
  %2428 = vmatprep.mubr.f32.mxu0 0.0
  %2429 = vmatmul.mubr.f32.gmra.mrb[0].mxu0 %v2347
  %v2430 = vpop.f32.mrb[0].mxu0
  %v2431 = vadd.f32 %v2334, %v2430
  %v2432 = vpop.f32.mrb[0].mxu0
  %2433 = vdwg.mxu0
  %v2434 = vadd.f32 %v2173, %v2416
  %v2435 = vadd.f32 %v2174, %v2421
  %v2436 = vadd.f32 %v2175, %v2426
  %v2437 = vadd.f32 %v2176, %v2431
  %v2438 = vld [vmem:[%s33] sm:$0x1]
  %v2440 = vlaneseq
  %v2441 = vshrl.u32 %v2440, 7
  %v2442 = vsub.s32 0, %v2441
  %v2443 = vrot.slane %v2438, %v2442
  %v2445 = vmul.f32 %v2434, %v2443
  %v2446 = vmul.f32 %v2435, %v2443
  %v2447 = vmul.f32 %v2436, %v2443
  %v2448 = vmul.f32 %v2437, %v2443
  %v2449 = vld [vmem:[%s35] sm:$0x1]
  %v2451 = vlaneseq
  %v2452 = vshrl.u32 %v2451, 7
  %v2453 = vsub.s32 0, %v2452
  %v2454 = vrot.slane %v2449, %v2453
  %v2456 = vadd.f32 %v2445, %v2454
  %v2457 = vadd.f32 %v2446, %v2454
  %v2458 = vadd.f32 %v2447, %v2454
  %v2459 = vadd.f32 %v2448, %v2454
  %s2460 = scalar_lea.vmem %s13, 32
  %v2461 = vld [vmem:[%s2460] sm:$0xff]
  %v2462 = vld [vmem:[%s2460 + $0x8] sm:$0xff]
  %v2463 = vld [vmem:[%s2460 + $0x10] sm:$0xff]
  %v2464 = vld [vmem:[%s2460 + $0x18] sm:$0xff]
  %s2465 = scalar_lea.vmem %s15, 1
  %v2466 = vld [vmem:[%s2465] sm:$0x1]
  %v2468 = vlaneseq
  %v2469 = vshrl.u32 %v2468, 7
  %v2470 = vsub.s32 0, %v2469
  %v2471 = vrot.slane %v2466, %v2470
  %v2474 = vsel %vm270, %v2456, 0
  %v2477 = vsel %vm270, %v2457, 0
  %v2480 = vsel %vm270, %v2458, 0
  %v2483 = vsel %vm270, %v2459, 0
  %2485 = vmatprep.subr.mxu0 0.0
  %2486 = vmatpush1.msra.mxu0 %v2461
  %2487 = vmatprep.subr.mxu0 0.0
  %2488 = vmatpush1.msra.mxu0 %v2462
  %2489 = vmatprep.subr.mxu0 0.0
  %2490 = vmatpush1.msra.mxu0 %v2463
  %2491 = vmatprep.subr.mxu0 0.0
  %2492 = vmatpush1.msra.mxu0 %v2464
  %2493 = vmatprep.subr.mxu0 0.0
  %2494 = vmatpush1.msra.mxu0 0.0
  %2495 = vmatprep.subr.mxu0 0.0
  %2496 = vmatpush1.msra.mxu0 0.0
  %2497 = vmatprep.subr.mxu0 0.0
  %2498 = vmatpush1.msra.mxu0 0.0
  %2499 = vmatprep.subr.mxu0 0.0
  %2500 = vmatpush1.msra.mxu0 0.0
  %2501 = vmatprep.subr.mxu0 0.0
  %2502 = vmatpush1.msra.mxu0 0.0
  %2503 = vmatprep.subr.mxu0 0.0
  %2504 = vmatpush1.msra.mxu0 0.0
  %2505 = vmatprep.subr.mxu0 0.0
  %2506 = vmatpush1.msra.mxu0 0.0
  %2507 = vmatprep.subr.mxu0 0.0
  %2508 = vmatpush1.msra.mxu0 0.0
  %2509 = vmatprep.subr.mxu0 0.0
  %2510 = vmatpush1.msra.mxu0 0.0
  %2511 = vmatprep.subr.mxu0 0.0
  %2512 = vmatpush1.msra.mxu0 0.0
  %2513 = vmatprep.subr.mxu0 0.0
  %2514 = vmatpush1.msra.mxu0 0.0
  %2515 = vmatprep.subr.mxu0 0.0
  %2516 = vmatpush1.msra.mxu0 0.0
  %2517 = vmatprep.subr.mxu0 0.0
  %2518 = vmatpush1.msra.mxu0 0.0
  %2519 = vmatprep.subr.mxu0 0.0
  %2520 = vmatpush1.msra.mxu0 0.0
  %2521 = vmatprep.subr.mxu0 0.0
  %2522 = vmatpush1.msra.mxu0 0.0
  %2523 = vmatprep.subr.mxu0 0.0
  %2524 = vmatpush1.msra.mxu0 0.0
  %2525 = vmatprep.subr.mxu0 0.0
  %2526 = vmatpush1.msra.mxu0 0.0
  %2527 = vmatprep.subr.mxu0 0.0
  %2528 = vmatpush1.msra.mxu0 0.0
  %2529 = vmatprep.subr.mxu0 0.0
  %2530 = vmatpush1.msra.mxu0 0.0
  %2531 = vmatprep.subr.mxu0 0.0
  %2532 = vmatpush1.msra.mxu0 0.0
  %2533 = vmatprep.subr.mxu0 0.0
  %2534 = vmatpush1.msra.mxu0 0.0
  %2535 = vmatprep.subr.mxu0 0.0
  %2536 = vmatpush1.msra.mxu0 0.0
  %2537 = vmatprep.subr.mxu0 0.0
  %2538 = vmatpush1.msra.mxu0 0.0
  %2539 = vmatprep.subr.mxu0 0.0
  %2540 = vmatpush1.msra.mxu0 0.0
  %2541 = vmatprep.subr.mxu0 0.0
  %2542 = vmatpush1.msra.mxu0 0.0
  %2543 = vmatprep.subr.mxu0 0.0
  %2544 = vmatpush1.msra.mxu0 0.0
  %2545 = vmatprep.subr.mxu0 0.0
  %2546 = vmatpush1.msra.mxu0 0.0
  %2547 = vmatprep.subr.mxu0 0.0
  %2548 = vmatpush1.msra.mxu0 0.0
  %2549 = vmatprep.mubr.f32.mxu0 0.0
  %2550 = vmatmul.mubr.f32.gmra.mrb[0].mxu0 %v2474
  %v2551 = vpop.f32.mrb[0].mxu0
  %v2552 = vadd.f32 %v2471, %v2551
  %v2553 = vpop.f32.mrb[0].mxu0
  %2554 = vmatprep.mubr.f32.mxu0 0.0
  %2555 = vmatmul.mubr.f32.gmra.mrb[0].mxu0 %v2477
  %v2556 = vpop.f32.mrb[0].mxu0
  %v2557 = vadd.f32 %v2471, %v2556
  %v2558 = vpop.f32.mrb[0].mxu0
  %2559 = vmatprep.mubr.f32.mxu0 0.0
  %2560 = vmatmul.mubr.f32.gmra.mrb[0].mxu0 %v2480
  %v2561 = vpop.f32.mrb[0].mxu0
  %v2562 = vadd.f32 %v2471, %v2561
  %v2563 = vpop.f32.mrb[0].mxu0
  %2564 = vmatprep.mubr.f32.mxu0 0.0
  %2565 = vmatmul.mubr.f32.gmra.mrb[0].mxu0 %v2483
  %v2566 = vpop.f32.mrb[0].mxu0
  %v2567 = vadd.f32 %v2471, %v2566
  %v2568 = vpop.f32.mrb[0].mxu0
  %2569 = vdwg.mxu0
  %v2570 = vmul.f32 %v2552, 0.35355338
  %v2571 = vmul.f32 %v2557, 0.35355338
  %2574 = vrot.lane.b32.xlu0 %v2552, 96
  %v2575 = vpop.permute.xlu0 %2574
  %2576 = vrot.lane.b32.xlu0 %v2557, 96
  %v2577 = vpop.permute.xlu0 %2576
  %v2579 = vsel %vm380, %v2570, 0
  %v2582 = vsel %vm380, %v2571, 0
  %v2584 = vsel %vm380, %v2575, 0
  %v2586 = vsel %vm380, %v2577, 0
  %2588 = vmatprep.subr.mxu0 0.0
  %2589 = vmatpush1.xpose.msra.mxu0 %v2584
  %2590 = vmatprep.subr.mxu0 0.0
  %2591 = vmatpush1.xpose.msra.mxu0 %v2586
  %2592 = vmatprep.subr.mxu0 0.0
  %2593 = vmatpush1.xpose.msra.mxu0 0.0
  %2594 = vmatprep.subr.mxu0 0.0
  %2595 = vmatpush1.xpose.msra.mxu0 0.0
  %2596 = vmatprep.subr.mxu0 0.0
  %2597 = vmatpush1.xpose.msra.mxu0 0.0
  %2598 = vmatprep.subr.mxu0 0.0
  %2599 = vmatpush1.xpose.msra.mxu0 0.0
  %2600 = vmatprep.subr.mxu0 0.0
  %2601 = vmatpush1.xpose.msra.mxu0 0.0
  %2602 = vmatprep.subr.mxu0 0.0
  %2603 = vmatpush1.xpose.msra.mxu0 0.0
  %2604 = vmatprep.subr.mxu0 0.0
  %2605 = vmatpush1.xpose.msra.mxu0 0.0
  %2606 = vmatprep.subr.mxu0 0.0
  %2607 = vmatpush1.xpose.msra.mxu0 0.0
  %2608 = vmatprep.subr.mxu0 0.0
  %2609 = vmatpush1.xpose.msra.mxu0 0.0
  %2610 = vmatprep.subr.mxu0 0.0
  %2611 = vmatpush1.xpose.msra.mxu0 0.0
  %2612 = vmatprep.subr.mxu0 0.0
  %2613 = vmatpush1.xpose.msra.mxu0 0.0
  %2614 = vmatprep.subr.mxu0 0.0
  %2615 = vmatpush1.xpose.msra.mxu0 0.0
  %2616 = vmatprep.subr.mxu0 0.0
  %2617 = vmatpush1.xpose.msra.mxu0 0.0
  %2618 = vmatprep.subr.mxu0 0.0
  %2619 = vmatpush1.xpose.msra.mxu0 0.0
  %2620 = vmatprep.subr.mxu0 0.0
  %2621 = vmatpush1.xpose.msra.mxu0 0.0
  %2622 = vmatprep.subr.mxu0 0.0
  %2623 = vmatpush1.xpose.msra.mxu0 0.0
  %2624 = vmatprep.subr.mxu0 0.0
  %2625 = vmatpush1.xpose.msra.mxu0 0.0
  %2626 = vmatprep.subr.mxu0 0.0
  %2627 = vmatpush1.xpose.msra.mxu0 0.0
  %2628 = vmatprep.subr.mxu0 0.0
  %2629 = vmatpush1.xpose.msra.mxu0 0.0
  %2630 = vmatprep.subr.mxu0 0.0
  %2631 = vmatpush1.xpose.msra.mxu0 0.0
  %2632 = vmatprep.subr.mxu0 0.0
  %2633 = vmatpush1.xpose.msra.mxu0 0.0
  %2634 = vmatprep.subr.mxu0 0.0
  %2635 = vmatpush1.xpose.msra.mxu0 0.0
  %2636 = vmatprep.subr.mxu0 0.0
  %2637 = vmatpush1.xpose.msra.mxu0 0.0
  %2638 = vmatprep.subr.mxu0 0.0
  %2639 = vmatpush1.xpose.msra.mxu0 0.0
  %2640 = vmatprep.subr.mxu0 0.0
  %2641 = vmatpush1.xpose.msra.mxu0 0.0
  %2642 = vmatprep.subr.mxu0 0.0
  %2643 = vmatpush1.xpose.msra.mxu0 0.0
  %2644 = vmatprep.subr.mxu0 0.0
  %2645 = vmatpush1.xpose.msra.mxu0 0.0
  %2646 = vmatprep.subr.mxu0 0.0
  %2647 = vmatpush1.xpose.msra.mxu0 0.0
  %2648 = vmatprep.subr.mxu0 0.0
  %2649 = vmatpush1.xpose.msra.mxu0 0.0
  %2650 = vmatprep.subr.mxu0 0.0
  %2651 = vmatpush1.xpose.msra.mxu0 0.0
  %2652 = vmatprep.mubr.f32.mxu0 0.0
  %2653 = vmatmul.mubr.f32.gmra.mrb[0].mxu0 %v2579
  %v2654 = vpop.f32.mrb[0].mxu0
  %v2655 = vadd.f32 %v373, %v2654
  %v2656 = vpop.f32.mrb[0].mxu0
  %2657 = vmatprep.mubr.f32.mxu0 0.0
  %2658 = vmatmul.mubr.f32.gmra.mrb[0].mxu0 %v2582
  %v2659 = vpop.f32.mrb[0].mxu0
  %v2660 = vadd.f32 %v373, %v2659
  %v2661 = vpop.f32.mrb[0].mxu0
  %2662 = vdwg.mxu0
  %v2663 = vsel %vm466, %v2655, -inf
  %2664 = vmax.xlane.f32.xlu0 %v2663
  %v2665 = vpop.xlane.xlu0 %2664
  %v2666 = vsel %vm466, %v2660, -inf
  %2667 = vmax.xlane.f32.xlu0 %v2666
  %v2668 = vpop.xlane.xlu0 %2667
  %v2669 = vsub.f32 %v2655, %v2665
  %v2670 = vsub.f32 %v2660, %v2668
  %v2671 = vmul.f32 %v2669, 1.442695
  %v2672 = vpow.pop %v2671
  %v2673 = vmul.f32 %v2670, 1.442695
  %v2674 = vpow.pop %v2673
  %v2675 = vsel %vm466, %v2672, 0.0
  %2676 = vadd.xlane.f32.xlu0 %v2675
  %v2677 = vpop.xlane.xlu0 %2676
  %v2678 = vsel %vm466, %v2674, 0.0
  %2679 = vadd.xlane.f32.xlu0 %v2678
  %v2680 = vpop.xlane.xlu0 %2679
  %v2681 = vrcp.pop %v2677
  %v2682 = vrcp.pop %v2680
  %v2683 = vmul.f32 %v2672, %v2681
  %v2684 = vmul.f32 %v2674, %v2682
  %2685 = vrot.lane.b32.xlu0 %v2552, 64
  %v2686 = vpop.permute.xlu0 %2685
  %2687 = vrot.lane.b32.xlu0 %v2557, 64
  %v2688 = vpop.permute.xlu0 %2687
  %v2692 = vsel %vm466, %v2683, 0
  %v2695 = vsel %vm466, %v2684, 0
  %2697 = vmatprep.subr.mxu0 0.0
  %2698 = vmatpush1.msra.mxu0 %v2686
  %2699 = vmatprep.subr.mxu0 0.0
  %2700 = vmatpush1.msra.mxu0 %v2688
  %2701 = vmatprep.subr.mxu0 0.0
  %2702 = vmatpush1.msra.mxu0 0.0
  %2703 = vmatprep.subr.mxu0 0.0
  %2704 = vmatpush1.msra.mxu0 0.0
  %2705 = vmatprep.subr.mxu0 0.0
  %2706 = vmatpush1.msra.mxu0 0.0
  %2707 = vmatprep.subr.mxu0 0.0
  %2708 = vmatpush1.msra.mxu0 0.0
  %2709 = vmatprep.subr.mxu0 0.0
  %2710 = vmatpush1.msra.mxu0 0.0
  %2711 = vmatprep.subr.mxu0 0.0
  %2712 = vmatpush1.msra.mxu0 0.0
  %2713 = vmatprep.subr.mxu0 0.0
  %2714 = vmatpush1.msra.mxu0 0.0
  %2715 = vmatprep.subr.mxu0 0.0
  %2716 = vmatpush1.msra.mxu0 0.0
  %2717 = vmatprep.subr.mxu0 0.0
  %2718 = vmatpush1.msra.mxu0 0.0
  %2719 = vmatprep.subr.mxu0 0.0
  %2720 = vmatpush1.msra.mxu0 0.0
  %2721 = vmatprep.subr.mxu0 0.0
  %2722 = vmatpush1.msra.mxu0 0.0
  %2723 = vmatprep.subr.mxu0 0.0
  %2724 = vmatpush1.msra.mxu0 0.0
  %2725 = vmatprep.subr.mxu0 0.0
  %2726 = vmatpush1.msra.mxu0 0.0
  %2727 = vmatprep.subr.mxu0 0.0
  %2728 = vmatpush1.msra.mxu0 0.0
  %2729 = vmatprep.subr.mxu0 0.0
  %2730 = vmatpush1.msra.mxu0 0.0
  %2731 = vmatprep.subr.mxu0 0.0
  %2732 = vmatpush1.msra.mxu0 0.0
  %2733 = vmatprep.subr.mxu0 0.0
  %2734 = vmatpush1.msra.mxu0 0.0
  %2735 = vmatprep.subr.mxu0 0.0
  %2736 = vmatpush1.msra.mxu0 0.0
  %2737 = vmatprep.subr.mxu0 0.0
  %2738 = vmatpush1.msra.mxu0 0.0
  %2739 = vmatprep.subr.mxu0 0.0
  %2740 = vmatpush1.msra.mxu0 0.0
  %2741 = vmatprep.subr.mxu0 0.0
  %2742 = vmatpush1.msra.mxu0 0.0
  %2743 = vmatprep.subr.mxu0 0.0
  %2744 = vmatpush1.msra.mxu0 0.0
  %2745 = vmatprep.subr.mxu0 0.0
  %2746 = vmatpush1.msra.mxu0 0.0
  %2747 = vmatprep.subr.mxu0 0.0
  %2748 = vmatpush1.msra.mxu0 0.0
  %2749 = vmatprep.subr.mxu0 0.0
  %2750 = vmatpush1.msra.mxu0 0.0
  %2751 = vmatprep.subr.mxu0 0.0
  %2752 = vmatpush1.msra.mxu0 0.0
  %2753 = vmatprep.subr.mxu0 0.0
  %2754 = vmatpush1.msra.mxu0 0.0
  %2755 = vmatprep.subr.mxu0 0.0
  %2756 = vmatpush1.msra.mxu0 0.0
  %2757 = vmatprep.subr.mxu0 0.0
  %2758 = vmatpush1.msra.mxu0 0.0
  %2759 = vmatprep.subr.mxu0 0.0
  %2760 = vmatpush1.msra.mxu0 0.0
  %2761 = vmatprep.mubr.f32.mxu0 0.0
  %2762 = vmatmul.mubr.f32.gmra.mrb[0].mxu0 %v2692
  %v2763 = vpop.f32.mrb[0].mxu0
  %v2764 = vadd.f32 0.0, %v2763
  %v2765 = vpop.f32.mrb[0].mxu0
  %2766 = vmatprep.mubr.f32.mxu0 0.0
  %2767 = vmatmul.mubr.f32.gmra.mrb[0].mxu0 %v2695
  %v2768 = vpop.f32.mrb[0].mxu0
  %v2769 = vadd.f32 0.0, %v2768
  %v2770 = vpop.f32.mrb[0].mxu0
  %2771 = vdwg.mxu0
  %2772 = vrot.lane.b32.xlu0 %v2570, 120
  %v2773 = vpop.permute.xlu0 %2772
  %2774 = vrot.lane.b32.xlu0 %v2571, 120
  %v2775 = vpop.permute.xlu0 %2774
  %2776 = vrot.lane.b32.xlu0 %v2552, 88
  %v2777 = vpop.permute.xlu0 %2776
  %2778 = vrot.lane.b32.xlu0 %v2557, 88
  %v2779 = vpop.permute.xlu0 %2778
  %v2780 = vsel %vm380, %v2773, 0
  %v2782 = vsel %vm380, %v2775, 0
  %v2784 = vsel %vm380, %v2777, 0
  %v2786 = vsel %vm380, %v2779, 0
  %2788 = vmatprep.subr.mxu0 0.0
  %2789 = vmatpush1.xpose.msra.mxu0 %v2784
  %2790 = vmatprep.subr.mxu0 0.0
  %2791 = vmatpush1.xpose.msra.mxu0 %v2786
  %2792 = vmatprep.subr.mxu0 0.0
  %2793 = vmatpush1.xpose.msra.mxu0 0.0
  %2794 = vmatprep.subr.mxu0 0.0
  %2795 = vmatpush1.xpose.msra.mxu0 0.0
  %2796 = vmatprep.subr.mxu0 0.0
  %2797 = vmatpush1.xpose.msra.mxu0 0.0
  %2798 = vmatprep.subr.mxu0 0.0
  %2799 = vmatpush1.xpose.msra.mxu0 0.0
  %2800 = vmatprep.subr.mxu0 0.0
  %2801 = vmatpush1.xpose.msra.mxu0 0.0
  %2802 = vmatprep.subr.mxu0 0.0
  %2803 = vmatpush1.xpose.msra.mxu0 0.0
  %2804 = vmatprep.subr.mxu0 0.0
  %2805 = vmatpush1.xpose.msra.mxu0 0.0
  %2806 = vmatprep.subr.mxu0 0.0
  %2807 = vmatpush1.xpose.msra.mxu0 0.0
  %2808 = vmatprep.subr.mxu0 0.0
  %2809 = vmatpush1.xpose.msra.mxu0 0.0
  %2810 = vmatprep.subr.mxu0 0.0
  %2811 = vmatpush1.xpose.msra.mxu0 0.0
  %2812 = vmatprep.subr.mxu0 0.0
  %2813 = vmatpush1.xpose.msra.mxu0 0.0
  %2814 = vmatprep.subr.mxu0 0.0
  %2815 = vmatpush1.xpose.msra.mxu0 0.0
  %2816 = vmatprep.subr.mxu0 0.0
  %2817 = vmatpush1.xpose.msra.mxu0 0.0
  %2818 = vmatprep.subr.mxu0 0.0
  %2819 = vmatpush1.xpose.msra.mxu0 0.0
  %2820 = vmatprep.subr.mxu0 0.0
  %2821 = vmatpush1.xpose.msra.mxu0 0.0
  %2822 = vmatprep.subr.mxu0 0.0
  %2823 = vmatpush1.xpose.msra.mxu0 0.0
  %2824 = vmatprep.subr.mxu0 0.0
  %2825 = vmatpush1.xpose.msra.mxu0 0.0
  %2826 = vmatprep.subr.mxu0 0.0
  %2827 = vmatpush1.xpose.msra.mxu0 0.0
  %2828 = vmatprep.subr.mxu0 0.0
  %2829 = vmatpush1.xpose.msra.mxu0 0.0
  %2830 = vmatprep.subr.mxu0 0.0
  %2831 = vmatpush1.xpose.msra.mxu0 0.0
  %2832 = vmatprep.subr.mxu0 0.0
  %2833 = vmatpush1.xpose.msra.mxu0 0.0
  %2834 = vmatprep.subr.mxu0 0.0
  %2835 = vmatpush1.xpose.msra.mxu0 0.0
  %2836 = vmatprep.subr.mxu0 0.0
  %2837 = vmatpush1.xpose.msra.mxu0 0.0
  %2838 = vmatprep.subr.mxu0 0.0
  %2839 = vmatpush1.xpose.msra.mxu0 0.0
  %2840 = vmatprep.subr.mxu0 0.0
  %2841 = vmatpush1.xpose.msra.mxu0 0.0
  %2842 = vmatprep.subr.mxu0 0.0
  %2843 = vmatpush1.xpose.msra.mxu0 0.0
  %2844 = vmatprep.subr.mxu0 0.0
  %2845 = vmatpush1.xpose.msra.mxu0 0.0
  %2846 = vmatprep.subr.mxu0 0.0
  %2847 = vmatpush1.xpose.msra.mxu0 0.0
  %2848 = vmatprep.subr.mxu0 0.0
  %2849 = vmatpush1.xpose.msra.mxu0 0.0
  %2850 = vmatprep.subr.mxu0 0.0
  %2851 = vmatpush1.xpose.msra.mxu0 0.0
  %2852 = vmatprep.mubr.f32.mxu0 0.0
  %2853 = vmatmul.mubr.f32.gmra.mrb[0].mxu0 %v2780
  %v2854 = vpop.f32.mrb[0].mxu0
  %v2855 = vadd.f32 %v373, %v2854
  %v2856 = vpop.f32.mrb[0].mxu0
  %2857 = vmatprep.mubr.f32.mxu0 0.0
  %2858 = vmatmul.mubr.f32.gmra.mrb[0].mxu0 %v2782
  %v2859 = vpop.f32.mrb[0].mxu0
  %v2860 = vadd.f32 %v373, %v2859
  %v2861 = vpop.f32.mrb[0].mxu0
  %2862 = vdwg.mxu0
  %v2863 = vsel %vm466, %v2855, -inf
  %2864 = vmax.xlane.f32.xlu0 %v2863
  %v2865 = vpop.xlane.xlu0 %2864
  %v2866 = vsel %vm466, %v2860, -inf
  %2867 = vmax.xlane.f32.xlu0 %v2866
  %v2868 = vpop.xlane.xlu0 %2867
  %v2869 = vsub.f32 %v2855, %v2865
  %v2870 = vsub.f32 %v2860, %v2868
  %v2871 = vmul.f32 %v2869, 1.442695
  %v2872 = vpow.pop %v2871
  %v2873 = vmul.f32 %v2870, 1.442695
  %v2874 = vpow.pop %v2873
  %v2875 = vsel %vm466, %v2872, 0.0
  %2876 = vadd.xlane.f32.xlu0 %v2875
  %v2877 = vpop.xlane.xlu0 %2876
  %v2878 = vsel %vm466, %v2874, 0.0
  %2879 = vadd.xlane.f32.xlu0 %v2878
  %v2880 = vpop.xlane.xlu0 %2879
  %v2881 = vrcp.pop %v2877
  %v2882 = vrcp.pop %v2880
  %v2883 = vmul.f32 %v2872, %v2881
  %v2884 = vmul.f32 %v2874, %v2882
  %2885 = vrot.lane.b32.xlu0 %v2552, 56
  %v2886 = vpop.permute.xlu0 %2885
  %2887 = vrot.lane.b32.xlu0 %v2557, 56
  %v2888 = vpop.permute.xlu0 %2887
  %v2892 = vsel %vm466, %v2883, 0
  %v2895 = vsel %vm466, %v2884, 0
  %2897 = vmatprep.subr.mxu0 0.0
  %2898 = vmatpush1.msra.mxu0 %v2886
  %2899 = vmatprep.subr.mxu0 0.0
  %2900 = vmatpush1.msra.mxu0 %v2888
  %2901 = vmatprep.subr.mxu0 0.0
  %2902 = vmatpush1.msra.mxu0 0.0
  %2903 = vmatprep.subr.mxu0 0.0
  %2904 = vmatpush1.msra.mxu0 0.0
  %2905 = vmatprep.subr.mxu0 0.0
  %2906 = vmatpush1.msra.mxu0 0.0
  %2907 = vmatprep.subr.mxu0 0.0
  %2908 = vmatpush1.msra.mxu0 0.0
  %2909 = vmatprep.subr.mxu0 0.0
  %2910 = vmatpush1.msra.mxu0 0.0
  %2911 = vmatprep.subr.mxu0 0.0
  %2912 = vmatpush1.msra.mxu0 0.0
  %2913 = vmatprep.subr.mxu0 0.0
  %2914 = vmatpush1.msra.mxu0 0.0
  %2915 = vmatprep.subr.mxu0 0.0
  %2916 = vmatpush1.msra.mxu0 0.0
  %2917 = vmatprep.subr.mxu0 0.0
  %2918 = vmatpush1.msra.mxu0 0.0
  %2919 = vmatprep.subr.mxu0 0.0
  %2920 = vmatpush1.msra.mxu0 0.0
  %2921 = vmatprep.subr.mxu0 0.0
  %2922 = vmatpush1.msra.mxu0 0.0
  %2923 = vmatprep.subr.mxu0 0.0
  %2924 = vmatpush1.msra.mxu0 0.0
  %2925 = vmatprep.subr.mxu0 0.0
  %2926 = vmatpush1.msra.mxu0 0.0
  %2927 = vmatprep.subr.mxu0 0.0
  %2928 = vmatpush1.msra.mxu0 0.0
  %2929 = vmatprep.subr.mxu0 0.0
  %2930 = vmatpush1.msra.mxu0 0.0
  %2931 = vmatprep.subr.mxu0 0.0
  %2932 = vmatpush1.msra.mxu0 0.0
  %2933 = vmatprep.subr.mxu0 0.0
  %2934 = vmatpush1.msra.mxu0 0.0
  %2935 = vmatprep.subr.mxu0 0.0
  %2936 = vmatpush1.msra.mxu0 0.0
  %2937 = vmatprep.subr.mxu0 0.0
  %2938 = vmatpush1.msra.mxu0 0.0
  %2939 = vmatprep.subr.mxu0 0.0
  %2940 = vmatpush1.msra.mxu0 0.0
  %2941 = vmatprep.subr.mxu0 0.0
  %2942 = vmatpush1.msra.mxu0 0.0
  %2943 = vmatprep.subr.mxu0 0.0
  %2944 = vmatpush1.msra.mxu0 0.0
  %2945 = vmatprep.subr.mxu0 0.0
  %2946 = vmatpush1.msra.mxu0 0.0
  %2947 = vmatprep.subr.mxu0 0.0
  %2948 = vmatpush1.msra.mxu0 0.0
  %2949 = vmatprep.subr.mxu0 0.0
  %2950 = vmatpush1.msra.mxu0 0.0
  %2951 = vmatprep.subr.mxu0 0.0
  %2952 = vmatpush1.msra.mxu0 0.0
  %2953 = vmatprep.subr.mxu0 0.0
  %2954 = vmatpush1.msra.mxu0 0.0
  %2955 = vmatprep.subr.mxu0 0.0
  %2956 = vmatpush1.msra.mxu0 0.0
  %2957 = vmatprep.subr.mxu0 0.0
  %2958 = vmatpush1.msra.mxu0 0.0
  %2959 = vmatprep.subr.mxu0 0.0
  %2960 = vmatpush1.msra.mxu0 0.0
  %2961 = vmatprep.mubr.f32.mxu0 0.0
  %2962 = vmatmul.mubr.f32.gmra.mrb[0].mxu0 %v2892
  %v2963 = vpop.f32.mrb[0].mxu0
  %v2964 = vadd.f32 0.0, %v2963
  %v2965 = vpop.f32.mrb[0].mxu0
  %2966 = vmatprep.mubr.f32.mxu0 0.0
  %2967 = vmatmul.mubr.f32.gmra.mrb[0].mxu0 %v2895
  %v2968 = vpop.f32.mrb[0].mxu0
  %v2969 = vadd.f32 0.0, %v2968
  %v2970 = vpop.f32.mrb[0].mxu0
  %2971 = vdwg.mxu0
  %2972 = vrot.lane.b32.xlu0 %v2570, 112
  %v2973 = vpop.permute.xlu0 %2972
  %2974 = vrot.lane.b32.xlu0 %v2571, 112
  %v2975 = vpop.permute.xlu0 %2974
  %2976 = vrot.lane.b32.xlu0 %v2552, 80
  %v2977 = vpop.permute.xlu0 %2976
  %2978 = vrot.lane.b32.xlu0 %v2557, 80
  %v2979 = vpop.permute.xlu0 %2978
  %v2980 = vsel %vm380, %v2973, 0
  %v2982 = vsel %vm380, %v2975, 0
  %v2984 = vsel %vm380, %v2977, 0
  %v2986 = vsel %vm380, %v2979, 0
  %2988 = vmatprep.subr.mxu0 0.0
  %2989 = vmatpush1.xpose.msra.mxu0 %v2984
  %2990 = vmatprep.subr.mxu0 0.0
  %2991 = vmatpush1.xpose.msra.mxu0 %v2986
  %2992 = vmatprep.subr.mxu0 0.0
  %2993 = vmatpush1.xpose.msra.mxu0 0.0
  %2994 = vmatprep.subr.mxu0 0.0
  %2995 = vmatpush1.xpose.msra.mxu0 0.0
  %2996 = vmatprep.subr.mxu0 0.0
  %2997 = vmatpush1.xpose.msra.mxu0 0.0
  %2998 = vmatprep.subr.mxu0 0.0
  %2999 = vmatpush1.xpose.msra.mxu0 0.0
  %3000 = vmatprep.subr.mxu0 0.0
  %3001 = vmatpush1.xpose.msra.mxu0 0.0
  %3002 = vmatprep.subr.mxu0 0.0
  %3003 = vmatpush1.xpose.msra.mxu0 0.0
  %3004 = vmatprep.subr.mxu0 0.0
  %3005 = vmatpush1.xpose.msra.mxu0 0.0
  %3006 = vmatprep.subr.mxu0 0.0
  %3007 = vmatpush1.xpose.msra.mxu0 0.0
  %3008 = vmatprep.subr.mxu0 0.0
  %3009 = vmatpush1.xpose.msra.mxu0 0.0
  %3010 = vmatprep.subr.mxu0 0.0
  %3011 = vmatpush1.xpose.msra.mxu0 0.0
  %3012 = vmatprep.subr.mxu0 0.0
  %3013 = vmatpush1.xpose.msra.mxu0 0.0
  %3014 = vmatprep.subr.mxu0 0.0
  %3015 = vmatpush1.xpose.msra.mxu0 0.0
  %3016 = vmatprep.subr.mxu0 0.0
  %3017 = vmatpush1.xpose.msra.mxu0 0.0
  %3018 = vmatprep.subr.mxu0 0.0
  %3019 = vmatpush1.xpose.msra.mxu0 0.0
  %3020 = vmatprep.subr.mxu0 0.0
  %3021 = vmatpush1.xpose.msra.mxu0 0.0
  %3022 = vmatprep.subr.mxu0 0.0
  %3023 = vmatpush1.xpose.msra.mxu0 0.0
  %3024 = vmatprep.subr.mxu0 0.0
  %3025 = vmatpush1.xpose.msra.mxu0 0.0
  %3026 = vmatprep.subr.mxu0 0.0
  %3027 = vmatpush1.xpose.msra.mxu0 0.0
  %3028 = vmatprep.subr.mxu0 0.0
  %3029 = vmatpush1.xpose.msra.mxu0 0.0
  %3030 = vmatprep.subr.mxu0 0.0
  %3031 = vmatpush1.xpose.msra.mxu0 0.0
  %3032 = vmatprep.subr.mxu0 0.0
  %3033 = vmatpush1.xpose.msra.mxu0 0.0
  %3034 = vmatprep.subr.mxu0 0.0
  %3035 = vmatpush1.xpose.msra.mxu0 0.0
  %3036 = vmatprep.subr.mxu0 0.0
  %3037 = vmatpush1.xpose.msra.mxu0 0.0
  %3038 = vmatprep.subr.mxu0 0.0
  %3039 = vmatpush1.xpose.msra.mxu0 0.0
  %3040 = vmatprep.subr.mxu0 0.0
  %3041 = vmatpush1.xpose.msra.mxu0 0.0
  %3042 = vmatprep.subr.mxu0 0.0
  %3043 = vmatpush1.xpose.msra.mxu0 0.0
  %3044 = vmatprep.subr.mxu0 0.0
  %3045 = vmatpush1.xpose.msra.mxu0 0.0
  %3046 = vmatprep.subr.mxu0 0.0
  %3047 = vmatpush1.xpose.msra.mxu0 0.0
  %3048 = vmatprep.subr.mxu0 0.0
  %3049 = vmatpush1.xpose.msra.mxu0 0.0
  %3050 = vmatprep.subr.mxu0 0.0
  %3051 = vmatpush1.xpose.msra.mxu0 0.0
  %3052 = vmatprep.mubr.f32.mxu0 0.0
  %3053 = vmatmul.mubr.f32.gmra.mrb[0].mxu0 %v2980
  %v3054 = vpop.f32.mrb[0].mxu0
  %v3055 = vadd.f32 %v373, %v3054
  %v3056 = vpop.f32.mrb[0].mxu0
  %3057 = vmatprep.mubr.f32.mxu0 0.0
  %3058 = vmatmul.mubr.f32.gmra.mrb[0].mxu0 %v2982
  %v3059 = vpop.f32.mrb[0].mxu0
  %v3060 = vadd.f32 %v373, %v3059
  %v3061 = vpop.f32.mrb[0].mxu0
  %3062 = vdwg.mxu0
  %v3063 = vsel %vm466, %v3055, -inf
  %3064 = vmax.xlane.f32.xlu0 %v3063
  %v3065 = vpop.xlane.xlu0 %3064
  %v3066 = vsel %vm466, %v3060, -inf
  %3067 = vmax.xlane.f32.xlu0 %v3066
  %v3068 = vpop.xlane.xlu0 %3067
  %v3069 = vsub.f32 %v3055, %v3065
  %v3070 = vsub.f32 %v3060, %v3068
  %v3071 = vmul.f32 %v3069, 1.442695
  %v3072 = vpow.pop %v3071
  %v3073 = vmul.f32 %v3070, 1.442695
  %v3074 = vpow.pop %v3073
  %v3075 = vsel %vm466, %v3072, 0.0
  %3076 = vadd.xlane.f32.xlu0 %v3075
  %v3077 = vpop.xlane.xlu0 %3076
  %v3078 = vsel %vm466, %v3074, 0.0
  %3079 = vadd.xlane.f32.xlu0 %v3078
  %v3080 = vpop.xlane.xlu0 %3079
  %v3081 = vrcp.pop %v3077
  %v3082 = vrcp.pop %v3080
  %v3083 = vmul.f32 %v3072, %v3081
  %v3084 = vmul.f32 %v3074, %v3082
  %3085 = vrot.lane.b32.xlu0 %v2552, 48
  %v3086 = vpop.permute.xlu0 %3085
  %3087 = vrot.lane.b32.xlu0 %v2557, 48
  %v3088 = vpop.permute.xlu0 %3087
  %v3092 = vsel %vm466, %v3083, 0
  %v3095 = vsel %vm466, %v3084, 0
  %3097 = vmatprep.subr.mxu0 0.0
  %3098 = vmatpush1.msra.mxu0 %v3086
  %3099 = vmatprep.subr.mxu0 0.0
  %3100 = vmatpush1.msra.mxu0 %v3088
  %3101 = vmatprep.subr.mxu0 0.0
  %3102 = vmatpush1.msra.mxu0 0.0
  %3103 = vmatprep.subr.mxu0 0.0
  %3104 = vmatpush1.msra.mxu0 0.0
  %3105 = vmatprep.subr.mxu0 0.0
  %3106 = vmatpush1.msra.mxu0 0.0
  %3107 = vmatprep.subr.mxu0 0.0
  %3108 = vmatpush1.msra.mxu0 0.0
  %3109 = vmatprep.subr.mxu0 0.0
  %3110 = vmatpush1.msra.mxu0 0.0
  %3111 = vmatprep.subr.mxu0 0.0
  %3112 = vmatpush1.msra.mxu0 0.0
  %3113 = vmatprep.subr.mxu0 0.0
  %3114 = vmatpush1.msra.mxu0 0.0
  %3115 = vmatprep.subr.mxu0 0.0
  %3116 = vmatpush1.msra.mxu0 0.0
  %3117 = vmatprep.subr.mxu0 0.0
  %3118 = vmatpush1.msra.mxu0 0.0
  %3119 = vmatprep.subr.mxu0 0.0
  %3120 = vmatpush1.msra.mxu0 0.0
  %3121 = vmatprep.subr.mxu0 0.0
  %3122 = vmatpush1.msra.mxu0 0.0
  %3123 = vmatprep.subr.mxu0 0.0
  %3124 = vmatpush1.msra.mxu0 0.0
  %3125 = vmatprep.subr.mxu0 0.0
  %3126 = vmatpush1.msra.mxu0 0.0
  %3127 = vmatprep.subr.mxu0 0.0
  %3128 = vmatpush1.msra.mxu0 0.0
  %3129 = vmatprep.subr.mxu0 0.0
  %3130 = vmatpush1.msra.mxu0 0.0
  %3131 = vmatprep.subr.mxu0 0.0
  %3132 = vmatpush1.msra.mxu0 0.0
  %3133 = vmatprep.subr.mxu0 0.0
  %3134 = vmatpush1.msra.mxu0 0.0
  %3135 = vmatprep.subr.mxu0 0.0
  %3136 = vmatpush1.msra.mxu0 0.0
  %3137 = vmatprep.subr.mxu0 0.0
  %3138 = vmatpush1.msra.mxu0 0.0
  %3139 = vmatprep.subr.mxu0 0.0
  %3140 = vmatpush1.msra.mxu0 0.0
  %3141 = vmatprep.subr.mxu0 0.0
  %3142 = vmatpush1.msra.mxu0 0.0
  %3143 = vmatprep.subr.mxu0 0.0
  %3144 = vmatpush1.msra.mxu0 0.0
  %3145 = vmatprep.subr.mxu0 0.0
  %3146 = vmatpush1.msra.mxu0 0.0
  %3147 = vmatprep.subr.mxu0 0.0
  %3148 = vmatpush1.msra.mxu0 0.0
  %3149 = vmatprep.subr.mxu0 0.0
  %3150 = vmatpush1.msra.mxu0 0.0
  %3151 = vmatprep.subr.mxu0 0.0
  %3152 = vmatpush1.msra.mxu0 0.0
  %3153 = vmatprep.subr.mxu0 0.0
  %3154 = vmatpush1.msra.mxu0 0.0
  %3155 = vmatprep.subr.mxu0 0.0
  %3156 = vmatpush1.msra.mxu0 0.0
  %3157 = vmatprep.subr.mxu0 0.0
  %3158 = vmatpush1.msra.mxu0 0.0
  %3159 = vmatprep.subr.mxu0 0.0
  %3160 = vmatpush1.msra.mxu0 0.0
  %3161 = vmatprep.mubr.f32.mxu0 0.0
  %3162 = vmatmul.mubr.f32.gmra.mrb[0].mxu0 %v3092
  %v3163 = vpop.f32.mrb[0].mxu0
  %v3164 = vadd.f32 0.0, %v3163
  %v3165 = vpop.f32.mrb[0].mxu0
  %3166 = vmatprep.mubr.f32.mxu0 0.0
  %3167 = vmatmul.mubr.f32.gmra.mrb[0].mxu0 %v3095
  %v3168 = vpop.f32.mrb[0].mxu0
  %v3169 = vadd.f32 0.0, %v3168
  %v3170 = vpop.f32.mrb[0].mxu0
  %3171 = vdwg.mxu0
  %3172 = vrot.lane.b32.xlu0 %v2570, 104
  %v3173 = vpop.permute.xlu0 %3172
  %3174 = vrot.lane.b32.xlu0 %v2571, 104
  %v3175 = vpop.permute.xlu0 %3174
  %3176 = vrot.lane.b32.xlu0 %v2552, 72
  %v3177 = vpop.permute.xlu0 %3176
  %3178 = vrot.lane.b32.xlu0 %v2557, 72
  %v3179 = vpop.permute.xlu0 %3178
  %v3180 = vsel %vm380, %v3173, 0
  %v3182 = vsel %vm380, %v3175, 0
  %v3184 = vsel %vm380, %v3177, 0
  %v3186 = vsel %vm380, %v3179, 0
  %3188 = vmatprep.subr.mxu0 0.0
  %3189 = vmatpush1.xpose.msra.mxu0 %v3184
  %3190 = vmatprep.subr.mxu0 0.0
  %3191 = vmatpush1.xpose.msra.mxu0 %v3186
  %3192 = vmatprep.subr.mxu0 0.0
  %3193 = vmatpush1.xpose.msra.mxu0 0.0
  %3194 = vmatprep.subr.mxu0 0.0
  %3195 = vmatpush1.xpose.msra.mxu0 0.0
  %3196 = vmatprep.subr.mxu0 0.0
  %3197 = vmatpush1.xpose.msra.mxu0 0.0
  %3198 = vmatprep.subr.mxu0 0.0
  %3199 = vmatpush1.xpose.msra.mxu0 0.0
  %3200 = vmatprep.subr.mxu0 0.0
  %3201 = vmatpush1.xpose.msra.mxu0 0.0
  %3202 = vmatprep.subr.mxu0 0.0
  %3203 = vmatpush1.xpose.msra.mxu0 0.0
  %3204 = vmatprep.subr.mxu0 0.0
  %3205 = vmatpush1.xpose.msra.mxu0 0.0
  %3206 = vmatprep.subr.mxu0 0.0
  %3207 = vmatpush1.xpose.msra.mxu0 0.0
  %3208 = vmatprep.subr.mxu0 0.0
  %3209 = vmatpush1.xpose.msra.mxu0 0.0
  %3210 = vmatprep.subr.mxu0 0.0
  %3211 = vmatpush1.xpose.msra.mxu0 0.0
  %3212 = vmatprep.subr.mxu0 0.0
  %3213 = vmatpush1.xpose.msra.mxu0 0.0
  %3214 = vmatprep.subr.mxu0 0.0
  %3215 = vmatpush1.xpose.msra.mxu0 0.0
  %3216 = vmatprep.subr.mxu0 0.0
  %3217 = vmatpush1.xpose.msra.mxu0 0.0
  %3218 = vmatprep.subr.mxu0 0.0
  %3219 = vmatpush1.xpose.msra.mxu0 0.0
  %3220 = vmatprep.subr.mxu0 0.0
  %3221 = vmatpush1.xpose.msra.mxu0 0.0
  %3222 = vmatprep.subr.mxu0 0.0
  %3223 = vmatpush1.xpose.msra.mxu0 0.0
  %3224 = vmatprep.subr.mxu0 0.0
  %3225 = vmatpush1.xpose.msra.mxu0 0.0
  %3226 = vmatprep.subr.mxu0 0.0
  %3227 = vmatpush1.xpose.msra.mxu0 0.0
  %3228 = vmatprep.subr.mxu0 0.0
  %3229 = vmatpush1.xpose.msra.mxu0 0.0
  %3230 = vmatprep.subr.mxu0 0.0
  %3231 = vmatpush1.xpose.msra.mxu0 0.0
  %3232 = vmatprep.subr.mxu0 0.0
  %3233 = vmatpush1.xpose.msra.mxu0 0.0
  %3234 = vmatprep.subr.mxu0 0.0
  %3235 = vmatpush1.xpose.msra.mxu0 0.0
  %3236 = vmatprep.subr.mxu0 0.0
  %3237 = vmatpush1.xpose.msra.mxu0 0.0
  %3238 = vmatprep.subr.mxu0 0.0
  %3239 = vmatpush1.xpose.msra.mxu0 0.0
  %3240 = vmatprep.subr.mxu0 0.0
  %3241 = vmatpush1.xpose.msra.mxu0 0.0
  %3242 = vmatprep.subr.mxu0 0.0
  %3243 = vmatpush1.xpose.msra.mxu0 0.0
  %3244 = vmatprep.subr.mxu0 0.0
  %3245 = vmatpush1.xpose.msra.mxu0 0.0
  %3246 = vmatprep.subr.mxu0 0.0
  %3247 = vmatpush1.xpose.msra.mxu0 0.0
  %3248 = vmatprep.subr.mxu0 0.0
  %3249 = vmatpush1.xpose.msra.mxu0 0.0
  %3250 = vmatprep.subr.mxu0 0.0
  %3251 = vmatpush1.xpose.msra.mxu0 0.0
  %3252 = vmatprep.mubr.f32.mxu0 0.0
  %3253 = vmatmul.mubr.f32.gmra.mrb[0].mxu0 %v3180
  %v3254 = vpop.f32.mrb[0].mxu0
  %v3255 = vadd.f32 %v373, %v3254
  %v3256 = vpop.f32.mrb[0].mxu0
  %3257 = vmatprep.mubr.f32.mxu0 0.0
  %3258 = vmatmul.mubr.f32.gmra.mrb[0].mxu0 %v3182
  %v3259 = vpop.f32.mrb[0].mxu0
  %v3260 = vadd.f32 %v373, %v3259
  %v3261 = vpop.f32.mrb[0].mxu0
  %3262 = vdwg.mxu0
  %v3263 = vsel %vm466, %v3255, -inf
  %3264 = vmax.xlane.f32.xlu0 %v3263
  %v3265 = vpop.xlane.xlu0 %3264
  %v3266 = vsel %vm466, %v3260, -inf
  %3267 = vmax.xlane.f32.xlu0 %v3266
  %v3268 = vpop.xlane.xlu0 %3267
  %v3269 = vsub.f32 %v3255, %v3265
  %v3270 = vsub.f32 %v3260, %v3268
  %v3271 = vmul.f32 %v3269, 1.442695
  %v3272 = vpow.pop %v3271
  %v3273 = vmul.f32 %v3270, 1.442695
  %v3274 = vpow.pop %v3273
  %v3275 = vsel %vm466, %v3272, 0.0
  %3276 = vadd.xlane.f32.xlu0 %v3275
  %v3277 = vpop.xlane.xlu0 %3276
  %v3278 = vsel %vm466, %v3274, 0.0
  %3279 = vadd.xlane.f32.xlu0 %v3278
  %v3280 = vpop.xlane.xlu0 %3279
  %v3281 = vrcp.pop %v3277
  %v3282 = vrcp.pop %v3280
  %v3283 = vmul.f32 %v3272, %v3281
  %v3284 = vmul.f32 %v3274, %v3282
  %3285 = vrot.lane.b32.xlu0 %v2552, 40
  %v3286 = vpop.permute.xlu0 %3285
  %3287 = vrot.lane.b32.xlu0 %v2557, 40
  %v3288 = vpop.permute.xlu0 %3287
  %v3292 = vsel %vm466, %v3283, 0
  %v3295 = vsel %vm466, %v3284, 0
  %3297 = vmatprep.subr.mxu0 0.0
  %3298 = vmatpush1.msra.mxu0 %v3286
  %3299 = vmatprep.subr.mxu0 0.0
  %3300 = vmatpush1.msra.mxu0 %v3288
  %3301 = vmatprep.subr.mxu0 0.0
  %3302 = vmatpush1.msra.mxu0 0.0
  %3303 = vmatprep.subr.mxu0 0.0
  %3304 = vmatpush1.msra.mxu0 0.0
  %3305 = vmatprep.subr.mxu0 0.0
  %3306 = vmatpush1.msra.mxu0 0.0
  %3307 = vmatprep.subr.mxu0 0.0
  %3308 = vmatpush1.msra.mxu0 0.0
  %3309 = vmatprep.subr.mxu0 0.0
  %3310 = vmatpush1.msra.mxu0 0.0
  %3311 = vmatprep.subr.mxu0 0.0
  %3312 = vmatpush1.msra.mxu0 0.0
  %3313 = vmatprep.subr.mxu0 0.0
  %3314 = vmatpush1.msra.mxu0 0.0
  %3315 = vmatprep.subr.mxu0 0.0
  %3316 = vmatpush1.msra.mxu0 0.0
  %3317 = vmatprep.subr.mxu0 0.0
  %3318 = vmatpush1.msra.mxu0 0.0
  %3319 = vmatprep.subr.mxu0 0.0
  %3320 = vmatpush1.msra.mxu0 0.0
  %3321 = vmatprep.subr.mxu0 0.0
  %3322 = vmatpush1.msra.mxu0 0.0
  %3323 = vmatprep.subr.mxu0 0.0
  %3324 = vmatpush1.msra.mxu0 0.0
  %3325 = vmatprep.subr.mxu0 0.0
  %3326 = vmatpush1.msra.mxu0 0.0
  %3327 = vmatprep.subr.mxu0 0.0
  %3328 = vmatpush1.msra.mxu0 0.0
  %3329 = vmatprep.subr.mxu0 0.0
  %3330 = vmatpush1.msra.mxu0 0.0
  %3331 = vmatprep.subr.mxu0 0.0
  %3332 = vmatpush1.msra.mxu0 0.0
  %3333 = vmatprep.subr.mxu0 0.0
  %3334 = vmatpush1.msra.mxu0 0.0
  %3335 = vmatprep.subr.mxu0 0.0
  %3336 = vmatpush1.msra.mxu0 0.0
  %3337 = vmatprep.subr.mxu0 0.0
  %3338 = vmatpush1.msra.mxu0 0.0
  %3339 = vmatprep.subr.mxu0 0.0
  %3340 = vmatpush1.msra.mxu0 0.0
  %3341 = vmatprep.subr.mxu0 0.0
  %3342 = vmatpush1.msra.mxu0 0.0
  %3343 = vmatprep.subr.mxu0 0.0
  %3344 = vmatpush1.msra.mxu0 0.0
  %3345 = vmatprep.subr.mxu0 0.0
  %3346 = vmatpush1.msra.mxu0 0.0
  %3347 = vmatprep.subr.mxu0 0.0
  %3348 = vmatpush1.msra.mxu0 0.0
  %3349 = vmatprep.subr.mxu0 0.0
  %3350 = vmatpush1.msra.mxu0 0.0
  %3351 = vmatprep.subr.mxu0 0.0
  %3352 = vmatpush1.msra.mxu0 0.0
  %3353 = vmatprep.subr.mxu0 0.0
  %3354 = vmatpush1.msra.mxu0 0.0
  %3355 = vmatprep.subr.mxu0 0.0
  %3356 = vmatpush1.msra.mxu0 0.0
  %3357 = vmatprep.subr.mxu0 0.0
  %3358 = vmatpush1.msra.mxu0 0.0
  %3359 = vmatprep.subr.mxu0 0.0
  %3360 = vmatpush1.msra.mxu0 0.0
  %3361 = vmatprep.mubr.f32.mxu0 0.0
  %3362 = vmatmul.mubr.f32.gmra.mrb[0].mxu0 %v3292
  %v3363 = vpop.f32.mrb[0].mxu0
  %v3364 = vadd.f32 0.0, %v3363
  %v3365 = vpop.f32.mrb[0].mxu0
  %3366 = vmatprep.mubr.f32.mxu0 0.0
  %3367 = vmatmul.mubr.f32.gmra.mrb[0].mxu0 %v3295
  %v3368 = vpop.f32.mrb[0].mxu0
  %v3369 = vadd.f32 0.0, %v3368
  %v3370 = vpop.f32.mrb[0].mxu0
  %3371 = vdwg.mxu0
  %3374 = vrot.lane.b32.xlu0 %v2964, 8
  %v3375 = vpop.permute.xlu0 %3374
  %3376 = vrot.lane.b32.xlu0 %v2969, 8
  %v3377 = vpop.permute.xlu0 %3376
  %3382 = vrot.lane.b32.xlu0 %v3164, 16
  %v3383 = vpop.permute.xlu0 %3382
  %3384 = vrot.lane.b32.xlu0 %v3169, 16
  %v3385 = vpop.permute.xlu0 %3384
  %3390 = vrot.lane.b32.xlu0 %v3364, 24
  %v3391 = vpop.permute.xlu0 %3390
  %3392 = vrot.lane.b32.xlu0 %v3369, 24
  %v3393 = vpop.permute.xlu0 %3392
  %v3396 = vsel %vm380, %v2764, %v3375
  %v3397 = vsel %vm380, %v2769, %v3377
  %v3398 = vsel %vm466, %v3396, %v3383
  %v3399 = vsel %vm466, %v3397, %v3385
  %v3400 = vsel %vm1204, %v3398, %v3391
  %v3401 = vsel %vm1204, %v3399, %v3393
  %v3402 = vmul.f32 %v2562, 0.35355338
  %v3403 = vmul.f32 %v2567, 0.35355338
  %3406 = vrot.lane.b32.xlu0 %v2562, 96
  %v3407 = vpop.permute.xlu0 %3406
  %3408 = vrot.lane.b32.xlu0 %v2567, 96
  %v3409 = vpop.permute.xlu0 %3408
  %v3411 = vsel %vm380, %v3402, 0
  %v3414 = vsel %vm380, %v3403, 0
  %v3416 = vsel %vm380, %v3407, 0
  %v3418 = vsel %vm380, %v3409, 0
  %3420 = vmatprep.subr.mxu0 0.0
  %3421 = vmatpush1.xpose.msra.mxu0 %v3416
  %3422 = vmatprep.subr.mxu0 0.0
  %3423 = vmatpush1.xpose.msra.mxu0 %v3418
  %3424 = vmatprep.subr.mxu0 0.0
  %3425 = vmatpush1.xpose.msra.mxu0 0.0
  %3426 = vmatprep.subr.mxu0 0.0
  %3427 = vmatpush1.xpose.msra.mxu0 0.0
  %3428 = vmatprep.subr.mxu0 0.0
  %3429 = vmatpush1.xpose.msra.mxu0 0.0
  %3430 = vmatprep.subr.mxu0 0.0
  %3431 = vmatpush1.xpose.msra.mxu0 0.0
  %3432 = vmatprep.subr.mxu0 0.0
  %3433 = vmatpush1.xpose.msra.mxu0 0.0
  %3434 = vmatprep.subr.mxu0 0.0
  %3435 = vmatpush1.xpose.msra.mxu0 0.0
  %3436 = vmatprep.subr.mxu0 0.0
  %3437 = vmatpush1.xpose.msra.mxu0 0.0
  %3438 = vmatprep.subr.mxu0 0.0
  %3439 = vmatpush1.xpose.msra.mxu0 0.0
  %3440 = vmatprep.subr.mxu0 0.0
  %3441 = vmatpush1.xpose.msra.mxu0 0.0
  %3442 = vmatprep.subr.mxu0 0.0
  %3443 = vmatpush1.xpose.msra.mxu0 0.0
  %3444 = vmatprep.subr.mxu0 0.0
  %3445 = vmatpush1.xpose.msra.mxu0 0.0
  %3446 = vmatprep.subr.mxu0 0.0
  %3447 = vmatpush1.xpose.msra.mxu0 0.0
  %3448 = vmatprep.subr.mxu0 0.0
  %3449 = vmatpush1.xpose.msra.mxu0 0.0
  %3450 = vmatprep.subr.mxu0 0.0
  %3451 = vmatpush1.xpose.msra.mxu0 0.0
  %3452 = vmatprep.subr.mxu0 0.0
  %3453 = vmatpush1.xpose.msra.mxu0 0.0
  %3454 = vmatprep.subr.mxu0 0.0
  %3455 = vmatpush1.xpose.msra.mxu0 0.0
  %3456 = vmatprep.subr.mxu0 0.0
  %3457 = vmatpush1.xpose.msra.mxu0 0.0
  %3458 = vmatprep.subr.mxu0 0.0
  %3459 = vmatpush1.xpose.msra.mxu0 0.0
  %3460 = vmatprep.subr.mxu0 0.0
  %3461 = vmatpush1.xpose.msra.mxu0 0.0
  %3462 = vmatprep.subr.mxu0 0.0
  %3463 = vmatpush1.xpose.msra.mxu0 0.0
  %3464 = vmatprep.subr.mxu0 0.0
  %3465 = vmatpush1.xpose.msra.mxu0 0.0
  %3466 = vmatprep.subr.mxu0 0.0
  %3467 = vmatpush1.xpose.msra.mxu0 0.0
  %3468 = vmatprep.subr.mxu0 0.0
  %3469 = vmatpush1.xpose.msra.mxu0 0.0
  %3470 = vmatprep.subr.mxu0 0.0
  %3471 = vmatpush1.xpose.msra.mxu0 0.0
  %3472 = vmatprep.subr.mxu0 0.0
  %3473 = vmatpush1.xpose.msra.mxu0 0.0
  %3474 = vmatprep.subr.mxu0 0.0
  %3475 = vmatpush1.xpose.msra.mxu0 0.0
  %3476 = vmatprep.subr.mxu0 0.0
  %3477 = vmatpush1.xpose.msra.mxu0 0.0
  %3478 = vmatprep.subr.mxu0 0.0
  %3479 = vmatpush1.xpose.msra.mxu0 0.0
  %3480 = vmatprep.subr.mxu0 0.0
  %3481 = vmatpush1.xpose.msra.mxu0 0.0
  %3482 = vmatprep.subr.mxu0 0.0
  %3483 = vmatpush1.xpose.msra.mxu0 0.0
  %3484 = vmatprep.mubr.f32.mxu0 0.0
  %3485 = vmatmul.mubr.f32.gmra.mrb[0].mxu0 %v3411
  %v3486 = vpop.f32.mrb[0].mxu0
  %v3487 = vadd.f32 %v1212, %v3486
  %v3488 = vpop.f32.mrb[0].mxu0
  %3489 = vmatprep.mubr.f32.mxu0 0.0
  %3490 = vmatmul.mubr.f32.gmra.mrb[0].mxu0 %v3414
  %v3491 = vpop.f32.mrb[0].mxu0
  %v3492 = vadd.f32 %v1212, %v3491
  %v3493 = vpop.f32.mrb[0].mxu0
  %3494 = vdwg.mxu0
  %v3495 = vsel %vm466, %v3487, -inf
  %3496 = vmax.xlane.f32.xlu0 %v3495
  %v3497 = vpop.xlane.xlu0 %3496
  %v3498 = vsel %vm466, %v3492, -inf
  %3499 = vmax.xlane.f32.xlu0 %v3498
  %v3500 = vpop.xlane.xlu0 %3499
  %v3501 = vsub.f32 %v3487, %v3497
  %v3502 = vsub.f32 %v3492, %v3500
  %v3503 = vmul.f32 %v3501, 1.442695
  %v3504 = vpow.pop %v3503
  %v3505 = vmul.f32 %v3502, 1.442695
  %v3506 = vpow.pop %v3505
  %v3507 = vsel %vm466, %v3504, 0.0
  %3508 = vadd.xlane.f32.xlu0 %v3507
  %v3509 = vpop.xlane.xlu0 %3508
  %v3510 = vsel %vm466, %v3506, 0.0
  %3511 = vadd.xlane.f32.xlu0 %v3510
  %v3512 = vpop.xlane.xlu0 %3511
  %v3513 = vrcp.pop %v3509
  %v3514 = vrcp.pop %v3512
  %v3515 = vmul.f32 %v3504, %v3513
  %v3516 = vmul.f32 %v3506, %v3514
  %3517 = vrot.lane.b32.xlu0 %v2562, 64
  %v3518 = vpop.permute.xlu0 %3517
  %3519 = vrot.lane.b32.xlu0 %v2567, 64
  %v3520 = vpop.permute.xlu0 %3519
  %v3524 = vsel %vm466, %v3515, 0
  %v3527 = vsel %vm466, %v3516, 0
  %3529 = vmatprep.subr.mxu0 0.0
  %3530 = vmatpush1.msra.mxu0 %v3518
  %3531 = vmatprep.subr.mxu0 0.0
  %3532 = vmatpush1.msra.mxu0 %v3520
  %3533 = vmatprep.subr.mxu0 0.0
  %3534 = vmatpush1.msra.mxu0 0.0
  %3535 = vmatprep.subr.mxu0 0.0
  %3536 = vmatpush1.msra.mxu0 0.0
  %3537 = vmatprep.subr.mxu0 0.0
  %3538 = vmatpush1.msra.mxu0 0.0
  %3539 = vmatprep.subr.mxu0 0.0
  %3540 = vmatpush1.msra.mxu0 0.0
  %3541 = vmatprep.subr.mxu0 0.0
  %3542 = vmatpush1.msra.mxu0 0.0
  %3543 = vmatprep.subr.mxu0 0.0
  %3544 = vmatpush1.msra.mxu0 0.0
  %3545 = vmatprep.subr.mxu0 0.0
  %3546 = vmatpush1.msra.mxu0 0.0
  %3547 = vmatprep.subr.mxu0 0.0
  %3548 = vmatpush1.msra.mxu0 0.0
  %3549 = vmatprep.subr.mxu0 0.0
  %3550 = vmatpush1.msra.mxu0 0.0
  %3551 = vmatprep.subr.mxu0 0.0
  %3552 = vmatpush1.msra.mxu0 0.0
  %3553 = vmatprep.subr.mxu0 0.0
  %3554 = vmatpush1.msra.mxu0 0.0
  %3555 = vmatprep.subr.mxu0 0.0
  %3556 = vmatpush1.msra.mxu0 0.0
  %3557 = vmatprep.subr.mxu0 0.0
  %3558 = vmatpush1.msra.mxu0 0.0
  %3559 = vmatprep.subr.mxu0 0.0
  %3560 = vmatpush1.msra.mxu0 0.0
  %3561 = vmatprep.subr.mxu0 0.0
  %3562 = vmatpush1.msra.mxu0 0.0
  %3563 = vmatprep.subr.mxu0 0.0
  %3564 = vmatpush1.msra.mxu0 0.0
  %3565 = vmatprep.subr.mxu0 0.0
  %3566 = vmatpush1.msra.mxu0 0.0
  %3567 = vmatprep.subr.mxu0 0.0
  %3568 = vmatpush1.msra.mxu0 0.0
  %3569 = vmatprep.subr.mxu0 0.0
  %3570 = vmatpush1.msra.mxu0 0.0
  %3571 = vmatprep.subr.mxu0 0.0
  %3572 = vmatpush1.msra.mxu0 0.0
  %3573 = vmatprep.subr.mxu0 0.0
  %3574 = vmatpush1.msra.mxu0 0.0
  %3575 = vmatprep.subr.mxu0 0.0
  %3576 = vmatpush1.msra.mxu0 0.0
  %3577 = vmatprep.subr.mxu0 0.0
  %3578 = vmatpush1.msra.mxu0 0.0
  %3579 = vmatprep.subr.mxu0 0.0
  %3580 = vmatpush1.msra.mxu0 0.0
  %3581 = vmatprep.subr.mxu0 0.0
  %3582 = vmatpush1.msra.mxu0 0.0
  %3583 = vmatprep.subr.mxu0 0.0
  %3584 = vmatpush1.msra.mxu0 0.0
  %3585 = vmatprep.subr.mxu0 0.0
  %3586 = vmatpush1.msra.mxu0 0.0
  %3587 = vmatprep.subr.mxu0 0.0
  %3588 = vmatpush1.msra.mxu0 0.0
  %3589 = vmatprep.subr.mxu0 0.0
  %3590 = vmatpush1.msra.mxu0 0.0
  %3591 = vmatprep.subr.mxu0 0.0
  %3592 = vmatpush1.msra.mxu0 0.0
  %3593 = vmatprep.mubr.f32.mxu0 0.0
  %3594 = vmatmul.mubr.f32.gmra.mrb[0].mxu0 %v3524
  %v3595 = vpop.f32.mrb[0].mxu0
  %v3596 = vadd.f32 0.0, %v3595
  %v3597 = vpop.f32.mrb[0].mxu0
  %3598 = vmatprep.mubr.f32.mxu0 0.0
  %3599 = vmatmul.mubr.f32.gmra.mrb[0].mxu0 %v3527
  %v3600 = vpop.f32.mrb[0].mxu0
  %v3601 = vadd.f32 0.0, %v3600
  %v3602 = vpop.f32.mrb[0].mxu0
  %3603 = vdwg.mxu0
  %3604 = vrot.lane.b32.xlu0 %v3402, 120
  %v3605 = vpop.permute.xlu0 %3604
  %3606 = vrot.lane.b32.xlu0 %v3403, 120
  %v3607 = vpop.permute.xlu0 %3606
  %3608 = vrot.lane.b32.xlu0 %v2562, 88
  %v3609 = vpop.permute.xlu0 %3608
  %3610 = vrot.lane.b32.xlu0 %v2567, 88
  %v3611 = vpop.permute.xlu0 %3610
  %v3612 = vsel %vm380, %v3605, 0
  %v3614 = vsel %vm380, %v3607, 0
  %v3616 = vsel %vm380, %v3609, 0
  %v3618 = vsel %vm380, %v3611, 0
  %3620 = vmatprep.subr.mxu0 0.0
  %3621 = vmatpush1.xpose.msra.mxu0 %v3616
  %3622 = vmatprep.subr.mxu0 0.0
  %3623 = vmatpush1.xpose.msra.mxu0 %v3618
  %3624 = vmatprep.subr.mxu0 0.0
  %3625 = vmatpush1.xpose.msra.mxu0 0.0
  %3626 = vmatprep.subr.mxu0 0.0
  %3627 = vmatpush1.xpose.msra.mxu0 0.0
  %3628 = vmatprep.subr.mxu0 0.0
  %3629 = vmatpush1.xpose.msra.mxu0 0.0
  %3630 = vmatprep.subr.mxu0 0.0
  %3631 = vmatpush1.xpose.msra.mxu0 0.0
  %3632 = vmatprep.subr.mxu0 0.0
  %3633 = vmatpush1.xpose.msra.mxu0 0.0
  %3634 = vmatprep.subr.mxu0 0.0
  %3635 = vmatpush1.xpose.msra.mxu0 0.0
  %3636 = vmatprep.subr.mxu0 0.0
  %3637 = vmatpush1.xpose.msra.mxu0 0.0
  %3638 = vmatprep.subr.mxu0 0.0
  %3639 = vmatpush1.xpose.msra.mxu0 0.0
  %3640 = vmatprep.subr.mxu0 0.0
  %3641 = vmatpush1.xpose.msra.mxu0 0.0
  %3642 = vmatprep.subr.mxu0 0.0
  %3643 = vmatpush1.xpose.msra.mxu0 0.0
  %3644 = vmatprep.subr.mxu0 0.0
  %3645 = vmatpush1.xpose.msra.mxu0 0.0
  %3646 = vmatprep.subr.mxu0 0.0
  %3647 = vmatpush1.xpose.msra.mxu0 0.0
  %3648 = vmatprep.subr.mxu0 0.0
  %3649 = vmatpush1.xpose.msra.mxu0 0.0
  %3650 = vmatprep.subr.mxu0 0.0
  %3651 = vmatpush1.xpose.msra.mxu0 0.0
  %3652 = vmatprep.subr.mxu0 0.0
  %3653 = vmatpush1.xpose.msra.mxu0 0.0
  %3654 = vmatprep.subr.mxu0 0.0
  %3655 = vmatpush1.xpose.msra.mxu0 0.0
  %3656 = vmatprep.subr.mxu0 0.0
  %3657 = vmatpush1.xpose.msra.mxu0 0.0
  %3658 = vmatprep.subr.mxu0 0.0
  %3659 = vmatpush1.xpose.msra.mxu0 0.0
  %3660 = vmatprep.subr.mxu0 0.0
  %3661 = vmatpush1.xpose.msra.mxu0 0.0
  %3662 = vmatprep.subr.mxu0 0.0
  %3663 = vmatpush1.xpose.msra.mxu0 0.0
  %3664 = vmatprep.subr.mxu0 0.0
  %3665 = vmatpush1.xpose.msra.mxu0 0.0
  %3666 = vmatprep.subr.mxu0 0.0
  %3667 = vmatpush1.xpose.msra.mxu0 0.0
  %3668 = vmatprep.subr.mxu0 0.0
  %3669 = vmatpush1.xpose.msra.mxu0 0.0
  %3670 = vmatprep.subr.mxu0 0.0
  %3671 = vmatpush1.xpose.msra.mxu0 0.0
  %3672 = vmatprep.subr.mxu0 0.0
  %3673 = vmatpush1.xpose.msra.mxu0 0.0
  %3674 = vmatprep.subr.mxu0 0.0
  %3675 = vmatpush1.xpose.msra.mxu0 0.0
  %3676 = vmatprep.subr.mxu0 0.0
  %3677 = vmatpush1.xpose.msra.mxu0 0.0
  %3678 = vmatprep.subr.mxu0 0.0
  %3679 = vmatpush1.xpose.msra.mxu0 0.0
  %3680 = vmatprep.subr.mxu0 0.0
  %3681 = vmatpush1.xpose.msra.mxu0 0.0
  %3682 = vmatprep.subr.mxu0 0.0
  %3683 = vmatpush1.xpose.msra.mxu0 0.0
  %3684 = vmatprep.mubr.f32.mxu0 0.0
  %3685 = vmatmul.mubr.f32.gmra.mrb[0].mxu0 %v3612
  %v3686 = vpop.f32.mrb[0].mxu0
  %v3687 = vadd.f32 %v1212, %v3686
  %v3688 = vpop.f32.mrb[0].mxu0
  %3689 = vmatprep.mubr.f32.mxu0 0.0
  %3690 = vmatmul.mubr.f32.gmra.mrb[0].mxu0 %v3614
  %v3691 = vpop.f32.mrb[0].mxu0
  %v3692 = vadd.f32 %v1212, %v3691
  %v3693 = vpop.f32.mrb[0].mxu0
  %3694 = vdwg.mxu0
  %v3695 = vsel %vm466, %v3687, -inf
  %3696 = vmax.xlane.f32.xlu0 %v3695
  %v3697 = vpop.xlane.xlu0 %3696
  %v3698 = vsel %vm466, %v3692, -inf
  %3699 = vmax.xlane.f32.xlu0 %v3698
  %v3700 = vpop.xlane.xlu0 %3699
  %v3701 = vsub.f32 %v3687, %v3697
  %v3702 = vsub.f32 %v3692, %v3700
  %v3703 = vmul.f32 %v3701, 1.442695
  %v3704 = vpow.pop %v3703
  %v3705 = vmul.f32 %v3702, 1.442695
  %v3706 = vpow.pop %v3705
  %v3707 = vsel %vm466, %v3704, 0.0
  %3708 = vadd.xlane.f32.xlu0 %v3707
  %v3709 = vpop.xlane.xlu0 %3708
  %v3710 = vsel %vm466, %v3706, 0.0
  %3711 = vadd.xlane.f32.xlu0 %v3710
  %v3712 = vpop.xlane.xlu0 %3711
  %v3713 = vrcp.pop %v3709
  %v3714 = vrcp.pop %v3712
  %v3715 = vmul.f32 %v3704, %v3713
  %v3716 = vmul.f32 %v3706, %v3714
  %3717 = vrot.lane.b32.xlu0 %v2562, 56
  %v3718 = vpop.permute.xlu0 %3717
  %3719 = vrot.lane.b32.xlu0 %v2567, 56
  %v3720 = vpop.permute.xlu0 %3719
  %v3724 = vsel %vm466, %v3715, 0
  %v3727 = vsel %vm466, %v3716, 0
  %3729 = vmatprep.subr.mxu0 0.0
  %3730 = vmatpush1.msra.mxu0 %v3718
  %3731 = vmatprep.subr.mxu0 0.0
  %3732 = vmatpush1.msra.mxu0 %v3720
  %3733 = vmatprep.subr.mxu0 0.0
  %3734 = vmatpush1.msra.mxu0 0.0
  %3735 = vmatprep.subr.mxu0 0.0
  %3736 = vmatpush1.msra.mxu0 0.0
  %3737 = vmatprep.subr.mxu0 0.0
  %3738 = vmatpush1.msra.mxu0 0.0
  %3739 = vmatprep.subr.mxu0 0.0
  %3740 = vmatpush1.msra.mxu0 0.0
  %3741 = vmatprep.subr.mxu0 0.0
  %3742 = vmatpush1.msra.mxu0 0.0
  %3743 = vmatprep.subr.mxu0 0.0
  %3744 = vmatpush1.msra.mxu0 0.0
  %3745 = vmatprep.subr.mxu0 0.0
  %3746 = vmatpush1.msra.mxu0 0.0
  %3747 = vmatprep.subr.mxu0 0.0
  %3748 = vmatpush1.msra.mxu0 0.0
  %3749 = vmatprep.subr.mxu0 0.0
  %3750 = vmatpush1.msra.mxu0 0.0
  %3751 = vmatprep.subr.mxu0 0.0
  %3752 = vmatpush1.msra.mxu0 0.0
  %3753 = vmatprep.subr.mxu0 0.0
  %3754 = vmatpush1.msra.mxu0 0.0
  %3755 = vmatprep.subr.mxu0 0.0
  %3756 = vmatpush1.msra.mxu0 0.0
  %3757 = vmatprep.subr.mxu0 0.0
  %3758 = vmatpush1.msra.mxu0 0.0
  %3759 = vmatprep.subr.mxu0 0.0
  %3760 = vmatpush1.msra.mxu0 0.0
  %3761 = vmatprep.subr.mxu0 0.0
  %3762 = vmatpush1.msra.mxu0 0.0
  %3763 = vmatprep.subr.mxu0 0.0
  %3764 = vmatpush1.msra.mxu0 0.0
  %3765 = vmatprep.subr.mxu0 0.0
  %3766 = vmatpush1.msra.mxu0 0.0
  %3767 = vmatprep.subr.mxu0 0.0
  %3768 = vmatpush1.msra.mxu0 0.0
  %3769 = vmatprep.subr.mxu0 0.0
  %3770 = vmatpush1.msra.mxu0 0.0
  %3771 = vmatprep.subr.mxu0 0.0
  %3772 = vmatpush1.msra.mxu0 0.0
  %3773 = vmatprep.subr.mxu0 0.0
  %3774 = vmatpush1.msra.mxu0 0.0
  %3775 = vmatprep.subr.mxu0 0.0
  %3776 = vmatpush1.msra.mxu0 0.0
  %3777 = vmatprep.subr.mxu0 0.0
  %3778 = vmatpush1.msra.mxu0 0.0
  %3779 = vmatprep.subr.mxu0 0.0
  %3780 = vmatpush1.msra.mxu0 0.0
  %3781 = vmatprep.subr.mxu0 0.0
  %3782 = vmatpush1.msra.mxu0 0.0
  %3783 = vmatprep.subr.mxu0 0.0
  %3784 = vmatpush1.msra.mxu0 0.0
  %3785 = vmatprep.subr.mxu0 0.0
  %3786 = vmatpush1.msra.mxu0 0.0
  %3787 = vmatprep.subr.mxu0 0.0
  %3788 = vmatpush1.msra.mxu0 0.0
  %3789 = vmatprep.subr.mxu0 0.0
  %3790 = vmatpush1.msra.mxu0 0.0
  %3791 = vmatprep.subr.mxu0 0.0
  %3792 = vmatpush1.msra.mxu0 0.0
  %3793 = vmatprep.mubr.f32.mxu0 0.0
  %3794 = vmatmul.mubr.f32.gmra.mrb[0].mxu0 %v3724
  %v3795 = vpop.f32.mrb[0].mxu0
  %v3796 = vadd.f32 0.0, %v3795
  %v3797 = vpop.f32.mrb[0].mxu0
  %3798 = vmatprep.mubr.f32.mxu0 0.0
  %3799 = vmatmul.mubr.f32.gmra.mrb[0].mxu0 %v3727
  %v3800 = vpop.f32.mrb[0].mxu0
  %v3801 = vadd.f32 0.0, %v3800
  %v3802 = vpop.f32.mrb[0].mxu0
  %3803 = vdwg.mxu0
  %3804 = vrot.lane.b32.xlu0 %v3402, 112
  %v3805 = vpop.permute.xlu0 %3804
  %3806 = vrot.lane.b32.xlu0 %v3403, 112
  %v3807 = vpop.permute.xlu0 %3806
  %3808 = vrot.lane.b32.xlu0 %v2562, 80
  %v3809 = vpop.permute.xlu0 %3808
  %3810 = vrot.lane.b32.xlu0 %v2567, 80
  %v3811 = vpop.permute.xlu0 %3810
  %v3812 = vsel %vm380, %v3805, 0
  %v3814 = vsel %vm380, %v3807, 0
  %v3816 = vsel %vm380, %v3809, 0
  %v3818 = vsel %vm380, %v3811, 0
  %3820 = vmatprep.subr.mxu0 0.0
  %3821 = vmatpush1.xpose.msra.mxu0 %v3816
  %3822 = vmatprep.subr.mxu0 0.0
  %3823 = vmatpush1.xpose.msra.mxu0 %v3818
  %3824 = vmatprep.subr.mxu0 0.0
  %3825 = vmatpush1.xpose.msra.mxu0 0.0
  %3826 = vmatprep.subr.mxu0 0.0
  %3827 = vmatpush1.xpose.msra.mxu0 0.0
  %3828 = vmatprep.subr.mxu0 0.0
  %3829 = vmatpush1.xpose.msra.mxu0 0.0
  %3830 = vmatprep.subr.mxu0 0.0
  %3831 = vmatpush1.xpose.msra.mxu0 0.0
  %3832 = vmatprep.subr.mxu0 0.0
  %3833 = vmatpush1.xpose.msra.mxu0 0.0
  %3834 = vmatprep.subr.mxu0 0.0
  %3835 = vmatpush1.xpose.msra.mxu0 0.0
  %3836 = vmatprep.subr.mxu0 0.0
  %3837 = vmatpush1.xpose.msra.mxu0 0.0
  %3838 = vmatprep.subr.mxu0 0.0
  %3839 = vmatpush1.xpose.msra.mxu0 0.0
  %3840 = vmatprep.subr.mxu0 0.0
  %3841 = vmatpush1.xpose.msra.mxu0 0.0
  %3842 = vmatprep.subr.mxu0 0.0
  %3843 = vmatpush1.xpose.msra.mxu0 0.0
  %3844 = vmatprep.subr.mxu0 0.0
  %3845 = vmatpush1.xpose.msra.mxu0 0.0
  %3846 = vmatprep.subr.mxu0 0.0
  %3847 = vmatpush1.xpose.msra.mxu0 0.0
  %3848 = vmatprep.subr.mxu0 0.0
  %3849 = vmatpush1.xpose.msra.mxu0 0.0
  %3850 = vmatprep.subr.mxu0 0.0
  %3851 = vmatpush1.xpose.msra.mxu0 0.0
  %3852 = vmatprep.subr.mxu0 0.0
  %3853 = vmatpush1.xpose.msra.mxu0 0.0
  %3854 = vmatprep.subr.mxu0 0.0
  %3855 = vmatpush1.xpose.msra.mxu0 0.0
  %3856 = vmatprep.subr.mxu0 0.0
  %3857 = vmatpush1.xpose.msra.mxu0 0.0
  %3858 = vmatprep.subr.mxu0 0.0
  %3859 = vmatpush1.xpose.msra.mxu0 0.0
  %3860 = vmatprep.subr.mxu0 0.0
  %3861 = vmatpush1.xpose.msra.mxu0 0.0
  %3862 = vmatprep.subr.mxu0 0.0
  %3863 = vmatpush1.xpose.msra.mxu0 0.0
  %3864 = vmatprep.subr.mxu0 0.0
  %3865 = vmatpush1.xpose.msra.mxu0 0.0
  %3866 = vmatprep.subr.mxu0 0.0
  %3867 = vmatpush1.xpose.msra.mxu0 0.0
  %3868 = vmatprep.subr.mxu0 0.0
  %3869 = vmatpush1.xpose.msra.mxu0 0.0
  %3870 = vmatprep.subr.mxu0 0.0
  %3871 = vmatpush1.xpose.msra.mxu0 0.0
  %3872 = vmatprep.subr.mxu0 0.0
  %3873 = vmatpush1.xpose.msra.mxu0 0.0
  %3874 = vmatprep.subr.mxu0 0.0
  %3875 = vmatpush1.xpose.msra.mxu0 0.0
  %3876 = vmatprep.subr.mxu0 0.0
  %3877 = vmatpush1.xpose.msra.mxu0 0.0
  %3878 = vmatprep.subr.mxu0 0.0
  %3879 = vmatpush1.xpose.msra.mxu0 0.0
  %3880 = vmatprep.subr.mxu0 0.0
  %3881 = vmatpush1.xpose.msra.mxu0 0.0
  %3882 = vmatprep.subr.mxu0 0.0
  %3883 = vmatpush1.xpose.msra.mxu0 0.0
  %3884 = vmatprep.mubr.f32.mxu0 0.0
  %3885 = vmatmul.mubr.f32.gmra.mrb[0].mxu0 %v3812
  %v3886 = vpop.f32.mrb[0].mxu0
  %v3887 = vadd.f32 %v1212, %v3886
  %v3888 = vpop.f32.mrb[0].mxu0
  %3889 = vmatprep.mubr.f32.mxu0 0.0
  %3890 = vmatmul.mubr.f32.gmra.mrb[0].mxu0 %v3814
  %v3891 = vpop.f32.mrb[0].mxu0
  %v3892 = vadd.f32 %v1212, %v3891
  %v3893 = vpop.f32.mrb[0].mxu0
  %3894 = vdwg.mxu0
  %v3895 = vsel %vm466, %v3887, -inf
  %3896 = vmax.xlane.f32.xlu0 %v3895
  %v3897 = vpop.xlane.xlu0 %3896
  %v3898 = vsel %vm466, %v3892, -inf
  %3899 = vmax.xlane.f32.xlu0 %v3898
  %v3900 = vpop.xlane.xlu0 %3899
  %v3901 = vsub.f32 %v3887, %v3897
  %v3902 = vsub.f32 %v3892, %v3900
  %v3903 = vmul.f32 %v3901, 1.442695
  %v3904 = vpow.pop %v3903
  %v3905 = vmul.f32 %v3902, 1.442695
  %v3906 = vpow.pop %v3905
  %v3907 = vsel %vm466, %v3904, 0.0
  %3908 = vadd.xlane.f32.xlu0 %v3907
  %v3909 = vpop.xlane.xlu0 %3908
  %v3910 = vsel %vm466, %v3906, 0.0
  %3911 = vadd.xlane.f32.xlu0 %v3910
  %v3912 = vpop.xlane.xlu0 %3911
  %v3913 = vrcp.pop %v3909
  %v3914 = vrcp.pop %v3912
  %v3915 = vmul.f32 %v3904, %v3913
  %v3916 = vmul.f32 %v3906, %v3914
  %3917 = vrot.lane.b32.xlu0 %v2562, 48
  %v3918 = vpop.permute.xlu0 %3917
  %3919 = vrot.lane.b32.xlu0 %v2567, 48
  %v3920 = vpop.permute.xlu0 %3919
  %v3924 = vsel %vm466, %v3915, 0
  %v3927 = vsel %vm466, %v3916, 0
  %3929 = vmatprep.subr.mxu0 0.0
  %3930 = vmatpush1.msra.mxu0 %v3918
  %3931 = vmatprep.subr.mxu0 0.0
  %3932 = vmatpush1.msra.mxu0 %v3920
  %3933 = vmatprep.subr.mxu0 0.0
  %3934 = vmatpush1.msra.mxu0 0.0
  %3935 = vmatprep.subr.mxu0 0.0
  %3936 = vmatpush1.msra.mxu0 0.0
  %3937 = vmatprep.subr.mxu0 0.0
  %3938 = vmatpush1.msra.mxu0 0.0
  %3939 = vmatprep.subr.mxu0 0.0
  %3940 = vmatpush1.msra.mxu0 0.0
  %3941 = vmatprep.subr.mxu0 0.0
  %3942 = vmatpush1.msra.mxu0 0.0
  %3943 = vmatprep.subr.mxu0 0.0
  %3944 = vmatpush1.msra.mxu0 0.0
  %3945 = vmatprep.subr.mxu0 0.0
  %3946 = vmatpush1.msra.mxu0 0.0
  %3947 = vmatprep.subr.mxu0 0.0
  %3948 = vmatpush1.msra.mxu0 0.0
  %3949 = vmatprep.subr.mxu0 0.0
  %3950 = vmatpush1.msra.mxu0 0.0
  %3951 = vmatprep.subr.mxu0 0.0
  %3952 = vmatpush1.msra.mxu0 0.0
  %3953 = vmatprep.subr.mxu0 0.0
  %3954 = vmatpush1.msra.mxu0 0.0
  %3955 = vmatprep.subr.mxu0 0.0
  %3956 = vmatpush1.msra.mxu0 0.0
  %3957 = vmatprep.subr.mxu0 0.0
  %3958 = vmatpush1.msra.mxu0 0.0
  %3959 = vmatprep.subr.mxu0 0.0
  %3960 = vmatpush1.msra.mxu0 0.0
  %3961 = vmatprep.subr.mxu0 0.0
  %3962 = vmatpush1.msra.mxu0 0.0
  %3963 = vmatprep.subr.mxu0 0.0
  %3964 = vmatpush1.msra.mxu0 0.0
  %3965 = vmatprep.subr.mxu0 0.0
  %3966 = vmatpush1.msra.mxu0 0.0
  %3967 = vmatprep.subr.mxu0 0.0
  %3968 = vmatpush1.msra.mxu0 0.0
  %3969 = vmatprep.subr.mxu0 0.0
  %3970 = vmatpush1.msra.mxu0 0.0
  %3971 = vmatprep.subr.mxu0 0.0
  %3972 = vmatpush1.msra.mxu0 0.0
  %3973 = vmatprep.subr.mxu0 0.0
  %3974 = vmatpush1.msra.mxu0 0.0
  %3975 = vmatprep.subr.mxu0 0.0
  %3976 = vmatpush1.msra.mxu0 0.0
  %3977 = vmatprep.subr.mxu0 0.0
  %3978 = vmatpush1.msra.mxu0 0.0
  %3979 = vmatprep.subr.mxu0 0.0
  %3980 = vmatpush1.msra.mxu0 0.0
  %3981 = vmatprep.subr.mxu0 0.0
  %3982 = vmatpush1.msra.mxu0 0.0
  %3983 = vmatprep.subr.mxu0 0.0
  %3984 = vmatpush1.msra.mxu0 0.0
  %3985 = vmatprep.subr.mxu0 0.0
  %3986 = vmatpush1.msra.mxu0 0.0
  %3987 = vmatprep.subr.mxu0 0.0
  %3988 = vmatpush1.msra.mxu0 0.0
  %3989 = vmatprep.subr.mxu0 0.0
  %3990 = vmatpush1.msra.mxu0 0.0
  %3991 = vmatprep.subr.mxu0 0.0
  %3992 = vmatpush1.msra.mxu0 0.0
  %3993 = vmatprep.mubr.f32.mxu0 0.0
  %3994 = vmatmul.mubr.f32.gmra.mrb[0].mxu0 %v3924
  %v3995 = vpop.f32.mrb[0].mxu0
  %v3996 = vadd.f32 0.0, %v3995
  %v3997 = vpop.f32.mrb[0].mxu0
  %3998 = vmatprep.mubr.f32.mxu0 0.0
  %3999 = vmatmul.mubr.f32.gmra.mrb[0].mxu0 %v3927
  %v4000 = vpop.f32.mrb[0].mxu0
  %v4001 = vadd.f32 0.0, %v4000
  %v4002 = vpop.f32.mrb[0].mxu0
  %4003 = vdwg.mxu0
  %4004 = vrot.lane.b32.xlu0 %v3402, 104
  %v4005 = vpop.permute.xlu0 %4004
  %4006 = vrot.lane.b32.xlu0 %v3403, 104
  %v4007 = vpop.permute.xlu0 %4006
  %4008 = vrot.lane.b32.xlu0 %v2562, 72
  %v4009 = vpop.permute.xlu0 %4008
  %4010 = vrot.lane.b32.xlu0 %v2567, 72
  %v4011 = vpop.permute.xlu0 %4010
  %v4012 = vsel %vm380, %v4005, 0
  %v4014 = vsel %vm380, %v4007, 0
  %v4016 = vsel %vm380, %v4009, 0
  %v4018 = vsel %vm380, %v4011, 0
  %4020 = vmatprep.subr.mxu0 0.0
  %4021 = vmatpush1.xpose.msra.mxu0 %v4016
  %4022 = vmatprep.subr.mxu0 0.0
  %4023 = vmatpush1.xpose.msra.mxu0 %v4018
  %4024 = vmatprep.subr.mxu0 0.0
  %4025 = vmatpush1.xpose.msra.mxu0 0.0
  %4026 = vmatprep.subr.mxu0 0.0
  %4027 = vmatpush1.xpose.msra.mxu0 0.0
  %4028 = vmatprep.subr.mxu0 0.0
  %4029 = vmatpush1.xpose.msra.mxu0 0.0
  %4030 = vmatprep.subr.mxu0 0.0
  %4031 = vmatpush1.xpose.msra.mxu0 0.0
  %4032 = vmatprep.subr.mxu0 0.0
  %4033 = vmatpush1.xpose.msra.mxu0 0.0
  %4034 = vmatprep.subr.mxu0 0.0
  %4035 = vmatpush1.xpose.msra.mxu0 0.0
  %4036 = vmatprep.subr.mxu0 0.0
  %4037 = vmatpush1.xpose.msra.mxu0 0.0
  %4038 = vmatprep.subr.mxu0 0.0
  %4039 = vmatpush1.xpose.msra.mxu0 0.0
  %4040 = vmatprep.subr.mxu0 0.0
  %4041 = vmatpush1.xpose.msra.mxu0 0.0
  %4042 = vmatprep.subr.mxu0 0.0
  %4043 = vmatpush1.xpose.msra.mxu0 0.0
  %4044 = vmatprep.subr.mxu0 0.0
  %4045 = vmatpush1.xpose.msra.mxu0 0.0
  %4046 = vmatprep.subr.mxu0 0.0
  %4047 = vmatpush1.xpose.msra.mxu0 0.0
  %4048 = vmatprep.subr.mxu0 0.0
  %4049 = vmatpush1.xpose.msra.mxu0 0.0
  %4050 = vmatprep.subr.mxu0 0.0
  %4051 = vmatpush1.xpose.msra.mxu0 0.0
  %4052 = vmatprep.subr.mxu0 0.0
  %4053 = vmatpush1.xpose.msra.mxu0 0.0
  %4054 = vmatprep.subr.mxu0 0.0
  %4055 = vmatpush1.xpose.msra.mxu0 0.0
  %4056 = vmatprep.subr.mxu0 0.0
  %4057 = vmatpush1.xpose.msra.mxu0 0.0
  %4058 = vmatprep.subr.mxu0 0.0
  %4059 = vmatpush1.xpose.msra.mxu0 0.0
  %4060 = vmatprep.subr.mxu0 0.0
  %4061 = vmatpush1.xpose.msra.mxu0 0.0
  %4062 = vmatprep.subr.mxu0 0.0
  %4063 = vmatpush1.xpose.msra.mxu0 0.0
  %4064 = vmatprep.subr.mxu0 0.0
  %4065 = vmatpush1.xpose.msra.mxu0 0.0
  %4066 = vmatprep.subr.mxu0 0.0
  %4067 = vmatpush1.xpose.msra.mxu0 0.0
  %4068 = vmatprep.subr.mxu0 0.0
  %4069 = vmatpush1.xpose.msra.mxu0 0.0
  %4070 = vmatprep.subr.mxu0 0.0
  %4071 = vmatpush1.xpose.msra.mxu0 0.0
  %4072 = vmatprep.subr.mxu0 0.0
  %4073 = vmatpush1.xpose.msra.mxu0 0.0
  %4074 = vmatprep.subr.mxu0 0.0
  %4075 = vmatpush1.xpose.msra.mxu0 0.0
  %4076 = vmatprep.subr.mxu0 0.0
  %4077 = vmatpush1.xpose.msra.mxu0 0.0
  %4078 = vmatprep.subr.mxu0 0.0
  %4079 = vmatpush1.xpose.msra.mxu0 0.0
  %4080 = vmatprep.subr.mxu0 0.0
  %4081 = vmatpush1.xpose.msra.mxu0 0.0
  %4082 = vmatprep.subr.mxu0 0.0
  %4083 = vmatpush1.xpose.msra.mxu0 0.0
  %4084 = vmatprep.mubr.f32.mxu0 0.0
  %4085 = vmatmul.mubr.f32.gmra.mrb[0].mxu0 %v4012
  %v4086 = vpop.f32.mrb[0].mxu0
  %v4087 = vadd.f32 %v1212, %v4086
  %v4088 = vpop.f32.mrb[0].mxu0
  %4089 = vmatprep.mubr.f32.mxu0 0.0
  %4090 = vmatmul.mubr.f32.gmra.mrb[0].mxu0 %v4014
  %v4091 = vpop.f32.mrb[0].mxu0
  %v4092 = vadd.f32 %v1212, %v4091
  %v4093 = vpop.f32.mrb[0].mxu0
  %4094 = vdwg.mxu0
  %v4095 = vsel %vm466, %v4087, -inf
  %4096 = vmax.xlane.f32.xlu0 %v4095
  %v4097 = vpop.xlane.xlu0 %4096
  %v4098 = vsel %vm466, %v4092, -inf
  %4099 = vmax.xlane.f32.xlu0 %v4098
  %v4100 = vpop.xlane.xlu0 %4099
  %v4101 = vsub.f32 %v4087, %v4097
  %v4102 = vsub.f32 %v4092, %v4100
  %v4103 = vmul.f32 %v4101, 1.442695
  %v4104 = vpow.pop %v4103
  %v4105 = vmul.f32 %v4102, 1.442695
  %v4106 = vpow.pop %v4105
  %v4107 = vsel %vm466, %v4104, 0.0
  %4108 = vadd.xlane.f32.xlu0 %v4107
  %v4109 = vpop.xlane.xlu0 %4108
  %v4110 = vsel %vm466, %v4106, 0.0
  %4111 = vadd.xlane.f32.xlu0 %v4110
  %v4112 = vpop.xlane.xlu0 %4111
  %v4113 = vrcp.pop %v4109
  %v4114 = vrcp.pop %v4112
  %v4115 = vmul.f32 %v4104, %v4113
  %v4116 = vmul.f32 %v4106, %v4114
  %4117 = vrot.lane.b32.xlu0 %v2562, 40
  %v4118 = vpop.permute.xlu0 %4117
  %4119 = vrot.lane.b32.xlu0 %v2567, 40
  %v4120 = vpop.permute.xlu0 %4119
  %v4124 = vsel %vm466, %v4115, 0
  %v4127 = vsel %vm466, %v4116, 0
  %4129 = vmatprep.subr.mxu0 0.0
  %4130 = vmatpush1.msra.mxu0 %v4118
  %4131 = vmatprep.subr.mxu0 0.0
  %4132 = vmatpush1.msra.mxu0 %v4120
  %4133 = vmatprep.subr.mxu0 0.0
  %4134 = vmatpush1.msra.mxu0 0.0
  %4135 = vmatprep.subr.mxu0 0.0
  %4136 = vmatpush1.msra.mxu0 0.0
  %4137 = vmatprep.subr.mxu0 0.0
  %4138 = vmatpush1.msra.mxu0 0.0
  %4139 = vmatprep.subr.mxu0 0.0
  %4140 = vmatpush1.msra.mxu0 0.0
  %4141 = vmatprep.subr.mxu0 0.0
  %4142 = vmatpush1.msra.mxu0 0.0
  %4143 = vmatprep.subr.mxu0 0.0
  %4144 = vmatpush1.msra.mxu0 0.0
  %4145 = vmatprep.subr.mxu0 0.0
  %4146 = vmatpush1.msra.mxu0 0.0
  %4147 = vmatprep.subr.mxu0 0.0
  %4148 = vmatpush1.msra.mxu0 0.0
  %4149 = vmatprep.subr.mxu0 0.0
  %4150 = vmatpush1.msra.mxu0 0.0
  %4151 = vmatprep.subr.mxu0 0.0
  %4152 = vmatpush1.msra.mxu0 0.0
  %4153 = vmatprep.subr.mxu0 0.0
  %4154 = vmatpush1.msra.mxu0 0.0
  %4155 = vmatprep.subr.mxu0 0.0
  %4156 = vmatpush1.msra.mxu0 0.0
  %4157 = vmatprep.subr.mxu0 0.0
  %4158 = vmatpush1.msra.mxu0 0.0
  %4159 = vmatprep.subr.mxu0 0.0
  %4160 = vmatpush1.msra.mxu0 0.0
  %4161 = vmatprep.subr.mxu0 0.0
  %4162 = vmatpush1.msra.mxu0 0.0
  %4163 = vmatprep.subr.mxu0 0.0
  %4164 = vmatpush1.msra.mxu0 0.0
  %4165 = vmatprep.subr.mxu0 0.0
  %4166 = vmatpush1.msra.mxu0 0.0
  %4167 = vmatprep.subr.mxu0 0.0
  %4168 = vmatpush1.msra.mxu0 0.0
  %4169 = vmatprep.subr.mxu0 0.0
  %4170 = vmatpush1.msra.mxu0 0.0
  %4171 = vmatprep.subr.mxu0 0.0
  %4172 = vmatpush1.msra.mxu0 0.0
  %4173 = vmatprep.subr.mxu0 0.0
  %4174 = vmatpush1.msra.mxu0 0.0
  %4175 = vmatprep.subr.mxu0 0.0
  %4176 = vmatpush1.msra.mxu0 0.0
  %4177 = vmatprep.subr.mxu0 0.0
  %4178 = vmatpush1.msra.mxu0 0.0
  %4179 = vmatprep.subr.mxu0 0.0
  %4180 = vmatpush1.msra.mxu0 0.0
  %4181 = vmatprep.subr.mxu0 0.0
  %4182 = vmatpush1.msra.mxu0 0.0
  %4183 = vmatprep.subr.mxu0 0.0
  %4184 = vmatpush1.msra.mxu0 0.0
  %4185 = vmatprep.subr.mxu0 0.0
  %4186 = vmatpush1.msra.mxu0 0.0
  %4187 = vmatprep.subr.mxu0 0.0
  %4188 = vmatpush1.msra.mxu0 0.0
  %4189 = vmatprep.subr.mxu0 0.0
  %4190 = vmatpush1.msra.mxu0 0.0
  %4191 = vmatprep.subr.mxu0 0.0
  %4192 = vmatpush1.msra.mxu0 0.0
  %4193 = vmatprep.mubr.f32.mxu0 0.0
  %4194 = vmatmul.mubr.f32.gmra.mrb[0].mxu0 %v4124
  %v4195 = vpop.f32.mrb[0].mxu0
  %v4196 = vadd.f32 0.0, %v4195
  %v4197 = vpop.f32.mrb[0].mxu0
  %4198 = vmatprep.mubr.f32.mxu0 0.0
  %4199 = vmatmul.mubr.f32.gmra.mrb[0].mxu0 %v4127
  %v4200 = vpop.f32.mrb[0].mxu0
  %v4201 = vadd.f32 0.0, %v4200
  %v4202 = vpop.f32.mrb[0].mxu0
  %4203 = vdwg.mxu0
  %4206 = vrot.lane.b32.xlu0 %v3796, 8
  %v4207 = vpop.permute.xlu0 %4206
  %4208 = vrot.lane.b32.xlu0 %v3801, 8
  %v4209 = vpop.permute.xlu0 %4208
  %4214 = vrot.lane.b32.xlu0 %v3996, 16
  %v4215 = vpop.permute.xlu0 %4214
  %4216 = vrot.lane.b32.xlu0 %v4001, 16
  %v4217 = vpop.permute.xlu0 %4216
  %4222 = vrot.lane.b32.xlu0 %v4196, 24
  %v4223 = vpop.permute.xlu0 %4222
  %4224 = vrot.lane.b32.xlu0 %v4201, 24
  %v4225 = vpop.permute.xlu0 %4224
  %v4228 = vsel %vm380, %v3596, %v4207
  %v4229 = vsel %vm380, %v3601, %v4209
  %v4230 = vsel %vm466, %v4228, %v4215
  %v4231 = vsel %vm466, %v4229, %v4217
  %v4232 = vsel %vm1204, %v4230, %v4223
  %v4233 = vsel %vm1204, %v4231, %v4225
  %s4234 = scalar_lea.vmem %s17, 32
  %v4235 = vld [vmem:[%s4234] sm:$0xff]
  %v4236 = vld [vmem:[%s4234 + $0x8] sm:$0xff]
  %v4237 = vld [vmem:[%s4234 + $0x10] sm:$0xff]
  %v4238 = vld [vmem:[%s4234 + $0x18] sm:$0xff]
  %s4239 = scalar_lea.vmem %s19, 1
  %v4240 = vld [vmem:[%s4239] sm:$0x1]
  %v4242 = vlaneseq
  %v4243 = vshrl.u32 %v4242, 7
  %v4244 = vsub.s32 0, %v4243
  %v4245 = vrot.slane %v4240, %v4244
  %v4248 = vsel %vm270, %v3400, 0
  %v4251 = vsel %vm270, %v3401, 0
  %v4254 = vsel %vm270, %v4232, 0
  %v4257 = vsel %vm270, %v4233, 0
  %4259 = vmatprep.subr.mxu0 0.0
  %4260 = vmatpush1.msra.mxu0 %v4235
  %4261 = vmatprep.subr.mxu0 0.0
  %4262 = vmatpush1.msra.mxu0 %v4236
  %4263 = vmatprep.subr.mxu0 0.0
  %4264 = vmatpush1.msra.mxu0 %v4237
  %4265 = vmatprep.subr.mxu0 0.0
  %4266 = vmatpush1.msra.mxu0 %v4238
  %4267 = vmatprep.subr.mxu0 0.0
  %4268 = vmatpush1.msra.mxu0 0.0
  %4269 = vmatprep.subr.mxu0 0.0
  %4270 = vmatpush1.msra.mxu0 0.0
  %4271 = vmatprep.subr.mxu0 0.0
  %4272 = vmatpush1.msra.mxu0 0.0
  %4273 = vmatprep.subr.mxu0 0.0
  %4274 = vmatpush1.msra.mxu0 0.0
  %4275 = vmatprep.subr.mxu0 0.0
  %4276 = vmatpush1.msra.mxu0 0.0
  %4277 = vmatprep.subr.mxu0 0.0
  %4278 = vmatpush1.msra.mxu0 0.0
  %4279 = vmatprep.subr.mxu0 0.0
  %4280 = vmatpush1.msra.mxu0 0.0
  %4281 = vmatprep.subr.mxu0 0.0
  %4282 = vmatpush1.msra.mxu0 0.0
  %4283 = vmatprep.subr.mxu0 0.0
  %4284 = vmatpush1.msra.mxu0 0.0
  %4285 = vmatprep.subr.mxu0 0.0
  %4286 = vmatpush1.msra.mxu0 0.0
  %4287 = vmatprep.subr.mxu0 0.0
  %4288 = vmatpush1.msra.mxu0 0.0
  %4289 = vmatprep.subr.mxu0 0.0
  %4290 = vmatpush1.msra.mxu0 0.0
  %4291 = vmatprep.subr.mxu0 0.0
  %4292 = vmatpush1.msra.mxu0 0.0
  %4293 = vmatprep.subr.mxu0 0.0
  %4294 = vmatpush1.msra.mxu0 0.0
  %4295 = vmatprep.subr.mxu0 0.0
  %4296 = vmatpush1.msra.mxu0 0.0
  %4297 = vmatprep.subr.mxu0 0.0
  %4298 = vmatpush1.msra.mxu0 0.0
  %4299 = vmatprep.subr.mxu0 0.0
  %4300 = vmatpush1.msra.mxu0 0.0
  %4301 = vmatprep.subr.mxu0 0.0
  %4302 = vmatpush1.msra.mxu0 0.0
  %4303 = vmatprep.subr.mxu0 0.0
  %4304 = vmatpush1.msra.mxu0 0.0
  %4305 = vmatprep.subr.mxu0 0.0
  %4306 = vmatpush1.msra.mxu0 0.0
  %4307 = vmatprep.subr.mxu0 0.0
  %4308 = vmatpush1.msra.mxu0 0.0
  %4309 = vmatprep.subr.mxu0 0.0
  %4310 = vmatpush1.msra.mxu0 0.0
  %4311 = vmatprep.subr.mxu0 0.0
  %4312 = vmatpush1.msra.mxu0 0.0
  %4313 = vmatprep.subr.mxu0 0.0
  %4314 = vmatpush1.msra.mxu0 0.0
  %4315 = vmatprep.subr.mxu0 0.0
  %4316 = vmatpush1.msra.mxu0 0.0
  %4317 = vmatprep.subr.mxu0 0.0
  %4318 = vmatpush1.msra.mxu0 0.0
  %4319 = vmatprep.subr.mxu0 0.0
  %4320 = vmatpush1.msra.mxu0 0.0
  %4321 = vmatprep.subr.mxu0 0.0
  %4322 = vmatpush1.msra.mxu0 0.0
  %4323 = vmatprep.mubr.f32.mxu0 0.0
  %4324 = vmatmul.mubr.f32.gmra.mrb[0].mxu0 %v4248
  %v4325 = vpop.f32.mrb[0].mxu0
  %v4326 = vadd.f32 %v4245, %v4325
  %v4327 = vpop.f32.mrb[0].mxu0
  %4328 = vmatprep.mubr.f32.mxu0 0.0
  %4329 = vmatmul.mubr.f32.gmra.mrb[0].mxu0 %v4251
  %v4330 = vpop.f32.mrb[0].mxu0
  %v4331 = vadd.f32 %v4245, %v4330
  %v4332 = vpop.f32.mrb[0].mxu0
  %4333 = vmatprep.mubr.f32.mxu0 0.0
  %4334 = vmatmul.mubr.f32.gmra.mrb[0].mxu0 %v4254
  %v4335 = vpop.f32.mrb[0].mxu0
  %v4336 = vadd.f32 %v4245, %v4335
  %v4337 = vpop.f32.mrb[0].mxu0
  %4338 = vmatprep.mubr.f32.mxu0 0.0
  %4339 = vmatmul.mubr.f32.gmra.mrb[0].mxu0 %v4257
  %v4340 = vpop.f32.mrb[0].mxu0
  %v4341 = vadd.f32 %v4245, %v4340
  %v4342 = vpop.f32.mrb[0].mxu0
  %4343 = vdwg.mxu0
  %v4344 = vadd.f32 %v2456, %v4326
  %v4345 = vadd.f32 %v2457, %v4331
  %v4346 = vadd.f32 %v2458, %v4336
  %v4347 = vadd.f32 %v2459, %v4341
  %s4348 = scalar_lea.vmem %s29, 1
  %v4349 = vld [vmem:[%s4348] sm:$0x1]
  %v4351 = vlaneseq
  %v4352 = vshrl.u32 %v4351, 7
  %v4353 = vsub.s32 0, %v4352
  %v4354 = vrot.slane %v4349, %v4353
  %v4356 = vmul.f32 %v4344, %v4354
  %v4357 = vmul.f32 %v4345, %v4354
  %v4358 = vmul.f32 %v4346, %v4354
  %v4359 = vmul.f32 %v4347, %v4354
  %s4360 = scalar_lea.vmem %s31, 1
  %v4361 = vld [vmem:[%s4360] sm:$0x1]
  %v4363 = vlaneseq
  %v4364 = vshrl.u32 %v4363, 7
  %v4365 = vsub.s32 0, %v4364
  %v4366 = vrot.slane %v4361, %v4365
  %v4368 = vadd.f32 %v4356, %v4366
  %v4369 = vadd.f32 %v4357, %v4366
  %v4370 = vadd.f32 %v4358, %v4366
  %v4371 = vadd.f32 %v4359, %v4366
  %s4372 = scalar_lea.vmem %s21, 32
  %v4373 = vld [vmem:[%s4372] sm:$0xff]
  %v4374 = vld [vmem:[%s4372 + $0x8] sm:$0xff]
  %v4375 = vld [vmem:[%s4372 + $0x10] sm:$0xff]
  %v4376 = vld [vmem:[%s4372 + $0x18] sm:$0xff]
  %s4377 = scalar_lea.vmem %s23, 1
  %v4378 = vld [vmem:[%s4377] sm:$0x1]
  %v4380 = vlaneseq
  %v4381 = vshrl.u32 %v4380, 7
  %v4382 = vsub.s32 0, %v4381
  %v4383 = vrot.slane %v4378, %v4382
  %v4386 = vsel %vm270, %v4368, 0
  %v4389 = vsel %vm270, %v4369, 0
  %v4392 = vsel %vm270, %v4370, 0
  %v4395 = vsel %vm270, %v4371, 0
  %4397 = vmatprep.subr.mxu0 0.0
  %4398 = vmatpush1.msra.mxu0 %v4373
  %4399 = vmatprep.subr.mxu0 0.0
  %4400 = vmatpush1.msra.mxu0 %v4374
  %4401 = vmatprep.subr.mxu0 0.0
  %4402 = vmatpush1.msra.mxu0 %v4375
  %4403 = vmatprep.subr.mxu0 0.0
  %4404 = vmatpush1.msra.mxu0 %v4376
  %4405 = vmatprep.subr.mxu0 0.0
  %4406 = vmatpush1.msra.mxu0 0.0
  %4407 = vmatprep.subr.mxu0 0.0
  %4408 = vmatpush1.msra.mxu0 0.0
  %4409 = vmatprep.subr.mxu0 0.0
  %4410 = vmatpush1.msra.mxu0 0.0
  %4411 = vmatprep.subr.mxu0 0.0
  %4412 = vmatpush1.msra.mxu0 0.0
  %4413 = vmatprep.subr.mxu0 0.0
  %4414 = vmatpush1.msra.mxu0 0.0
  %4415 = vmatprep.subr.mxu0 0.0
  %4416 = vmatpush1.msra.mxu0 0.0
  %4417 = vmatprep.subr.mxu0 0.0
  %4418 = vmatpush1.msra.mxu0 0.0
  %4419 = vmatprep.subr.mxu0 0.0
  %4420 = vmatpush1.msra.mxu0 0.0
  %4421 = vmatprep.subr.mxu0 0.0
  %4422 = vmatpush1.msra.mxu0 0.0
  %4423 = vmatprep.subr.mxu0 0.0
  %4424 = vmatpush1.msra.mxu0 0.0
  %4425 = vmatprep.subr.mxu0 0.0
  %4426 = vmatpush1.msra.mxu0 0.0
  %4427 = vmatprep.subr.mxu0 0.0
  %4428 = vmatpush1.msra.mxu0 0.0
  %4429 = vmatprep.subr.mxu0 0.0
  %4430 = vmatpush1.msra.mxu0 0.0
  %4431 = vmatprep.subr.mxu0 0.0
  %4432 = vmatpush1.msra.mxu0 0.0
  %4433 = vmatprep.subr.mxu0 0.0
  %4434 = vmatpush1.msra.mxu0 0.0
  %4435 = vmatprep.subr.mxu0 0.0
  %4436 = vmatpush1.msra.mxu0 0.0
  %4437 = vmatprep.subr.mxu0 0.0
  %4438 = vmatpush1.msra.mxu0 0.0
  %4439 = vmatprep.subr.mxu0 0.0
  %4440 = vmatpush1.msra.mxu0 0.0
  %4441 = vmatprep.subr.mxu0 0.0
  %4442 = vmatpush1.msra.mxu0 0.0
  %4443 = vmatprep.subr.mxu0 0.0
  %4444 = vmatpush1.msra.mxu0 0.0
  %4445 = vmatprep.subr.mxu0 0.0
  %4446 = vmatpush1.msra.mxu0 0.0
  %4447 = vmatprep.subr.mxu0 0.0
  %4448 = vmatpush1.msra.mxu0 0.0
  %4449 = vmatprep.subr.mxu0 0.0
  %4450 = vmatpush1.msra.mxu0 0.0
  %4451 = vmatprep.subr.mxu0 0.0
  %4452 = vmatpush1.msra.mxu0 0.0
  %4453 = vmatprep.subr.mxu0 0.0
  %4454 = vmatpush1.msra.mxu0 0.0
  %4455 = vmatprep.subr.mxu0 0.0
  %4456 = vmatpush1.msra.mxu0 0.0
  %4457 = vmatprep.subr.mxu0 0.0
  %4458 = vmatpush1.msra.mxu0 0.0
  %4459 = vmatprep.subr.mxu0 0.0
  %4460 = vmatpush1.msra.mxu0 0.0
  %4461 = vmatprep.mubr.f32.mxu0 0.0
  %4462 = vmatmul.mubr.f32.gmra.mrb[0].mxu0 %v4386
  %v4463 = vpop.f32.mrb[0].mxu0
  %v4464 = vadd.f32 %v4383, %v4463
  %v4465 = vpop.f32.mrb[0].mxu0
  %4466 = vmatprep.mubr.f32.mxu0 0.0
  %4467 = vmatmul.mubr.f32.gmra.mrb[0].mxu0 %v4389
  %v4468 = vpop.f32.mrb[0].mxu0
  %v4469 = vadd.f32 %v4383, %v4468
  %v4470 = vpop.f32.mrb[0].mxu0
  %4471 = vmatprep.mubr.f32.mxu0 0.0
  %4472 = vmatmul.mubr.f32.gmra.mrb[0].mxu0 %v4392
  %v4473 = vpop.f32.mrb[0].mxu0
  %v4474 = vadd.f32 %v4383, %v4473
  %v4475 = vpop.f32.mrb[0].mxu0
  %4476 = vmatprep.mubr.f32.mxu0 0.0
  %4477 = vmatmul.mubr.f32.gmra.mrb[0].mxu0 %v4395
  %v4478 = vpop.f32.mrb[0].mxu0
  %v4479 = vadd.f32 %v4383, %v4478
  %v4480 = vpop.f32.mrb[0].mxu0
  %4481 = vdwg.mxu0
  %v4482 = vmul.f32 %v4464, %v4464
  %v4483 = vmul.f32 %v4469, %v4469
  %v4484 = vmul.f32 %v4474, %v4474
  %v4485 = vmul.f32 %v4479, %v4479
  %v4486 = vmul.f32 %v4464, %v4482
  %v4487 = vmul.f32 %v4469, %v4483
  %v4488 = vmul.f32 %v4474, %v4484
  %v4489 = vmul.f32 %v4479, %v4485
  %v4490 = vmul.f32 %v4486, 0.044715
  %v4491 = vmul.f32 %v4487, 0.044715
  %v4492 = vmul.f32 %v4488, 0.044715
  %v4493 = vmul.f32 %v4489, 0.044715
  %v4494 = vadd.f32 %v4464, %v4490
  %v4495 = vadd.f32 %v4469, %v4491
  %v4496 = vadd.f32 %v4474, %v4492
  %v4497 = vadd.f32 %v4479, %v4493
  %v4498 = vmul.f32 %v4494, 0.7978846
  %v4499 = vmul.f32 %v4495, 0.7978846
  %v4500 = vmul.f32 %v4496, 0.7978846
  %v4501 = vmul.f32 %v4497, 0.7978846
  %v4502 = vtanh.pop %v4498
  %v4503 = vtanh.pop %v4499
  %v4504 = vtanh.pop %v4500
  %v4505 = vtanh.pop %v4501
  %v4506 = vadd.f32 %v4502, 1.0
  %v4507 = vadd.f32 %v4503, 1.0
  %v4508 = vadd.f32 %v4504, 1.0
  %v4509 = vadd.f32 %v4505, 1.0
  %v4510 = vmul.f32 %v4506, 0.5
  %v4511 = vmul.f32 %v4507, 0.5
  %v4512 = vmul.f32 %v4508, 0.5
  %v4513 = vmul.f32 %v4509, 0.5
  %v4514 = vmul.f32 %v4464, %v4510
  %v4515 = vmul.f32 %v4469, %v4511
  %v4516 = vmul.f32 %v4474, %v4512
  %v4517 = vmul.f32 %v4479, %v4513
  %s4518 = scalar_lea.vmem %s25, 64
  %v4519 = vld [vmem:[%s4518] sm:$0xff]
  %v4520 = vld [vmem:[%s4518 + $0x8] sm:$0xff]
  %v4521 = vld [vmem:[%s4518 + $0x10] sm:$0xff]
  %v4522 = vld [vmem:[%s4518 + $0x18] sm:$0xff]
  %v4523 = vld [vmem:[%s4518 + $0x20] sm:$0xff]
  %v4524 = vld [vmem:[%s4518 + $0x28] sm:$0xff]
  %v4525 = vld [vmem:[%s4518 + $0x30] sm:$0xff]
  %v4526 = vld [vmem:[%s4518 + $0x38] sm:$0xff]
  %s4527 = scalar_lea.vmem %s27, 1
  %v4528 = vld [vmem:[%s4527] sm:$0x1]
  %v4530 = vlaneseq
  %v4531 = vshrl.u32 %v4530, 7
  %v4532 = vsub.s32 0, %v4531
  %v4533 = vrot.slane %v4528, %v4532
  %v4536 = vsel %vm2336, %v4514, 0
  %v4539 = vsel %vm2336, %v4515, 0
  %v4542 = vsel %vm2336, %v4516, 0
  %v4545 = vsel %vm2336, %v4517, 0
  %4547 = vmatprep.subr.mxu0 0.0
  %4548 = vmatpush1.msra.mxu0 %v4519
  %4549 = vmatprep.subr.mxu0 0.0
  %4550 = vmatpush1.msra.mxu0 %v4520
  %4551 = vmatprep.subr.mxu0 0.0
  %4552 = vmatpush1.msra.mxu0 %v4521
  %4553 = vmatprep.subr.mxu0 0.0
  %4554 = vmatpush1.msra.mxu0 %v4522
  %4555 = vmatprep.subr.mxu0 0.0
  %4556 = vmatpush1.msra.mxu0 %v4523
  %4557 = vmatprep.subr.mxu0 0.0
  %4558 = vmatpush1.msra.mxu0 %v4524
  %4559 = vmatprep.subr.mxu0 0.0
  %4560 = vmatpush1.msra.mxu0 %v4525
  %4561 = vmatprep.subr.mxu0 0.0
  %4562 = vmatpush1.msra.mxu0 %v4526
  %4563 = vmatprep.subr.mxu0 0.0
  %4564 = vmatpush1.msra.mxu0 0.0
  %4565 = vmatprep.subr.mxu0 0.0
  %4566 = vmatpush1.msra.mxu0 0.0
  %4567 = vmatprep.subr.mxu0 0.0
  %4568 = vmatpush1.msra.mxu0 0.0
  %4569 = vmatprep.subr.mxu0 0.0
  %4570 = vmatpush1.msra.mxu0 0.0
  %4571 = vmatprep.subr.mxu0 0.0
  %4572 = vmatpush1.msra.mxu0 0.0
  %4573 = vmatprep.subr.mxu0 0.0
  %4574 = vmatpush1.msra.mxu0 0.0
  %4575 = vmatprep.subr.mxu0 0.0
  %4576 = vmatpush1.msra.mxu0 0.0
  %4577 = vmatprep.subr.mxu0 0.0
  %4578 = vmatpush1.msra.mxu0 0.0
  %4579 = vmatprep.subr.mxu0 0.0
  %4580 = vmatpush1.msra.mxu0 0.0
  %4581 = vmatprep.subr.mxu0 0.0
  %4582 = vmatpush1.msra.mxu0 0.0
  %4583 = vmatprep.subr.mxu0 0.0
  %4584 = vmatpush1.msra.mxu0 0.0
  %4585 = vmatprep.subr.mxu0 0.0
  %4586 = vmatpush1.msra.mxu0 0.0
  %4587 = vmatprep.subr.mxu0 0.0
  %4588 = vmatpush1.msra.mxu0 0.0
  %4589 = vmatprep.subr.mxu0 0.0
  %4590 = vmatpush1.msra.mxu0 0.0
  %4591 = vmatprep.subr.mxu0 0.0
  %4592 = vmatpush1.msra.mxu0 0.0
  %4593 = vmatprep.subr.mxu0 0.0
  %4594 = vmatpush1.msra.mxu0 0.0
  %4595 = vmatprep.subr.mxu0 0.0
  %4596 = vmatpush1.msra.mxu0 0.0
  %4597 = vmatprep.subr.mxu0 0.0
  %4598 = vmatpush1.msra.mxu0 0.0
  %4599 = vmatprep.subr.mxu0 0.0
  %4600 = vmatpush1.msra.mxu0 0.0
  %4601 = vmatprep.subr.mxu0 0.0
  %4602 = vmatpush1.msra.mxu0 0.0
  %4603 = vmatprep.subr.mxu0 0.0
  %4604 = vmatpush1.msra.mxu0 0.0
  %4605 = vmatprep.subr.mxu0 0.0
  %4606 = vmatpush1.msra.mxu0 0.0
  %4607 = vmatprep.subr.mxu0 0.0
  %4608 = vmatpush1.msra.mxu0 0.0
  %4609 = vmatprep.subr.mxu0 0.0
  %4610 = vmatpush1.msra.mxu0 0.0
  %4611 = vmatprep.mubr.f32.mxu0 0.0
  %4612 = vmatmul.mubr.f32.gmra.mrb[0].mxu0 %v4536
  %v4613 = vpop.f32.mrb[0].mxu0
  %v4614 = vadd.f32 %v4533, %v4613
  %v4615 = vpop.f32.mrb[0].mxu0
  %4616 = vmatprep.mubr.f32.mxu0 0.0
  %4617 = vmatmul.mubr.f32.gmra.mrb[0].mxu0 %v4539
  %v4618 = vpop.f32.mrb[0].mxu0
  %v4619 = vadd.f32 %v4533, %v4618
  %v4620 = vpop.f32.mrb[0].mxu0
  %4621 = vmatprep.mubr.f32.mxu0 0.0
  %4622 = vmatmul.mubr.f32.gmra.mrb[0].mxu0 %v4542
  %v4623 = vpop.f32.mrb[0].mxu0
  %v4624 = vadd.f32 %v4533, %v4623
  %v4625 = vpop.f32.mrb[0].mxu0
  %4626 = vmatprep.mubr.f32.mxu0 0.0
  %4627 = vmatmul.mubr.f32.gmra.mrb[0].mxu0 %v4545
  %v4628 = vpop.f32.mrb[0].mxu0
  %v4629 = vadd.f32 %v4533, %v4628
  %v4630 = vpop.f32.mrb[0].mxu0
  %4631 = vdwg.mxu0
  %v4632 = vadd.f32 %v4368, %v4614
  %v4633 = vadd.f32 %v4369, %v4619
  %v4634 = vadd.f32 %v4370, %v4624
  %v4635 = vadd.f32 %v4371, %v4629
  %s4636 = scalar_lea.vmem %s33, 1
  %v4637 = vld [vmem:[%s4636] sm:$0x1]
  %v4639 = vlaneseq
  %v4640 = vshrl.u32 %v4639, 7
  %v4641 = vsub.s32 0, %v4640
  %v4642 = vrot.slane %v4637, %v4641
  %v4644 = vmul.f32 %v4632, %v4642
  %v4645 = vmul.f32 %v4633, %v4642
  %v4646 = vmul.f32 %v4634, %v4642
  %v4647 = vmul.f32 %v4635, %v4642
  %s4648 = scalar_lea.vmem %s35, 1
  %v4649 = vld [vmem:[%s4648] sm:$0x1]
  %v4651 = vlaneseq
  %v4652 = vshrl.u32 %v4651, 7
  %v4653 = vsub.s32 0, %v4652
  %v4654 = vrot.slane %v4649, %v4653
  %v4656 = vadd.f32 %v4644, %v4654
  %v4657 = vadd.f32 %v4645, %v4654
  %v4658 = vadd.f32 %v4646, %v4654
  %v4659 = vadd.f32 %v4647, %v4654
  %v4660 = vmul.f32 %v4656, %v4656
  %v4661 = vmul.f32 %v4657, %v4657
  %v4662 = vmul.f32 %v4658, %v4658
  %v4663 = vmul.f32 %v4659, %v4659
  %v4664 = vmul.f32 %v4656, %v4660
  %v4665 = vmul.f32 %v4657, %v4661
  %v4666 = vmul.f32 %v4658, %v4662
  %v4667 = vmul.f32 %v4659, %v4663
  %v4668 = vmul.f32 %v4664, 0.044715
  %v4669 = vmul.f32 %v4665, 0.044715
  %v4670 = vmul.f32 %v4666, 0.044715
  %v4671 = vmul.f32 %v4667, 0.044715
  %v4672 = vadd.f32 %v4656, %v4668
  %v4673 = vadd.f32 %v4657, %v4669
  %v4674 = vadd.f32 %v4658, %v4670
  %v4675 = vadd.f32 %v4659, %v4671
  %v4676 = vmul.f32 %v4672, 0.7978846
  %v4677 = vmul.f32 %v4673, 0.7978846
  %v4678 = vmul.f32 %v4674, 0.7978846
  %v4679 = vmul.f32 %v4675, 0.7978846
  %v4680 = vtanh.pop %v4676
  %v4681 = vtanh.pop %v4677
  %v4682 = vtanh.pop %v4678
  %v4683 = vtanh.pop %v4679
  %v4684 = vadd.f32 %v4680, 1.0
  %v4685 = vadd.f32 %v4681, 1.0
  %v4686 = vadd.f32 %v4682, 1.0
  %v4687 = vadd.f32 %v4683, 1.0
  %v4688 = vmul.f32 %v4684, 0.5
  %v4689 = vmul.f32 %v4685, 0.5
  %v4690 = vmul.f32 %v4686, 0.5
  %v4691 = vmul.f32 %v4687, 0.5
  %v4692 = vmul.f32 %v4656, %v4688
  %v4693 = vmul.f32 %v4657, %v4689
  %v4694 = vmul.f32 %v4658, %v4690
  %v4695 = vmul.f32 %v4659, %v4691
  %v4696 = vld [vmem:[%s3] sm:$0xff]
  %v4697 = vld [vmem:[%s3 + $0x8] sm:$0xff]
  %v4698 = vld [vmem:[%s3 + $0x10] sm:$0xff]
  %v4699 = vld [vmem:[%s3 + $0x18] sm:$0xff]
  %4701 = vset.pattern.permute.xlu0 0
  %4702 = vperm.xlu0 %4701, %v4696
  %v4703 = vpop.permute.xlu0 %4702
  %4706 = vset.pattern.permute.xlu0 0
  %4707 = vperm.xlu0 %4706, %v4697
  %v4708 = vpop.permute.xlu0 %4707
  %4711 = vset.pattern.permute.xlu0 0
  %4712 = vperm.xlu0 %4711, %v4698
  %v4713 = vpop.permute.xlu0 %4712
  %4716 = vset.pattern.permute.xlu0 0
  %4717 = vperm.xlu0 %4716, %v4699
  %v4718 = vpop.permute.xlu0 %4717
  %v4720 = vmul.f32 %v4692, %v4703
  %v4721 = vmul.f32 %v4693, %v4708
  %v4722 = vmul.f32 %v4694, %v4713
  %v4723 = vmul.f32 %v4695, %v4718
  %v4724 = vlaneseq
  %v4725 = vshrl.u32 %v4724, 7
  %v4726 = vadd.s32 %v4725, 8
  %v4727 = vadd.s32 %v4725, 16
  %v4728 = vadd.s32 %v4725, 24
  %vm4729 = vcmp.lt.s32.totalorder %v4725, 0
  %v4730 = vsub.s32 0, %v4725
  %v4731 = vsel %vm4729, %v4730, %v4725
  %v4732 = vshrl.u32 %v4731, 4
  %v4733 = vand.u32 %v4731, 15
  %v4734 = vsub.s32 0, %v4733
  %v4735 = vsel %vm4729, %v4734, %v4733
  %vm4736 = vcmp.lt.s32.totalorder %v4726, 0
  %v4737 = vsub.s32 0, %v4726
  %v4738 = vsel %vm4736, %v4737, %v4726
  %v4739 = vshrl.u32 %v4738, 4
  %v4740 = vand.u32 %v4738, 15
  %v4741 = vsub.s32 0, %v4740
  %v4742 = vsel %vm4736, %v4741, %v4740
  %vm4743 = vcmp.lt.s32.totalorder %v4727, 0
  %v4744 = vsub.s32 0, %v4727
  %v4745 = vsel %vm4743, %v4744, %v4727
  %v4746 = vshrl.u32 %v4745, 4
  %v4747 = vand.u32 %v4745, 15
  %v4748 = vsub.s32 0, %v4747
  %v4749 = vsel %vm4743, %v4748, %v4747
  %vm4750 = vcmp.lt.s32.totalorder %v4728, 0
  %v4751 = vsub.s32 0, %v4728
  %v4752 = vsel %vm4750, %v4751, %v4728
  %v4753 = vshrl.u32 %v4752, 4
  %v4754 = vand.u32 %v4752, 15
  %v4755 = vsub.s32 0, %v4754
  %v4756 = vsel %vm4750, %v4755, %v4754
  %vm4757 = vcmp.ne.s32.totalorder %v4735, 0
  %vm4758 = vcmp.ne.s32.totalorder %v4742, 0
  %vm4759 = vcmp.ne.s32.totalorder %v4749, 0
  %vm4760 = vcmp.ne.s32.totalorder %v4756, 0
  %vm4761 = vcmp.lt.s32.totalorder %v4735, 0
  %vm4762 = vcmp.lt.s32.totalorder %v4742, 0
  %vm4763 = vcmp.lt.s32.totalorder %v4749, 0
  %vm4764 = vcmp.lt.s32.totalorder %v4756, 0
  %vm4765 = vmand %vm4761, %vm4757
  %vm4766 = vmand %vm4762, %vm4758
  %vm4767 = vmand %vm4763, %vm4759
  %vm4768 = vmand %vm4764, %vm4760
  %v4769 = vadd.s32 %v4735, 16
  %v4770 = vadd.s32 %v4742, 16
  %v4771 = vadd.s32 %v4749, 16
  %v4772 = vadd.s32 %v4756, 16
  %v4773 = vsel %vm4765, %v4769, %v4735
  %v4774 = vsel %vm4766, %v4770, %v4742
  %v4775 = vsel %vm4767, %v4771, %v4749
  %v4776 = vsel %vm4768, %v4772, %v4756
  %vm4777 = vcmp.ne.s32.totalorder %v4773, 0
  %vm4778 = vcmp.ne.s32.totalorder %v4774, 0
  %vm4779 = vcmp.ne.s32.totalorder %v4775, 0
  %vm4780 = vcmp.ne.s32.totalorder %v4776, 0
  %vm4781 = vcmp.ne.s32.totalorder %v4773, 15
  %vm4782 = vcmp.ne.s32.totalorder %v4774, 15
  %vm4783 = vcmp.ne.s32.totalorder %v4775, 15
  %vm4784 = vcmp.ne.s32.totalorder %v4776, 15
  %vm4789 = vcmask 1040384
  %v4790 = vrot.slane %v4720, 7
  %v4791 = vrot.slane %v4721, 7
  %v4792 = vsel %vm4789, %v4790, %v4791
  %v4793 = vrot.slane %v4722, 7
  %v4794 = vsel %vm4789, %v4791, %v4793
  %v4795 = vrot.slane %v4723, 7
  %v4796 = vsel %vm4789, %v4793, %v4795
  %v4801 = vsel %vm4789, 0.0, %v4790
  %v4802 = vsel %vm4777, %v4801, 0.0
  %v4803 = vsel %vm4778, %v4792, 0.0
  %v4804 = vsel %vm4779, %v4794, 0.0
  %v4805 = vsel %vm4780, %v4796, 0.0
  %vm4806 = vcmask 1046528
  %v4807 = vrot.slane %v4720, 1
  %v4808 = vrot.slane %v4721, 1
  %v4809 = vsel %vm4806, %v4807, %v4808
  %v4810 = vrot.slane %v4722, 1
  %v4811 = vsel %vm4806, %v4808, %v4810
  %v4812 = vrot.slane %v4723, 1
  %v4813 = vsel %vm4806, %v4810, %v4812
  %v4818 = vsel %vm4806, %v4812, 0.0
  %v4819 = vsel %vm4781, %v4809, 0.0
  %v4820 = vsel %vm4782, %v4811, 0.0
  %v4821 = vsel %vm4783, %v4813, 0.0
  %v4822 = vsel %vm4784, %v4818, 0.0
  %4823 = vrot.lane.b32.xlu0 %v4720, 32
  %v4824 = vpop.permute.xlu0 %4823
  %4825 = vrot.lane.b32.xlu0 %v4721, 32
  %v4826 = vpop.permute.xlu0 %4825
  %4827 = vrot.lane.b32.xlu0 %v4722, 32
  %v4828 = vpop.permute.xlu0 %4827
  %4829 = vrot.lane.b32.xlu0 %v4723, 32
  %v4830 = vpop.permute.xlu0 %4829
  %4839 = vrot.lane.b32.xlu0 %v4819, 64
  %v4840 = vpop.permute.xlu0 %4839
  %4841 = vrot.lane.b32.xlu0 %v4820, 64
  %v4842 = vpop.permute.xlu0 %4841
  %4843 = vrot.lane.b32.xlu0 %v4821, 64
  %v4844 = vpop.permute.xlu0 %4843
  %4845 = vrot.lane.b32.xlu0 %v4822, 64
  %v4846 = vpop.permute.xlu0 %4845
  %v4851 = vsel %vm270, %v4802, %v4824
  %v4852 = vsel %vm270, %v4803, %v4826
  %v4853 = vsel %vm270, %v4804, %v4828
  %v4854 = vsel %vm270, %v4805, %v4830
  %v4855 = vsel %vm2336, %v4851, %v4840
  %v4856 = vsel %vm2336, %v4852, %v4842
  %v4857 = vsel %vm2336, %v4853, %v4844
  %v4858 = vsel %vm2336, %v4854, %v4846
  %v4859 = vld [vmem:[%s37] sm:$0xff]
  %v4860 = vld [vmem:[%s37 + $0x8] sm:$0xff]
  %v4861 = vld [vmem:[%s37 + $0x10] sm:$0xff]
  %v4862 = vld [vmem:[%s37 + $0x18] sm:$0xff]
  %v4863 = vld [vmem:[%s37 + $0x20] sm:$0xff]
  %v4864 = vld [vmem:[%s37 + $0x28] sm:$0xff]
  %v4865 = vld [vmem:[%s37 + $0x30] sm:$0xff]
  %v4866 = vld [vmem:[%s37 + $0x38] sm:$0xff]
  %v4867 = vld [vmem:[%s37 + $0x40] sm:$0xff]
  %v4868 = vld [vmem:[%s37 + $0x48] sm:$0xff]
  %v4869 = vld [vmem:[%s37 + $0x50] sm:$0xff]
  %v4870 = vld [vmem:[%s37 + $0x58] sm:$0xff]
  %v4871 = vld [vmem:[%s39] sm:$0x1]
  %v4873 = vlaneseq
  %v4874 = vshrl.u32 %v4873, 7
  %v4875 = vsub.s32 0, %v4874
  %v4876 = vrot.slane %v4871, %v4875
  %vm4878 = vcmask 785408
  %v4880 = vsel %vm4878, %v4855, 0
  %v4883 = vsel %vm4878, %v4856, 0
  %v4886 = vsel %vm4878, %v4857, 0
  %v4889 = vsel %vm4878, %v4858, 0
  %4891 = vmatprep.subr.mxu0 0.0
  %4892 = vmatpush1.msra.mxu0 %v4859
  %4893 = vmatprep.subr.mxu0 0.0
  %4894 = vmatpush1.msra.mxu0 %v4860
  %4895 = vmatprep.subr.mxu0 0.0
  %4896 = vmatpush1.msra.mxu0 %v4861
  %4897 = vmatprep.subr.mxu0 0.0
  %4898 = vmatpush1.msra.mxu0 %v4862
  %4899 = vmatprep.subr.mxu0 0.0
  %4900 = vmatpush1.msra.mxu0 %v4863
  %4901 = vmatprep.subr.mxu0 0.0
  %4902 = vmatpush1.msra.mxu0 %v4864
  %4903 = vmatprep.subr.mxu0 0.0
  %4904 = vmatpush1.msra.mxu0 %v4865
  %4905 = vmatprep.subr.mxu0 0.0
  %4906 = vmatpush1.msra.mxu0 %v4866
  %4907 = vmatprep.subr.mxu0 0.0
  %4908 = vmatpush1.msra.mxu0 %v4867
  %4909 = vmatprep.subr.mxu0 0.0
  %4910 = vmatpush1.msra.mxu0 %v4868
  %4911 = vmatprep.subr.mxu0 0.0
  %4912 = vmatpush1.msra.mxu0 %v4869
  %4913 = vmatprep.subr.mxu0 0.0
  %4914 = vmatpush1.msra.mxu0 %v4870
  %4915 = vmatprep.subr.mxu0 0.0
  %4916 = vmatpush1.msra.mxu0 0.0
  %4917 = vmatprep.subr.mxu0 0.0
  %4918 = vmatpush1.msra.mxu0 0.0
  %4919 = vmatprep.subr.mxu0 0.0
  %4920 = vmatpush1.msra.mxu0 0.0
  %4921 = vmatprep.subr.mxu0 0.0
  %4922 = vmatpush1.msra.mxu0 0.0
  %4923 = vmatprep.subr.mxu0 0.0
  %4924 = vmatpush1.msra.mxu0 0.0
  %4925 = vmatprep.subr.mxu0 0.0
  %4926 = vmatpush1.msra.mxu0 0.0
  %4927 = vmatprep.subr.mxu0 0.0
  %4928 = vmatpush1.msra.mxu0 0.0
  %4929 = vmatprep.subr.mxu0 0.0
  %4930 = vmatpush1.msra.mxu0 0.0
  %4931 = vmatprep.subr.mxu0 0.0
  %4932 = vmatpush1.msra.mxu0 0.0
  %4933 = vmatprep.subr.mxu0 0.0
  %4934 = vmatpush1.msra.mxu0 0.0
  %4935 = vmatprep.subr.mxu0 0.0
  %4936 = vmatpush1.msra.mxu0 0.0
  %4937 = vmatprep.subr.mxu0 0.0
  %4938 = vmatpush1.msra.mxu0 0.0
  %4939 = vmatprep.subr.mxu0 0.0
  %4940 = vmatpush1.msra.mxu0 0.0
  %4941 = vmatprep.subr.mxu0 0.0
  %4942 = vmatpush1.msra.mxu0 0.0
  %4943 = vmatprep.subr.mxu0 0.0
  %4944 = vmatpush1.msra.mxu0 0.0
  %4945 = vmatprep.subr.mxu0 0.0
  %4946 = vmatpush1.msra.mxu0 0.0
  %4947 = vmatprep.subr.mxu0 0.0
  %4948 = vmatpush1.msra.mxu0 0.0
  %4949 = vmatprep.subr.mxu0 0.0
  %4950 = vmatpush1.msra.mxu0 0.0
  %4951 = vmatprep.subr.mxu0 0.0
  %4952 = vmatpush1.msra.mxu0 0.0
  %4953 = vmatprep.subr.mxu0 0.0
  %4954 = vmatpush1.msra.mxu0 0.0
  %4955 = vmatprep.mubr.f32.mxu0 0.0
  %4956 = vmatmul.mubr.f32.gmra.mrb[0].mxu0 %v4880
  %v4957 = vpop.f32.mrb[0].mxu0
  %v4958 = vadd.f32 %v4876, %v4957
  %v4959 = vpop.f32.mrb[0].mxu0
  %4960 = vmatprep.mubr.f32.mxu0 0.0
  %4961 = vmatmul.mubr.f32.gmra.mrb[0].mxu0 %v4883
  %v4962 = vpop.f32.mrb[0].mxu0
  %v4963 = vadd.f32 %v4876, %v4962
  %v4964 = vpop.f32.mrb[0].mxu0
  %4965 = vmatprep.mubr.f32.mxu0 0.0
  %4966 = vmatmul.mubr.f32.gmra.mrb[0].mxu0 %v4886
  %v4967 = vpop.f32.mrb[0].mxu0
  %v4968 = vadd.f32 %v4876, %v4967
  %v4969 = vpop.f32.mrb[0].mxu0
  %4970 = vmatprep.mubr.f32.mxu0 0.0
  %4971 = vmatmul.mubr.f32.gmra.mrb[0].mxu0 %v4889
  %v4972 = vpop.f32.mrb[0].mxu0
  %v4973 = vadd.f32 %v4876, %v4972
  %v4974 = vpop.f32.mrb[0].mxu0
  %4975 = vdwg.mxu0
  %v4976 = vld [vmem:[%s41] sm:$0x1]
  %v4978 = vlaneseq
  %v4979 = vshrl.u32 %v4978, 7
  %v4980 = vsub.s32 0, %v4979
  %v4981 = vrot.slane %v4976, %v4980
  %v4983 = vmul.f32 %v4958, %v4981
  %v4984 = vmul.f32 %v4963, %v4981
  %v4985 = vmul.f32 %v4968, %v4981
  %v4986 = vmul.f32 %v4973, %v4981
  %v4987 = vld [vmem:[%s43] sm:$0x1]
  %v4989 = vlaneseq
  %v4990 = vshrl.u32 %v4989, 7
  %v4991 = vsub.s32 0, %v4990
  %v4992 = vrot.slane %v4987, %v4991
  %v4994 = vadd.f32 %v4983, %v4992
  %v4995 = vadd.f32 %v4984, %v4992
  %v4996 = vadd.f32 %v4985, %v4992
  %v4997 = vadd.f32 %v4986, %v4992
  %v4998 = vmul.f32 %v4994, %v4994
  %v4999 = vmul.f32 %v4995, %v4995
  %v5000 = vmul.f32 %v4996, %v4996
  %v5001 = vmul.f32 %v4997, %v4997
  %v5002 = vmul.f32 %v4994, %v4998
  %v5003 = vmul.f32 %v4995, %v4999
  %v5004 = vmul.f32 %v4996, %v5000
  %v5005 = vmul.f32 %v4997, %v5001
  %v5006 = vmul.f32 %v5002, 0.044715
  %v5007 = vmul.f32 %v5003, 0.044715
  %v5008 = vmul.f32 %v5004, 0.044715
  %v5009 = vmul.f32 %v5005, 0.044715
  %v5010 = vadd.f32 %v4994, %v5006
  %v5011 = vadd.f32 %v4995, %v5007
  %v5012 = vadd.f32 %v4996, %v5008
  %v5013 = vadd.f32 %v4997, %v5009
  %v5014 = vmul.f32 %v5010, 0.7978846
  %v5015 = vmul.f32 %v5011, 0.7978846
  %v5016 = vmul.f32 %v5012, 0.7978846
  %v5017 = vmul.f32 %v5013, 0.7978846
  %v5018 = vtanh.pop %v5014
  %v5019 = vtanh.pop %v5015
  %v5020 = vtanh.pop %v5016
  %v5021 = vtanh.pop %v5017
  %v5022 = vadd.f32 %v5018, 1.0
  %v5023 = vadd.f32 %v5019, 1.0
  %v5024 = vadd.f32 %v5020, 1.0
  %v5025 = vadd.f32 %v5021, 1.0
  %v5026 = vmul.f32 %v5022, 0.5
  %v5027 = vmul.f32 %v5023, 0.5
  %v5028 = vmul.f32 %v5024, 0.5
  %v5029 = vmul.f32 %v5025, 0.5
  %v5030 = vmul.f32 %v4994, %v5026
  %v5031 = vmul.f32 %v4995, %v5027
  %v5032 = vmul.f32 %v4996, %v5028
  %v5033 = vmul.f32 %v4997, %v5029
  %v5038 = vrot.slane %v5030, 7
  %v5039 = vrot.slane %v5031, 7
  %v5040 = vsel %vm4789, %v5038, %v5039
  %v5041 = vrot.slane %v5032, 7
  %v5042 = vsel %vm4789, %v5039, %v5041
  %v5043 = vrot.slane %v5033, 7
  %v5044 = vsel %vm4789, %v5041, %v5043
  %v5049 = vsel %vm4789, 0.0, %v5038
  %v5050 = vsel %vm4777, %v5049, 0.0
  %v5051 = vsel %vm4778, %v5040, 0.0
  %v5052 = vsel %vm4779, %v5042, 0.0
  %v5053 = vsel %vm4780, %v5044, 0.0
  %v5054 = vrot.slane %v5030, 1
  %v5055 = vrot.slane %v5031, 1
  %v5056 = vsel %vm4806, %v5054, %v5055
  %v5057 = vrot.slane %v5032, 1
  %v5058 = vsel %vm4806, %v5055, %v5057
  %v5059 = vrot.slane %v5033, 1
  %v5060 = vsel %vm4806, %v5057, %v5059
  %v5065 = vsel %vm4806, %v5059, 0.0
  %v5066 = vsel %vm4781, %v5056, 0.0
  %v5067 = vsel %vm4782, %v5058, 0.0
  %v5068 = vsel %vm4783, %v5060, 0.0
  %v5069 = vsel %vm4784, %v5065, 0.0
  %5070 = vrot.lane.b32.xlu0 %v5030, 32
  %v5071 = vpop.permute.xlu0 %5070
  %5072 = vrot.lane.b32.xlu0 %v5031, 32
  %v5073 = vpop.permute.xlu0 %5072
  %5074 = vrot.lane.b32.xlu0 %v5032, 32
  %v5075 = vpop.permute.xlu0 %5074
  %5076 = vrot.lane.b32.xlu0 %v5033, 32
  %v5077 = vpop.permute.xlu0 %5076
  %5086 = vrot.lane.b32.xlu0 %v5066, 64
  %v5087 = vpop.permute.xlu0 %5086
  %5088 = vrot.lane.b32.xlu0 %v5067, 64
  %v5089 = vpop.permute.xlu0 %5088
  %5090 = vrot.lane.b32.xlu0 %v5068, 64
  %v5091 = vpop.permute.xlu0 %5090
  %5092 = vrot.lane.b32.xlu0 %v5069, 64
  %v5093 = vpop.permute.xlu0 %5092
  %v5098 = vsel %vm270, %v5050, %v5071
  %v5099 = vsel %vm270, %v5051, %v5073
  %v5100 = vsel %vm270, %v5052, %v5075
  %v5101 = vsel %vm270, %v5053, %v5077
  %v5102 = vsel %vm2336, %v5098, %v5087
  %v5103 = vsel %vm2336, %v5099, %v5089
  %v5104 = vsel %vm2336, %v5100, %v5091
  %v5105 = vsel %vm2336, %v5101, %v5093
  %v5106 = vld [vmem:[%s45] sm:$0xff]
  %v5107 = vld [vmem:[%s45 + $0x8] sm:$0xff]
  %v5108 = vld [vmem:[%s45 + $0x10] sm:$0xff]
  %v5109 = vld [vmem:[%s45 + $0x18] sm:$0xff]
  %v5110 = vld [vmem:[%s45 + $0x20] sm:$0xff]
  %v5111 = vld [vmem:[%s45 + $0x28] sm:$0xff]
  %v5112 = vld [vmem:[%s45 + $0x30] sm:$0xff]
  %v5113 = vld [vmem:[%s45 + $0x38] sm:$0xff]
  %v5114 = vld [vmem:[%s45 + $0x40] sm:$0xff]
  %v5115 = vld [vmem:[%s45 + $0x48] sm:$0xff]
  %v5116 = vld [vmem:[%s45 + $0x50] sm:$0xff]
  %v5117 = vld [vmem:[%s45 + $0x58] sm:$0xff]
  %v5118 = vld [vmem:[%s47] sm:$0x1]
  %v5120 = vlaneseq
  %v5121 = vshrl.u32 %v5120, 7
  %v5122 = vsub.s32 0, %v5121
  %v5123 = vrot.slane %v5118, %v5122
  %v5126 = vsel %vm4878, %v5102, 0
  %v5129 = vsel %vm4878, %v5103, 0
  %v5132 = vsel %vm4878, %v5104, 0
  %v5135 = vsel %vm4878, %v5105, 0
  %5137 = vmatprep.subr.mxu0 0.0
  %5138 = vmatpush1.msra.mxu0 %v5106
  %5139 = vmatprep.subr.mxu0 0.0
  %5140 = vmatpush1.msra.mxu0 %v5107
  %5141 = vmatprep.subr.mxu0 0.0
  %5142 = vmatpush1.msra.mxu0 %v5108
  %5143 = vmatprep.subr.mxu0 0.0
  %5144 = vmatpush1.msra.mxu0 %v5109
  %5145 = vmatprep.subr.mxu0 0.0
  %5146 = vmatpush1.msra.mxu0 %v5110
  %5147 = vmatprep.subr.mxu0 0.0
  %5148 = vmatpush1.msra.mxu0 %v5111
  %5149 = vmatprep.subr.mxu0 0.0
  %5150 = vmatpush1.msra.mxu0 %v5112
  %5151 = vmatprep.subr.mxu0 0.0
  %5152 = vmatpush1.msra.mxu0 %v5113
  %5153 = vmatprep.subr.mxu0 0.0
  %5154 = vmatpush1.msra.mxu0 %v5114
  %5155 = vmatprep.subr.mxu0 0.0
  %5156 = vmatpush1.msra.mxu0 %v5115
  %5157 = vmatprep.subr.mxu0 0.0
  %5158 = vmatpush1.msra.mxu0 %v5116
  %5159 = vmatprep.subr.mxu0 0.0
  %5160 = vmatpush1.msra.mxu0 %v5117
  %5161 = vmatprep.subr.mxu0 0.0
  %5162 = vmatpush1.msra.mxu0 0.0
  %5163 = vmatprep.subr.mxu0 0.0
  %5164 = vmatpush1.msra.mxu0 0.0
  %5165 = vmatprep.subr.mxu0 0.0
  %5166 = vmatpush1.msra.mxu0 0.0
  %5167 = vmatprep.subr.mxu0 0.0
  %5168 = vmatpush1.msra.mxu0 0.0
  %5169 = vmatprep.subr.mxu0 0.0
  %5170 = vmatpush1.msra.mxu0 0.0
  %5171 = vmatprep.subr.mxu0 0.0
  %5172 = vmatpush1.msra.mxu0 0.0
  %5173 = vmatprep.subr.mxu0 0.0
  %5174 = vmatpush1.msra.mxu0 0.0
  %5175 = vmatprep.subr.mxu0 0.0
  %5176 = vmatpush1.msra.mxu0 0.0
  %5177 = vmatprep.subr.mxu0 0.0
  %5178 = vmatpush1.msra.mxu0 0.0
  %5179 = vmatprep.subr.mxu0 0.0
  %5180 = vmatpush1.msra.mxu0 0.0
  %5181 = vmatprep.subr.mxu0 0.0
  %5182 = vmatpush1.msra.mxu0 0.0
  %5183 = vmatprep.subr.mxu0 0.0
  %5184 = vmatpush1.msra.mxu0 0.0
  %5185 = vmatprep.subr.mxu0 0.0
  %5186 = vmatpush1.msra.mxu0 0.0
  %5187 = vmatprep.subr.mxu0 0.0
  %5188 = vmatpush1.msra.mxu0 0.0
  %5189 = vmatprep.subr.mxu0 0.0
  %5190 = vmatpush1.msra.mxu0 0.0
  %5191 = vmatprep.subr.mxu0 0.0
  %5192 = vmatpush1.msra.mxu0 0.0
  %5193 = vmatprep.subr.mxu0 0.0
  %5194 = vmatpush1.msra.mxu0 0.0
  %5195 = vmatprep.subr.mxu0 0.0
  %5196 = vmatpush1.msra.mxu0 0.0
  %5197 = vmatprep.subr.mxu0 0.0
  %5198 = vmatpush1.msra.mxu0 0.0
  %5199 = vmatprep.subr.mxu0 0.0
  %5200 = vmatpush1.msra.mxu0 0.0
  %5201 = vmatprep.mubr.f32.mxu0 0.0
  %5202 = vmatmul.mubr.f32.gmra.mrb[0].mxu0 %v5126
  %v5203 = vpop.f32.mrb[0].mxu0
  %v5204 = vadd.f32 %v5123, %v5203
  %v5205 = vpop.f32.mrb[0].mxu0
  %5206 = vmatprep.mubr.f32.mxu0 0.0
  %5207 = vmatmul.mubr.f32.gmra.mrb[0].mxu0 %v5129
  %v5208 = vpop.f32.mrb[0].mxu0
  %v5209 = vadd.f32 %v5123, %v5208
  %v5210 = vpop.f32.mrb[0].mxu0
  %5211 = vmatprep.mubr.f32.mxu0 0.0
  %5212 = vmatmul.mubr.f32.gmra.mrb[0].mxu0 %v5132
  %v5213 = vpop.f32.mrb[0].mxu0
  %v5214 = vadd.f32 %v5123, %v5213
  %v5215 = vpop.f32.mrb[0].mxu0
  %5216 = vmatprep.mubr.f32.mxu0 0.0
  %5217 = vmatmul.mubr.f32.gmra.mrb[0].mxu0 %v5135
  %v5218 = vpop.f32.mrb[0].mxu0
  %v5219 = vadd.f32 %v5123, %v5218
  %v5220 = vpop.f32.mrb[0].mxu0
  %5221 = vdwg.mxu0
  %v5222 = vld [vmem:[%s49] sm:$0x1]
  %v5224 = vlaneseq
  %v5225 = vshrl.u32 %v5224, 7
  %v5226 = vsub.s32 0, %v5225
  %v5227 = vrot.slane %v5222, %v5226
  %v5229 = vmul.f32 %v5204, %v5227
  %v5230 = vmul.f32 %v5209, %v5227
  %v5231 = vmul.f32 %v5214, %v5227
  %v5232 = vmul.f32 %v5219, %v5227
  %v5233 = vld [vmem:[%s51] sm:$0x1]
  %v5235 = vlaneseq
  %v5236 = vshrl.u32 %v5235, 7
  %v5237 = vsub.s32 0, %v5236
  %v5238 = vrot.slane %v5233, %v5237
  %v5240 = vadd.f32 %v5229, %v5238
  %v5241 = vadd.f32 %v5230, %v5238
  %v5242 = vadd.f32 %v5231, %v5238
  %v5243 = vadd.f32 %v5232, %v5238
  %v5244 = vmul.f32 %v5240, %v5240
  %v5245 = vmul.f32 %v5241, %v5241
  %v5246 = vmul.f32 %v5242, %v5242
  %v5247 = vmul.f32 %v5243, %v5243
  %v5248 = vmul.f32 %v5240, %v5244
  %v5249 = vmul.f32 %v5241, %v5245
  %v5250 = vmul.f32 %v5242, %v5246
  %v5251 = vmul.f32 %v5243, %v5247
  %v5252 = vmul.f32 %v5248, 0.044715
  %v5253 = vmul.f32 %v5249, 0.044715
  %v5254 = vmul.f32 %v5250, 0.044715
  %v5255 = vmul.f32 %v5251, 0.044715
  %v5256 = vadd.f32 %v5240, %v5252
  %v5257 = vadd.f32 %v5241, %v5253
  %v5258 = vadd.f32 %v5242, %v5254
  %v5259 = vadd.f32 %v5243, %v5255
  %v5260 = vmul.f32 %v5256, 0.7978846
  %v5261 = vmul.f32 %v5257, 0.7978846
  %v5262 = vmul.f32 %v5258, 0.7978846
  %v5263 = vmul.f32 %v5259, 0.7978846
  %v5264 = vtanh.pop %v5260
  %v5265 = vtanh.pop %v5261
  %v5266 = vtanh.pop %v5262
  %v5267 = vtanh.pop %v5263
  %v5268 = vadd.f32 %v5264, 1.0
  %v5269 = vadd.f32 %v5265, 1.0
  %v5270 = vadd.f32 %v5266, 1.0
  %v5271 = vadd.f32 %v5267, 1.0
  %v5272 = vmul.f32 %v5268, 0.5
  %v5273 = vmul.f32 %v5269, 0.5
  %v5274 = vmul.f32 %v5270, 0.5
  %v5275 = vmul.f32 %v5271, 0.5
  %v5276 = vmul.f32 %v5240, %v5272
  %v5277 = vmul.f32 %v5241, %v5273
  %v5278 = vmul.f32 %v5242, %v5274
  %v5279 = vmul.f32 %v5243, %v5275
  %v5280 = vsel %vm270, %v5276, 0.0
  %v5281 = vsel %vm270, %v5277, 0.0
  %v5282 = vadd.f32 %v5280, %v5281
  %v5283 = vrot.slane %v5282, 4
  %v5284 = vadd.f32 %v5282, %v5283
  %v5285 = vrot.slane %v5284, 2
  %v5286 = vadd.f32 %v5284, %v5285
  %v5287 = vrot.slane %v5286, 1
  %v5288 = vadd.f32 %v5286, %v5287
  %v5289 = vrcp.pop 16.0
  %v5290 = vmul.f32 %v5288, %v5289
  %v5291 = vsel %vm270, %v5276, -inf
  %v5292 = vsel %vm270, %v5277, -inf
  %v5293 = vmax.f32 %v5291, %v5292
  %v5294 = vrot.slane %v5293, 4
  %v5295 = vmax.f32 %v5293, %v5294
  %v5296 = vrot.slane %v5295, 2
  %v5297 = vmax.f32 %v5295, %v5296
  %v5298 = vrot.slane %v5297, 1
  %v5299 = vmax.f32 %v5297, %v5298
  %5301 = vrot.lane.b32.xlu0 %v5299, 32
  %v5302 = vpop.permute.xlu0 %5301
  %v5304 = vsel %vm270, %v5290, %v5302
  %v5305 = vsel %vm270, %v5278, 0.0
  %v5306 = vsel %vm270, %v5279, 0.0
  %v5307 = vadd.f32 %v5305, %v5306
  %v5308 = vrot.slane %v5307, 4
  %v5309 = vadd.f32 %v5307, %v5308
  %v5310 = vrot.slane %v5309, 2
  %v5311 = vadd.f32 %v5309, %v5310
  %v5312 = vrot.slane %v5311, 1
  %v5313 = vadd.f32 %v5311, %v5312
  %v5314 = vmul.f32 %v5313, %v5289
  %v5315 = vsel %vm270, %v5278, -inf
  %v5316 = vsel %vm270, %v5279, -inf
  %v5317 = vmax.f32 %v5315, %v5316
  %v5318 = vrot.slane %v5317, 4
  %v5319 = vmax.f32 %v5317, %v5318
  %v5320 = vrot.slane %v5319, 2
  %v5321 = vmax.f32 %v5319, %v5320
  %v5322 = vrot.slane %v5321, 1
  %v5323 = vmax.f32 %v5321, %v5322
  %5325 = vrot.lane.b32.xlu0 %v5323, 32
  %v5326 = vpop.permute.xlu0 %5325
  %v5328 = vsel %vm270, %v5314, %v5326
  %v5330 = vrot.slane %v5328, 7
  %v5332 = vsel %vm4789, %v5304, %v5330
  %v5333 = vld [vmem:[%s53] sm:$0xff]
  %v5334 = vld [vmem:[%s53 + $0x8] sm:$0xff]
  %v5335 = vld [vmem:[%s53 + $0x10] sm:$0xff]
  %v5336 = vld [vmem:[%s53 + $0x18] sm:$0xff]
  %v5337 = vld [vmem:[%s53 + $0x20] sm:$0xff]
  %v5338 = vld [vmem:[%s53 + $0x28] sm:$0xff]
  %v5339 = vld [vmem:[%s53 + $0x30] sm:$0xff]
  %v5340 = vld [vmem:[%s53 + $0x38] sm:$0xff]
  %v5341 = vld [vmem:[%s55] sm:$0x1]
  %v5343 = vlaneseq
  %v5344 = vshrl.u32 %v5343, 7
  %v5345 = vsub.s32 0, %v5344
  %v5346 = vrot.slane %v5341, %v5345
  %v5349 = vsel %vm2336, %v5332, 0
  %5351 = vmatprep.subr.mxu0 0.0
  %5352 = vmatpush1.msra.mxu0 %v5333
  %5353 = vmatprep.subr.mxu0 0.0
  %5354 = vmatpush1.msra.mxu0 %v5334
  %5355 = vmatprep.subr.mxu0 0.0
  %5356 = vmatpush1.msra.mxu0 %v5335
  %5357 = vmatprep.subr.mxu0 0.0
  %5358 = vmatpush1.msra.mxu0 %v5336
  %5359 = vmatprep.subr.mxu0 0.0
  %5360 = vmatpush1.msra.mxu0 %v5337
  %5361 = vmatprep.subr.mxu0 0.0
  %5362 = vmatpush1.msra.mxu0 %v5338
  %5363 = vmatprep.subr.mxu0 0.0
  %5364 = vmatpush1.msra.mxu0 %v5339
  %5365 = vmatprep.subr.mxu0 0.0
  %5366 = vmatpush1.msra.mxu0 %v5340
  %5367 = vmatprep.subr.mxu0 0.0
  %5368 = vmatpush1.msra.mxu0 0.0
  %5369 = vmatprep.subr.mxu0 0.0
  %5370 = vmatpush1.msra.mxu0 0.0
  %5371 = vmatprep.subr.mxu0 0.0
  %5372 = vmatpush1.msra.mxu0 0.0
  %5373 = vmatprep.subr.mxu0 0.0
  %5374 = vmatpush1.msra.mxu0 0.0
  %5375 = vmatprep.subr.mxu0 0.0
  %5376 = vmatpush1.msra.mxu0 0.0
  %5377 = vmatprep.subr.mxu0 0.0
  %5378 = vmatpush1.msra.mxu0 0.0
  %5379 = vmatprep.subr.mxu0 0.0
  %5380 = vmatpush1.msra.mxu0 0.0
  %5381 = vmatprep.subr.mxu0 0.0
  %5382 = vmatpush1.msra.mxu0 0.0
  %5383 = vmatprep.subr.mxu0 0.0
  %5384 = vmatpush1.msra.mxu0 0.0
  %5385 = vmatprep.subr.mxu0 0.0
  %5386 = vmatpush1.msra.mxu0 0.0
  %5387 = vmatprep.subr.mxu0 0.0
  %5388 = vmatpush1.msra.mxu0 0.0
  %5389 = vmatprep.subr.mxu0 0.0
  %5390 = vmatpush1.msra.mxu0 0.0
  %5391 = vmatprep.subr.mxu0 0.0
  %5392 = vmatpush1.msra.mxu0 0.0
  %5393 = vmatprep.subr.mxu0 0.0
  %5394 = vmatpush1.msra.mxu0 0.0
  %5395 = vmatprep.subr.mxu0 0.0
  %5396 = vmatpush1.msra.mxu0 0.0
  %5397 = vmatprep.subr.mxu0 0.0
  %5398 = vmatpush1.msra.mxu0 0.0
  %5399 = vmatprep.subr.mxu0 0.0
  %5400 = vmatpush1.msra.mxu0 0.0
  %5401 = vmatprep.subr.mxu0 0.0
  %5402 = vmatpush1.msra.mxu0 0.0
  %5403 = vmatprep.subr.mxu0 0.0
  %5404 = vmatpush1.msra.mxu0 0.0
  %5405 = vmatprep.subr.mxu0 0.0
  %5406 = vmatpush1.msra.mxu0 0.0
  %5407 = vmatprep.subr.mxu0 0.0
  %5408 = vmatpush1.msra.mxu0 0.0
  %5409 = vmatprep.subr.mxu0 0.0
  %5410 = vmatpush1.msra.mxu0 0.0
  %5411 = vmatprep.subr.mxu0 0.0
  %5412 = vmatpush1.msra.mxu0 0.0
  %5413 = vmatprep.subr.mxu0 0.0
  %5414 = vmatpush1.msra.mxu0 0.0
  %5415 = vmatprep.mubr.f32.mxu0 0.0
  %5416 = vmatmul.mubr.f32.gmra.mrb[0].mxu0 %v5349
  %v5417 = vpop.f32.mrb[0].mxu0
  %v5418 = vadd.f32 %v5346, %v5417
  %v5419 = vpop.f32.mrb[0].mxu0
  %5420 = vdwg.mxu0
  %v5421 = vld [vmem:[%s57] sm:$0x1]
  %v5423 = vlaneseq
  %v5424 = vshrl.u32 %v5423, 7
  %v5425 = vsub.s32 0, %v5424
  %v5426 = vrot.slane %v5421, %v5425
  %v5428 = vmul.f32 %v5418, %v5426
  %v5429 = vld [vmem:[%s59] sm:$0x1]
  %v5431 = vlaneseq
  %v5432 = vshrl.u32 %v5431, 7
  %v5433 = vsub.s32 0, %v5432
  %v5434 = vrot.slane %v5429, %v5433
  %v5436 = vadd.f32 %v5428, %v5434
  %v5437 = vmul.f32 %v5436, %v5436
  %v5438 = vmul.f32 %v5436, %v5437
  %v5439 = vmul.f32 %v5438, 0.044715
  %v5440 = vadd.f32 %v5436, %v5439
  %v5441 = vmul.f32 %v5440, 0.7978846
  %v5442 = vtanh.pop %v5441
  %v5443 = vadd.f32 %v5442, 1.0
  %v5444 = vmul.f32 %v5443, 0.5
  %v5445 = vmul.f32 %v5436, %v5444
  %v5446 = vld [vmem:[%s61] sm:$0xff]
  %v5447 = vld [vmem:[%s61 + $0x8] sm:$0xff]
  %v5448 = vld [vmem:[%s61 + $0x10] sm:$0xff]
  %v5449 = vld [vmem:[%s61 + $0x18] sm:$0xff]
  %v5450 = vld [vmem:[%s63] sm:$0x1]
  %v5452 = vlaneseq
  %v5453 = vshrl.u32 %v5452, 7
  %v5454 = vsub.s32 0, %v5453
  %v5455 = vrot.slane %v5450, %v5454
  %v5458 = vsel %vm270, %v5445, 0
  %5460 = vmatprep.subr.mxu0 0.0
  %5461 = vmatpush1.msra.mxu0 %v5446
  %5462 = vmatprep.subr.mxu0 0.0
  %5463 = vmatpush1.msra.mxu0 %v5447
  %5464 = vmatprep.subr.mxu0 0.0
  %5465 = vmatpush1.msra.mxu0 %v5448
  %5466 = vmatprep.subr.mxu0 0.0
  %5467 = vmatpush1.msra.mxu0 %v5449
  %5468 = vmatprep.subr.mxu0 0.0
  %5469 = vmatpush1.msra.mxu0 0.0
  %5470 = vmatprep.subr.mxu0 0.0
  %5471 = vmatpush1.msra.mxu0 0.0
  %5472 = vmatprep.subr.mxu0 0.0
  %5473 = vmatpush1.msra.mxu0 0.0
  %5474 = vmatprep.subr.mxu0 0.0
  %5475 = vmatpush1.msra.mxu0 0.0
  %5476 = vmatprep.subr.mxu0 0.0
  %5477 = vmatpush1.msra.mxu0 0.0
  %5478 = vmatprep.subr.mxu0 0.0
  %5479 = vmatpush1.msra.mxu0 0.0
  %5480 = vmatprep.subr.mxu0 0.0
  %5481 = vmatpush1.msra.mxu0 0.0
  %5482 = vmatprep.subr.mxu0 0.0
  %5483 = vmatpush1.msra.mxu0 0.0
  %5484 = vmatprep.subr.mxu0 0.0
  %5485 = vmatpush1.msra.mxu0 0.0
  %5486 = vmatprep.subr.mxu0 0.0
  %5487 = vmatpush1.msra.mxu0 0.0
  %5488 = vmatprep.subr.mxu0 0.0
  %5489 = vmatpush1.msra.mxu0 0.0
  %5490 = vmatprep.subr.mxu0 0.0
  %5491 = vmatpush1.msra.mxu0 0.0
  %5492 = vmatprep.subr.mxu0 0.0
  %5493 = vmatpush1.msra.mxu0 0.0
  %5494 = vmatprep.subr.mxu0 0.0
  %5495 = vmatpush1.msra.mxu0 0.0
  %5496 = vmatprep.subr.mxu0 0.0
  %5497 = vmatpush1.msra.mxu0 0.0
  %5498 = vmatprep.subr.mxu0 0.0
  %5499 = vmatpush1.msra.mxu0 0.0
  %5500 = vmatprep.subr.mxu0 0.0
  %5501 = vmatpush1.msra.mxu0 0.0
  %5502 = vmatprep.subr.mxu0 0.0
  %5503 = vmatpush1.msra.mxu0 0.0
  %5504 = vmatprep.subr.mxu0 0.0
  %5505 = vmatpush1.msra.mxu0 0.0
  %5506 = vmatprep.subr.mxu0 0.0
  %5507 = vmatpush1.msra.mxu0 0.0
  %5508 = vmatprep.subr.mxu0 0.0
  %5509 = vmatpush1.msra.mxu0 0.0
  %5510 = vmatprep.subr.mxu0 0.0
  %5511 = vmatpush1.msra.mxu0 0.0
  %5512 = vmatprep.subr.mxu0 0.0
  %5513 = vmatpush1.msra.mxu0 0.0
  %5514 = vmatprep.subr.mxu0 0.0
  %5515 = vmatpush1.msra.mxu0 0.0
  %5516 = vmatprep.subr.mxu0 0.0
  %5517 = vmatpush1.msra.mxu0 0.0
  %5518 = vmatprep.subr.mxu0 0.0
  %5519 = vmatpush1.msra.mxu0 0.0
  %5520 = vmatprep.subr.mxu0 0.0
  %5521 = vmatpush1.msra.mxu0 0.0
  %5522 = vmatprep.subr.mxu0 0.0
  %5523 = vmatpush1.msra.mxu0 0.0
  %5524 = vmatprep.mubr.f32.mxu0 0.0
  %5525 = vmatmul.mubr.f32.gmra.mrb[0].mxu0 %v5458
  %v5526 = vpop.f32.mrb[0].mxu0
  %v5527 = vadd.f32 %v5455, %v5526
  %v5528 = vpop.f32.mrb[0].mxu0
  %5529 = vdwg.mxu0
  %5530 = vst [vmem:[%s65] sm:$0xff] 0.0
  %vm5531 = vcmask 33792
  %5532 = vst.msk [vmem:[%s65] sm:$0x3] %vm5531, %v5527
  // Predicated region
  $region130: #{forward.1} parent=0 // pred_check
    _
  $region131: #{forward.1} parent=0 // pred_check_branch
    %5534 = sbr.rel (0) target = $region133
  $region132: #{forward.1} parent=0 // pred_region
    _
  $region133: #{forward.1} parent=0 // pred_fallthru
    _
  // Predicated region
  $region134: #{forward.1} parent=0 // pred_check
    _
  $region135: #{forward.1} parent=0 // pred_check_branch
    %5536 = sbr.rel (0) target = $region137
  $region136: #{forward.1} parent=0 // pred_region
    _
  $region137: #{forward.1} parent=0 // pred_fallthru
    _

</llo_original>
